<compile_context>
chip_gen: v7x
topology: tpu7x:2x2x1
jax: 0.10.0
libtpu: 0.0.40
codegen_flags: <defaults>
</compile_context>

<pallas_src>
import functools

import numpy as np
import jax
import jax.numpy as jnp
from jax.experimental import pallas as pl
from jax.experimental.pallas import tpu as pltpu

LATENT_DIM = 8
NUM_MODULES = 4
W_HID = 16                      # Decoder hidden width
RGB_LATENT = 15                 # rgb_latent_dim
N_FREQS = 6                     # multires
EMB_DIM = 3 + 3 * 2 * N_FREQS   # 39
EMB_BLOCKS = 16                 # 13 real 3-wide blocks + 3 zero pad -> 48 lanes
EMB_LANES = 3 * EMB_BLOCKS      # 48
TILE = 2048                     # rows per grid step (1024-4096 is the sweet spot;
                                # on v7x keep N large enough for >=2 grid steps)


def _make_kernel(offsets, latent_dim, num_modules):
    """Build the kernel as a closure over static slab row offsets."""

    def w(ref, name):
        o, r, c = offsets[name]
        return ref[o:o + r, 0:c]

    def kernel(pts_ref, w_ref, out_ref):
        f32 = jnp.float32
        relu = lambda x: jnp.maximum(x, 0.0)
        dot = lambda a, b: jnp.dot(a, b, preferred_element_type=f32)

        # single fused point stream: [xyz | latents | viewdirs]
        xyzlat = pts_ref[:, 0:3 + latent_dim]                    # [T, 3+L]
        lat = pts_ref[:, 3:3 + latent_dim]                       # [T, L]
        v = pts_ref[:, 3 + latent_dim:3 + latent_dim + 3]        # [T, 3]

        # ---- attention_network: Linear/ReLU/Linear/ReLU/Linear/Softmax --------
        h = relu(dot(xyzlat, w(w_ref, "a0w")) + w(w_ref, "a0b"))
        h = relu(dot(h, w(w_ref, "a1w")) + w(w_ref, "a1b"))
        logits = dot(h, w(w_ref, "a2w")) + w(w_ref, "a2b")       # [T, M]
        m = jnp.max(logits, axis=-1, keepdims=True)
        e = jnp.exp(logits - m)
        attn = e * pl.reciprocal(jnp.sum(e, axis=-1, keepdims=True), approx=True)

        # ---- Decoder[1] positional MLP (p2 kept as one [16,16] matmul) --------
        q = relu(dot(lat, w(w_ref, "p0w")) + w(w_ref, "p0b"))
        q = relu(dot(q, w(w_ref, "p1w")) + w(w_ref, "p1b"))
        pout = dot(q, w(w_ref, "p2w")) + w(w_ref, "p2b")         # [T, 16]
        density = pout[:, 0:1]                                   # [T, 1]
        rgb_latent = pout[:, 1:]                                 # [T, 15]

        # ---- fused directional positional encoding ----------------------------
        # repf replicates v into 13 lane blocks, pre-scaled by 2^k; a single sin
        # covers every sin/cos block (cos via sin(x+pi/2)); the identity block is
        # restored with a mask blend.  Pad blocks carry zero weights.
        vs = dot(v, w(w_ref, "repf"))                            # [T, 48]
        ph = w(w_ref, "phase")                                   # [1, 48]
        idm = w(w_ref, "idmask")                                 # [1, 48]
        emb = idm * vs + (1.0 - idm) * jnp.sin(vs + ph)          # [T, 48]

        # ---- Decoder[1] directional MLP ----------------------------------------
        z = (dot(rgb_latent, w(w_ref, "d0w_r"))
             + dot(emb, w(w_ref, "d0w_e"))
             + w(w_ref, "d0b"))
        h = relu(z)
        h = relu(dot(h, w(w_ref, "d1w")) + w(w_ref, "d1b"))
        h = relu(dot(h, w(w_ref, "d2w")) + w(w_ref, "d2b"))
        rgb = dot(h, w(w_ref, "d3w")) + w(w_ref, "d3b")          # [T, 3]

        # ---- final_output = attention[..., 1:2] * cat([density, rgb]) ----------
        # one merged [T, 4 + num_modules] output tile: [final | attention]
        a1 = attn[:, 1:2]
        out_ref[:, 0:1] = (a1 * density).astype(out_ref.dtype)
        out_ref[:, 1:4] = (a1 * rgb).astype(out_ref.dtype)
        out_ref[:, 4:4 + num_modules] = attn.astype(out_ref.dtype)

    return kernel


def prior_modules_forward(p, xyz, viewdirs, latents, *, tile=TILE):
    N = xyz.shape[0]
    latent_dim = latents.shape[-1]
    num_modules = p["a2w"].shape[-1]
    d_pts = 3 + latent_dim + 3
    d_out = 4 + num_modules

    # ---- single fused point stream, padded to a multiple of the row tile -------
    pts = jnp.concatenate([xyz, latents, viewdirs], axis=-1).astype(jnp.float32)
    pad = (-N) % tile
    if pad:
        pts = jnp.pad(pts, ((0, pad), (0, 0)))
    n_pad = N + pad

    # ---- pack every weight / bias / encoding constant into one [R,128] slab ----
    d0w_r = p["d0w"][:RGB_LATENT]                                # [15, 16]
    d0w_dir = p["d0w"][RGB_LATENT:]                              # [39, 16]
    d0w_e = jnp.pad(d0w_dir, ((0, EMB_LANES - EMB_DIM), (0, 0))) # [48, 16]

    repf = np.zeros((3, EMB_LANES), np.float32)
    phase = np.zeros((1, EMB_LANES), np.float32)
    idmask = np.zeros((1, EMB_LANES), np.float32)
    for i in range(3):
        repf[i, i] = 1.0                                         # identity block
    idmask[0, 0:3] = 1.0
    for k in range(N_FREQS):
        f = float(2 ** k)
        s0, c0 = 3 * (1 + 2 * k), 3 * (2 + 2 * k)
        for i in range(3):
            repf[i, s0 + i] = f
            repf[i, c0 + i] = f
        phase[0, c0:c0 + 3] = np.pi / 2.0                        # cos(x)=sin(x+pi/2)

    entries = [
        ("a0w", p["a0w"]), ("a0b", p["a0b"]),
        ("a1w", p["a1w"]), ("a1b", p["a1b"]),
        ("a2w", p["a2w"]), ("a2b", p["a2b"]),
        ("p0w", p["p0w"]), ("p0b", p["p0b"]),
        ("p1w", p["p1w"]), ("p1b", p["p1b"]),
        ("p2w", p["p2w"]), ("p2b", p["p2b"]),
        ("d0w_r", d0w_r), ("d0w_e", d0w_e), ("d0b", p["d0b"]),
        ("d1w", p["d1w"]), ("d1b", p["d1b"]),
        ("d2w", p["d2w"]), ("d2b", p["d2b"]),
        ("d3w", p["d3w"]), ("d3b", p["d3b"]),
        ("repf", jnp.asarray(repf)), ("phase", jnp.asarray(phase)),
        ("idmask", jnp.asarray(idmask)),
    ]
    blocks, offsets, row = [], {}, 0
    for name, a in entries:
        a = jnp.asarray(a, jnp.float32)
        r, c = a.shape
        rp = (-r) % 8                                            # sublane-aligned starts
        blocks.append(jnp.pad(a, ((0, rp), (0, 128 - c))))
        offsets[name] = (row, r, c)
        row += r + rp
    slab = jnp.concatenate(blocks, axis=0)                       # [~336, 128] ≈ 170 KiB

    kernel = _make_kernel(offsets, latent_dim, num_modules)

    grid_spec = pltpu.PrefetchScalarGridSpec(
        num_scalar_prefetch=0,
        grid=(n_pad // tile,),
        in_specs=[
            pl.BlockSpec((tile, d_pts), lambda i: (i, 0)),       # streamed points
            pl.BlockSpec(slab.shape, lambda i: (0, 0)),          # constant slab (DMA'd once)
        ],
        out_specs=pl.BlockSpec((tile, d_out), lambda i: (i, 0)),
    )
    out = pl.pallas_call(
        kernel,
        grid_spec=grid_spec,
        out_shape=jax.ShapeDtypeStruct((n_pad, d_out), jnp.float32),
        compiler_params=pltpu.CompilerParams(dimension_semantics=("parallel",)),
    )(pts, slab)
    return out[:N, :4], out[:N, 4:]


# ----------------------------- parameter init --------------------------------
def init_params(key, latent_dim, num_modules):
    layer_dims = [
        ("a0", latent_dim + 3, 32), ("a1", 32, 32), ("a2", 32, num_modules),
        ("p0", latent_dim, W_HID), ("p1", W_HID, W_HID), ("p2", W_HID, 1 + RGB_LATENT),
        ("d0", RGB_LATENT + EMB_DIM, W_HID), ("d1", W_HID, W_HID),
        ("d2", W_HID, W_HID), ("d3", W_HID, 3),
    ]
    params = {}
    keys = jax.random.split(key, len(layer_dims))
    for k, (name, din, dout) in zip(keys, layer_dims):
        kw, kb = jax.random.split(k)
        bound = 1.0 / (din ** 0.5)          # torch.nn.Linear default uniform init
        params[name + "w"] = jax.random.uniform(kw, (din, dout), jnp.float32, -bound, bound)
        params[name + "b"] = jax.random.uniform(kb, (1, dout), jnp.float32, -bound, bound)
    return params


# --------------------------- pure-JAX reference ------------------------------
def reference_forward(p, xyz, viewdirs, latents):
    relu = jax.nn.relu
    x = jnp.concatenate([xyz, latents], axis=-1)
    h = relu(x @ p["a0w"] + p["a0b"])
    h = relu(h @ p["a1w"] + p["a1b"])
    attn = jax.nn.softmax(h @ p["a2w"] + p["a2b"], axis=-1)

    q = relu(latents @ p["p0w"] + p["p0b"])
    q = relu(q @ p["p1w"] + p["p1b"])
    pos_out = q @ p["p2w"] + p["p2b"]
    density, rgb_latent = pos_out[:, :1], pos_out[:, 1:]

    embs = [viewdirs]
    for k in range(N_FREQS):
        embs.append(jnp.sin(viewdirs * (2.0 ** k)))
        embs.append(jnp.cos(viewdirs * (2.0 ** k)))
    feat = jnp.concatenate([rgb_latent] + embs, axis=-1)
    h = relu(feat @ p["d0w"] + p["d0b"])
    h = relu(h @ p["d1w"] + p["d1b"])
    h = relu(h @ p["d2w"] + p["d2b"])
    rgb = h @ p["d3w"] + p["d3b"]

    final = attn[:, 1:2] * jnp.concatenate([density, rgb], axis=-1)
    return final, attn


if __name__ == "__main__":
    key = jax.random.PRNGKey(0)
    kx, kv, kl, kp = jax.random.split(key, 4)
    N = 1000                                    # deliberately NOT a multiple of the tile
    xyz = jax.random.normal(kx, (N, 3), jnp.float32)
    viewdirs = jax.random.normal(kv, (N, 3), jnp.float32)
    viewdirs = viewdirs / jnp.linalg.norm(viewdirs, axis=-1, keepdims=True)
    latents = jax.random.normal(kl, (N, LATENT_DIM), jnp.float32)

    params = init_params(kp, LATENT_DIM, NUM_MODULES)

    # small tile for the test so padding (1000 -> 1024) and multiple grid steps are
    # exercised; production default is TILE=2048.
    fwd = jax.jit(functools.partial(prior_modules_forward, tile=256))
    final_k, attn_k = fwd(params, xyz, viewdirs, latents)
    jax.block_until_ready((final_k, attn_k))

    final_r, attn_r = reference_forward(params, xyz, viewdirs, latents)
    assert final_k.shape == (N, 4) and attn_k.shape == (N, NUM_MODULES)
    assert jnp.allclose(attn_k, attn_r, rtol=5e-3, atol=5e-3)
    assert jnp.allclose(final_k, final_r, rtol=5e-3, atol=5e-3)
    print("KERNEL_OK")
</pallas_src>

<mosaic_0001>
module attributes {stable_mosaic.version = 11 : i64} {
  func.func @kernel(%arg0: i32, %arg1: memref<256x14xf32, #tpu.memory_space<vmem>>, %arg2: memref<336x128xf32, #tpu.memory_space<vmem>>, %arg3: memref<256x8xf32, #tpu.memory_space<vmem>>) attributes {dimension_semantics = [#tpu.dimension_semantics<parallel>], iteration_bounds = array<i64: 4>, scalar_prefetch = 0 : i64, scratch_operands = 0 : i64, tpu.core_type = #tpu.core_type<tc>, window_params = [{transform_indices = @transform_0, window_bounds = array<i64: 256, 14>}, {pipeline_mode = #tpu.pipeline_mode<synchronous>, transform_indices = @transform_1, window_bounds = array<i64: 336, 128>}, {transform_indices = @transform_2, window_bounds = array<i64: 256, 8>}]} {
    %c0 = arith.constant 0 : index
    %c0_0 = arith.constant 0 : index
    %0 = vector.load %arg1[%c0, %c0_0] : memref<256x14xf32, #tpu.memory_space<vmem>>, vector<256x11xf32>
    %c0_1 = arith.constant 0 : index
    %c3 = arith.constant 3 : index
    %1 = vector.load %arg1[%c0_1, %c3] : memref<256x14xf32, #tpu.memory_space<vmem>>, vector<256x8xf32>
    %c0_2 = arith.constant 0 : index
    %c11 = arith.constant 11 : index
    %2 = vector.load %arg1[%c0_2, %c11] : memref<256x14xf32, #tpu.memory_space<vmem>>, vector<256x3xf32>
    %c0_3 = arith.constant 0 : index
    %c0_4 = arith.constant 0 : index
    %3 = vector.load %arg2[%c0_3, %c0_4] : memref<336x128xf32, #tpu.memory_space<vmem>>, vector<11x32xf32>
    %cst = arith.constant dense<0.000000e+00> : vector<256x32xf32>
    %4 = tpu.matmul %0, %3, %cst {dimension_numbers = #tpu.dot_dimension_numbers<[1], [0], [0], [1], [0, 0, 1, 1], [], []>} : vector<256x11xf32>, vector<11x32xf32>, vector<256x32xf32> -> vector<256x32xf32>
    %c16 = arith.constant 16 : index
    %c0_5 = arith.constant 0 : index
    %5 = vector.load %arg2[%c16, %c0_5] : memref<336x128xf32, #tpu.memory_space<vmem>>, vector<1x32xf32>
    %6 = vector.broadcast %5 : vector<1x32xf32> to vector<256x32xf32>
    %7 = arith.addf %4, %6 : vector<256x32xf32>
    %cst_6 = arith.constant 0.000000e+00 : f32
    %8 = vector.broadcast %cst_6 : f32 to vector<256x32xf32>
    %9 = arith.maximumf %7, %8 : vector<256x32xf32>
    %c24 = arith.constant 24 : index
    %c0_7 = arith.constant 0 : index
    %10 = vector.load %arg2[%c24, %c0_7] : memref<336x128xf32, #tpu.memory_space<vmem>>, vector<32x32xf32>
    %cst_8 = arith.constant dense<0.000000e+00> : vector<256x32xf32>
    %11 = tpu.matmul %9, %10, %cst_8 {dimension_numbers = #tpu.dot_dimension_numbers<[1], [0], [0], [1], [0, 0, 1, 1], [], []>} : vector<256x32xf32>, vector<32x32xf32>, vector<256x32xf32> -> vector<256x32xf32>
    %c56 = arith.constant 56 : index
    %c0_9 = arith.constant 0 : index
    %12 = vector.load %arg2[%c56, %c0_9] : memref<336x128xf32, #tpu.memory_space<vmem>>, vector<1x32xf32>
    %13 = vector.broadcast %12 : vector<1x32xf32> to vector<256x32xf32>
    %14 = arith.addf %11, %13 : vector<256x32xf32>
    %cst_10 = arith.constant 0.000000e+00 : f32
    %15 = vector.broadcast %cst_10 : f32 to vector<256x32xf32>
    %16 = arith.maximumf %14, %15 : vector<256x32xf32>
    %c64 = arith.constant 64 : index
    %c0_11 = arith.constant 0 : index
    %17 = vector.load %arg2[%c64, %c0_11] : memref<336x128xf32, #tpu.memory_space<vmem>>, vector<32x4xf32>
    %cst_12 = arith.constant dense<0.000000e+00> : vector<256x4xf32>
    %18 = tpu.matmul %16, %17, %cst_12 {dimension_numbers = #tpu.dot_dimension_numbers<[1], [0], [0], [1], [0, 0, 1, 1], [], []>} : vector<256x32xf32>, vector<32x4xf32>, vector<256x4xf32> -> vector<256x4xf32>
    %c96 = arith.constant 96 : index
    %c0_13 = arith.constant 0 : index
    %19 = vector.load %arg2[%c96, %c0_13] : memref<336x128xf32, #tpu.memory_space<vmem>>, vector<1x4xf32>
    %20 = vector.broadcast %19 : vector<1x4xf32> to vector<256x4xf32>
    %21 = arith.addf %18, %20 : vector<256x4xf32>
    %cst_14 = arith.constant dense<0xFF800000> : vector<256xf32>
    %22 = vector.multi_reduction <maximumf>, %21, %cst_14 [1] : vector<256x4xf32> to vector<256xf32>
    %23 = vector.shape_cast %22 : vector<256xf32> to vector<256x1xf32>
    %24 = vector.broadcast %23 : vector<256x1xf32> to vector<256x4xf32>
    %25 = arith.subf %21, %24 : vector<256x4xf32>
    %26 = math.exp %25 : vector<256x4xf32>
    %cst_15 = arith.constant dense<0.000000e+00> : vector<256xf32>
    %27 = vector.multi_reduction <add>, %26, %cst_15 [1] : vector<256x4xf32> to vector<256xf32>
    %28 = vector.shape_cast %27 : vector<256xf32> to vector<256x1xf32>
    %29 = tpu.reciprocal %28 {approx = true} : vector<256x1xf32> -> vector<256x1xf32>
    %30 = vector.broadcast %29 : vector<256x1xf32> to vector<256x4xf32>
    %31 = arith.mulf %26, %30 : vector<256x4xf32>
    %c104 = arith.constant 104 : index
    %c0_16 = arith.constant 0 : index
    %32 = vector.load %arg2[%c104, %c0_16] : memref<336x128xf32, #tpu.memory_space<vmem>>, vector<8x16xf32>
    %cst_17 = arith.constant dense<0.000000e+00> : vector<256x16xf32>
    %33 = tpu.matmul %1, %32, %cst_17 {dimension_numbers = #tpu.dot_dimension_numbers<[1], [0], [0], [1], [0, 0, 1, 1], [], []>} : vector<256x8xf32>, vector<8x16xf32>, vector<256x16xf32> -> vector<256x16xf32>
    %c112 = arith.constant 112 : index
    %c0_18 = arith.constant 0 : index
    %34 = vector.load %arg2[%c112, %c0_18] : memref<336x128xf32, #tpu.memory_space<vmem>>, vector<1x16xf32>
    %35 = vector.broadcast %34 : vector<1x16xf32> to vector<256x16xf32>
    %36 = arith.addf %33, %35 : vector<256x16xf32>
    %cst_19 = arith.constant 0.000000e+00 : f32
    %37 = vector.broadcast %cst_19 : f32 to vector<256x16xf32>
    %38 = arith.maximumf %36, %37 : vector<256x16xf32>
    %c120 = arith.constant 120 : index
    %c0_20 = arith.constant 0 : index
    %39 = vector.load %arg2[%c120, %c0_20] : memref<336x128xf32, #tpu.memory_space<vmem>>, vector<16x16xf32>
    %cst_21 = arith.constant dense<0.000000e+00> : vector<256x16xf32>
    %40 = tpu.matmul %38, %39, %cst_21 {dimension_numbers = #tpu.dot_dimension_numbers<[1], [0], [0], [1], [0, 0, 1, 1], [], []>} : vector<256x16xf32>, vector<16x16xf32>, vector<256x16xf32> -> vector<256x16xf32>
    %c136 = arith.constant 136 : index
    %c0_22 = arith.constant 0 : index
    %41 = vector.load %arg2[%c136, %c0_22] : memref<336x128xf32, #tpu.memory_space<vmem>>, vector<1x16xf32>
    %42 = vector.broadcast %41 : vector<1x16xf32> to vector<256x16xf32>
    %43 = arith.addf %40, %42 : vector<256x16xf32>
    %cst_23 = arith.constant 0.000000e+00 : f32
    %44 = vector.broadcast %cst_23 : f32 to vector<256x16xf32>
    %45 = arith.maximumf %43, %44 : vector<256x16xf32>
    %c144 = arith.constant 144 : index
    %c0_24 = arith.constant 0 : index
    %46 = vector.load %arg2[%c144, %c0_24] : memref<336x128xf32, #tpu.memory_space<vmem>>, vector<16x16xf32>
    %cst_25 = arith.constant dense<0.000000e+00> : vector<256x16xf32>
    %47 = tpu.matmul %45, %46, %cst_25 {dimension_numbers = #tpu.dot_dimension_numbers<[1], [0], [0], [1], [0, 0, 1, 1], [], []>} : vector<256x16xf32>, vector<16x16xf32>, vector<256x16xf32> -> vector<256x16xf32>
    %c160 = arith.constant 160 : index
    %c0_26 = arith.constant 0 : index
    %48 = vector.load %arg2[%c160, %c0_26] : memref<336x128xf32, #tpu.memory_space<vmem>>, vector<1x16xf32>
    %49 = vector.broadcast %48 : vector<1x16xf32> to vector<256x16xf32>
    %50 = arith.addf %47, %49 : vector<256x16xf32>
    %51 = vector.extract_strided_slice %50 {offsets = [0, 0], sizes = [256, 1], strides = [1, 1]} : vector<256x16xf32> to vector<256x1xf32>
    %52 = vector.extract_strided_slice %50 {offsets = [0, 1], sizes = [256, 15], strides = [1, 1]} : vector<256x16xf32> to vector<256x15xf32>
    %c312 = arith.constant 312 : index
    %c0_27 = arith.constant 0 : index
    %53 = vector.load %arg2[%c312, %c0_27] : memref<336x128xf32, #tpu.memory_space<vmem>>, vector<3x48xf32>
    %cst_28 = arith.constant dense<0.000000e+00> : vector<256x48xf32>
    %54 = tpu.matmul %2, %53, %cst_28 {dimension_numbers = #tpu.dot_dimension_numbers<[1], [0], [0], [1], [0, 0, 1, 1], [], []>} : vector<256x3xf32>, vector<3x48xf32>, vector<256x48xf32> -> vector<256x48xf32>
    %c320 = arith.constant 320 : index
    %c0_29 = arith.constant 0 : index
    %55 = vector.load %arg2[%c320, %c0_29] : memref<336x128xf32, #tpu.memory_space<vmem>>, vector<1x48xf32>
    %c328 = arith.constant 328 : index
    %c0_30 = arith.constant 0 : index
    %56 = vector.load %arg2[%c328, %c0_30] : memref<336x128xf32, #tpu.memory_space<vmem>>, vector<1x48xf32>
    %57 = vector.broadcast %56 : vector<1x48xf32> to vector<256x48xf32>
    %58 = arith.mulf %57, %54 : vector<256x48xf32>
    %cst_31 = arith.constant 1.000000e+00 : f32
    %59 = vector.broadcast %cst_31 : f32 to vector<1x48xf32>
    %60 = arith.subf %59, %56 : vector<1x48xf32>
    %61 = vector.broadcast %55 : vector<1x48xf32> to vector<256x48xf32>
    %62 = arith.addf %54, %61 : vector<256x48xf32>
    %63 = math.sin %62 : vector<256x48xf32>
    %64 = vector.broadcast %60 : vector<1x48xf32> to vector<256x48xf32>
    %65 = arith.mulf %64, %63 : vector<256x48xf32>
    %66 = arith.addf %58, %65 : vector<256x48xf32>
    %c168 = arith.constant 168 : index
    %c0_32 = arith.constant 0 : index
    %67 = vector.load %arg2[%c168, %c0_32] : memref<336x128xf32, #tpu.memory_space<vmem>>, vector<15x16xf32>
    %cst_33 = arith.constant dense<0.000000e+00> : vector<256x16xf32>
    %68 = tpu.matmul %52, %67, %cst_33 {dimension_numbers = #tpu.dot_dimension_numbers<[1], [0], [0], [1], [0, 0, 1, 1], [], []>} : vector<256x15xf32>, vector<15x16xf32>, vector<256x16xf32> -> vector<256x16xf32>
    %c184 = arith.constant 184 : index
    %c0_34 = arith.constant 0 : index
    %69 = vector.load %arg2[%c184, %c0_34] : memref<336x128xf32, #tpu.memory_space<vmem>>, vector<48x16xf32>
    %cst_35 = arith.constant dense<0.000000e+00> : vector<256x16xf32>
    %70 = tpu.matmul %66, %69, %cst_35 {dimension_numbers = #tpu.dot_dimension_numbers<[1], [0], [0], [1], [0, 0, 1, 1], [], []>} : vector<256x48xf32>, vector<48x16xf32>, vector<256x16xf32> -> vector<256x16xf32>
    %71 = arith.addf %68, %70 : vector<256x16xf32>
    %c232 = arith.constant 232 : index
    %c0_36 = arith.constant 0 : index
    %72 = vector.load %arg2[%c232, %c0_36] : memref<336x128xf32, #tpu.memory_space<vmem>>, vector<1x16xf32>
    %73 = vector.broadcast %72 : vector<1x16xf32> to vector<256x16xf32>
    %74 = arith.addf %71, %73 : vector<256x16xf32>
    %cst_37 = arith.constant 0.000000e+00 : f32
    %75 = vector.broadcast %cst_37 : f32 to vector<256x16xf32>
    %76 = arith.maximumf %74, %75 : vector<256x16xf32>
    %c240 = arith.constant 240 : index
    %c0_38 = arith.constant 0 : index
    %77 = vector.load %arg2[%c240, %c0_38] : memref<336x128xf32, #tpu.memory_space<vmem>>, vector<16x16xf32>
    %cst_39 = arith.constant dense<0.000000e+00> : vector<256x16xf32>
    %78 = tpu.matmul %76, %77, %cst_39 {dimension_numbers = #tpu.dot_dimension_numbers<[1], [0], [0], [1], [0, 0, 1, 1], [], []>} : vector<256x16xf32>, vector<16x16xf32>, vector<256x16xf32> -> vector<256x16xf32>
    %c256 = arith.constant 256 : index
    %c0_40 = arith.constant 0 : index
    %79 = vector.load %arg2[%c256, %c0_40] : memref<336x128xf32, #tpu.memory_space<vmem>>, vector<1x16xf32>
    %80 = vector.broadcast %79 : vector<1x16xf32> to vector<256x16xf32>
    %81 = arith.addf %78, %80 : vector<256x16xf32>
    %cst_41 = arith.constant 0.000000e+00 : f32
    %82 = vector.broadcast %cst_41 : f32 to vector<256x16xf32>
    %83 = arith.maximumf %81, %82 : vector<256x16xf32>
    %c264 = arith.constant 264 : index
    %c0_42 = arith.constant 0 : index
    %84 = vector.load %arg2[%c264, %c0_42] : memref<336x128xf32, #tpu.memory_space<vmem>>, vector<16x16xf32>
    %cst_43 = arith.constant dense<0.000000e+00> : vector<256x16xf32>
    %85 = tpu.matmul %83, %84, %cst_43 {dimension_numbers = #tpu.dot_dimension_numbers<[1], [0], [0], [1], [0, 0, 1, 1], [], []>} : vector<256x16xf32>, vector<16x16xf32>, vector<256x16xf32> -> vector<256x16xf32>
    %c280 = arith.constant 280 : index
    %c0_44 = arith.constant 0 : index
    %86 = vector.load %arg2[%c280, %c0_44] : memref<336x128xf32, #tpu.memory_space<vmem>>, vector<1x16xf32>
    %87 = vector.broadcast %86 : vector<1x16xf32> to vector<256x16xf32>
    %88 = arith.addf %85, %87 : vector<256x16xf32>
    %cst_45 = arith.constant 0.000000e+00 : f32
    %89 = vector.broadcast %cst_45 : f32 to vector<256x16xf32>
    %90 = arith.maximumf %88, %89 : vector<256x16xf32>
    %c288 = arith.constant 288 : index
    %c0_46 = arith.constant 0 : index
    %91 = vector.load %arg2[%c288, %c0_46] : memref<336x128xf32, #tpu.memory_space<vmem>>, vector<16x3xf32>
    %cst_47 = arith.constant dense<0.000000e+00> : vector<256x3xf32>
    %92 = tpu.matmul %90, %91, %cst_47 {dimension_numbers = #tpu.dot_dimension_numbers<[1], [0], [0], [1], [0, 0, 1, 1], [], []>} : vector<256x16xf32>, vector<16x3xf32>, vector<256x3xf32> -> vector<256x3xf32>
    %c304 = arith.constant 304 : index
    %c0_48 = arith.constant 0 : index
    %93 = vector.load %arg2[%c304, %c0_48] : memref<336x128xf32, #tpu.memory_space<vmem>>, vector<1x3xf32>
    %94 = vector.broadcast %93 : vector<1x3xf32> to vector<256x3xf32>
    %95 = arith.addf %92, %94 : vector<256x3xf32>
    %96 = vector.extract_strided_slice %31 {offsets = [0, 1], sizes = [256, 1], strides = [1, 1]} : vector<256x4xf32> to vector<256x1xf32>
    %97 = arith.mulf %96, %51 : vector<256x1xf32>
    %c0_49 = arith.constant 0 : index
    %c0_50 = arith.constant 0 : index
    %98 = vector.load %arg3[%c0_49, %c0_50] : memref<256x8xf32, #tpu.memory_space<vmem>>, vector<256x1xf32>
    tpu.vector_store %arg3[%c0_49, %c0_50], %97 {strides = array<i32>} : memref<256x8xf32, #tpu.memory_space<vmem>>, vector<256x1xf32>,
    %99 = vector.broadcast %96 : vector<256x1xf32> to vector<256x3xf32>
    %100 = arith.mulf %99, %95 : vector<256x3xf32>
    %c0_51 = arith.constant 0 : index
    %c1 = arith.constant 1 : index
    %101 = vector.load %arg3[%c0_51, %c1] : memref<256x8xf32, #tpu.memory_space<vmem>>, vector<256x3xf32>
    tpu.vector_store %arg3[%c0_51, %c1], %100 {strides = array<i32>} : memref<256x8xf32, #tpu.memory_space<vmem>>, vector<256x3xf32>,
    %c0_52 = arith.constant 0 : index
    %c4 = arith.constant 4 : index
    %102 = vector.load %arg3[%c0_52, %c4] : memref<256x8xf32, #tpu.memory_space<vmem>>, vector<256x4xf32>
    tpu.vector_store %arg3[%c0_52, %c4], %31 {strides = array<i32>} : memref<256x8xf32, #tpu.memory_space<vmem>>, vector<256x4xf32>,
    return
  }
  func.func @transform_0(%arg0: i32) -> (i32, i32) {
    %c0_i32 = arith.constant 0 : i32
    %c0_i32_0 = arith.constant 0 : i32
    return %arg0, %c0_i32 : i32, i32
  }
  func.func @transform_1(%arg0: i32) -> (i32, i32) {
    %c0_i32 = arith.constant 0 : i32
    %c0_i32_0 = arith.constant 0 : i32
    %c0_i32_1 = arith.constant 0 : i32
    return %c0_i32, %c0_i32_0 : i32, i32
  }
  func.func @transform_2(%arg0: i32) -> (i32, i32) {
    %c0_i32 = arith.constant 0 : i32
    %c0_i32_0 = arith.constant 0 : i32
    return %arg0, %c0_i32 : i32, i32
  }
}

</mosaic_0001>

<llo_original>
// kernel: prior_modules_forward.1
$region0: #{prior_modules_forward.1}
  #allocation0 [shape = 'u32[]', space=smem, size = 0x4, offset = 0x4, fixed_abs, tag = 'smem constant byte address 0x4 - core index']
  #allocation1 [shape = 'u32[144,128]{1,0:T(1,128)}', space=vmem, size = 0x12000, scoped, tag = 'internal scratch']
  %s0 = inlined_call_operand.vmem [shape: f32[1024,14], index: 0, kind: input, shape index: {}]
  %s1 = inlined_call_operand.vmem [shape: f32[336,128], index: 1, kind: input, shape index: {}]
  %s2 = inlined_call_operand.vmem [shape: f32[1024,8], index: 2, kind: output, shape index: {}]
  %s3 = sld [smem:[#allocation0]]
  $region41: #{prior_modules_forward.1} parent=0
    _
  %s5 = ssub.s32 1, %s3
  %s6 = scalar_select 0, %s5, %s3
  loop: start=0, step=1, limit=6
  $region2: #{prior_modules_forward.1} parent=0 // loop_pre_header
    _
  $region3: #{prior_modules_forward.1} parent=0 // loop_header
    %s8 = sphi 0, %s12
    %p9 = scmp.ge.s32.totalorder %s8, 6
    %s18 = sphi 0, %s20
    %s21 = sphi 0, %s18
    %s22 = sphi 0, %s21
    %s38 = sphi 0, %s22
    %s42 = sphi 0, %s42
    %s44 = sphi 0, %s42
    %s45 = sphi 0, %s44
    %s59 = sphi 0, %s45
    %s65 = sphi 0, %s67
    %s68 = sphi 0, %s65
    %s69 = sphi 0, %s68
    %s85 = sphi 0, %s69
  $region4: #{prior_modules_forward.1} parent=0 // loop_header_branch
    %11 = sbr.rel (%p9) target = $region8
  $region5: #{prior_modules_forward.1} parent=0 // loop_body
    %s13 = ssub.s32 %s8, 1
    %s14 = ssub.s32 %s8, 2
    %s15 = sadd.s32 %s8, 1
    %s16 = ssub.s32 %s8, %s15
    %p17 = scmp.eq.s32.totalorder %s16, 0
    %s19 = sadd.s32 %s18, 1
    %s20 = scalar_select %p17, %s18, %s19
    %p23 = pneg %p17
    %p24 = scmp.eq.s32.totalorder %s8, 3
    %p25 = por %p23, %p24
    %p26 = scmp.ne.s32.totalorder %s18, %s21
    %p27 = scmp.eq.s32.totalorder %s8, 0
    %p28 = por %p26, %p27
    %p29 = scmp.ne.s32.totalorder %s18, %s21
    %p30 = scmp.eq.s32.totalorder %s13, 3
    %p31 = por %p29, %p30
    %p32 = scmp.ne.s32.totalorder %s21, %s22
    %p33 = scmp.eq.s32.totalorder %s13, 0
    %p34 = por %p32, %p33
    %p35 = scmp.ne.s32.totalorder %s21, %s22
    %p36 = scmp.eq.s32.totalorder %s14, 3
    %p37 = por %p35, %p36
    %p39 = scmp.ne.s32.totalorder %s22, %s38
    %p40 = scmp.eq.s32.totalorder %s14, 0
    %p41 = por %p39, %p40
    %s43 = sadd.s32 %s42, 1
    %p46 = scmp.eq.s32.totalorder %s8, 3
    %p47 = scmp.ne.s32.totalorder %s42, %s44
    %p48 = scmp.eq.s32.totalorder %s8, 0
    %p49 = por %p47, %p48
    %p50 = scmp.ne.s32.totalorder %s42, %s44
    %p51 = scmp.eq.s32.totalorder %s13, 3
    %p52 = por %p50, %p51
    %p53 = scmp.ne.s32.totalorder %s44, %s45
    %p54 = scmp.eq.s32.totalorder %s13, 0
    %p55 = por %p53, %p54
    %p56 = scmp.ne.s32.totalorder %s44, %s45
    %p57 = scmp.eq.s32.totalorder %s14, 3
    %p58 = por %p56, %p57
    %p60 = scmp.ne.s32.totalorder %s45, %s59
    %p61 = scmp.eq.s32.totalorder %s14, 0
    %p62 = por %p60, %p61
    %s63 = ssub.s32 %s8, %s15
    %p64 = scmp.eq.s32.totalorder %s63, 0
    %s66 = sadd.s32 %s65, 1
    %s67 = scalar_select %p64, %s65, %s66
    %p70 = pneg %p64
    %p71 = scmp.eq.s32.totalorder %s8, 3
    %p72 = por %p70, %p71
    %p73 = scmp.ne.s32.totalorder %s65, %s68
    %p74 = scmp.eq.s32.totalorder %s8, 0
    %p75 = por %p73, %p74
    %p76 = scmp.ne.s32.totalorder %s65, %s68
    %p77 = scmp.eq.s32.totalorder %s13, 3
    %p78 = por %p76, %p77
    %p79 = scmp.ne.s32.totalorder %s68, %s69
    %p80 = scmp.eq.s32.totalorder %s13, 0
    %p81 = por %p79, %p80
    %p82 = scmp.ne.s32.totalorder %s68, %s69
    %p83 = scmp.eq.s32.totalorder %s14, 3
    %p84 = por %p82, %p83
    %p86 = scmp.ne.s32.totalorder %s69, %s85
    %p87 = scmp.eq.s32.totalorder %s14, 0
    %p88 = por %p86, %p87
    %p89 = scmp.le.s32.totalorder 1, %s8
    %p90 = scmp.lt.s32.totalorder %s8, 5
    %p91 = pnand %p89, %p90
    %p92 = pneg %p91
    // Predicated region
    $region9: #{prior_modules_forward.1} parent=5 // pred_check
      _
    $region10: #{prior_modules_forward.1} parent=5 // pred_check_branch
      %94 = sbr.rel (%p91) target = $region12
    $region11: #{prior_modules_forward.1} parent=5 // pred_region
      %s95 = ssub.s32 %s8, 1
      // Predicated region
      $region13: #{prior_modules_forward.1} parent=11 // pred_check
        %p96 = pneg %p55
      $region14: #{prior_modules_forward.1} parent=11 // pred_check_branch
        %98 = sbr.rel (%p96) target = $region16
      $region15: #{prior_modules_forward.1} parent=11 // pred_region
        _
      $region16: #{prior_modules_forward.1} parent=11 // pred_fallthru
        _
    $region12: #{prior_modules_forward.1} parent=5 // pred_fallthru
      _
    %p99 = scmp.lt.s32.totalorder %s8, 4
    // Predicated region
    $region17: #{prior_modules_forward.1} parent=5 // pred_check
      %p100 = pneg %p99
    $region18: #{prior_modules_forward.1} parent=5 // pred_check_branch
      %102 = sbr.rel (%p100) target = $region20
    $region19: #{prior_modules_forward.1} parent=5 // pred_region
      // Predicated region
      $region21: #{prior_modules_forward.1} parent=19 // pred_check
        %p103 = pneg %p28
      $region22: #{prior_modules_forward.1} parent=19 // pred_check_branch
        %105 = sbr.rel (%p103) target = $region24
      $region23: #{prior_modules_forward.1} parent=19 // pred_region
        %s106 = smul.u32 32, %s8
        %p107 = scmp.lt.s32.totalorder %s106, 127
        %s108 = scalar_select %p107, %s106, 127
        %s109 = smul.addr %s108, 8
        %s110 = scalar_lea.vmem %s0, %s109
        %s111 = smul.u32 32, %s8
      $region24: #{prior_modules_forward.1} parent=19 // pred_fallthru
        _
    $region20: #{prior_modules_forward.1} parent=5 // pred_fallthru
      _
    %p112 = scmp.le.s32.totalorder 1, %s8
    %p113 = scmp.lt.s32.totalorder %s8, 5
    %p114 = pnand %p112, %p113
    %p115 = pneg %p114
    // Predicated region
    $region25: #{prior_modules_forward.1} parent=5 // pred_check
      _
    $region26: #{prior_modules_forward.1} parent=5 // pred_check_branch
      %117 = sbr.rel (%p114) target = $region28
    $region27: #{prior_modules_forward.1} parent=5 // pred_region
      %s118 = ssub.s32 %s8, 1
      %s119 = smul.u32 32, %s13
      %p120 = scmp.lt.s32.totalorder %s119, 127
      %s121 = scalar_select %p120, %s119, 127
      %s122 = smul.addr %s121, 8
      %s123 = scalar_lea.vmem %s0, %s122
      %p124 = pneg %p34
      %p125 = pneg %p31
      %p126 = pneg %p55
      %p127 = pneg %p52
      %p128 = pneg %p81
      %p129 = pneg %p78
      %s130 = smul.u32 32, %s13
      %p131 = scmp.lt.s32.totalorder %s130, 127
      %s132 = scalar_select %p131, %s130, 127
      %s133 = smul.addr %s132, 8
      %s134 = scalar_lea.vmem %s2, %s133
      %s135 = smul.u32 32, %s13
      %p136 = scmp.lt.s32.totalorder %s135, 127
      %s137 = scalar_select %p136, %s135, 127
      %s138 = smul.addr %s137, 8
      %s139 = scalar_lea.vmem %s0, %s138
      %s140 = smul.u32 32, %s13
      %s141 = smul.u32 32, %s13
      %p142 = scmp.lt.s32.totalorder %s141, 127
      %s143 = scalar_select %p142, %s141, 127
      %s144 = smul.addr %s143, 8
      %s145 = scalar_lea.vmem %s2, %s144
      %s146 = smul.u32 32, %s13
      %v147 = vld [vmem:[%s139] sm:$0xff]
      %v148 = vld [vmem:[%s139 + $0x8] sm:$0xff]
      %v149 = vld [vmem:[%s139 + $0x10] sm:$0xff]
      %v150 = vld [vmem:[%s139 + $0x18] sm:$0xff]
      %v151 = vld [vmem:[%s139 + $0x20] sm:$0xff]
      %v152 = vld [vmem:[%s139 + $0x28] sm:$0xff]
      %v153 = vld [vmem:[%s139 + $0x30] sm:$0xff]
      %v154 = vld [vmem:[%s139 + $0x38] sm:$0xff]
      %v155 = vld [vmem:[%s139 + $0x40] sm:$0xff]
      %v156 = vld [vmem:[%s139 + $0x48] sm:$0xff]
      %v157 = vld [vmem:[%s139 + $0x50] sm:$0xff]
      %v158 = vld [vmem:[%s139 + $0x58] sm:$0xff]
      %v159 = vld [vmem:[%s139 + $0x60] sm:$0xff]
      %v160 = vld [vmem:[%s139 + $0x68] sm:$0xff]
      %v161 = vld [vmem:[%s139 + $0x70] sm:$0xff]
      %v162 = vld [vmem:[%s139 + $0x78] sm:$0xff]
      %v163 = vld [vmem:[%s139 + $0x80] sm:$0xff]
      %v164 = vld [vmem:[%s139 + $0x88] sm:$0xff]
      %v165 = vld [vmem:[%s139 + $0x90] sm:$0xff]
      %v166 = vld [vmem:[%s139 + $0x98] sm:$0xff]
      %v167 = vld [vmem:[%s139 + $0xa0] sm:$0xff]
      %v168 = vld [vmem:[%s139 + $0xa8] sm:$0xff]
      %v169 = vld [vmem:[%s139 + $0xb0] sm:$0xff]
      %v170 = vld [vmem:[%s139 + $0xb8] sm:$0xff]
      %v171 = vld [vmem:[%s139 + $0xc0] sm:$0xff]
      %v172 = vld [vmem:[%s139 + $0xc8] sm:$0xff]
      %v173 = vld [vmem:[%s139 + $0xd0] sm:$0xff]
      %v174 = vld [vmem:[%s139 + $0xd8] sm:$0xff]
      %v175 = vld [vmem:[%s139 + $0xe0] sm:$0xff]
      %v176 = vld [vmem:[%s139 + $0xe8] sm:$0xff]
      %v177 = vld [vmem:[%s139 + $0xf0] sm:$0xff]
      %v178 = vld [vmem:[%s139 + $0xf8] sm:$0xff]
      %v179 = vld [vmem:[%s1] sm:$0xff]
      %v180 = vld [vmem:[%s1 + $0x8] sm:$0x7]
      %v181 = vld [vmem:[%s1 + $0x10] sm:$0x1]
      %v182 = vlaneseq
      %v183 = vshrl.u32 %v182, 7
      %v184 = vsub.s32 0, %v183
      %v185 = vrot.slane %v181, %v184
      %vm186 = vcmask 89088
      %v188 = vsel %vm186, %v147, 0
      %v191 = vsel %vm186, %v148, 0
      %v194 = vsel %vm186, %v149, 0
      %v197 = vsel %vm186, %v150, 0
      %v200 = vsel %vm186, %v151, 0
      %v203 = vsel %vm186, %v152, 0
      %v206 = vsel %vm186, %v153, 0
      %v209 = vsel %vm186, %v154, 0
      %v212 = vsel %vm186, %v155, 0
      %v215 = vsel %vm186, %v156, 0
      %v218 = vsel %vm186, %v157, 0
      %v221 = vsel %vm186, %v158, 0
      %v224 = vsel %vm186, %v159, 0
      %v227 = vsel %vm186, %v160, 0
      %v230 = vsel %vm186, %v161, 0
      %v233 = vsel %vm186, %v162, 0
      %v236 = vsel %vm186, %v163, 0
      %v239 = vsel %vm186, %v164, 0
      %v242 = vsel %vm186, %v165, 0
      %v245 = vsel %vm186, %v166, 0
      %v248 = vsel %vm186, %v167, 0
      %v251 = vsel %vm186, %v168, 0
      %v254 = vsel %vm186, %v169, 0
      %v257 = vsel %vm186, %v170, 0
      %v260 = vsel %vm186, %v171, 0
      %v263 = vsel %vm186, %v172, 0
      %v266 = vsel %vm186, %v173, 0
      %v269 = vsel %vm186, %v174, 0
      %v272 = vsel %vm186, %v175, 0
      %v275 = vsel %vm186, %v176, 0
      %v278 = vsel %vm186, %v177, 0
      %v281 = vsel %vm186, %v178, 0
      %vm283 = vcmask 1042432
      %v285 = vsel %vm283, %v180, 0
      %287 = vmatprep.subr.mxu0 0.0
      %288 = vmatpush1.msra.mxu0 %v179
      %289 = vmatprep.subr.mxu0 0.0
      %290 = vmatpush1.msra.mxu0 %v285
      %291 = vmatprep.subr.mxu0 0.0
      %292 = vmatpush1.msra.mxu0 0.0
      %293 = vmatprep.subr.mxu0 0.0
      %294 = vmatpush1.msra.mxu0 0.0
      %295 = vmatprep.subr.mxu0 0.0
      %296 = vmatpush1.msra.mxu0 0.0
      %297 = vmatprep.subr.mxu0 0.0
      %298 = vmatpush1.msra.mxu0 0.0
      %299 = vmatprep.subr.mxu0 0.0
      %300 = vmatpush1.msra.mxu0 0.0
      %301 = vmatprep.subr.mxu0 0.0
      %302 = vmatpush1.msra.mxu0 0.0
      %303 = vmatprep.subr.mxu0 0.0
      %304 = vmatpush1.msra.mxu0 0.0
      %305 = vmatprep.subr.mxu0 0.0
      %306 = vmatpush1.msra.mxu0 0.0
      %307 = vmatprep.subr.mxu0 0.0
      %308 = vmatpush1.msra.mxu0 0.0
      %309 = vmatprep.subr.mxu0 0.0
      %310 = vmatpush1.msra.mxu0 0.0
      %311 = vmatprep.subr.mxu0 0.0
      %312 = vmatpush1.msra.mxu0 0.0
      %313 = vmatprep.subr.mxu0 0.0
      %314 = vmatpush1.msra.mxu0 0.0
      %315 = vmatprep.subr.mxu0 0.0
      %316 = vmatpush1.msra.mxu0 0.0
      %317 = vmatprep.subr.mxu0 0.0
      %318 = vmatpush1.msra.mxu0 0.0
      %319 = vmatprep.subr.mxu0 0.0
      %320 = vmatpush1.msra.mxu0 0.0
      %321 = vmatprep.subr.mxu0 0.0
      %322 = vmatpush1.msra.mxu0 0.0
      %323 = vmatprep.subr.mxu0 0.0
      %324 = vmatpush1.msra.mxu0 0.0
      %325 = vmatprep.subr.mxu0 0.0
      %326 = vmatpush1.msra.mxu0 0.0
      %327 = vmatprep.subr.mxu0 0.0
      %328 = vmatpush1.msra.mxu0 0.0
      %329 = vmatprep.subr.mxu0 0.0
      %330 = vmatpush1.msra.mxu0 0.0
      %331 = vmatprep.subr.mxu0 0.0
      %332 = vmatpush1.msra.mxu0 0.0
      %333 = vmatprep.subr.mxu0 0.0
      %334 = vmatpush1.msra.mxu0 0.0
      %335 = vmatprep.subr.mxu0 0.0
      %336 = vmatpush1.msra.mxu0 0.0
      %337 = vmatprep.subr.mxu0 0.0
      %338 = vmatpush1.msra.mxu0 0.0
      %339 = vmatprep.subr.mxu0 0.0
      %340 = vmatpush1.msra.mxu0 0.0
      %341 = vmatprep.subr.mxu0 0.0
      %342 = vmatpush1.msra.mxu0 0.0
      %343 = vmatprep.subr.mxu0 0.0
      %344 = vmatpush1.msra.mxu0 0.0
      %345 = vmatprep.subr.mxu0 0.0
      %346 = vmatpush1.msra.mxu0 0.0
      %347 = vmatprep.subr.mxu0 0.0
      %348 = vmatpush1.msra.mxu0 0.0
      %349 = vmatprep.subr.mxu0 0.0
      %350 = vmatpush1.msra.mxu0 0.0
      %351 = vmatprep.mubr.f32.mxu0 0.0
      %352 = vmatmul.mubr.f32.gmra.mrb[0].mxu0 %v188
      %v353 = vpop.f32.mrb[0].mxu0
      %v354 = vadd.f32 %v185, %v353
      %v355 = vpop.f32.mrb[0].mxu0
      %356 = vmatprep.mubr.f32.mxu0 0.0
      %357 = vmatmul.mubr.f32.gmra.mrb[0].mxu0 %v191
      %v358 = vpop.f32.mrb[0].mxu0
      %v359 = vadd.f32 %v185, %v358
      %v360 = vpop.f32.mrb[0].mxu0
      %361 = vmatprep.mubr.f32.mxu0 0.0
      %362 = vmatmul.mubr.f32.gmra.mrb[0].mxu0 %v194
      %v363 = vpop.f32.mrb[0].mxu0
      %v364 = vadd.f32 %v185, %v363
      %v365 = vpop.f32.mrb[0].mxu0
      %366 = vmatprep.mubr.f32.mxu0 0.0
      %367 = vmatmul.mubr.f32.gmra.mrb[0].mxu0 %v197
      %v368 = vpop.f32.mrb[0].mxu0
      %v369 = vadd.f32 %v185, %v368
      %v370 = vpop.f32.mrb[0].mxu0
      %371 = vmatprep.mubr.f32.mxu0 0.0
      %372 = vmatmul.mubr.f32.gmra.mrb[0].mxu0 %v200
      %v373 = vpop.f32.mrb[0].mxu0
      %v374 = vadd.f32 %v185, %v373
      %v375 = vpop.f32.mrb[0].mxu0
      %376 = vmatprep.mubr.f32.mxu0 0.0
      %377 = vmatmul.mubr.f32.gmra.mrb[0].mxu0 %v203
      %v378 = vpop.f32.mrb[0].mxu0
      %v379 = vadd.f32 %v185, %v378
      %v380 = vpop.f32.mrb[0].mxu0
      %381 = vmatprep.mubr.f32.mxu0 0.0
      %382 = vmatmul.mubr.f32.gmra.mrb[0].mxu0 %v206
      %v383 = vpop.f32.mrb[0].mxu0
      %v384 = vadd.f32 %v185, %v383
      %v385 = vpop.f32.mrb[0].mxu0
      %386 = vmatprep.mubr.f32.mxu0 0.0
      %387 = vmatmul.mubr.f32.gmra.mrb[0].mxu0 %v209
      %v388 = vpop.f32.mrb[0].mxu0
      %v389 = vadd.f32 %v185, %v388
      %v390 = vpop.f32.mrb[0].mxu0
      %391 = vmatprep.mubr.f32.mxu0 0.0
      %392 = vmatmul.mubr.f32.gmra.mrb[0].mxu0 %v212
      %v393 = vpop.f32.mrb[0].mxu0
      %v394 = vadd.f32 %v185, %v393
      %v395 = vpop.f32.mrb[0].mxu0
      %396 = vmatprep.mubr.f32.mxu0 0.0
      %397 = vmatmul.mubr.f32.gmra.mrb[0].mxu0 %v215
      %v398 = vpop.f32.mrb[0].mxu0
      %v399 = vadd.f32 %v185, %v398
      %v400 = vpop.f32.mrb[0].mxu0
      %401 = vmatprep.mubr.f32.mxu0 0.0
      %402 = vmatmul.mubr.f32.gmra.mrb[0].mxu0 %v218
      %v403 = vpop.f32.mrb[0].mxu0
      %v404 = vadd.f32 %v185, %v403
      %v405 = vpop.f32.mrb[0].mxu0
      %406 = vmatprep.mubr.f32.mxu0 0.0
      %407 = vmatmul.mubr.f32.gmra.mrb[0].mxu0 %v221
      %v408 = vpop.f32.mrb[0].mxu0
      %v409 = vadd.f32 %v185, %v408
      %v410 = vpop.f32.mrb[0].mxu0
      %411 = vmatprep.mubr.f32.mxu0 0.0
      %412 = vmatmul.mubr.f32.gmra.mrb[0].mxu0 %v224
      %v413 = vpop.f32.mrb[0].mxu0
      %v414 = vadd.f32 %v185, %v413
      %v415 = vpop.f32.mrb[0].mxu0
      %416 = vmatprep.mubr.f32.mxu0 0.0
      %417 = vmatmul.mubr.f32.gmra.mrb[0].mxu0 %v227
      %v418 = vpop.f32.mrb[0].mxu0
      %v419 = vadd.f32 %v185, %v418
      %v420 = vpop.f32.mrb[0].mxu0
      %421 = vmatprep.mubr.f32.mxu0 0.0
      %422 = vmatmul.mubr.f32.gmra.mrb[0].mxu0 %v230
      %v423 = vpop.f32.mrb[0].mxu0
      %v424 = vadd.f32 %v185, %v423
      %v425 = vpop.f32.mrb[0].mxu0
      %426 = vmatprep.mubr.f32.mxu0 0.0
      %427 = vmatmul.mubr.f32.gmra.mrb[0].mxu0 %v233
      %v428 = vpop.f32.mrb[0].mxu0
      %v429 = vadd.f32 %v185, %v428
      %v430 = vpop.f32.mrb[0].mxu0
      %431 = vmatprep.mubr.f32.mxu0 0.0
      %432 = vmatmul.mubr.f32.gmra.mrb[0].mxu0 %v236
      %v433 = vpop.f32.mrb[0].mxu0
      %v434 = vadd.f32 %v185, %v433
      %v435 = vpop.f32.mrb[0].mxu0
      %436 = vmatprep.mubr.f32.mxu0 0.0
      %437 = vmatmul.mubr.f32.gmra.mrb[0].mxu0 %v239
      %v438 = vpop.f32.mrb[0].mxu0
      %v439 = vadd.f32 %v185, %v438
      %v440 = vpop.f32.mrb[0].mxu0
      %441 = vmatprep.mubr.f32.mxu0 0.0
      %442 = vmatmul.mubr.f32.gmra.mrb[0].mxu0 %v242
      %v443 = vpop.f32.mrb[0].mxu0
      %v444 = vadd.f32 %v185, %v443
      %v445 = vpop.f32.mrb[0].mxu0
      %446 = vmatprep.mubr.f32.mxu0 0.0
      %447 = vmatmul.mubr.f32.gmra.mrb[0].mxu0 %v245
      %v448 = vpop.f32.mrb[0].mxu0
      %v449 = vadd.f32 %v185, %v448
      %v450 = vpop.f32.mrb[0].mxu0
      %451 = vmatprep.mubr.f32.mxu0 0.0
      %452 = vmatmul.mubr.f32.gmra.mrb[0].mxu0 %v248
      %v453 = vpop.f32.mrb[0].mxu0
      %v454 = vadd.f32 %v185, %v453
      %v455 = vpop.f32.mrb[0].mxu0
      %456 = vmatprep.mubr.f32.mxu0 0.0
      %457 = vmatmul.mubr.f32.gmra.mrb[0].mxu0 %v251
      %v458 = vpop.f32.mrb[0].mxu0
      %v459 = vadd.f32 %v185, %v458
      %v460 = vpop.f32.mrb[0].mxu0
      %461 = vmatprep.mubr.f32.mxu0 0.0
      %462 = vmatmul.mubr.f32.gmra.mrb[0].mxu0 %v254
      %v463 = vpop.f32.mrb[0].mxu0
      %v464 = vadd.f32 %v185, %v463
      %v465 = vpop.f32.mrb[0].mxu0
      %466 = vmatprep.mubr.f32.mxu0 0.0
      %467 = vmatmul.mubr.f32.gmra.mrb[0].mxu0 %v257
      %v468 = vpop.f32.mrb[0].mxu0
      %v469 = vadd.f32 %v185, %v468
      %v470 = vpop.f32.mrb[0].mxu0
      %471 = vmatprep.mubr.f32.mxu0 0.0
      %472 = vmatmul.mubr.f32.gmra.mrb[0].mxu0 %v260
      %v473 = vpop.f32.mrb[0].mxu0
      %v474 = vadd.f32 %v185, %v473
      %v475 = vpop.f32.mrb[0].mxu0
      %476 = vmatprep.mubr.f32.mxu0 0.0
      %477 = vmatmul.mubr.f32.gmra.mrb[0].mxu0 %v263
      %v478 = vpop.f32.mrb[0].mxu0
      %v479 = vadd.f32 %v185, %v478
      %v480 = vpop.f32.mrb[0].mxu0
      %481 = vmatprep.mubr.f32.mxu0 0.0
      %482 = vmatmul.mubr.f32.gmra.mrb[0].mxu0 %v266
      %v483 = vpop.f32.mrb[0].mxu0
      %v484 = vadd.f32 %v185, %v483
      %v485 = vpop.f32.mrb[0].mxu0
      %486 = vmatprep.mubr.f32.mxu0 0.0
      %487 = vmatmul.mubr.f32.gmra.mrb[0].mxu0 %v269
      %v488 = vpop.f32.mrb[0].mxu0
      %v489 = vadd.f32 %v185, %v488
      %v490 = vpop.f32.mrb[0].mxu0
      %491 = vmatprep.mubr.f32.mxu0 0.0
      %492 = vmatmul.mubr.f32.gmra.mrb[0].mxu0 %v272
      %v493 = vpop.f32.mrb[0].mxu0
      %v494 = vadd.f32 %v185, %v493
      %v495 = vpop.f32.mrb[0].mxu0
      %496 = vmatprep.mubr.f32.mxu0 0.0
      %497 = vmatmul.mubr.f32.gmra.mrb[0].mxu0 %v275
      %v498 = vpop.f32.mrb[0].mxu0
      %v499 = vadd.f32 %v185, %v498
      %v500 = vpop.f32.mrb[0].mxu0
      %501 = vmatprep.mubr.f32.mxu0 0.0
      %502 = vmatmul.mubr.f32.gmra.mrb[0].mxu0 %v278
      %v503 = vpop.f32.mrb[0].mxu0
      %v504 = vadd.f32 %v185, %v503
      %v505 = vpop.f32.mrb[0].mxu0
      %506 = vmatprep.mubr.f32.mxu0 0.0
      %507 = vmatmul.mubr.f32.gmra.mrb[0].mxu0 %v281
      %v508 = vpop.f32.mrb[0].mxu0
      %v509 = vadd.f32 %v185, %v508
      %v510 = vpop.f32.mrb[0].mxu0
      %511 = vdwg.mxu0
      %v512 = vmax.f32 %v354, 0.0
      %v513 = vmax.f32 %v359, 0.0
      %v514 = vmax.f32 %v364, 0.0
      %v515 = vmax.f32 %v369, 0.0
      %v516 = vmax.f32 %v374, 0.0
      %v517 = vmax.f32 %v379, 0.0
      %v518 = vmax.f32 %v384, 0.0
      %v519 = vmax.f32 %v389, 0.0
      %v520 = vmax.f32 %v394, 0.0
      %v521 = vmax.f32 %v399, 0.0
      %v522 = vmax.f32 %v404, 0.0
      %v523 = vmax.f32 %v409, 0.0
      %v524 = vmax.f32 %v414, 0.0
      %v525 = vmax.f32 %v419, 0.0
      %v526 = vmax.f32 %v424, 0.0
      %v527 = vmax.f32 %v429, 0.0
      %v528 = vmax.f32 %v434, 0.0
      %v529 = vmax.f32 %v439, 0.0
      %v530 = vmax.f32 %v444, 0.0
      %v531 = vmax.f32 %v449, 0.0
      %v532 = vmax.f32 %v454, 0.0
      %v533 = vmax.f32 %v459, 0.0
      %v534 = vmax.f32 %v464, 0.0
      %v535 = vmax.f32 %v469, 0.0
      %v536 = vmax.f32 %v474, 0.0
      %v537 = vmax.f32 %v479, 0.0
      %v538 = vmax.f32 %v484, 0.0
      %v539 = vmax.f32 %v489, 0.0
      %v540 = vmax.f32 %v494, 0.0
      %v541 = vmax.f32 %v499, 0.0
      %v542 = vmax.f32 %v504, 0.0
      %v543 = vmax.f32 %v509, 0.0
      %v544 = vld [vmem:[%s1 + $0x18] sm:$0xff]
      %v545 = vld [vmem:[%s1 + $0x20] sm:$0xff]
      %v546 = vld [vmem:[%s1 + $0x28] sm:$0xff]
      %v547 = vld [vmem:[%s1 + $0x30] sm:$0xff]
      %v548 = vld [vmem:[%s1 + $0x38] sm:$0x1]
      %v549 = vlaneseq
      %v550 = vshrl.u32 %v549, 7
      %v551 = vsub.s32 0, %v550
      %v552 = vrot.slane %v548, %v551
      %vm553 = vcmask 261120
      %v555 = vsel %vm553, %v512, 0
      %v558 = vsel %vm553, %v513, 0
      %v561 = vsel %vm553, %v514, 0
      %v564 = vsel %vm553, %v515, 0
      %v567 = vsel %vm553, %v516, 0
      %v570 = vsel %vm553, %v517, 0
      %v573 = vsel %vm553, %v518, 0
      %v576 = vsel %vm553, %v519, 0
      %v579 = vsel %vm553, %v520, 0
      %v582 = vsel %vm553, %v521, 0
      %v585 = vsel %vm553, %v522, 0
      %v588 = vsel %vm553, %v523, 0
      %v591 = vsel %vm553, %v524, 0
      %v594 = vsel %vm553, %v525, 0
      %v597 = vsel %vm553, %v526, 0
      %v600 = vsel %vm553, %v527, 0
      %v603 = vsel %vm553, %v528, 0
      %v606 = vsel %vm553, %v529, 0
      %v609 = vsel %vm553, %v530, 0
      %v612 = vsel %vm553, %v531, 0
      %v615 = vsel %vm553, %v532, 0
      %v618 = vsel %vm553, %v533, 0
      %v621 = vsel %vm553, %v534, 0
      %v624 = vsel %vm553, %v535, 0
      %v627 = vsel %vm553, %v536, 0
      %v630 = vsel %vm553, %v537, 0
      %v633 = vsel %vm553, %v538, 0
      %v636 = vsel %vm553, %v539, 0
      %v639 = vsel %vm553, %v540, 0
      %v642 = vsel %vm553, %v541, 0
      %v645 = vsel %vm553, %v542, 0
      %v648 = vsel %vm553, %v543, 0
      %650 = vmatprep.subr.mxu0 0.0
      %651 = vmatpush1.msra.mxu0 %v544
      %652 = vmatprep.subr.mxu0 0.0
      %653 = vmatpush1.msra.mxu0 %v545
      %654 = vmatprep.subr.mxu0 0.0
      %655 = vmatpush1.msra.mxu0 %v546
      %656 = vmatprep.subr.mxu0 0.0
      %657 = vmatpush1.msra.mxu0 %v547
      %658 = vmatprep.subr.mxu0 0.0
      %659 = vmatpush1.msra.mxu0 0.0
      %660 = vmatprep.subr.mxu0 0.0
      %661 = vmatpush1.msra.mxu0 0.0
      %662 = vmatprep.subr.mxu0 0.0
      %663 = vmatpush1.msra.mxu0 0.0
      %664 = vmatprep.subr.mxu0 0.0
      %665 = vmatpush1.msra.mxu0 0.0
      %666 = vmatprep.subr.mxu0 0.0
      %667 = vmatpush1.msra.mxu0 0.0
      %668 = vmatprep.subr.mxu0 0.0
      %669 = vmatpush1.msra.mxu0 0.0
      %670 = vmatprep.subr.mxu0 0.0
      %671 = vmatpush1.msra.mxu0 0.0
      %672 = vmatprep.subr.mxu0 0.0
      %673 = vmatpush1.msra.mxu0 0.0
      %674 = vmatprep.subr.mxu0 0.0
      %675 = vmatpush1.msra.mxu0 0.0
      %676 = vmatprep.subr.mxu0 0.0
      %677 = vmatpush1.msra.mxu0 0.0
      %678 = vmatprep.subr.mxu0 0.0
      %679 = vmatpush1.msra.mxu0 0.0
      %680 = vmatprep.subr.mxu0 0.0
      %681 = vmatpush1.msra.mxu0 0.0
      %682 = vmatprep.subr.mxu0 0.0
      %683 = vmatpush1.msra.mxu0 0.0
      %684 = vmatprep.subr.mxu0 0.0
      %685 = vmatpush1.msra.mxu0 0.0
      %686 = vmatprep.subr.mxu0 0.0
      %687 = vmatpush1.msra.mxu0 0.0
      %688 = vmatprep.subr.mxu0 0.0
      %689 = vmatpush1.msra.mxu0 0.0
      %690 = vmatprep.subr.mxu0 0.0
      %691 = vmatpush1.msra.mxu0 0.0
      %692 = vmatprep.subr.mxu0 0.0
      %693 = vmatpush1.msra.mxu0 0.0
      %694 = vmatprep.subr.mxu0 0.0
      %695 = vmatpush1.msra.mxu0 0.0
      %696 = vmatprep.subr.mxu0 0.0
      %697 = vmatpush1.msra.mxu0 0.0
      %698 = vmatprep.subr.mxu0 0.0
      %699 = vmatpush1.msra.mxu0 0.0
      %700 = vmatprep.subr.mxu0 0.0
      %701 = vmatpush1.msra.mxu0 0.0
      %702 = vmatprep.subr.mxu0 0.0
      %703 = vmatpush1.msra.mxu0 0.0
      %704 = vmatprep.subr.mxu0 0.0
      %705 = vmatpush1.msra.mxu0 0.0
      %706 = vmatprep.subr.mxu0 0.0
      %707 = vmatpush1.msra.mxu0 0.0
      %708 = vmatprep.subr.mxu0 0.0
      %709 = vmatpush1.msra.mxu0 0.0
      %710 = vmatprep.subr.mxu0 0.0
      %711 = vmatpush1.msra.mxu0 0.0
      %712 = vmatprep.subr.mxu0 0.0
      %713 = vmatpush1.msra.mxu0 0.0
      %714 = vmatprep.mubr.f32.mxu0 0.0
      %715 = vmatmul.mubr.f32.gmra.mrb[0].mxu0 %v555
      %v716 = vpop.f32.mrb[0].mxu0
      %v717 = vadd.f32 %v552, %v716
      %v718 = vpop.f32.mrb[0].mxu0
      %719 = vmatprep.mubr.f32.mxu0 0.0
      %720 = vmatmul.mubr.f32.gmra.mrb[0].mxu0 %v558
      %v721 = vpop.f32.mrb[0].mxu0
      %v722 = vadd.f32 %v552, %v721
      %v723 = vpop.f32.mrb[0].mxu0
      %724 = vmatprep.mubr.f32.mxu0 0.0
      %725 = vmatmul.mubr.f32.gmra.mrb[0].mxu0 %v561
      %v726 = vpop.f32.mrb[0].mxu0
      %v727 = vadd.f32 %v552, %v726
      %v728 = vpop.f32.mrb[0].mxu0
      %729 = vmatprep.mubr.f32.mxu0 0.0
      %730 = vmatmul.mubr.f32.gmra.mrb[0].mxu0 %v564
      %v731 = vpop.f32.mrb[0].mxu0
      %v732 = vadd.f32 %v552, %v731
      %v733 = vpop.f32.mrb[0].mxu0
      %734 = vmatprep.mubr.f32.mxu0 0.0
      %735 = vmatmul.mubr.f32.gmra.mrb[0].mxu0 %v567
      %v736 = vpop.f32.mrb[0].mxu0
      %v737 = vadd.f32 %v552, %v736
      %v738 = vpop.f32.mrb[0].mxu0
      %739 = vmatprep.mubr.f32.mxu0 0.0
      %740 = vmatmul.mubr.f32.gmra.mrb[0].mxu0 %v570
      %v741 = vpop.f32.mrb[0].mxu0
      %v742 = vadd.f32 %v552, %v741
      %v743 = vpop.f32.mrb[0].mxu0
      %744 = vmatprep.mubr.f32.mxu0 0.0
      %745 = vmatmul.mubr.f32.gmra.mrb[0].mxu0 %v573
      %v746 = vpop.f32.mrb[0].mxu0
      %v747 = vadd.f32 %v552, %v746
      %v748 = vpop.f32.mrb[0].mxu0
      %749 = vmatprep.mubr.f32.mxu0 0.0
      %750 = vmatmul.mubr.f32.gmra.mrb[0].mxu0 %v576
      %v751 = vpop.f32.mrb[0].mxu0
      %v752 = vadd.f32 %v552, %v751
      %v753 = vpop.f32.mrb[0].mxu0
      %754 = vmatprep.mubr.f32.mxu0 0.0
      %755 = vmatmul.mubr.f32.gmra.mrb[0].mxu0 %v579
      %v756 = vpop.f32.mrb[0].mxu0
      %v757 = vadd.f32 %v552, %v756
      %v758 = vpop.f32.mrb[0].mxu0
      %759 = vmatprep.mubr.f32.mxu0 0.0
      %760 = vmatmul.mubr.f32.gmra.mrb[0].mxu0 %v582
      %v761 = vpop.f32.mrb[0].mxu0
      %v762 = vadd.f32 %v552, %v761
      %v763 = vpop.f32.mrb[0].mxu0
      %764 = vmatprep.mubr.f32.mxu0 0.0
      %765 = vmatmul.mubr.f32.gmra.mrb[0].mxu0 %v585
      %v766 = vpop.f32.mrb[0].mxu0
      %v767 = vadd.f32 %v552, %v766
      %v768 = vpop.f32.mrb[0].mxu0
      %769 = vmatprep.mubr.f32.mxu0 0.0
      %770 = vmatmul.mubr.f32.gmra.mrb[0].mxu0 %v588
      %v771 = vpop.f32.mrb[0].mxu0
      %v772 = vadd.f32 %v552, %v771
      %v773 = vpop.f32.mrb[0].mxu0
      %774 = vmatprep.mubr.f32.mxu0 0.0
      %775 = vmatmul.mubr.f32.gmra.mrb[0].mxu0 %v591
      %v776 = vpop.f32.mrb[0].mxu0
      %v777 = vadd.f32 %v552, %v776
      %v778 = vpop.f32.mrb[0].mxu0
      %779 = vmatprep.mubr.f32.mxu0 0.0
      %780 = vmatmul.mubr.f32.gmra.mrb[0].mxu0 %v594
      %v781 = vpop.f32.mrb[0].mxu0
      %v782 = vadd.f32 %v552, %v781
      %v783 = vpop.f32.mrb[0].mxu0
      %784 = vmatprep.mubr.f32.mxu0 0.0
      %785 = vmatmul.mubr.f32.gmra.mrb[0].mxu0 %v597
      %v786 = vpop.f32.mrb[0].mxu0
      %v787 = vadd.f32 %v552, %v786
      %v788 = vpop.f32.mrb[0].mxu0
      %789 = vmatprep.mubr.f32.mxu0 0.0
      %790 = vmatmul.mubr.f32.gmra.mrb[0].mxu0 %v600
      %v791 = vpop.f32.mrb[0].mxu0
      %v792 = vadd.f32 %v552, %v791
      %v793 = vpop.f32.mrb[0].mxu0
      %794 = vmatprep.mubr.f32.mxu0 0.0
      %795 = vmatmul.mubr.f32.gmra.mrb[0].mxu0 %v603
      %v796 = vpop.f32.mrb[0].mxu0
      %v797 = vadd.f32 %v552, %v796
      %v798 = vpop.f32.mrb[0].mxu0
      %799 = vmatprep.mubr.f32.mxu0 0.0
      %800 = vmatmul.mubr.f32.gmra.mrb[0].mxu0 %v606
      %v801 = vpop.f32.mrb[0].mxu0
      %v802 = vadd.f32 %v552, %v801
      %v803 = vpop.f32.mrb[0].mxu0
      %804 = vmatprep.mubr.f32.mxu0 0.0
      %805 = vmatmul.mubr.f32.gmra.mrb[0].mxu0 %v609
      %v806 = vpop.f32.mrb[0].mxu0
      %v807 = vadd.f32 %v552, %v806
      %v808 = vpop.f32.mrb[0].mxu0
      %809 = vmatprep.mubr.f32.mxu0 0.0
      %810 = vmatmul.mubr.f32.gmra.mrb[0].mxu0 %v612
      %v811 = vpop.f32.mrb[0].mxu0
      %v812 = vadd.f32 %v552, %v811
      %v813 = vpop.f32.mrb[0].mxu0
      %814 = vmatprep.mubr.f32.mxu0 0.0
      %815 = vmatmul.mubr.f32.gmra.mrb[0].mxu0 %v615
      %v816 = vpop.f32.mrb[0].mxu0
      %v817 = vadd.f32 %v552, %v816
      %v818 = vpop.f32.mrb[0].mxu0
      %819 = vmatprep.mubr.f32.mxu0 0.0
      %820 = vmatmul.mubr.f32.gmra.mrb[0].mxu0 %v618
      %v821 = vpop.f32.mrb[0].mxu0
      %v822 = vadd.f32 %v552, %v821
      %v823 = vpop.f32.mrb[0].mxu0
      %824 = vmatprep.mubr.f32.mxu0 0.0
      %825 = vmatmul.mubr.f32.gmra.mrb[0].mxu0 %v621
      %v826 = vpop.f32.mrb[0].mxu0
      %v827 = vadd.f32 %v552, %v826
      %v828 = vpop.f32.mrb[0].mxu0
      %829 = vmatprep.mubr.f32.mxu0 0.0
      %830 = vmatmul.mubr.f32.gmra.mrb[0].mxu0 %v624
      %v831 = vpop.f32.mrb[0].mxu0
      %v832 = vadd.f32 %v552, %v831
      %v833 = vpop.f32.mrb[0].mxu0
      %834 = vmatprep.mubr.f32.mxu0 0.0
      %835 = vmatmul.mubr.f32.gmra.mrb[0].mxu0 %v627
      %v836 = vpop.f32.mrb[0].mxu0
      %v837 = vadd.f32 %v552, %v836
      %v838 = vpop.f32.mrb[0].mxu0
      %839 = vmatprep.mubr.f32.mxu0 0.0
      %840 = vmatmul.mubr.f32.gmra.mrb[0].mxu0 %v630
      %v841 = vpop.f32.mrb[0].mxu0
      %v842 = vadd.f32 %v552, %v841
      %v843 = vpop.f32.mrb[0].mxu0
      %844 = vmatprep.mubr.f32.mxu0 0.0
      %845 = vmatmul.mubr.f32.gmra.mrb[0].mxu0 %v633
      %v846 = vpop.f32.mrb[0].mxu0
      %v847 = vadd.f32 %v552, %v846
      %v848 = vpop.f32.mrb[0].mxu0
      %849 = vmatprep.mubr.f32.mxu0 0.0
      %850 = vmatmul.mubr.f32.gmra.mrb[0].mxu0 %v636
      %v851 = vpop.f32.mrb[0].mxu0
      %v852 = vadd.f32 %v552, %v851
      %v853 = vpop.f32.mrb[0].mxu0
      %854 = vmatprep.mubr.f32.mxu0 0.0
      %855 = vmatmul.mubr.f32.gmra.mrb[0].mxu0 %v639
      %v856 = vpop.f32.mrb[0].mxu0
      %v857 = vadd.f32 %v552, %v856
      %v858 = vpop.f32.mrb[0].mxu0
      %859 = vmatprep.mubr.f32.mxu0 0.0
      %860 = vmatmul.mubr.f32.gmra.mrb[0].mxu0 %v642
      %v861 = vpop.f32.mrb[0].mxu0
      %v862 = vadd.f32 %v552, %v861
      %v863 = vpop.f32.mrb[0].mxu0
      %864 = vmatprep.mubr.f32.mxu0 0.0
      %865 = vmatmul.mubr.f32.gmra.mrb[0].mxu0 %v645
      %v866 = vpop.f32.mrb[0].mxu0
      %v867 = vadd.f32 %v552, %v866
      %v868 = vpop.f32.mrb[0].mxu0
      %869 = vmatprep.mubr.f32.mxu0 0.0
      %870 = vmatmul.mubr.f32.gmra.mrb[0].mxu0 %v648
      %v871 = vpop.f32.mrb[0].mxu0
      %v872 = vadd.f32 %v552, %v871
      %v873 = vpop.f32.mrb[0].mxu0
      %874 = vdwg.mxu0
      %v875 = vmax.f32 %v717, 0.0
      %v876 = vmax.f32 %v722, 0.0
      %v877 = vmax.f32 %v727, 0.0
      %v878 = vmax.f32 %v732, 0.0
      %v879 = vmax.f32 %v737, 0.0
      %v880 = vmax.f32 %v742, 0.0
      %v881 = vmax.f32 %v747, 0.0
      %v882 = vmax.f32 %v752, 0.0
      %v883 = vmax.f32 %v757, 0.0
      %v884 = vmax.f32 %v762, 0.0
      %v885 = vmax.f32 %v767, 0.0
      %v886 = vmax.f32 %v772, 0.0
      %v887 = vmax.f32 %v777, 0.0
      %v888 = vmax.f32 %v782, 0.0
      %v889 = vmax.f32 %v787, 0.0
      %v890 = vmax.f32 %v792, 0.0
      %v891 = vmax.f32 %v797, 0.0
      %v892 = vmax.f32 %v802, 0.0
      %v893 = vmax.f32 %v807, 0.0
      %v894 = vmax.f32 %v812, 0.0
      %v895 = vmax.f32 %v817, 0.0
      %v896 = vmax.f32 %v822, 0.0
      %v897 = vmax.f32 %v827, 0.0
      %v898 = vmax.f32 %v832, 0.0
      %v899 = vmax.f32 %v837, 0.0
      %v900 = vmax.f32 %v842, 0.0
      %v901 = vmax.f32 %v847, 0.0
      %v902 = vmax.f32 %v852, 0.0
      %v903 = vmax.f32 %v857, 0.0
      %v904 = vmax.f32 %v862, 0.0
      %v905 = vmax.f32 %v867, 0.0
      %v906 = vmax.f32 %v872, 0.0
      %v907 = vld [vmem:[%s1 + $0x40] sm:$0xff]
      %v908 = vld [vmem:[%s1 + $0x48] sm:$0xff]
      %v909 = vld [vmem:[%s1 + $0x50] sm:$0xff]
      %v910 = vld [vmem:[%s1 + $0x58] sm:$0xff]
      %v911 = vld [vmem:[%s1 + $0x60] sm:$0x1]
      %v912 = vlaneseq
      %v913 = vshrl.u32 %v912, 7
      %v914 = vsub.s32 0, %v913
      %v915 = vrot.slane %v911, %v914
      %v917 = vsel %vm553, %v875, 0
      %v920 = vsel %vm553, %v876, 0
      %v923 = vsel %vm553, %v877, 0
      %v926 = vsel %vm553, %v878, 0
      %v929 = vsel %vm553, %v879, 0
      %v932 = vsel %vm553, %v880, 0
      %v935 = vsel %vm553, %v881, 0
      %v938 = vsel %vm553, %v882, 0
      %v941 = vsel %vm553, %v883, 0
      %v944 = vsel %vm553, %v884, 0
      %v947 = vsel %vm553, %v885, 0
      %v950 = vsel %vm553, %v886, 0
      %v953 = vsel %vm553, %v887, 0
      %v956 = vsel %vm553, %v888, 0
      %v959 = vsel %vm553, %v889, 0
      %v962 = vsel %vm553, %v890, 0
      %v965 = vsel %vm553, %v891, 0
      %v968 = vsel %vm553, %v892, 0
      %v971 = vsel %vm553, %v893, 0
      %v974 = vsel %vm553, %v894, 0
      %v977 = vsel %vm553, %v895, 0
      %v980 = vsel %vm553, %v896, 0
      %v983 = vsel %vm553, %v897, 0
      %v986 = vsel %vm553, %v898, 0
      %v989 = vsel %vm553, %v899, 0
      %v992 = vsel %vm553, %v900, 0
      %v995 = vsel %vm553, %v901, 0
      %v998 = vsel %vm553, %v902, 0
      %v1001 = vsel %vm553, %v903, 0
      %v1004 = vsel %vm553, %v904, 0
      %v1007 = vsel %vm553, %v905, 0
      %v1010 = vsel %vm553, %v906, 0
      %1012 = vmatprep.subr.mxu0 0.0
      %1013 = vmatpush1.msra.mxu0 %v907
      %1014 = vmatprep.subr.mxu0 0.0
      %1015 = vmatpush1.msra.mxu0 %v908
      %1016 = vmatprep.subr.mxu0 0.0
      %1017 = vmatpush1.msra.mxu0 %v909
      %1018 = vmatprep.subr.mxu0 0.0
      %1019 = vmatpush1.msra.mxu0 %v910
      %1020 = vmatprep.subr.mxu0 0.0
      %1021 = vmatpush1.msra.mxu0 0.0
      %1022 = vmatprep.subr.mxu0 0.0
      %1023 = vmatpush1.msra.mxu0 0.0
      %1024 = vmatprep.subr.mxu0 0.0
      %1025 = vmatpush1.msra.mxu0 0.0
      %1026 = vmatprep.subr.mxu0 0.0
      %1027 = vmatpush1.msra.mxu0 0.0
      %1028 = vmatprep.subr.mxu0 0.0
      %1029 = vmatpush1.msra.mxu0 0.0
      %1030 = vmatprep.subr.mxu0 0.0
      %1031 = vmatpush1.msra.mxu0 0.0
      %1032 = vmatprep.subr.mxu0 0.0
      %1033 = vmatpush1.msra.mxu0 0.0
      %1034 = vmatprep.subr.mxu0 0.0
      %1035 = vmatpush1.msra.mxu0 0.0
      %1036 = vmatprep.subr.mxu0 0.0
      %1037 = vmatpush1.msra.mxu0 0.0
      %1038 = vmatprep.subr.mxu0 0.0
      %1039 = vmatpush1.msra.mxu0 0.0
      %1040 = vmatprep.subr.mxu0 0.0
      %1041 = vmatpush1.msra.mxu0 0.0
      %1042 = vmatprep.subr.mxu0 0.0
      %1043 = vmatpush1.msra.mxu0 0.0
      %1044 = vmatprep.subr.mxu0 0.0
      %1045 = vmatpush1.msra.mxu0 0.0
      %1046 = vmatprep.subr.mxu0 0.0
      %1047 = vmatpush1.msra.mxu0 0.0
      %1048 = vmatprep.subr.mxu0 0.0
      %1049 = vmatpush1.msra.mxu0 0.0
      %1050 = vmatprep.subr.mxu0 0.0
      %1051 = vmatpush1.msra.mxu0 0.0
      %1052 = vmatprep.subr.mxu0 0.0
      %1053 = vmatpush1.msra.mxu0 0.0
      %1054 = vmatprep.subr.mxu0 0.0
      %1055 = vmatpush1.msra.mxu0 0.0
      %1056 = vmatprep.subr.mxu0 0.0
      %1057 = vmatpush1.msra.mxu0 0.0
      %1058 = vmatprep.subr.mxu0 0.0
      %1059 = vmatpush1.msra.mxu0 0.0
      %1060 = vmatprep.subr.mxu0 0.0
      %1061 = vmatpush1.msra.mxu0 0.0
      %1062 = vmatprep.subr.mxu0 0.0
      %1063 = vmatpush1.msra.mxu0 0.0
      %1064 = vmatprep.subr.mxu0 0.0
      %1065 = vmatpush1.msra.mxu0 0.0
      %1066 = vmatprep.subr.mxu0 0.0
      %1067 = vmatpush1.msra.mxu0 0.0
      %1068 = vmatprep.subr.mxu0 0.0
      %1069 = vmatpush1.msra.mxu0 0.0
      %1070 = vmatprep.subr.mxu0 0.0
      %1071 = vmatpush1.msra.mxu0 0.0
      %1072 = vmatprep.subr.mxu0 0.0
      %1073 = vmatpush1.msra.mxu0 0.0
      %1074 = vmatprep.subr.mxu0 0.0
      %1075 = vmatpush1.msra.mxu0 0.0
      %1076 = vmatprep.mubr.f32.mxu0 0.0
      %1077 = vmatmul.mubr.f32.gmra.mrb[0].mxu0 %v917
      %v1078 = vpop.f32.mrb[0].mxu0
      %v1079 = vadd.f32 %v915, %v1078
      %v1080 = vpop.f32.mrb[0].mxu0
      %1081 = vmatprep.mubr.f32.mxu0 0.0
      %1082 = vmatmul.mubr.f32.gmra.mrb[0].mxu0 %v920
      %v1083 = vpop.f32.mrb[0].mxu0
      %v1084 = vadd.f32 %v915, %v1083
      %v1085 = vpop.f32.mrb[0].mxu0
      %1086 = vmatprep.mubr.f32.mxu0 0.0
      %1087 = vmatmul.mubr.f32.gmra.mrb[0].mxu0 %v923
      %v1088 = vpop.f32.mrb[0].mxu0
      %v1089 = vadd.f32 %v915, %v1088
      %v1090 = vpop.f32.mrb[0].mxu0
      %1091 = vmatprep.mubr.f32.mxu0 0.0
      %1092 = vmatmul.mubr.f32.gmra.mrb[0].mxu0 %v926
      %v1093 = vpop.f32.mrb[0].mxu0
      %v1094 = vadd.f32 %v915, %v1093
      %v1095 = vpop.f32.mrb[0].mxu0
      %1096 = vmatprep.mubr.f32.mxu0 0.0
      %1097 = vmatmul.mubr.f32.gmra.mrb[0].mxu0 %v929
      %v1098 = vpop.f32.mrb[0].mxu0
      %v1099 = vadd.f32 %v915, %v1098
      %v1100 = vpop.f32.mrb[0].mxu0
      %1101 = vmatprep.mubr.f32.mxu0 0.0
      %1102 = vmatmul.mubr.f32.gmra.mrb[0].mxu0 %v932
      %v1103 = vpop.f32.mrb[0].mxu0
      %v1104 = vadd.f32 %v915, %v1103
      %v1105 = vpop.f32.mrb[0].mxu0
      %1106 = vmatprep.mubr.f32.mxu0 0.0
      %1107 = vmatmul.mubr.f32.gmra.mrb[0].mxu0 %v935
      %v1108 = vpop.f32.mrb[0].mxu0
      %v1109 = vadd.f32 %v915, %v1108
      %v1110 = vpop.f32.mrb[0].mxu0
      %1111 = vmatprep.mubr.f32.mxu0 0.0
      %1112 = vmatmul.mubr.f32.gmra.mrb[0].mxu0 %v938
      %v1113 = vpop.f32.mrb[0].mxu0
      %v1114 = vadd.f32 %v915, %v1113
      %v1115 = vpop.f32.mrb[0].mxu0
      %1116 = vmatprep.mubr.f32.mxu0 0.0
      %1117 = vmatmul.mubr.f32.gmra.mrb[0].mxu0 %v941
      %v1118 = vpop.f32.mrb[0].mxu0
      %v1119 = vadd.f32 %v915, %v1118
      %v1120 = vpop.f32.mrb[0].mxu0
      %1121 = vmatprep.mubr.f32.mxu0 0.0
      %1122 = vmatmul.mubr.f32.gmra.mrb[0].mxu0 %v944
      %v1123 = vpop.f32.mrb[0].mxu0
      %v1124 = vadd.f32 %v915, %v1123
      %v1125 = vpop.f32.mrb[0].mxu0
      %1126 = vmatprep.mubr.f32.mxu0 0.0
      %1127 = vmatmul.mubr.f32.gmra.mrb[0].mxu0 %v947
      %v1128 = vpop.f32.mrb[0].mxu0
      %v1129 = vadd.f32 %v915, %v1128
      %v1130 = vpop.f32.mrb[0].mxu0
      %1131 = vmatprep.mubr.f32.mxu0 0.0
      %1132 = vmatmul.mubr.f32.gmra.mrb[0].mxu0 %v950
      %v1133 = vpop.f32.mrb[0].mxu0
      %v1134 = vadd.f32 %v915, %v1133
      %v1135 = vpop.f32.mrb[0].mxu0
      %1136 = vmatprep.mubr.f32.mxu0 0.0
      %1137 = vmatmul.mubr.f32.gmra.mrb[0].mxu0 %v953
      %v1138 = vpop.f32.mrb[0].mxu0
      %v1139 = vadd.f32 %v915, %v1138
      %v1140 = vpop.f32.mrb[0].mxu0
      %1141 = vmatprep.mubr.f32.mxu0 0.0
      %1142 = vmatmul.mubr.f32.gmra.mrb[0].mxu0 %v956
      %v1143 = vpop.f32.mrb[0].mxu0
      %v1144 = vadd.f32 %v915, %v1143
      %v1145 = vpop.f32.mrb[0].mxu0
      %1146 = vmatprep.mubr.f32.mxu0 0.0
      %1147 = vmatmul.mubr.f32.gmra.mrb[0].mxu0 %v959
      %v1148 = vpop.f32.mrb[0].mxu0
      %v1149 = vadd.f32 %v915, %v1148
      %v1150 = vpop.f32.mrb[0].mxu0
      %1151 = vmatprep.mubr.f32.mxu0 0.0
      %1152 = vmatmul.mubr.f32.gmra.mrb[0].mxu0 %v962
      %v1153 = vpop.f32.mrb[0].mxu0
      %v1154 = vadd.f32 %v915, %v1153
      %v1155 = vpop.f32.mrb[0].mxu0
      %1156 = vmatprep.mubr.f32.mxu0 0.0
      %1157 = vmatmul.mubr.f32.gmra.mrb[0].mxu0 %v965
      %v1158 = vpop.f32.mrb[0].mxu0
      %v1159 = vadd.f32 %v915, %v1158
      %v1160 = vpop.f32.mrb[0].mxu0
      %1161 = vmatprep.mubr.f32.mxu0 0.0
      %1162 = vmatmul.mubr.f32.gmra.mrb[0].mxu0 %v968
      %v1163 = vpop.f32.mrb[0].mxu0
      %v1164 = vadd.f32 %v915, %v1163
      %v1165 = vpop.f32.mrb[0].mxu0
      %1166 = vmatprep.mubr.f32.mxu0 0.0
      %1167 = vmatmul.mubr.f32.gmra.mrb[0].mxu0 %v971
      %v1168 = vpop.f32.mrb[0].mxu0
      %v1169 = vadd.f32 %v915, %v1168
      %v1170 = vpop.f32.mrb[0].mxu0
      %1171 = vmatprep.mubr.f32.mxu0 0.0
      %1172 = vmatmul.mubr.f32.gmra.mrb[0].mxu0 %v974
      %v1173 = vpop.f32.mrb[0].mxu0
      %v1174 = vadd.f32 %v915, %v1173
      %v1175 = vpop.f32.mrb[0].mxu0
      %1176 = vmatprep.mubr.f32.mxu0 0.0
      %1177 = vmatmul.mubr.f32.gmra.mrb[0].mxu0 %v977
      %v1178 = vpop.f32.mrb[0].mxu0
      %v1179 = vadd.f32 %v915, %v1178
      %v1180 = vpop.f32.mrb[0].mxu0
      %1181 = vmatprep.mubr.f32.mxu0 0.0
      %1182 = vmatmul.mubr.f32.gmra.mrb[0].mxu0 %v980
      %v1183 = vpop.f32.mrb[0].mxu0
      %v1184 = vadd.f32 %v915, %v1183
      %v1185 = vpop.f32.mrb[0].mxu0
      %1186 = vmatprep.mubr.f32.mxu0 0.0
      %1187 = vmatmul.mubr.f32.gmra.mrb[0].mxu0 %v983
      %v1188 = vpop.f32.mrb[0].mxu0
      %v1189 = vadd.f32 %v915, %v1188
      %v1190 = vpop.f32.mrb[0].mxu0
      %1191 = vmatprep.mubr.f32.mxu0 0.0
      %1192 = vmatmul.mubr.f32.gmra.mrb[0].mxu0 %v986
      %v1193 = vpop.f32.mrb[0].mxu0
      %v1194 = vadd.f32 %v915, %v1193
      %v1195 = vpop.f32.mrb[0].mxu0
      %1196 = vmatprep.mubr.f32.mxu0 0.0
      %1197 = vmatmul.mubr.f32.gmra.mrb[0].mxu0 %v989
      %v1198 = vpop.f32.mrb[0].mxu0
      %v1199 = vadd.f32 %v915, %v1198
      %v1200 = vpop.f32.mrb[0].mxu0
      %1201 = vmatprep.mubr.f32.mxu0 0.0
      %1202 = vmatmul.mubr.f32.gmra.mrb[0].mxu0 %v992
      %v1203 = vpop.f32.mrb[0].mxu0
      %v1204 = vadd.f32 %v915, %v1203
      %v1205 = vpop.f32.mrb[0].mxu0
      %1206 = vmatprep.mubr.f32.mxu0 0.0
      %1207 = vmatmul.mubr.f32.gmra.mrb[0].mxu0 %v995
      %v1208 = vpop.f32.mrb[0].mxu0
      %v1209 = vadd.f32 %v915, %v1208
      %v1210 = vpop.f32.mrb[0].mxu0
      %1211 = vmatprep.mubr.f32.mxu0 0.0
      %1212 = vmatmul.mubr.f32.gmra.mrb[0].mxu0 %v998
      %v1213 = vpop.f32.mrb[0].mxu0
      %v1214 = vadd.f32 %v915, %v1213
      %v1215 = vpop.f32.mrb[0].mxu0
      %1216 = vmatprep.mubr.f32.mxu0 0.0
      %1217 = vmatmul.mubr.f32.gmra.mrb[0].mxu0 %v1001
      %v1218 = vpop.f32.mrb[0].mxu0
      %v1219 = vadd.f32 %v915, %v1218
      %v1220 = vpop.f32.mrb[0].mxu0
      %1221 = vmatprep.mubr.f32.mxu0 0.0
      %1222 = vmatmul.mubr.f32.gmra.mrb[0].mxu0 %v1004
      %v1223 = vpop.f32.mrb[0].mxu0
      %v1224 = vadd.f32 %v915, %v1223
      %v1225 = vpop.f32.mrb[0].mxu0
      %1226 = vmatprep.mubr.f32.mxu0 0.0
      %1227 = vmatmul.mubr.f32.gmra.mrb[0].mxu0 %v1007
      %v1228 = vpop.f32.mrb[0].mxu0
      %v1229 = vadd.f32 %v915, %v1228
      %v1230 = vpop.f32.mrb[0].mxu0
      %1231 = vmatprep.mubr.f32.mxu0 0.0
      %1232 = vmatmul.mubr.f32.gmra.mrb[0].mxu0 %v1010
      %v1233 = vpop.f32.mrb[0].mxu0
      %v1234 = vadd.f32 %v915, %v1233
      %v1235 = vpop.f32.mrb[0].mxu0
      %1236 = vdwg.mxu0
      %vm1237 = vcmask 31744
      %v1238 = vsel %vm1237, %v1079, -inf
      %1239 = vmax.xlane.f32.xlu0 %v1238
      %v1240 = vpop.xlane.xlu0 %1239
      %v1241 = vsel %vm1237, %v1084, -inf
      %1242 = vmax.xlane.f32.xlu0 %v1241
      %v1243 = vpop.xlane.xlu0 %1242
      %v1244 = vsel %vm1237, %v1089, -inf
      %1245 = vmax.xlane.f32.xlu0 %v1244
      %v1246 = vpop.xlane.xlu0 %1245
      %v1247 = vsel %vm1237, %v1094, -inf
      %1248 = vmax.xlane.f32.xlu0 %v1247
      %v1249 = vpop.xlane.xlu0 %1248
      %v1250 = vsel %vm1237, %v1099, -inf
      %1251 = vmax.xlane.f32.xlu0 %v1250
      %v1252 = vpop.xlane.xlu0 %1251
      %v1253 = vsel %vm1237, %v1104, -inf
      %1254 = vmax.xlane.f32.xlu0 %v1253
      %v1255 = vpop.xlane.xlu0 %1254
      %v1256 = vsel %vm1237, %v1109, -inf
      %1257 = vmax.xlane.f32.xlu0 %v1256
      %v1258 = vpop.xlane.xlu0 %1257
      %v1259 = vsel %vm1237, %v1114, -inf
      %1260 = vmax.xlane.f32.xlu0 %v1259
      %v1261 = vpop.xlane.xlu0 %1260
      %v1262 = vsel %vm1237, %v1119, -inf
      %1263 = vmax.xlane.f32.xlu0 %v1262
      %v1264 = vpop.xlane.xlu0 %1263
      %v1265 = vsel %vm1237, %v1124, -inf
      %1266 = vmax.xlane.f32.xlu0 %v1265
      %v1267 = vpop.xlane.xlu0 %1266
      %v1268 = vsel %vm1237, %v1129, -inf
      %1269 = vmax.xlane.f32.xlu0 %v1268
      %v1270 = vpop.xlane.xlu0 %1269
      %v1271 = vsel %vm1237, %v1134, -inf
      %1272 = vmax.xlane.f32.xlu0 %v1271
      %v1273 = vpop.xlane.xlu0 %1272
      %v1274 = vsel %vm1237, %v1139, -inf
      %1275 = vmax.xlane.f32.xlu0 %v1274
      %v1276 = vpop.xlane.xlu0 %1275
      %v1277 = vsel %vm1237, %v1144, -inf
      %1278 = vmax.xlane.f32.xlu0 %v1277
      %v1279 = vpop.xlane.xlu0 %1278
      %v1280 = vsel %vm1237, %v1149, -inf
      %1281 = vmax.xlane.f32.xlu0 %v1280
      %v1282 = vpop.xlane.xlu0 %1281
      %v1283 = vsel %vm1237, %v1154, -inf
      %1284 = vmax.xlane.f32.xlu0 %v1283
      %v1285 = vpop.xlane.xlu0 %1284
      %v1286 = vsel %vm1237, %v1159, -inf
      %1287 = vmax.xlane.f32.xlu0 %v1286
      %v1288 = vpop.xlane.xlu0 %1287
      %v1289 = vsel %vm1237, %v1164, -inf
      %1290 = vmax.xlane.f32.xlu0 %v1289
      %v1291 = vpop.xlane.xlu0 %1290
      %v1292 = vsel %vm1237, %v1169, -inf
      %1293 = vmax.xlane.f32.xlu0 %v1292
      %v1294 = vpop.xlane.xlu0 %1293
      %v1295 = vsel %vm1237, %v1174, -inf
      %1296 = vmax.xlane.f32.xlu0 %v1295
      %v1297 = vpop.xlane.xlu0 %1296
      %v1298 = vsel %vm1237, %v1179, -inf
      %1299 = vmax.xlane.f32.xlu0 %v1298
      %v1300 = vpop.xlane.xlu0 %1299
      %v1301 = vsel %vm1237, %v1184, -inf
      %1302 = vmax.xlane.f32.xlu0 %v1301
      %v1303 = vpop.xlane.xlu0 %1302
      %v1304 = vsel %vm1237, %v1189, -inf
      %1305 = vmax.xlane.f32.xlu0 %v1304
      %v1306 = vpop.xlane.xlu0 %1305
      %v1307 = vsel %vm1237, %v1194, -inf
      %1308 = vmax.xlane.f32.xlu0 %v1307
      %v1309 = vpop.xlane.xlu0 %1308
      %v1310 = vsel %vm1237, %v1199, -inf
      %1311 = vmax.xlane.f32.xlu0 %v1310
      %v1312 = vpop.xlane.xlu0 %1311
      %v1313 = vsel %vm1237, %v1204, -inf
      %1314 = vmax.xlane.f32.xlu0 %v1313
      %v1315 = vpop.xlane.xlu0 %1314
      %v1316 = vsel %vm1237, %v1209, -inf
      %1317 = vmax.xlane.f32.xlu0 %v1316
      %v1318 = vpop.xlane.xlu0 %1317
      %v1319 = vsel %vm1237, %v1214, -inf
      %1320 = vmax.xlane.f32.xlu0 %v1319
      %v1321 = vpop.xlane.xlu0 %1320
      %v1322 = vsel %vm1237, %v1219, -inf
      %1323 = vmax.xlane.f32.xlu0 %v1322
      %v1324 = vpop.xlane.xlu0 %1323
      %v1325 = vsel %vm1237, %v1224, -inf
      %1326 = vmax.xlane.f32.xlu0 %v1325
      %v1327 = vpop.xlane.xlu0 %1326
      %v1328 = vsel %vm1237, %v1229, -inf
      %1329 = vmax.xlane.f32.xlu0 %v1328
      %v1330 = vpop.xlane.xlu0 %1329
      %v1331 = vsel %vm1237, %v1234, -inf
      %1332 = vmax.xlane.f32.xlu0 %v1331
      %v1333 = vpop.xlane.xlu0 %1332
      %v1334 = vsub.f32 %v1079, %v1240
      %v1335 = vsub.f32 %v1084, %v1243
      %v1336 = vsub.f32 %v1089, %v1246
      %v1337 = vsub.f32 %v1094, %v1249
      %v1338 = vsub.f32 %v1099, %v1252
      %v1339 = vsub.f32 %v1104, %v1255
      %v1340 = vsub.f32 %v1109, %v1258
      %v1341 = vsub.f32 %v1114, %v1261
      %v1342 = vsub.f32 %v1119, %v1264
      %v1343 = vsub.f32 %v1124, %v1267
      %v1344 = vsub.f32 %v1129, %v1270
      %v1345 = vsub.f32 %v1134, %v1273
      %v1346 = vsub.f32 %v1139, %v1276
      %v1347 = vsub.f32 %v1144, %v1279
      %v1348 = vsub.f32 %v1149, %v1282
      %v1349 = vsub.f32 %v1154, %v1285
      %v1350 = vsub.f32 %v1159, %v1288
      %v1351 = vsub.f32 %v1164, %v1291
      %v1352 = vsub.f32 %v1169, %v1294
      %v1353 = vsub.f32 %v1174, %v1297
      %v1354 = vsub.f32 %v1179, %v1300
      %v1355 = vsub.f32 %v1184, %v1303
      %v1356 = vsub.f32 %v1189, %v1306
      %v1357 = vsub.f32 %v1194, %v1309
      %v1358 = vsub.f32 %v1199, %v1312
      %v1359 = vsub.f32 %v1204, %v1315
      %v1360 = vsub.f32 %v1209, %v1318
      %v1361 = vsub.f32 %v1214, %v1321
      %v1362 = vsub.f32 %v1219, %v1324
      %v1363 = vsub.f32 %v1224, %v1327
      %v1364 = vsub.f32 %v1229, %v1330
      %v1365 = vsub.f32 %v1234, %v1333
      %v1366 = vmul.f32 %v1334, 1.442695
      %v1367 = vpow.pop %v1366
      %v1368 = vmul.f32 %v1335, 1.442695
      %v1369 = vpow.pop %v1368
      %v1370 = vmul.f32 %v1336, 1.442695
      %v1371 = vpow.pop %v1370
      %v1372 = vmul.f32 %v1337, 1.442695
      %v1373 = vpow.pop %v1372
      %v1374 = vmul.f32 %v1338, 1.442695
      %v1375 = vpow.pop %v1374
      %v1376 = vmul.f32 %v1339, 1.442695
      %v1377 = vpow.pop %v1376
      %v1378 = vmul.f32 %v1340, 1.442695
      %v1379 = vpow.pop %v1378
      %v1380 = vmul.f32 %v1341, 1.442695
      %v1381 = vpow.pop %v1380
      %v1382 = vmul.f32 %v1342, 1.442695
      %v1383 = vpow.pop %v1382
      %v1384 = vmul.f32 %v1343, 1.442695
      %v1385 = vpow.pop %v1384
      %v1386 = vmul.f32 %v1344, 1.442695
      %v1387 = vpow.pop %v1386
      %v1388 = vmul.f32 %v1345, 1.442695
      %v1389 = vpow.pop %v1388
      %v1390 = vmul.f32 %v1346, 1.442695
      %v1391 = vpow.pop %v1390
      %v1392 = vmul.f32 %v1347, 1.442695
      %v1393 = vpow.pop %v1392
      %v1394 = vmul.f32 %v1348, 1.442695
      %v1395 = vpow.pop %v1394
      %v1396 = vmul.f32 %v1349, 1.442695
      %v1397 = vpow.pop %v1396
      %v1398 = vmul.f32 %v1350, 1.442695
      %v1399 = vpow.pop %v1398
      %v1400 = vmul.f32 %v1351, 1.442695
      %v1401 = vpow.pop %v1400
      %v1402 = vmul.f32 %v1352, 1.442695
      %v1403 = vpow.pop %v1402
      %v1404 = vmul.f32 %v1353, 1.442695
      %v1405 = vpow.pop %v1404
      %v1406 = vmul.f32 %v1354, 1.442695
      %v1407 = vpow.pop %v1406
      %v1408 = vmul.f32 %v1355, 1.442695
      %v1409 = vpow.pop %v1408
      %v1410 = vmul.f32 %v1356, 1.442695
      %v1411 = vpow.pop %v1410
      %v1412 = vmul.f32 %v1357, 1.442695
      %v1413 = vpow.pop %v1412
      %v1414 = vmul.f32 %v1358, 1.442695
      %v1415 = vpow.pop %v1414
      %v1416 = vmul.f32 %v1359, 1.442695
      %v1417 = vpow.pop %v1416
      %v1418 = vmul.f32 %v1360, 1.442695
      %v1419 = vpow.pop %v1418
      %v1420 = vmul.f32 %v1361, 1.442695
      %v1421 = vpow.pop %v1420
      %v1422 = vmul.f32 %v1362, 1.442695
      %v1423 = vpow.pop %v1422
      %v1424 = vmul.f32 %v1363, 1.442695
      %v1425 = vpow.pop %v1424
      %v1426 = vmul.f32 %v1364, 1.442695
      %v1427 = vpow.pop %v1426
      %v1428 = vmul.f32 %v1365, 1.442695
      %v1429 = vpow.pop %v1428
      %v1430 = vsel %vm1237, %v1367, 0.0
      %1431 = vadd.xlane.f32.xlu0 %v1430
      %v1432 = vpop.xlane.xlu0 %1431
      %v1433 = vsel %vm1237, %v1369, 0.0
      %1434 = vadd.xlane.f32.xlu0 %v1433
      %v1435 = vpop.xlane.xlu0 %1434
      %v1436 = vsel %vm1237, %v1371, 0.0
      %1437 = vadd.xlane.f32.xlu0 %v1436
      %v1438 = vpop.xlane.xlu0 %1437
      %v1439 = vsel %vm1237, %v1373, 0.0
      %1440 = vadd.xlane.f32.xlu0 %v1439
      %v1441 = vpop.xlane.xlu0 %1440
      %v1442 = vsel %vm1237, %v1375, 0.0
      %1443 = vadd.xlane.f32.xlu0 %v1442
      %v1444 = vpop.xlane.xlu0 %1443
      %v1445 = vsel %vm1237, %v1377, 0.0
      %1446 = vadd.xlane.f32.xlu0 %v1445
      %v1447 = vpop.xlane.xlu0 %1446
      %v1448 = vsel %vm1237, %v1379, 0.0
      %1449 = vadd.xlane.f32.xlu0 %v1448
      %v1450 = vpop.xlane.xlu0 %1449
      %v1451 = vsel %vm1237, %v1381, 0.0
      %1452 = vadd.xlane.f32.xlu0 %v1451
      %v1453 = vpop.xlane.xlu0 %1452
      %v1454 = vsel %vm1237, %v1383, 0.0
      %1455 = vadd.xlane.f32.xlu0 %v1454
      %v1456 = vpop.xlane.xlu0 %1455
      %v1457 = vsel %vm1237, %v1385, 0.0
      %1458 = vadd.xlane.f32.xlu0 %v1457
      %v1459 = vpop.xlane.xlu0 %1458
      %v1460 = vsel %vm1237, %v1387, 0.0
      %1461 = vadd.xlane.f32.xlu0 %v1460
      %v1462 = vpop.xlane.xlu0 %1461
      %v1463 = vsel %vm1237, %v1389, 0.0
      %1464 = vadd.xlane.f32.xlu0 %v1463
      %v1465 = vpop.xlane.xlu0 %1464
      %v1466 = vsel %vm1237, %v1391, 0.0
      %1467 = vadd.xlane.f32.xlu0 %v1466
      %v1468 = vpop.xlane.xlu0 %1467
      %v1469 = vsel %vm1237, %v1393, 0.0
      %1470 = vadd.xlane.f32.xlu0 %v1469
      %v1471 = vpop.xlane.xlu0 %1470
      %v1472 = vsel %vm1237, %v1395, 0.0
      %1473 = vadd.xlane.f32.xlu0 %v1472
      %v1474 = vpop.xlane.xlu0 %1473
      %v1475 = vsel %vm1237, %v1397, 0.0
      %1476 = vadd.xlane.f32.xlu0 %v1475
      %v1477 = vpop.xlane.xlu0 %1476
      %v1478 = vsel %vm1237, %v1399, 0.0
      %1479 = vadd.xlane.f32.xlu0 %v1478
      %v1480 = vpop.xlane.xlu0 %1479
      %v1481 = vsel %vm1237, %v1401, 0.0
      %1482 = vadd.xlane.f32.xlu0 %v1481
      %v1483 = vpop.xlane.xlu0 %1482
      %v1484 = vsel %vm1237, %v1403, 0.0
      %1485 = vadd.xlane.f32.xlu0 %v1484
      %v1486 = vpop.xlane.xlu0 %1485
      %v1487 = vsel %vm1237, %v1405, 0.0
      %1488 = vadd.xlane.f32.xlu0 %v1487
      %v1489 = vpop.xlane.xlu0 %1488
      %v1490 = vsel %vm1237, %v1407, 0.0
      %1491 = vadd.xlane.f32.xlu0 %v1490
      %v1492 = vpop.xlane.xlu0 %1491
      %v1493 = vsel %vm1237, %v1409, 0.0
      %1494 = vadd.xlane.f32.xlu0 %v1493
      %v1495 = vpop.xlane.xlu0 %1494
      %v1496 = vsel %vm1237, %v1411, 0.0
      %1497 = vadd.xlane.f32.xlu0 %v1496
      %v1498 = vpop.xlane.xlu0 %1497
      %v1499 = vsel %vm1237, %v1413, 0.0
      %1500 = vadd.xlane.f32.xlu0 %v1499
      %v1501 = vpop.xlane.xlu0 %1500
      %v1502 = vsel %vm1237, %v1415, 0.0
      %1503 = vadd.xlane.f32.xlu0 %v1502
      %v1504 = vpop.xlane.xlu0 %1503
      %v1505 = vsel %vm1237, %v1417, 0.0
      %1506 = vadd.xlane.f32.xlu0 %v1505
      %v1507 = vpop.xlane.xlu0 %1506
      %v1508 = vsel %vm1237, %v1419, 0.0
      %1509 = vadd.xlane.f32.xlu0 %v1508
      %v1510 = vpop.xlane.xlu0 %1509
      %v1511 = vsel %vm1237, %v1421, 0.0
      %1512 = vadd.xlane.f32.xlu0 %v1511
      %v1513 = vpop.xlane.xlu0 %1512
      %v1514 = vsel %vm1237, %v1423, 0.0
      %1515 = vadd.xlane.f32.xlu0 %v1514
      %v1516 = vpop.xlane.xlu0 %1515
      %v1517 = vsel %vm1237, %v1425, 0.0
      %1518 = vadd.xlane.f32.xlu0 %v1517
      %v1519 = vpop.xlane.xlu0 %1518
      %v1520 = vsel %vm1237, %v1427, 0.0
      %1521 = vadd.xlane.f32.xlu0 %v1520
      %v1522 = vpop.xlane.xlu0 %1521
      %v1523 = vsel %vm1237, %v1429, 0.0
      %1524 = vadd.xlane.f32.xlu0 %v1523
      %v1525 = vpop.xlane.xlu0 %1524
      %v1526 = vrcp.pop %v1432
      %v1527 = vrcp.pop %v1435
      %v1528 = vrcp.pop %v1438
      %v1529 = vrcp.pop %v1441
      %v1530 = vrcp.pop %v1444
      %v1531 = vrcp.pop %v1447
      %v1532 = vrcp.pop %v1450
      %v1533 = vrcp.pop %v1453
      %v1534 = vrcp.pop %v1456
      %v1535 = vrcp.pop %v1459
      %v1536 = vrcp.pop %v1462
      %v1537 = vrcp.pop %v1465
      %v1538 = vrcp.pop %v1468
      %v1539 = vrcp.pop %v1471
      %v1540 = vrcp.pop %v1474
      %v1541 = vrcp.pop %v1477
      %v1542 = vrcp.pop %v1480
      %v1543 = vrcp.pop %v1483
      %v1544 = vrcp.pop %v1486
      %v1545 = vrcp.pop %v1489
      %v1546 = vrcp.pop %v1492
      %v1547 = vrcp.pop %v1495
      %v1548 = vrcp.pop %v1498
      %v1549 = vrcp.pop %v1501
      %v1550 = vrcp.pop %v1504
      %v1551 = vrcp.pop %v1507
      %v1552 = vrcp.pop %v1510
      %v1553 = vrcp.pop %v1513
      %v1554 = vrcp.pop %v1516
      %v1555 = vrcp.pop %v1519
      %v1556 = vrcp.pop %v1522
      %v1557 = vrcp.pop %v1525
      %v1558 = vmul.f32 %v1367, %v1526
      %v1559 = vmul.f32 %v1369, %v1527
      %v1560 = vmul.f32 %v1371, %v1528
      %v1561 = vmul.f32 %v1373, %v1529
      %v1562 = vmul.f32 %v1375, %v1530
      %v1563 = vmul.f32 %v1377, %v1531
      %v1564 = vmul.f32 %v1379, %v1532
      %v1565 = vmul.f32 %v1381, %v1533
      %v1566 = vmul.f32 %v1383, %v1534
      %v1567 = vmul.f32 %v1385, %v1535
      %v1568 = vmul.f32 %v1387, %v1536
      %v1569 = vmul.f32 %v1389, %v1537
      %v1570 = vmul.f32 %v1391, %v1538
      %v1571 = vmul.f32 %v1393, %v1539
      %v1572 = vmul.f32 %v1395, %v1540
      %v1573 = vmul.f32 %v1397, %v1541
      %v1574 = vmul.f32 %v1399, %v1542
      %v1575 = vmul.f32 %v1401, %v1543
      %v1576 = vmul.f32 %v1403, %v1544
      %v1577 = vmul.f32 %v1405, %v1545
      %v1578 = vmul.f32 %v1407, %v1546
      %v1579 = vmul.f32 %v1409, %v1547
      %v1580 = vmul.f32 %v1411, %v1548
      %v1581 = vmul.f32 %v1413, %v1549
      %v1582 = vmul.f32 %v1415, %v1550
      %v1583 = vmul.f32 %v1417, %v1551
      %v1584 = vmul.f32 %v1419, %v1552
      %v1585 = vmul.f32 %v1421, %v1553
      %v1586 = vmul.f32 %v1423, %v1554
      %v1587 = vmul.f32 %v1425, %v1555
      %v1588 = vmul.f32 %v1427, %v1556
      %v1589 = vmul.f32 %v1429, %v1557
      %v1590 = vld [vmem:[%s1 + $0x68] sm:$0xff]
      %v1591 = vld [vmem:[%s1 + $0x70] sm:$0x1]
      %v1592 = vlaneseq
      %v1593 = vshrl.u32 %v1592, 7
      %v1594 = vsub.s32 0, %v1593
      %v1595 = vrot.slane %v1591, %v1594
      %1596 = vrot.lane.b32.xlu0 %v147, 125
      %v1597 = vpop.permute.xlu0 %1596
      %1598 = vrot.lane.b32.xlu0 %v148, 125
      %v1599 = vpop.permute.xlu0 %1598
      %1600 = vrot.lane.b32.xlu0 %v149, 125
      %v1601 = vpop.permute.xlu0 %1600
      %1602 = vrot.lane.b32.xlu0 %v150, 125
      %v1603 = vpop.permute.xlu0 %1602
      %1604 = vrot.lane.b32.xlu0 %v151, 125
      %v1605 = vpop.permute.xlu0 %1604
      %1606 = vrot.lane.b32.xlu0 %v152, 125
      %v1607 = vpop.permute.xlu0 %1606
      %1608 = vrot.lane.b32.xlu0 %v153, 125
      %v1609 = vpop.permute.xlu0 %1608
      %1610 = vrot.lane.b32.xlu0 %v154, 125
      %v1611 = vpop.permute.xlu0 %1610
      %1612 = vrot.lane.b32.xlu0 %v155, 125
      %v1613 = vpop.permute.xlu0 %1612
      %1614 = vrot.lane.b32.xlu0 %v156, 125
      %v1615 = vpop.permute.xlu0 %1614
      %1616 = vrot.lane.b32.xlu0 %v157, 125
      %v1617 = vpop.permute.xlu0 %1616
      %1618 = vrot.lane.b32.xlu0 %v158, 125
      %v1619 = vpop.permute.xlu0 %1618
      %1620 = vrot.lane.b32.xlu0 %v159, 125
      %v1621 = vpop.permute.xlu0 %1620
      %1622 = vrot.lane.b32.xlu0 %v160, 125
      %v1623 = vpop.permute.xlu0 %1622
      %1624 = vrot.lane.b32.xlu0 %v161, 125
      %v1625 = vpop.permute.xlu0 %1624
      %1626 = vrot.lane.b32.xlu0 %v162, 125
      %v1627 = vpop.permute.xlu0 %1626
      %1628 = vrot.lane.b32.xlu0 %v163, 125
      %v1629 = vpop.permute.xlu0 %1628
      %1630 = vrot.lane.b32.xlu0 %v164, 125
      %v1631 = vpop.permute.xlu0 %1630
      %1632 = vrot.lane.b32.xlu0 %v165, 125
      %v1633 = vpop.permute.xlu0 %1632
      %1634 = vrot.lane.b32.xlu0 %v166, 125
      %v1635 = vpop.permute.xlu0 %1634
      %1636 = vrot.lane.b32.xlu0 %v167, 125
      %v1637 = vpop.permute.xlu0 %1636
      %1638 = vrot.lane.b32.xlu0 %v168, 125
      %v1639 = vpop.permute.xlu0 %1638
      %1640 = vrot.lane.b32.xlu0 %v169, 125
      %v1641 = vpop.permute.xlu0 %1640
      %1642 = vrot.lane.b32.xlu0 %v170, 125
      %v1643 = vpop.permute.xlu0 %1642
      %1644 = vrot.lane.b32.xlu0 %v171, 125
      %v1645 = vpop.permute.xlu0 %1644
      %1646 = vrot.lane.b32.xlu0 %v172, 125
      %v1647 = vpop.permute.xlu0 %1646
      %1648 = vrot.lane.b32.xlu0 %v173, 125
      %v1649 = vpop.permute.xlu0 %1648
      %1650 = vrot.lane.b32.xlu0 %v174, 125
      %v1651 = vpop.permute.xlu0 %1650
      %1652 = vrot.lane.b32.xlu0 %v175, 125
      %v1653 = vpop.permute.xlu0 %1652
      %1654 = vrot.lane.b32.xlu0 %v176, 125
      %v1655 = vpop.permute.xlu0 %1654
      %1656 = vrot.lane.b32.xlu0 %v177, 125
      %v1657 = vpop.permute.xlu0 %1656
      %1658 = vrot.lane.b32.xlu0 %v178, 125
      %v1659 = vpop.permute.xlu0 %1658
      %vm1660 = vcmask 64512
      %v1661 = vsel %vm1660, %v1597, 0
      %v1663 = vsel %vm1660, %v1599, 0
      %v1665 = vsel %vm1660, %v1601, 0
      %v1667 = vsel %vm1660, %v1603, 0
      %v1669 = vsel %vm1660, %v1605, 0
      %v1671 = vsel %vm1660, %v1607, 0
      %v1673 = vsel %vm1660, %v1609, 0
      %v1675 = vsel %vm1660, %v1611, 0
      %v1677 = vsel %vm1660, %v1613, 0
      %v1679 = vsel %vm1660, %v1615, 0
      %v1681 = vsel %vm1660, %v1617, 0
      %v1683 = vsel %vm1660, %v1619, 0
      %v1685 = vsel %vm1660, %v1621, 0
      %v1687 = vsel %vm1660, %v1623, 0
      %v1689 = vsel %vm1660, %v1625, 0
      %v1691 = vsel %vm1660, %v1627, 0
      %v1693 = vsel %vm1660, %v1629, 0
      %v1695 = vsel %vm1660, %v1631, 0
      %v1697 = vsel %vm1660, %v1633, 0
      %v1699 = vsel %vm1660, %v1635, 0
      %v1701 = vsel %vm1660, %v1637, 0
      %v1703 = vsel %vm1660, %v1639, 0
      %v1705 = vsel %vm1660, %v1641, 0
      %v1707 = vsel %vm1660, %v1643, 0
      %v1709 = vsel %vm1660, %v1645, 0
      %v1711 = vsel %vm1660, %v1647, 0
      %v1713 = vsel %vm1660, %v1649, 0
      %v1715 = vsel %vm1660, %v1651, 0
      %v1717 = vsel %vm1660, %v1653, 0
      %v1719 = vsel %vm1660, %v1655, 0
      %v1721 = vsel %vm1660, %v1657, 0
      %v1723 = vsel %vm1660, %v1659, 0
      %1725 = vmatprep.subr.mxu0 0.0
      %1726 = vmatpush1.msra.mxu0 %v1590
      %1727 = vmatprep.subr.mxu0 0.0
      %1728 = vmatpush1.msra.mxu0 0.0
      %1729 = vmatprep.subr.mxu0 0.0
      %1730 = vmatpush1.msra.mxu0 0.0
      %1731 = vmatprep.subr.mxu0 0.0
      %1732 = vmatpush1.msra.mxu0 0.0
      %1733 = vmatprep.subr.mxu0 0.0
      %1734 = vmatpush1.msra.mxu0 0.0
      %1735 = vmatprep.subr.mxu0 0.0
      %1736 = vmatpush1.msra.mxu0 0.0
      %1737 = vmatprep.subr.mxu0 0.0
      %1738 = vmatpush1.msra.mxu0 0.0
      %1739 = vmatprep.subr.mxu0 0.0
      %1740 = vmatpush1.msra.mxu0 0.0
      %1741 = vmatprep.subr.mxu0 0.0
      %1742 = vmatpush1.msra.mxu0 0.0
      %1743 = vmatprep.subr.mxu0 0.0
      %1744 = vmatpush1.msra.mxu0 0.0
      %1745 = vmatprep.subr.mxu0 0.0
      %1746 = vmatpush1.msra.mxu0 0.0
      %1747 = vmatprep.subr.mxu0 0.0
      %1748 = vmatpush1.msra.mxu0 0.0
      %1749 = vmatprep.subr.mxu0 0.0
      %1750 = vmatpush1.msra.mxu0 0.0
      %1751 = vmatprep.subr.mxu0 0.0
      %1752 = vmatpush1.msra.mxu0 0.0
      %1753 = vmatprep.subr.mxu0 0.0
      %1754 = vmatpush1.msra.mxu0 0.0
      %1755 = vmatprep.subr.mxu0 0.0
      %1756 = vmatpush1.msra.mxu0 0.0
      %1757 = vmatprep.subr.mxu0 0.0
      %1758 = vmatpush1.msra.mxu0 0.0
      %1759 = vmatprep.subr.mxu0 0.0
      %1760 = vmatpush1.msra.mxu0 0.0
      %1761 = vmatprep.subr.mxu0 0.0
      %1762 = vmatpush1.msra.mxu0 0.0
      %1763 = vmatprep.subr.mxu0 0.0
      %1764 = vmatpush1.msra.mxu0 0.0
      %1765 = vmatprep.subr.mxu0 0.0
      %1766 = vmatpush1.msra.mxu0 0.0
      %1767 = vmatprep.subr.mxu0 0.0
      %1768 = vmatpush1.msra.mxu0 0.0
      %1769 = vmatprep.subr.mxu0 0.0
      %1770 = vmatpush1.msra.mxu0 0.0
      %1771 = vmatprep.subr.mxu0 0.0
      %1772 = vmatpush1.msra.mxu0 0.0
      %1773 = vmatprep.subr.mxu0 0.0
      %1774 = vmatpush1.msra.mxu0 0.0
      %1775 = vmatprep.subr.mxu0 0.0
      %1776 = vmatpush1.msra.mxu0 0.0
      %1777 = vmatprep.subr.mxu0 0.0
      %1778 = vmatpush1.msra.mxu0 0.0
      %1779 = vmatprep.subr.mxu0 0.0
      %1780 = vmatpush1.msra.mxu0 0.0
      %1781 = vmatprep.subr.mxu0 0.0
      %1782 = vmatpush1.msra.mxu0 0.0
      %1783 = vmatprep.subr.mxu0 0.0
      %1784 = vmatpush1.msra.mxu0 0.0
      %1785 = vmatprep.subr.mxu0 0.0
      %1786 = vmatpush1.msra.mxu0 0.0
      %1787 = vmatprep.subr.mxu0 0.0
      %1788 = vmatpush1.msra.mxu0 0.0
      %1789 = vmatprep.mubr.f32.mxu0 0.0
      %1790 = vmatmul.mubr.f32.gmra.mrb[0].mxu0 %v1661
      %v1791 = vpop.f32.mrb[0].mxu0
      %v1792 = vadd.f32 %v1595, %v1791
      %v1793 = vpop.f32.mrb[0].mxu0
      %1794 = vmatprep.mubr.f32.mxu0 0.0
      %1795 = vmatmul.mubr.f32.gmra.mrb[0].mxu0 %v1663
      %v1796 = vpop.f32.mrb[0].mxu0
      %v1797 = vadd.f32 %v1595, %v1796
      %v1798 = vpop.f32.mrb[0].mxu0
      %1799 = vmatprep.mubr.f32.mxu0 0.0
      %1800 = vmatmul.mubr.f32.gmra.mrb[0].mxu0 %v1665
      %v1801 = vpop.f32.mrb[0].mxu0
      %v1802 = vadd.f32 %v1595, %v1801
      %v1803 = vpop.f32.mrb[0].mxu0
      %1804 = vmatprep.mubr.f32.mxu0 0.0
      %1805 = vmatmul.mubr.f32.gmra.mrb[0].mxu0 %v1667
      %v1806 = vpop.f32.mrb[0].mxu0
      %v1807 = vadd.f32 %v1595, %v1806
      %v1808 = vpop.f32.mrb[0].mxu0
      %1809 = vmatprep.mubr.f32.mxu0 0.0
      %1810 = vmatmul.mubr.f32.gmra.mrb[0].mxu0 %v1669
      %v1811 = vpop.f32.mrb[0].mxu0
      %v1812 = vadd.f32 %v1595, %v1811
      %v1813 = vpop.f32.mrb[0].mxu0
      %1814 = vmatprep.mubr.f32.mxu0 0.0
      %1815 = vmatmul.mubr.f32.gmra.mrb[0].mxu0 %v1671
      %v1816 = vpop.f32.mrb[0].mxu0
      %v1817 = vadd.f32 %v1595, %v1816
      %v1818 = vpop.f32.mrb[0].mxu0
      %1819 = vmatprep.mubr.f32.mxu0 0.0
      %1820 = vmatmul.mubr.f32.gmra.mrb[0].mxu0 %v1673
      %v1821 = vpop.f32.mrb[0].mxu0
      %v1822 = vadd.f32 %v1595, %v1821
      %v1823 = vpop.f32.mrb[0].mxu0
      %1824 = vmatprep.mubr.f32.mxu0 0.0
      %1825 = vmatmul.mubr.f32.gmra.mrb[0].mxu0 %v1675
      %v1826 = vpop.f32.mrb[0].mxu0
      %v1827 = vadd.f32 %v1595, %v1826
      %v1828 = vpop.f32.mrb[0].mxu0
      %1829 = vmatprep.mubr.f32.mxu0 0.0
      %1830 = vmatmul.mubr.f32.gmra.mrb[0].mxu0 %v1677
      %v1831 = vpop.f32.mrb[0].mxu0
      %v1832 = vadd.f32 %v1595, %v1831
      %v1833 = vpop.f32.mrb[0].mxu0
      %1834 = vmatprep.mubr.f32.mxu0 0.0
      %1835 = vmatmul.mubr.f32.gmra.mrb[0].mxu0 %v1679
      %v1836 = vpop.f32.mrb[0].mxu0
      %v1837 = vadd.f32 %v1595, %v1836
      %v1838 = vpop.f32.mrb[0].mxu0
      %1839 = vmatprep.mubr.f32.mxu0 0.0
      %1840 = vmatmul.mubr.f32.gmra.mrb[0].mxu0 %v1681
      %v1841 = vpop.f32.mrb[0].mxu0
      %v1842 = vadd.f32 %v1595, %v1841
      %v1843 = vpop.f32.mrb[0].mxu0
      %1844 = vmatprep.mubr.f32.mxu0 0.0
      %1845 = vmatmul.mubr.f32.gmra.mrb[0].mxu0 %v1683
      %v1846 = vpop.f32.mrb[0].mxu0
      %v1847 = vadd.f32 %v1595, %v1846
      %v1848 = vpop.f32.mrb[0].mxu0
      %1849 = vmatprep.mubr.f32.mxu0 0.0
      %1850 = vmatmul.mubr.f32.gmra.mrb[0].mxu0 %v1685
      %v1851 = vpop.f32.mrb[0].mxu0
      %v1852 = vadd.f32 %v1595, %v1851
      %v1853 = vpop.f32.mrb[0].mxu0
      %1854 = vmatprep.mubr.f32.mxu0 0.0
      %1855 = vmatmul.mubr.f32.gmra.mrb[0].mxu0 %v1687
      %v1856 = vpop.f32.mrb[0].mxu0
      %v1857 = vadd.f32 %v1595, %v1856
      %v1858 = vpop.f32.mrb[0].mxu0
      %1859 = vmatprep.mubr.f32.mxu0 0.0
      %1860 = vmatmul.mubr.f32.gmra.mrb[0].mxu0 %v1689
      %v1861 = vpop.f32.mrb[0].mxu0
      %v1862 = vadd.f32 %v1595, %v1861
      %v1863 = vpop.f32.mrb[0].mxu0
      %1864 = vmatprep.mubr.f32.mxu0 0.0
      %1865 = vmatmul.mubr.f32.gmra.mrb[0].mxu0 %v1691
      %v1866 = vpop.f32.mrb[0].mxu0
      %v1867 = vadd.f32 %v1595, %v1866
      %v1868 = vpop.f32.mrb[0].mxu0
      %1869 = vmatprep.mubr.f32.mxu0 0.0
      %1870 = vmatmul.mubr.f32.gmra.mrb[0].mxu0 %v1693
      %v1871 = vpop.f32.mrb[0].mxu0
      %v1872 = vadd.f32 %v1595, %v1871
      %v1873 = vpop.f32.mrb[0].mxu0
      %1874 = vmatprep.mubr.f32.mxu0 0.0
      %1875 = vmatmul.mubr.f32.gmra.mrb[0].mxu0 %v1695
      %v1876 = vpop.f32.mrb[0].mxu0
      %v1877 = vadd.f32 %v1595, %v1876
      %v1878 = vpop.f32.mrb[0].mxu0
      %1879 = vmatprep.mubr.f32.mxu0 0.0
      %1880 = vmatmul.mubr.f32.gmra.mrb[0].mxu0 %v1697
      %v1881 = vpop.f32.mrb[0].mxu0
      %v1882 = vadd.f32 %v1595, %v1881
      %v1883 = vpop.f32.mrb[0].mxu0
      %1884 = vmatprep.mubr.f32.mxu0 0.0
      %1885 = vmatmul.mubr.f32.gmra.mrb[0].mxu0 %v1699
      %v1886 = vpop.f32.mrb[0].mxu0
      %v1887 = vadd.f32 %v1595, %v1886
      %v1888 = vpop.f32.mrb[0].mxu0
      %1889 = vmatprep.mubr.f32.mxu0 0.0
      %1890 = vmatmul.mubr.f32.gmra.mrb[0].mxu0 %v1701
      %v1891 = vpop.f32.mrb[0].mxu0
      %v1892 = vadd.f32 %v1595, %v1891
      %v1893 = vpop.f32.mrb[0].mxu0
      %1894 = vmatprep.mubr.f32.mxu0 0.0
      %1895 = vmatmul.mubr.f32.gmra.mrb[0].mxu0 %v1703
      %v1896 = vpop.f32.mrb[0].mxu0
      %v1897 = vadd.f32 %v1595, %v1896
      %v1898 = vpop.f32.mrb[0].mxu0
      %1899 = vmatprep.mubr.f32.mxu0 0.0
      %1900 = vmatmul.mubr.f32.gmra.mrb[0].mxu0 %v1705
      %v1901 = vpop.f32.mrb[0].mxu0
      %v1902 = vadd.f32 %v1595, %v1901
      %v1903 = vpop.f32.mrb[0].mxu0
      %1904 = vmatprep.mubr.f32.mxu0 0.0
      %1905 = vmatmul.mubr.f32.gmra.mrb[0].mxu0 %v1707
      %v1906 = vpop.f32.mrb[0].mxu0
      %v1907 = vadd.f32 %v1595, %v1906
      %v1908 = vpop.f32.mrb[0].mxu0
      %1909 = vmatprep.mubr.f32.mxu0 0.0
      %1910 = vmatmul.mubr.f32.gmra.mrb[0].mxu0 %v1709
      %v1911 = vpop.f32.mrb[0].mxu0
      %v1912 = vadd.f32 %v1595, %v1911
      %v1913 = vpop.f32.mrb[0].mxu0
      %1914 = vmatprep.mubr.f32.mxu0 0.0
      %1915 = vmatmul.mubr.f32.gmra.mrb[0].mxu0 %v1711
      %v1916 = vpop.f32.mrb[0].mxu0
      %v1917 = vadd.f32 %v1595, %v1916
      %v1918 = vpop.f32.mrb[0].mxu0
      %1919 = vmatprep.mubr.f32.mxu0 0.0
      %1920 = vmatmul.mubr.f32.gmra.mrb[0].mxu0 %v1713
      %v1921 = vpop.f32.mrb[0].mxu0
      %v1922 = vadd.f32 %v1595, %v1921
      %v1923 = vpop.f32.mrb[0].mxu0
      %1924 = vmatprep.mubr.f32.mxu0 0.0
      %1925 = vmatmul.mubr.f32.gmra.mrb[0].mxu0 %v1715
      %v1926 = vpop.f32.mrb[0].mxu0
      %v1927 = vadd.f32 %v1595, %v1926
      %v1928 = vpop.f32.mrb[0].mxu0
      %1929 = vmatprep.mubr.f32.mxu0 0.0
      %1930 = vmatmul.mubr.f32.gmra.mrb[0].mxu0 %v1717
      %v1931 = vpop.f32.mrb[0].mxu0
      %v1932 = vadd.f32 %v1595, %v1931
      %v1933 = vpop.f32.mrb[0].mxu0
      %1934 = vmatprep.mubr.f32.mxu0 0.0
      %1935 = vmatmul.mubr.f32.gmra.mrb[0].mxu0 %v1719
      %v1936 = vpop.f32.mrb[0].mxu0
      %v1937 = vadd.f32 %v1595, %v1936
      %v1938 = vpop.f32.mrb[0].mxu0
      %1939 = vmatprep.mubr.f32.mxu0 0.0
      %1940 = vmatmul.mubr.f32.gmra.mrb[0].mxu0 %v1721
      %v1941 = vpop.f32.mrb[0].mxu0
      %v1942 = vadd.f32 %v1595, %v1941
      %v1943 = vpop.f32.mrb[0].mxu0
      %1944 = vmatprep.mubr.f32.mxu0 0.0
      %1945 = vmatmul.mubr.f32.gmra.mrb[0].mxu0 %v1723
      %v1946 = vpop.f32.mrb[0].mxu0
      %v1947 = vadd.f32 %v1595, %v1946
      %v1948 = vpop.f32.mrb[0].mxu0
      %1949 = vdwg.mxu0
      %v1950 = vmax.f32 %v1792, 0.0
      %v1951 = vmax.f32 %v1797, 0.0
      %v1952 = vmax.f32 %v1802, 0.0
      %v1953 = vmax.f32 %v1807, 0.0
      %v1954 = vmax.f32 %v1812, 0.0
      %v1955 = vmax.f32 %v1817, 0.0
      %v1956 = vmax.f32 %v1822, 0.0
      %v1957 = vmax.f32 %v1827, 0.0
      %v1958 = vmax.f32 %v1832, 0.0
      %v1959 = vmax.f32 %v1837, 0.0
      %v1960 = vmax.f32 %v1842, 0.0
      %v1961 = vmax.f32 %v1847, 0.0
      %v1962 = vmax.f32 %v1852, 0.0
      %v1963 = vmax.f32 %v1857, 0.0
      %v1964 = vmax.f32 %v1862, 0.0
      %v1965 = vmax.f32 %v1867, 0.0
      %v1966 = vmax.f32 %v1872, 0.0
      %v1967 = vmax.f32 %v1877, 0.0
      %v1968 = vmax.f32 %v1882, 0.0
      %v1969 = vmax.f32 %v1887, 0.0
      %v1970 = vmax.f32 %v1892, 0.0
      %v1971 = vmax.f32 %v1897, 0.0
      %v1972 = vmax.f32 %v1902, 0.0
      %v1973 = vmax.f32 %v1907, 0.0
      %v1974 = vmax.f32 %v1912, 0.0
      %v1975 = vmax.f32 %v1917, 0.0
      %v1976 = vmax.f32 %v1922, 0.0
      %v1977 = vmax.f32 %v1927, 0.0
      %v1978 = vmax.f32 %v1932, 0.0
      %v1979 = vmax.f32 %v1937, 0.0
      %v1980 = vmax.f32 %v1942, 0.0
      %v1981 = vmax.f32 %v1947, 0.0
      %v1982 = vld [vmem:[%s1 + $0x78] sm:$0xff]
      %v1983 = vld [vmem:[%s1 + $0x80] sm:$0xff]
      %v1984 = vld [vmem:[%s1 + $0x88] sm:$0x1]
      %v1985 = vlaneseq
      %v1986 = vshrl.u32 %v1985, 7
      %v1987 = vsub.s32 0, %v1986
      %v1988 = vrot.slane %v1984, %v1987
      %vm1989 = vcmask 130048
      %v1991 = vsel %vm1989, %v1950, 0
      %v1994 = vsel %vm1989, %v1951, 0
      %v1997 = vsel %vm1989, %v1952, 0
      %v2000 = vsel %vm1989, %v1953, 0
      %v2003 = vsel %vm1989, %v1954, 0
      %v2006 = vsel %vm1989, %v1955, 0
      %v2009 = vsel %vm1989, %v1956, 0
      %v2012 = vsel %vm1989, %v1957, 0
      %v2015 = vsel %vm1989, %v1958, 0
      %v2018 = vsel %vm1989, %v1959, 0
      %v2021 = vsel %vm1989, %v1960, 0
      %v2024 = vsel %vm1989, %v1961, 0
      %v2027 = vsel %vm1989, %v1962, 0
      %v2030 = vsel %vm1989, %v1963, 0
      %v2033 = vsel %vm1989, %v1964, 0
      %v2036 = vsel %vm1989, %v1965, 0
      %v2039 = vsel %vm1989, %v1966, 0
      %v2042 = vsel %vm1989, %v1967, 0
      %v2045 = vsel %vm1989, %v1968, 0
      %v2048 = vsel %vm1989, %v1969, 0
      %v2051 = vsel %vm1989, %v1970, 0
      %v2054 = vsel %vm1989, %v1971, 0
      %v2057 = vsel %vm1989, %v1972, 0
      %v2060 = vsel %vm1989, %v1973, 0
      %v2063 = vsel %vm1989, %v1974, 0
      %v2066 = vsel %vm1989, %v1975, 0
      %v2069 = vsel %vm1989, %v1976, 0
      %v2072 = vsel %vm1989, %v1977, 0
      %v2075 = vsel %vm1989, %v1978, 0
      %v2078 = vsel %vm1989, %v1979, 0
      %v2081 = vsel %vm1989, %v1980, 0
      %v2084 = vsel %vm1989, %v1981, 0
      %2086 = vmatprep.subr.mxu0 0.0
      %2087 = vmatpush1.msra.mxu0 %v1982
      %2088 = vmatprep.subr.mxu0 0.0
      %2089 = vmatpush1.msra.mxu0 %v1983
      %2090 = vmatprep.subr.mxu0 0.0
      %2091 = vmatpush1.msra.mxu0 0.0
      %2092 = vmatprep.subr.mxu0 0.0
      %2093 = vmatpush1.msra.mxu0 0.0
      %2094 = vmatprep.subr.mxu0 0.0
      %2095 = vmatpush1.msra.mxu0 0.0
      %2096 = vmatprep.subr.mxu0 0.0
      %2097 = vmatpush1.msra.mxu0 0.0
      %2098 = vmatprep.subr.mxu0 0.0
      %2099 = vmatpush1.msra.mxu0 0.0
      %2100 = vmatprep.subr.mxu0 0.0
      %2101 = vmatpush1.msra.mxu0 0.0
      %2102 = vmatprep.subr.mxu0 0.0
      %2103 = vmatpush1.msra.mxu0 0.0
      %2104 = vmatprep.subr.mxu0 0.0
      %2105 = vmatpush1.msra.mxu0 0.0
      %2106 = vmatprep.subr.mxu0 0.0
      %2107 = vmatpush1.msra.mxu0 0.0
      %2108 = vmatprep.subr.mxu0 0.0
      %2109 = vmatpush1.msra.mxu0 0.0
      %2110 = vmatprep.subr.mxu0 0.0
      %2111 = vmatpush1.msra.mxu0 0.0
      %2112 = vmatprep.subr.mxu0 0.0
      %2113 = vmatpush1.msra.mxu0 0.0
      %2114 = vmatprep.subr.mxu0 0.0
      %2115 = vmatpush1.msra.mxu0 0.0
      %2116 = vmatprep.subr.mxu0 0.0
      %2117 = vmatpush1.msra.mxu0 0.0
      %2118 = vmatprep.subr.mxu0 0.0
      %2119 = vmatpush1.msra.mxu0 0.0
      %2120 = vmatprep.subr.mxu0 0.0
      %2121 = vmatpush1.msra.mxu0 0.0
      %2122 = vmatprep.subr.mxu0 0.0
      %2123 = vmatpush1.msra.mxu0 0.0
      %2124 = vmatprep.subr.mxu0 0.0
      %2125 = vmatpush1.msra.mxu0 0.0
      %2126 = vmatprep.subr.mxu0 0.0
      %2127 = vmatpush1.msra.mxu0 0.0
      %2128 = vmatprep.subr.mxu0 0.0
      %2129 = vmatpush1.msra.mxu0 0.0
      %2130 = vmatprep.subr.mxu0 0.0
      %2131 = vmatpush1.msra.mxu0 0.0
      %2132 = vmatprep.subr.mxu0 0.0
      %2133 = vmatpush1.msra.mxu0 0.0
      %2134 = vmatprep.subr.mxu0 0.0
      %2135 = vmatpush1.msra.mxu0 0.0
      %2136 = vmatprep.subr.mxu0 0.0
      %2137 = vmatpush1.msra.mxu0 0.0
      %2138 = vmatprep.subr.mxu0 0.0
      %2139 = vmatpush1.msra.mxu0 0.0
      %2140 = vmatprep.subr.mxu0 0.0
      %2141 = vmatpush1.msra.mxu0 0.0
      %2142 = vmatprep.subr.mxu0 0.0
      %2143 = vmatpush1.msra.mxu0 0.0
      %2144 = vmatprep.subr.mxu0 0.0
      %2145 = vmatpush1.msra.mxu0 0.0
      %2146 = vmatprep.subr.mxu0 0.0
      %2147 = vmatpush1.msra.mxu0 0.0
      %2148 = vmatprep.subr.mxu0 0.0
      %2149 = vmatpush1.msra.mxu0 0.0
      %2150 = vmatprep.mubr.f32.mxu0 0.0
      %2151 = vmatmul.mubr.f32.gmra.mrb[0].mxu0 %v1991
      %v2152 = vpop.f32.mrb[0].mxu0
      %v2153 = vadd.f32 %v1988, %v2152
      %v2154 = vpop.f32.mrb[0].mxu0
      %2155 = vmatprep.mubr.f32.mxu0 0.0
      %2156 = vmatmul.mubr.f32.gmra.mrb[0].mxu0 %v1994
      %v2157 = vpop.f32.mrb[0].mxu0
      %v2158 = vadd.f32 %v1988, %v2157
      %v2159 = vpop.f32.mrb[0].mxu0
      %2160 = vmatprep.mubr.f32.mxu0 0.0
      %2161 = vmatmul.mubr.f32.gmra.mrb[0].mxu0 %v1997
      %v2162 = vpop.f32.mrb[0].mxu0
      %v2163 = vadd.f32 %v1988, %v2162
      %v2164 = vpop.f32.mrb[0].mxu0
      %2165 = vmatprep.mubr.f32.mxu0 0.0
      %2166 = vmatmul.mubr.f32.gmra.mrb[0].mxu0 %v2000
      %v2167 = vpop.f32.mrb[0].mxu0
      %v2168 = vadd.f32 %v1988, %v2167
      %v2169 = vpop.f32.mrb[0].mxu0
      %2170 = vmatprep.mubr.f32.mxu0 0.0
      %2171 = vmatmul.mubr.f32.gmra.mrb[0].mxu0 %v2003
      %v2172 = vpop.f32.mrb[0].mxu0
      %v2173 = vadd.f32 %v1988, %v2172
      %v2174 = vpop.f32.mrb[0].mxu0
      %2175 = vmatprep.mubr.f32.mxu0 0.0
      %2176 = vmatmul.mubr.f32.gmra.mrb[0].mxu0 %v2006
      %v2177 = vpop.f32.mrb[0].mxu0
      %v2178 = vadd.f32 %v1988, %v2177
      %v2179 = vpop.f32.mrb[0].mxu0
      %2180 = vmatprep.mubr.f32.mxu0 0.0
      %2181 = vmatmul.mubr.f32.gmra.mrb[0].mxu0 %v2009
      %v2182 = vpop.f32.mrb[0].mxu0
      %v2183 = vadd.f32 %v1988, %v2182
      %v2184 = vpop.f32.mrb[0].mxu0
      %2185 = vmatprep.mubr.f32.mxu0 0.0
      %2186 = vmatmul.mubr.f32.gmra.mrb[0].mxu0 %v2012
      %v2187 = vpop.f32.mrb[0].mxu0
      %v2188 = vadd.f32 %v1988, %v2187
      %v2189 = vpop.f32.mrb[0].mxu0
      %2190 = vmatprep.mubr.f32.mxu0 0.0
      %2191 = vmatmul.mubr.f32.gmra.mrb[0].mxu0 %v2015
      %v2192 = vpop.f32.mrb[0].mxu0
      %v2193 = vadd.f32 %v1988, %v2192
      %v2194 = vpop.f32.mrb[0].mxu0
      %2195 = vmatprep.mubr.f32.mxu0 0.0
      %2196 = vmatmul.mubr.f32.gmra.mrb[0].mxu0 %v2018
      %v2197 = vpop.f32.mrb[0].mxu0
      %v2198 = vadd.f32 %v1988, %v2197
      %v2199 = vpop.f32.mrb[0].mxu0
      %2200 = vmatprep.mubr.f32.mxu0 0.0
      %2201 = vmatmul.mubr.f32.gmra.mrb[0].mxu0 %v2021
      %v2202 = vpop.f32.mrb[0].mxu0
      %v2203 = vadd.f32 %v1988, %v2202
      %v2204 = vpop.f32.mrb[0].mxu0
      %2205 = vmatprep.mubr.f32.mxu0 0.0
      %2206 = vmatmul.mubr.f32.gmra.mrb[0].mxu0 %v2024
      %v2207 = vpop.f32.mrb[0].mxu0
      %v2208 = vadd.f32 %v1988, %v2207
      %v2209 = vpop.f32.mrb[0].mxu0
      %2210 = vmatprep.mubr.f32.mxu0 0.0
      %2211 = vmatmul.mubr.f32.gmra.mrb[0].mxu0 %v2027
      %v2212 = vpop.f32.mrb[0].mxu0
      %v2213 = vadd.f32 %v1988, %v2212
      %v2214 = vpop.f32.mrb[0].mxu0
      %2215 = vmatprep.mubr.f32.mxu0 0.0
      %2216 = vmatmul.mubr.f32.gmra.mrb[0].mxu0 %v2030
      %v2217 = vpop.f32.mrb[0].mxu0
      %v2218 = vadd.f32 %v1988, %v2217
      %v2219 = vpop.f32.mrb[0].mxu0
      %2220 = vmatprep.mubr.f32.mxu0 0.0
      %2221 = vmatmul.mubr.f32.gmra.mrb[0].mxu0 %v2033
      %v2222 = vpop.f32.mrb[0].mxu0
      %v2223 = vadd.f32 %v1988, %v2222
      %v2224 = vpop.f32.mrb[0].mxu0
      %2225 = vmatprep.mubr.f32.mxu0 0.0
      %2226 = vmatmul.mubr.f32.gmra.mrb[0].mxu0 %v2036
      %v2227 = vpop.f32.mrb[0].mxu0
      %v2228 = vadd.f32 %v1988, %v2227
      %v2229 = vpop.f32.mrb[0].mxu0
      %2230 = vmatprep.mubr.f32.mxu0 0.0
      %2231 = vmatmul.mubr.f32.gmra.mrb[0].mxu0 %v2039
      %v2232 = vpop.f32.mrb[0].mxu0
      %v2233 = vadd.f32 %v1988, %v2232
      %v2234 = vpop.f32.mrb[0].mxu0
      %2235 = vmatprep.mubr.f32.mxu0 0.0
      %2236 = vmatmul.mubr.f32.gmra.mrb[0].mxu0 %v2042
      %v2237 = vpop.f32.mrb[0].mxu0
      %v2238 = vadd.f32 %v1988, %v2237
      %v2239 = vpop.f32.mrb[0].mxu0
      %2240 = vmatprep.mubr.f32.mxu0 0.0
      %2241 = vmatmul.mubr.f32.gmra.mrb[0].mxu0 %v2045
      %v2242 = vpop.f32.mrb[0].mxu0
      %v2243 = vadd.f32 %v1988, %v2242
      %v2244 = vpop.f32.mrb[0].mxu0
      %2245 = vmatprep.mubr.f32.mxu0 0.0
      %2246 = vmatmul.mubr.f32.gmra.mrb[0].mxu0 %v2048
      %v2247 = vpop.f32.mrb[0].mxu0
      %v2248 = vadd.f32 %v1988, %v2247
      %v2249 = vpop.f32.mrb[0].mxu0
      %2250 = vmatprep.mubr.f32.mxu0 0.0
      %2251 = vmatmul.mubr.f32.gmra.mrb[0].mxu0 %v2051
      %v2252 = vpop.f32.mrb[0].mxu0
      %v2253 = vadd.f32 %v1988, %v2252
      %v2254 = vpop.f32.mrb[0].mxu0
      %2255 = vmatprep.mubr.f32.mxu0 0.0
      %2256 = vmatmul.mubr.f32.gmra.mrb[0].mxu0 %v2054
      %v2257 = vpop.f32.mrb[0].mxu0
      %v2258 = vadd.f32 %v1988, %v2257
      %v2259 = vpop.f32.mrb[0].mxu0
      %2260 = vmatprep.mubr.f32.mxu0 0.0
      %2261 = vmatmul.mubr.f32.gmra.mrb[0].mxu0 %v2057
      %v2262 = vpop.f32.mrb[0].mxu0
      %v2263 = vadd.f32 %v1988, %v2262
      %v2264 = vpop.f32.mrb[0].mxu0
      %2265 = vmatprep.mubr.f32.mxu0 0.0
      %2266 = vmatmul.mubr.f32.gmra.mrb[0].mxu0 %v2060
      %v2267 = vpop.f32.mrb[0].mxu0
      %v2268 = vadd.f32 %v1988, %v2267
      %v2269 = vpop.f32.mrb[0].mxu0
      %2270 = vmatprep.mubr.f32.mxu0 0.0
      %2271 = vmatmul.mubr.f32.gmra.mrb[0].mxu0 %v2063
      %v2272 = vpop.f32.mrb[0].mxu0
      %v2273 = vadd.f32 %v1988, %v2272
      %v2274 = vpop.f32.mrb[0].mxu0
      %2275 = vmatprep.mubr.f32.mxu0 0.0
      %2276 = vmatmul.mubr.f32.gmra.mrb[0].mxu0 %v2066
      %v2277 = vpop.f32.mrb[0].mxu0
      %v2278 = vadd.f32 %v1988, %v2277
      %v2279 = vpop.f32.mrb[0].mxu0
      %2280 = vmatprep.mubr.f32.mxu0 0.0
      %2281 = vmatmul.mubr.f32.gmra.mrb[0].mxu0 %v2069
      %v2282 = vpop.f32.mrb[0].mxu0
      %v2283 = vadd.f32 %v1988, %v2282
      %v2284 = vpop.f32.mrb[0].mxu0
      %2285 = vmatprep.mubr.f32.mxu0 0.0
      %2286 = vmatmul.mubr.f32.gmra.mrb[0].mxu0 %v2072
      %v2287 = vpop.f32.mrb[0].mxu0
      %v2288 = vadd.f32 %v1988, %v2287
      %v2289 = vpop.f32.mrb[0].mxu0
      %2290 = vmatprep.mubr.f32.mxu0 0.0
      %2291 = vmatmul.mubr.f32.gmra.mrb[0].mxu0 %v2075
      %v2292 = vpop.f32.mrb[0].mxu0
      %v2293 = vadd.f32 %v1988, %v2292
      %v2294 = vpop.f32.mrb[0].mxu0
      %2295 = vmatprep.mubr.f32.mxu0 0.0
      %2296 = vmatmul.mubr.f32.gmra.mrb[0].mxu0 %v2078
      %v2297 = vpop.f32.mrb[0].mxu0
      %v2298 = vadd.f32 %v1988, %v2297
      %v2299 = vpop.f32.mrb[0].mxu0
      %2300 = vmatprep.mubr.f32.mxu0 0.0
      %2301 = vmatmul.mubr.f32.gmra.mrb[0].mxu0 %v2081
      %v2302 = vpop.f32.mrb[0].mxu0
      %v2303 = vadd.f32 %v1988, %v2302
      %v2304 = vpop.f32.mrb[0].mxu0
      %2305 = vmatprep.mubr.f32.mxu0 0.0
      %2306 = vmatmul.mubr.f32.gmra.mrb[0].mxu0 %v2084
      %v2307 = vpop.f32.mrb[0].mxu0
      %v2308 = vadd.f32 %v1988, %v2307
      %v2309 = vpop.f32.mrb[0].mxu0
      %2310 = vdwg.mxu0
      %v2311 = vmax.f32 %v2153, 0.0
      %v2312 = vmax.f32 %v2158, 0.0
      %v2313 = vmax.f32 %v2163, 0.0
      %v2314 = vmax.f32 %v2168, 0.0
      %v2315 = vmax.f32 %v2173, 0.0
      %v2316 = vmax.f32 %v2178, 0.0
      %v2317 = vmax.f32 %v2183, 0.0
      %v2318 = vmax.f32 %v2188, 0.0
      %v2319 = vmax.f32 %v2193, 0.0
      %v2320 = vmax.f32 %v2198, 0.0
      %v2321 = vmax.f32 %v2203, 0.0
      %v2322 = vmax.f32 %v2208, 0.0
      %v2323 = vmax.f32 %v2213, 0.0
      %v2324 = vmax.f32 %v2218, 0.0
      %v2325 = vmax.f32 %v2223, 0.0
      %v2326 = vmax.f32 %v2228, 0.0
      %v2327 = vmax.f32 %v2233, 0.0
      %v2328 = vmax.f32 %v2238, 0.0
      %v2329 = vmax.f32 %v2243, 0.0
      %v2330 = vmax.f32 %v2248, 0.0
      %v2331 = vmax.f32 %v2253, 0.0
      %v2332 = vmax.f32 %v2258, 0.0
      %v2333 = vmax.f32 %v2263, 0.0
      %v2334 = vmax.f32 %v2268, 0.0
      %v2335 = vmax.f32 %v2273, 0.0
      %v2336 = vmax.f32 %v2278, 0.0
      %v2337 = vmax.f32 %v2283, 0.0
      %v2338 = vmax.f32 %v2288, 0.0
      %v2339 = vmax.f32 %v2293, 0.0
      %v2340 = vmax.f32 %v2298, 0.0
      %v2341 = vmax.f32 %v2303, 0.0
      %v2342 = vmax.f32 %v2308, 0.0
      %v2343 = vld [vmem:[%s1 + $0x90] sm:$0xff]
      %v2344 = vld [vmem:[%s1 + $0x98] sm:$0xff]
      %v2345 = vld [vmem:[%s1 + $0xa0] sm:$0x1]
      %v2346 = vlaneseq
      %v2347 = vshrl.u32 %v2346, 7
      %v2348 = vsub.s32 0, %v2347
      %v2349 = vrot.slane %v2345, %v2348
      %v2351 = vsel %vm1989, %v2311, 0
      %v2354 = vsel %vm1989, %v2312, 0
      %v2357 = vsel %vm1989, %v2313, 0
      %v2360 = vsel %vm1989, %v2314, 0
      %v2363 = vsel %vm1989, %v2315, 0
      %v2366 = vsel %vm1989, %v2316, 0
      %v2369 = vsel %vm1989, %v2317, 0
      %v2372 = vsel %vm1989, %v2318, 0
      %v2375 = vsel %vm1989, %v2319, 0
      %v2378 = vsel %vm1989, %v2320, 0
      %v2381 = vsel %vm1989, %v2321, 0
      %v2384 = vsel %vm1989, %v2322, 0
      %v2387 = vsel %vm1989, %v2323, 0
      %v2390 = vsel %vm1989, %v2324, 0
      %v2393 = vsel %vm1989, %v2325, 0
      %v2396 = vsel %vm1989, %v2326, 0
      %v2399 = vsel %vm1989, %v2327, 0
      %v2402 = vsel %vm1989, %v2328, 0
      %v2405 = vsel %vm1989, %v2329, 0
      %v2408 = vsel %vm1989, %v2330, 0
      %v2411 = vsel %vm1989, %v2331, 0
      %v2414 = vsel %vm1989, %v2332, 0
      %v2417 = vsel %vm1989, %v2333, 0
      %v2420 = vsel %vm1989, %v2334, 0
      %v2423 = vsel %vm1989, %v2335, 0
      %v2426 = vsel %vm1989, %v2336, 0
      %v2429 = vsel %vm1989, %v2337, 0
      %v2432 = vsel %vm1989, %v2338, 0
      %v2435 = vsel %vm1989, %v2339, 0
      %v2438 = vsel %vm1989, %v2340, 0
      %v2441 = vsel %vm1989, %v2341, 0
      %v2444 = vsel %vm1989, %v2342, 0
      %2446 = vmatprep.subr.mxu0 0.0
      %2447 = vmatpush1.msra.mxu0 %v2343
      %2448 = vmatprep.subr.mxu0 0.0
      %2449 = vmatpush1.msra.mxu0 %v2344
      %2450 = vmatprep.subr.mxu0 0.0
      %2451 = vmatpush1.msra.mxu0 0.0
      %2452 = vmatprep.subr.mxu0 0.0
      %2453 = vmatpush1.msra.mxu0 0.0
      %2454 = vmatprep.subr.mxu0 0.0
      %2455 = vmatpush1.msra.mxu0 0.0
      %2456 = vmatprep.subr.mxu0 0.0
      %2457 = vmatpush1.msra.mxu0 0.0
      %2458 = vmatprep.subr.mxu0 0.0
      %2459 = vmatpush1.msra.mxu0 0.0
      %2460 = vmatprep.subr.mxu0 0.0
      %2461 = vmatpush1.msra.mxu0 0.0
      %2462 = vmatprep.subr.mxu0 0.0
      %2463 = vmatpush1.msra.mxu0 0.0
      %2464 = vmatprep.subr.mxu0 0.0
      %2465 = vmatpush1.msra.mxu0 0.0
      %2466 = vmatprep.subr.mxu0 0.0
      %2467 = vmatpush1.msra.mxu0 0.0
      %2468 = vmatprep.subr.mxu0 0.0
      %2469 = vmatpush1.msra.mxu0 0.0
      %2470 = vmatprep.subr.mxu0 0.0
      %2471 = vmatpush1.msra.mxu0 0.0
      %2472 = vmatprep.subr.mxu0 0.0
      %2473 = vmatpush1.msra.mxu0 0.0
      %2474 = vmatprep.subr.mxu0 0.0
      %2475 = vmatpush1.msra.mxu0 0.0
      %2476 = vmatprep.subr.mxu0 0.0
      %2477 = vmatpush1.msra.mxu0 0.0
      %2478 = vmatprep.subr.mxu0 0.0
      %2479 = vmatpush1.msra.mxu0 0.0
      %2480 = vmatprep.subr.mxu0 0.0
      %2481 = vmatpush1.msra.mxu0 0.0
      %2482 = vmatprep.subr.mxu0 0.0
      %2483 = vmatpush1.msra.mxu0 0.0
      %2484 = vmatprep.subr.mxu0 0.0
      %2485 = vmatpush1.msra.mxu0 0.0
      %2486 = vmatprep.subr.mxu0 0.0
      %2487 = vmatpush1.msra.mxu0 0.0
      %2488 = vmatprep.subr.mxu0 0.0
      %2489 = vmatpush1.msra.mxu0 0.0
      %2490 = vmatprep.subr.mxu0 0.0
      %2491 = vmatpush1.msra.mxu0 0.0
      %2492 = vmatprep.subr.mxu0 0.0
      %2493 = vmatpush1.msra.mxu0 0.0
      %2494 = vmatprep.subr.mxu0 0.0
      %2495 = vmatpush1.msra.mxu0 0.0
      %2496 = vmatprep.subr.mxu0 0.0
      %2497 = vmatpush1.msra.mxu0 0.0
      %2498 = vmatprep.subr.mxu0 0.0
      %2499 = vmatpush1.msra.mxu0 0.0
      %2500 = vmatprep.subr.mxu0 0.0
      %2501 = vmatpush1.msra.mxu0 0.0
      %2502 = vmatprep.subr.mxu0 0.0
      %2503 = vmatpush1.msra.mxu0 0.0
      %2504 = vmatprep.subr.mxu0 0.0
      %2505 = vmatpush1.msra.mxu0 0.0
      %2506 = vmatprep.subr.mxu0 0.0
      %2507 = vmatpush1.msra.mxu0 0.0
      %2508 = vmatprep.subr.mxu0 0.0
      %2509 = vmatpush1.msra.mxu0 0.0
      %2510 = vmatprep.mubr.f32.mxu0 0.0
      %2511 = vmatmul.mubr.f32.gmra.mrb[0].mxu0 %v2351
      %v2512 = vpop.f32.mrb[0].mxu0
      %v2513 = vadd.f32 %v2349, %v2512
      %v2514 = vpop.f32.mrb[0].mxu0
      %2515 = vmatprep.mubr.f32.mxu0 0.0
      %2516 = vmatmul.mubr.f32.gmra.mrb[0].mxu0 %v2354
      %v2517 = vpop.f32.mrb[0].mxu0
      %v2518 = vadd.f32 %v2349, %v2517
      %v2519 = vpop.f32.mrb[0].mxu0
      %2520 = vmatprep.mubr.f32.mxu0 0.0
      %2521 = vmatmul.mubr.f32.gmra.mrb[0].mxu0 %v2357
      %v2522 = vpop.f32.mrb[0].mxu0
      %v2523 = vadd.f32 %v2349, %v2522
      %v2524 = vpop.f32.mrb[0].mxu0
      %2525 = vmatprep.mubr.f32.mxu0 0.0
      %2526 = vmatmul.mubr.f32.gmra.mrb[0].mxu0 %v2360
      %v2527 = vpop.f32.mrb[0].mxu0
      %v2528 = vadd.f32 %v2349, %v2527
      %v2529 = vpop.f32.mrb[0].mxu0
      %2530 = vmatprep.mubr.f32.mxu0 0.0
      %2531 = vmatmul.mubr.f32.gmra.mrb[0].mxu0 %v2363
      %v2532 = vpop.f32.mrb[0].mxu0
      %v2533 = vadd.f32 %v2349, %v2532
      %v2534 = vpop.f32.mrb[0].mxu0
      %2535 = vmatprep.mubr.f32.mxu0 0.0
      %2536 = vmatmul.mubr.f32.gmra.mrb[0].mxu0 %v2366
      %v2537 = vpop.f32.mrb[0].mxu0
      %v2538 = vadd.f32 %v2349, %v2537
      %v2539 = vpop.f32.mrb[0].mxu0
      %2540 = vmatprep.mubr.f32.mxu0 0.0
      %2541 = vmatmul.mubr.f32.gmra.mrb[0].mxu0 %v2369
      %v2542 = vpop.f32.mrb[0].mxu0
      %v2543 = vadd.f32 %v2349, %v2542
      %v2544 = vpop.f32.mrb[0].mxu0
      %2545 = vmatprep.mubr.f32.mxu0 0.0
      %2546 = vmatmul.mubr.f32.gmra.mrb[0].mxu0 %v2372
      %v2547 = vpop.f32.mrb[0].mxu0
      %v2548 = vadd.f32 %v2349, %v2547
      %v2549 = vpop.f32.mrb[0].mxu0
      %2550 = vmatprep.mubr.f32.mxu0 0.0
      %2551 = vmatmul.mubr.f32.gmra.mrb[0].mxu0 %v2375
      %v2552 = vpop.f32.mrb[0].mxu0
      %v2553 = vadd.f32 %v2349, %v2552
      %v2554 = vpop.f32.mrb[0].mxu0
      %2555 = vmatprep.mubr.f32.mxu0 0.0
      %2556 = vmatmul.mubr.f32.gmra.mrb[0].mxu0 %v2378
      %v2557 = vpop.f32.mrb[0].mxu0
      %v2558 = vadd.f32 %v2349, %v2557
      %v2559 = vpop.f32.mrb[0].mxu0
      %2560 = vmatprep.mubr.f32.mxu0 0.0
      %2561 = vmatmul.mubr.f32.gmra.mrb[0].mxu0 %v2381
      %v2562 = vpop.f32.mrb[0].mxu0
      %v2563 = vadd.f32 %v2349, %v2562
      %v2564 = vpop.f32.mrb[0].mxu0
      %2565 = vmatprep.mubr.f32.mxu0 0.0
      %2566 = vmatmul.mubr.f32.gmra.mrb[0].mxu0 %v2384
      %v2567 = vpop.f32.mrb[0].mxu0
      %v2568 = vadd.f32 %v2349, %v2567
      %v2569 = vpop.f32.mrb[0].mxu0
      %2570 = vmatprep.mubr.f32.mxu0 0.0
      %2571 = vmatmul.mubr.f32.gmra.mrb[0].mxu0 %v2387
      %v2572 = vpop.f32.mrb[0].mxu0
      %v2573 = vadd.f32 %v2349, %v2572
      %v2574 = vpop.f32.mrb[0].mxu0
      %2575 = vmatprep.mubr.f32.mxu0 0.0
      %2576 = vmatmul.mubr.f32.gmra.mrb[0].mxu0 %v2390
      %v2577 = vpop.f32.mrb[0].mxu0
      %v2578 = vadd.f32 %v2349, %v2577
      %v2579 = vpop.f32.mrb[0].mxu0
      %2580 = vmatprep.mubr.f32.mxu0 0.0
      %2581 = vmatmul.mubr.f32.gmra.mrb[0].mxu0 %v2393
      %v2582 = vpop.f32.mrb[0].mxu0
      %v2583 = vadd.f32 %v2349, %v2582
      %v2584 = vpop.f32.mrb[0].mxu0
      %2585 = vmatprep.mubr.f32.mxu0 0.0
      %2586 = vmatmul.mubr.f32.gmra.mrb[0].mxu0 %v2396
      %v2587 = vpop.f32.mrb[0].mxu0
      %v2588 = vadd.f32 %v2349, %v2587
      %v2589 = vpop.f32.mrb[0].mxu0
      %2590 = vmatprep.mubr.f32.mxu0 0.0
      %2591 = vmatmul.mubr.f32.gmra.mrb[0].mxu0 %v2399
      %v2592 = vpop.f32.mrb[0].mxu0
      %v2593 = vadd.f32 %v2349, %v2592
      %v2594 = vpop.f32.mrb[0].mxu0
      %2595 = vmatprep.mubr.f32.mxu0 0.0
      %2596 = vmatmul.mubr.f32.gmra.mrb[0].mxu0 %v2402
      %v2597 = vpop.f32.mrb[0].mxu0
      %v2598 = vadd.f32 %v2349, %v2597
      %v2599 = vpop.f32.mrb[0].mxu0
      %2600 = vmatprep.mubr.f32.mxu0 0.0
      %2601 = vmatmul.mubr.f32.gmra.mrb[0].mxu0 %v2405
      %v2602 = vpop.f32.mrb[0].mxu0
      %v2603 = vadd.f32 %v2349, %v2602
      %v2604 = vpop.f32.mrb[0].mxu0
      %2605 = vmatprep.mubr.f32.mxu0 0.0
      %2606 = vmatmul.mubr.f32.gmra.mrb[0].mxu0 %v2408
      %v2607 = vpop.f32.mrb[0].mxu0
      %v2608 = vadd.f32 %v2349, %v2607
      %v2609 = vpop.f32.mrb[0].mxu0
      %2610 = vmatprep.mubr.f32.mxu0 0.0
      %2611 = vmatmul.mubr.f32.gmra.mrb[0].mxu0 %v2411
      %v2612 = vpop.f32.mrb[0].mxu0
      %v2613 = vadd.f32 %v2349, %v2612
      %v2614 = vpop.f32.mrb[0].mxu0
      %2615 = vmatprep.mubr.f32.mxu0 0.0
      %2616 = vmatmul.mubr.f32.gmra.mrb[0].mxu0 %v2414
      %v2617 = vpop.f32.mrb[0].mxu0
      %v2618 = vadd.f32 %v2349, %v2617
      %v2619 = vpop.f32.mrb[0].mxu0
      %2620 = vmatprep.mubr.f32.mxu0 0.0
      %2621 = vmatmul.mubr.f32.gmra.mrb[0].mxu0 %v2417
      %v2622 = vpop.f32.mrb[0].mxu0
      %v2623 = vadd.f32 %v2349, %v2622
      %v2624 = vpop.f32.mrb[0].mxu0
      %2625 = vmatprep.mubr.f32.mxu0 0.0
      %2626 = vmatmul.mubr.f32.gmra.mrb[0].mxu0 %v2420
      %v2627 = vpop.f32.mrb[0].mxu0
      %v2628 = vadd.f32 %v2349, %v2627
      %v2629 = vpop.f32.mrb[0].mxu0
      %2630 = vmatprep.mubr.f32.mxu0 0.0
      %2631 = vmatmul.mubr.f32.gmra.mrb[0].mxu0 %v2423
      %v2632 = vpop.f32.mrb[0].mxu0
      %v2633 = vadd.f32 %v2349, %v2632
      %v2634 = vpop.f32.mrb[0].mxu0
      %2635 = vmatprep.mubr.f32.mxu0 0.0
      %2636 = vmatmul.mubr.f32.gmra.mrb[0].mxu0 %v2426
      %v2637 = vpop.f32.mrb[0].mxu0
      %v2638 = vadd.f32 %v2349, %v2637
      %v2639 = vpop.f32.mrb[0].mxu0
      %2640 = vmatprep.mubr.f32.mxu0 0.0
      %2641 = vmatmul.mubr.f32.gmra.mrb[0].mxu0 %v2429
      %v2642 = vpop.f32.mrb[0].mxu0
      %v2643 = vadd.f32 %v2349, %v2642
      %v2644 = vpop.f32.mrb[0].mxu0
      %2645 = vmatprep.mubr.f32.mxu0 0.0
      %2646 = vmatmul.mubr.f32.gmra.mrb[0].mxu0 %v2432
      %v2647 = vpop.f32.mrb[0].mxu0
      %v2648 = vadd.f32 %v2349, %v2647
      %v2649 = vpop.f32.mrb[0].mxu0
      %2650 = vmatprep.mubr.f32.mxu0 0.0
      %2651 = vmatmul.mubr.f32.gmra.mrb[0].mxu0 %v2435
      %v2652 = vpop.f32.mrb[0].mxu0
      %v2653 = vadd.f32 %v2349, %v2652
      %v2654 = vpop.f32.mrb[0].mxu0
      %2655 = vmatprep.mubr.f32.mxu0 0.0
      %2656 = vmatmul.mubr.f32.gmra.mrb[0].mxu0 %v2438
      %v2657 = vpop.f32.mrb[0].mxu0
      %v2658 = vadd.f32 %v2349, %v2657
      %v2659 = vpop.f32.mrb[0].mxu0
      %2660 = vmatprep.mubr.f32.mxu0 0.0
      %2661 = vmatmul.mubr.f32.gmra.mrb[0].mxu0 %v2441
      %v2662 = vpop.f32.mrb[0].mxu0
      %v2663 = vadd.f32 %v2349, %v2662
      %v2664 = vpop.f32.mrb[0].mxu0
      %2665 = vmatprep.mubr.f32.mxu0 0.0
      %2666 = vmatmul.mubr.f32.gmra.mrb[0].mxu0 %v2444
      %v2667 = vpop.f32.mrb[0].mxu0
      %v2668 = vadd.f32 %v2349, %v2667
      %v2669 = vpop.f32.mrb[0].mxu0
      %2670 = vdwg.mxu0
      %v2671 = vld [vmem:[%s1 + $0x138] sm:$0x7]
      %2672 = vrot.lane.b32.xlu0 %v147, 117
      %v2673 = vpop.permute.xlu0 %2672
      %2674 = vrot.lane.b32.xlu0 %v148, 117
      %v2675 = vpop.permute.xlu0 %2674
      %2676 = vrot.lane.b32.xlu0 %v149, 117
      %v2677 = vpop.permute.xlu0 %2676
      %2678 = vrot.lane.b32.xlu0 %v150, 117
      %v2679 = vpop.permute.xlu0 %2678
      %2680 = vrot.lane.b32.xlu0 %v151, 117
      %v2681 = vpop.permute.xlu0 %2680
      %2682 = vrot.lane.b32.xlu0 %v152, 117
      %v2683 = vpop.permute.xlu0 %2682
      %2684 = vrot.lane.b32.xlu0 %v153, 117
      %v2685 = vpop.permute.xlu0 %2684
      %2686 = vrot.lane.b32.xlu0 %v154, 117
      %v2687 = vpop.permute.xlu0 %2686
      %2688 = vrot.lane.b32.xlu0 %v155, 117
      %v2689 = vpop.permute.xlu0 %2688
      %2690 = vrot.lane.b32.xlu0 %v156, 117
      %v2691 = vpop.permute.xlu0 %2690
      %2692 = vrot.lane.b32.xlu0 %v157, 117
      %v2693 = vpop.permute.xlu0 %2692
      %2694 = vrot.lane.b32.xlu0 %v158, 117
      %v2695 = vpop.permute.xlu0 %2694
      %2696 = vrot.lane.b32.xlu0 %v159, 117
      %v2697 = vpop.permute.xlu0 %2696
      %2698 = vrot.lane.b32.xlu0 %v160, 117
      %v2699 = vpop.permute.xlu0 %2698
      %2700 = vrot.lane.b32.xlu0 %v161, 117
      %v2701 = vpop.permute.xlu0 %2700
      %2702 = vrot.lane.b32.xlu0 %v162, 117
      %v2703 = vpop.permute.xlu0 %2702
      %2704 = vrot.lane.b32.xlu0 %v163, 117
      %v2705 = vpop.permute.xlu0 %2704
      %2706 = vrot.lane.b32.xlu0 %v164, 117
      %v2707 = vpop.permute.xlu0 %2706
      %2708 = vrot.lane.b32.xlu0 %v165, 117
      %v2709 = vpop.permute.xlu0 %2708
      %2710 = vrot.lane.b32.xlu0 %v166, 117
      %v2711 = vpop.permute.xlu0 %2710
      %2712 = vrot.lane.b32.xlu0 %v167, 117
      %v2713 = vpop.permute.xlu0 %2712
      %2714 = vrot.lane.b32.xlu0 %v168, 117
      %v2715 = vpop.permute.xlu0 %2714
      %2716 = vrot.lane.b32.xlu0 %v169, 117
      %v2717 = vpop.permute.xlu0 %2716
      %2718 = vrot.lane.b32.xlu0 %v170, 117
      %v2719 = vpop.permute.xlu0 %2718
      %2720 = vrot.lane.b32.xlu0 %v171, 117
      %v2721 = vpop.permute.xlu0 %2720
      %2722 = vrot.lane.b32.xlu0 %v172, 117
      %v2723 = vpop.permute.xlu0 %2722
      %2724 = vrot.lane.b32.xlu0 %v173, 117
      %v2725 = vpop.permute.xlu0 %2724
      %2726 = vrot.lane.b32.xlu0 %v174, 117
      %v2727 = vpop.permute.xlu0 %2726
      %2728 = vrot.lane.b32.xlu0 %v175, 117
      %v2729 = vpop.permute.xlu0 %2728
      %2730 = vrot.lane.b32.xlu0 %v176, 117
      %v2731 = vpop.permute.xlu0 %2730
      %2732 = vrot.lane.b32.xlu0 %v177, 117
      %v2733 = vpop.permute.xlu0 %2732
      %2734 = vrot.lane.b32.xlu0 %v178, 117
      %v2735 = vpop.permute.xlu0 %2734
      %vm2736 = vcmask 23552
      %v2737 = vsel %vm2736, %v2673, 0
      %v2739 = vsel %vm2736, %v2675, 0
      %v2741 = vsel %vm2736, %v2677, 0
      %v2743 = vsel %vm2736, %v2679, 0
      %v2745 = vsel %vm2736, %v2681, 0
      %v2747 = vsel %vm2736, %v2683, 0
      %v2749 = vsel %vm2736, %v2685, 0
      %v2751 = vsel %vm2736, %v2687, 0
      %v2753 = vsel %vm2736, %v2689, 0
      %v2755 = vsel %vm2736, %v2691, 0
      %v2757 = vsel %vm2736, %v2693, 0
      %v2759 = vsel %vm2736, %v2695, 0
      %v2761 = vsel %vm2736, %v2697, 0
      %v2763 = vsel %vm2736, %v2699, 0
      %v2765 = vsel %vm2736, %v2701, 0
      %v2767 = vsel %vm2736, %v2703, 0
      %v2769 = vsel %vm2736, %v2705, 0
      %v2771 = vsel %vm2736, %v2707, 0
      %v2773 = vsel %vm2736, %v2709, 0
      %v2775 = vsel %vm2736, %v2711, 0
      %v2777 = vsel %vm2736, %v2713, 0
      %v2779 = vsel %vm2736, %v2715, 0
      %v2781 = vsel %vm2736, %v2717, 0
      %v2783 = vsel %vm2736, %v2719, 0
      %v2785 = vsel %vm2736, %v2721, 0
      %v2787 = vsel %vm2736, %v2723, 0
      %v2789 = vsel %vm2736, %v2725, 0
      %v2791 = vsel %vm2736, %v2727, 0
      %v2793 = vsel %vm2736, %v2729, 0
      %v2795 = vsel %vm2736, %v2731, 0
      %v2797 = vsel %vm2736, %v2733, 0
      %v2799 = vsel %vm2736, %v2735, 0
      %v2802 = vsel %vm283, %v2671, 0
      %2804 = vmatprep.subr.mxu0 0.0
      %2805 = vmatpush1.msra.mxu0 %v2802
      %2806 = vmatprep.subr.mxu0 0.0
      %2807 = vmatpush1.msra.mxu0 0.0
      %2808 = vmatprep.subr.mxu0 0.0
      %2809 = vmatpush1.msra.mxu0 0.0
      %2810 = vmatprep.subr.mxu0 0.0
      %2811 = vmatpush1.msra.mxu0 0.0
      %2812 = vmatprep.subr.mxu0 0.0
      %2813 = vmatpush1.msra.mxu0 0.0
      %2814 = vmatprep.subr.mxu0 0.0
      %2815 = vmatpush1.msra.mxu0 0.0
      %2816 = vmatprep.subr.mxu0 0.0
      %2817 = vmatpush1.msra.mxu0 0.0
      %2818 = vmatprep.subr.mxu0 0.0
      %2819 = vmatpush1.msra.mxu0 0.0
      %2820 = vmatprep.subr.mxu0 0.0
      %2821 = vmatpush1.msra.mxu0 0.0
      %2822 = vmatprep.subr.mxu0 0.0
      %2823 = vmatpush1.msra.mxu0 0.0
      %2824 = vmatprep.subr.mxu0 0.0
      %2825 = vmatpush1.msra.mxu0 0.0
      %2826 = vmatprep.subr.mxu0 0.0
      %2827 = vmatpush1.msra.mxu0 0.0
      %2828 = vmatprep.subr.mxu0 0.0
      %2829 = vmatpush1.msra.mxu0 0.0
      %2830 = vmatprep.subr.mxu0 0.0
      %2831 = vmatpush1.msra.mxu0 0.0
      %2832 = vmatprep.subr.mxu0 0.0
      %2833 = vmatpush1.msra.mxu0 0.0
      %2834 = vmatprep.subr.mxu0 0.0
      %2835 = vmatpush1.msra.mxu0 0.0
      %2836 = vmatprep.subr.mxu0 0.0
      %2837 = vmatpush1.msra.mxu0 0.0
      %2838 = vmatprep.subr.mxu0 0.0
      %2839 = vmatpush1.msra.mxu0 0.0
      %2840 = vmatprep.subr.mxu0 0.0
      %2841 = vmatpush1.msra.mxu0 0.0
      %2842 = vmatprep.subr.mxu0 0.0
      %2843 = vmatpush1.msra.mxu0 0.0
      %2844 = vmatprep.subr.mxu0 0.0
      %2845 = vmatpush1.msra.mxu0 0.0
      %2846 = vmatprep.subr.mxu0 0.0
      %2847 = vmatpush1.msra.mxu0 0.0
      %2848 = vmatprep.subr.mxu0 0.0
      %2849 = vmatpush1.msra.mxu0 0.0
      %2850 = vmatprep.subr.mxu0 0.0
      %2851 = vmatpush1.msra.mxu0 0.0
      %2852 = vmatprep.subr.mxu0 0.0
      %2853 = vmatpush1.msra.mxu0 0.0
      %2854 = vmatprep.subr.mxu0 0.0
      %2855 = vmatpush1.msra.mxu0 0.0
      %2856 = vmatprep.subr.mxu0 0.0
      %2857 = vmatpush1.msra.mxu0 0.0
      %2858 = vmatprep.subr.mxu0 0.0
      %2859 = vmatpush1.msra.mxu0 0.0
      %2860 = vmatprep.subr.mxu0 0.0
      %2861 = vmatpush1.msra.mxu0 0.0
      %2862 = vmatprep.subr.mxu0 0.0
      %2863 = vmatpush1.msra.mxu0 0.0
      %2864 = vmatprep.subr.mxu0 0.0
      %2865 = vmatpush1.msra.mxu0 0.0
      %2866 = vmatprep.subr.mxu0 0.0
      %2867 = vmatpush1.msra.mxu0 0.0
      %2868 = vmatprep.mubr.f32.mxu0 0.0
      %2869 = vmatmul.mubr.f32.gmra.mrb[0].mxu0 %v2737
      %v2870 = vpop.f32.mrb[0].mxu0
      %v2871 = vadd.f32 0.0, %v2870
      %v2872 = vpop.f32.mrb[0].mxu0
      %2873 = vmatprep.mubr.f32.mxu0 0.0
      %2874 = vmatmul.mubr.f32.gmra.mrb[0].mxu0 %v2739
      %v2875 = vpop.f32.mrb[0].mxu0
      %v2876 = vadd.f32 0.0, %v2875
      %v2877 = vpop.f32.mrb[0].mxu0
      %2878 = vmatprep.mubr.f32.mxu0 0.0
      %2879 = vmatmul.mubr.f32.gmra.mrb[0].mxu0 %v2741
      %v2880 = vpop.f32.mrb[0].mxu0
      %v2881 = vadd.f32 0.0, %v2880
      %v2882 = vpop.f32.mrb[0].mxu0
      %2883 = vmatprep.mubr.f32.mxu0 0.0
      %2884 = vmatmul.mubr.f32.gmra.mrb[0].mxu0 %v2743
      %v2885 = vpop.f32.mrb[0].mxu0
      %v2886 = vadd.f32 0.0, %v2885
      %v2887 = vpop.f32.mrb[0].mxu0
      %2888 = vmatprep.mubr.f32.mxu0 0.0
      %2889 = vmatmul.mubr.f32.gmra.mrb[0].mxu0 %v2745
      %v2890 = vpop.f32.mrb[0].mxu0
      %v2891 = vadd.f32 0.0, %v2890
      %v2892 = vpop.f32.mrb[0].mxu0
      %2893 = vmatprep.mubr.f32.mxu0 0.0
      %2894 = vmatmul.mubr.f32.gmra.mrb[0].mxu0 %v2747
      %v2895 = vpop.f32.mrb[0].mxu0
      %v2896 = vadd.f32 0.0, %v2895
      %v2897 = vpop.f32.mrb[0].mxu0
      %2898 = vmatprep.mubr.f32.mxu0 0.0
      %2899 = vmatmul.mubr.f32.gmra.mrb[0].mxu0 %v2749
      %v2900 = vpop.f32.mrb[0].mxu0
      %v2901 = vadd.f32 0.0, %v2900
      %v2902 = vpop.f32.mrb[0].mxu0
      %2903 = vmatprep.mubr.f32.mxu0 0.0
      %2904 = vmatmul.mubr.f32.gmra.mrb[0].mxu0 %v2751
      %v2905 = vpop.f32.mrb[0].mxu0
      %v2906 = vadd.f32 0.0, %v2905
      %v2907 = vpop.f32.mrb[0].mxu0
      %2908 = vmatprep.mubr.f32.mxu0 0.0
      %2909 = vmatmul.mubr.f32.gmra.mrb[0].mxu0 %v2753
      %v2910 = vpop.f32.mrb[0].mxu0
      %v2911 = vadd.f32 0.0, %v2910
      %v2912 = vpop.f32.mrb[0].mxu0
      %2913 = vmatprep.mubr.f32.mxu0 0.0
      %2914 = vmatmul.mubr.f32.gmra.mrb[0].mxu0 %v2755
      %v2915 = vpop.f32.mrb[0].mxu0
      %v2916 = vadd.f32 0.0, %v2915
      %v2917 = vpop.f32.mrb[0].mxu0
      %2918 = vmatprep.mubr.f32.mxu0 0.0
      %2919 = vmatmul.mubr.f32.gmra.mrb[0].mxu0 %v2757
      %v2920 = vpop.f32.mrb[0].mxu0
      %v2921 = vadd.f32 0.0, %v2920
      %v2922 = vpop.f32.mrb[0].mxu0
      %2923 = vmatprep.mubr.f32.mxu0 0.0
      %2924 = vmatmul.mubr.f32.gmra.mrb[0].mxu0 %v2759
      %v2925 = vpop.f32.mrb[0].mxu0
      %v2926 = vadd.f32 0.0, %v2925
      %v2927 = vpop.f32.mrb[0].mxu0
      %2928 = vmatprep.mubr.f32.mxu0 0.0
      %2929 = vmatmul.mubr.f32.gmra.mrb[0].mxu0 %v2761
      %v2930 = vpop.f32.mrb[0].mxu0
      %v2931 = vadd.f32 0.0, %v2930
      %v2932 = vpop.f32.mrb[0].mxu0
      %2933 = vmatprep.mubr.f32.mxu0 0.0
      %2934 = vmatmul.mubr.f32.gmra.mrb[0].mxu0 %v2763
      %v2935 = vpop.f32.mrb[0].mxu0
      %v2936 = vadd.f32 0.0, %v2935
      %v2937 = vpop.f32.mrb[0].mxu0
      %2938 = vmatprep.mubr.f32.mxu0 0.0
      %2939 = vmatmul.mubr.f32.gmra.mrb[0].mxu0 %v2765
      %v2940 = vpop.f32.mrb[0].mxu0
      %v2941 = vadd.f32 0.0, %v2940
      %v2942 = vpop.f32.mrb[0].mxu0
      %2943 = vmatprep.mubr.f32.mxu0 0.0
      %2944 = vmatmul.mubr.f32.gmra.mrb[0].mxu0 %v2767
      %v2945 = vpop.f32.mrb[0].mxu0
      %v2946 = vadd.f32 0.0, %v2945
      %v2947 = vpop.f32.mrb[0].mxu0
      %2948 = vmatprep.mubr.f32.mxu0 0.0
      %2949 = vmatmul.mubr.f32.gmra.mrb[0].mxu0 %v2769
      %v2950 = vpop.f32.mrb[0].mxu0
      %v2951 = vadd.f32 0.0, %v2950
      %v2952 = vpop.f32.mrb[0].mxu0
      %2953 = vmatprep.mubr.f32.mxu0 0.0
      %2954 = vmatmul.mubr.f32.gmra.mrb[0].mxu0 %v2771
      %v2955 = vpop.f32.mrb[0].mxu0
      %v2956 = vadd.f32 0.0, %v2955
      %v2957 = vpop.f32.mrb[0].mxu0
      %2958 = vmatprep.mubr.f32.mxu0 0.0
      %2959 = vmatmul.mubr.f32.gmra.mrb[0].mxu0 %v2773
      %v2960 = vpop.f32.mrb[0].mxu0
      %v2961 = vadd.f32 0.0, %v2960
      %v2962 = vpop.f32.mrb[0].mxu0
      %2963 = vmatprep.mubr.f32.mxu0 0.0
      %2964 = vmatmul.mubr.f32.gmra.mrb[0].mxu0 %v2775
      %v2965 = vpop.f32.mrb[0].mxu0
      %v2966 = vadd.f32 0.0, %v2965
      %v2967 = vpop.f32.mrb[0].mxu0
      %2968 = vmatprep.mubr.f32.mxu0 0.0
      %2969 = vmatmul.mubr.f32.gmra.mrb[0].mxu0 %v2777
      %v2970 = vpop.f32.mrb[0].mxu0
      %v2971 = vadd.f32 0.0, %v2970
      %v2972 = vpop.f32.mrb[0].mxu0
      %2973 = vmatprep.mubr.f32.mxu0 0.0
      %2974 = vmatmul.mubr.f32.gmra.mrb[0].mxu0 %v2779
      %v2975 = vpop.f32.mrb[0].mxu0
      %v2976 = vadd.f32 0.0, %v2975
      %v2977 = vpop.f32.mrb[0].mxu0
      %2978 = vmatprep.mubr.f32.mxu0 0.0
      %2979 = vmatmul.mubr.f32.gmra.mrb[0].mxu0 %v2781
      %v2980 = vpop.f32.mrb[0].mxu0
      %v2981 = vadd.f32 0.0, %v2980
      %v2982 = vpop.f32.mrb[0].mxu0
      %2983 = vmatprep.mubr.f32.mxu0 0.0
      %2984 = vmatmul.mubr.f32.gmra.mrb[0].mxu0 %v2783
      %v2985 = vpop.f32.mrb[0].mxu0
      %v2986 = vadd.f32 0.0, %v2985
      %v2987 = vpop.f32.mrb[0].mxu0
      %2988 = vmatprep.mubr.f32.mxu0 0.0
      %2989 = vmatmul.mubr.f32.gmra.mrb[0].mxu0 %v2785
      %v2990 = vpop.f32.mrb[0].mxu0
      %v2991 = vadd.f32 0.0, %v2990
      %v2992 = vpop.f32.mrb[0].mxu0
      %2993 = vmatprep.mubr.f32.mxu0 0.0
      %2994 = vmatmul.mubr.f32.gmra.mrb[0].mxu0 %v2787
      %v2995 = vpop.f32.mrb[0].mxu0
      %v2996 = vadd.f32 0.0, %v2995
      %v2997 = vpop.f32.mrb[0].mxu0
      %2998 = vmatprep.mubr.f32.mxu0 0.0
      %2999 = vmatmul.mubr.f32.gmra.mrb[0].mxu0 %v2789
      %v3000 = vpop.f32.mrb[0].mxu0
      %v3001 = vadd.f32 0.0, %v3000
      %v3002 = vpop.f32.mrb[0].mxu0
      %3003 = vmatprep.mubr.f32.mxu0 0.0
      %3004 = vmatmul.mubr.f32.gmra.mrb[0].mxu0 %v2791
      %v3005 = vpop.f32.mrb[0].mxu0
      %v3006 = vadd.f32 0.0, %v3005
      %v3007 = vpop.f32.mrb[0].mxu0
      %3008 = vmatprep.mubr.f32.mxu0 0.0
      %3009 = vmatmul.mubr.f32.gmra.mrb[0].mxu0 %v2793
      %v3010 = vpop.f32.mrb[0].mxu0
      %v3011 = vadd.f32 0.0, %v3010
      %v3012 = vpop.f32.mrb[0].mxu0
      %3013 = vmatprep.mubr.f32.mxu0 0.0
      %3014 = vmatmul.mubr.f32.gmra.mrb[0].mxu0 %v2795
      %v3015 = vpop.f32.mrb[0].mxu0
      %v3016 = vadd.f32 0.0, %v3015
      %v3017 = vpop.f32.mrb[0].mxu0
      %3018 = vmatprep.mubr.f32.mxu0 0.0
      %3019 = vmatmul.mubr.f32.gmra.mrb[0].mxu0 %v2797
      %v3020 = vpop.f32.mrb[0].mxu0
      %v3021 = vadd.f32 0.0, %v3020
      %v3022 = vpop.f32.mrb[0].mxu0
      %3023 = vmatprep.mubr.f32.mxu0 0.0
      %3024 = vmatmul.mubr.f32.gmra.mrb[0].mxu0 %v2799
      %v3025 = vpop.f32.mrb[0].mxu0
      %v3026 = vadd.f32 0.0, %v3025
      %v3027 = vpop.f32.mrb[0].mxu0
      %3028 = vdwg.mxu0
      %v3029 = vld [vmem:[%s1 + $0x140] sm:$0x1]
      %v3030 = vld [vmem:[%s1 + $0x148] sm:$0x1]
      %v3031 = vlaneseq
      %v3032 = vshrl.u32 %v3031, 7
      %v3033 = vsub.s32 0, %v3032
      %v3034 = vrot.slane %v3030, %v3033
      %v3035 = vmul.f32 %v3034, %v2871
      %v3036 = vmul.f32 %v3034, %v2876
      %v3037 = vmul.f32 %v3034, %v2881
      %v3038 = vmul.f32 %v3034, %v2886
      %v3039 = vmul.f32 %v3034, %v2891
      %v3040 = vmul.f32 %v3034, %v2896
      %v3041 = vmul.f32 %v3034, %v2901
      %v3042 = vmul.f32 %v3034, %v2906
      %v3043 = vmul.f32 %v3034, %v2911
      %v3044 = vmul.f32 %v3034, %v2916
      %v3045 = vmul.f32 %v3034, %v2921
      %v3046 = vmul.f32 %v3034, %v2926
      %v3047 = vmul.f32 %v3034, %v2931
      %v3048 = vmul.f32 %v3034, %v2936
      %v3049 = vmul.f32 %v3034, %v2941
      %v3050 = vmul.f32 %v3034, %v2946
      %v3051 = vmul.f32 %v3034, %v2951
      %v3052 = vmul.f32 %v3034, %v2956
      %v3053 = vmul.f32 %v3034, %v2961
      %v3054 = vmul.f32 %v3034, %v2966
      %v3055 = vmul.f32 %v3034, %v2971
      %v3056 = vmul.f32 %v3034, %v2976
      %v3057 = vmul.f32 %v3034, %v2981
      %v3058 = vmul.f32 %v3034, %v2986
      %v3059 = vmul.f32 %v3034, %v2991
      %v3060 = vmul.f32 %v3034, %v2996
      %v3061 = vmul.f32 %v3034, %v3001
      %v3062 = vmul.f32 %v3034, %v3006
      %v3063 = vmul.f32 %v3034, %v3011
      %v3064 = vmul.f32 %v3034, %v3016
      %v3065 = vmul.f32 %v3034, %v3021
      %v3066 = vmul.f32 %v3034, %v3026
      %v3067 = vsub.f32 1.0, %v3030
      %v3068 = vlaneseq
      %v3069 = vshrl.u32 %v3068, 7
      %v3070 = vsub.s32 0, %v3069
      %v3071 = vrot.slane %v3029, %v3070
      %v3072 = vadd.f32 %v2871, %v3071
      %v3073 = vadd.f32 %v2876, %v3071
      %v3074 = vadd.f32 %v2881, %v3071
      %v3075 = vadd.f32 %v2886, %v3071
      %v3076 = vadd.f32 %v2891, %v3071
      %v3077 = vadd.f32 %v2896, %v3071
      %v3078 = vadd.f32 %v2901, %v3071
      %v3079 = vadd.f32 %v2906, %v3071
      %v3080 = vadd.f32 %v2911, %v3071
      %v3081 = vadd.f32 %v2916, %v3071
      %v3082 = vadd.f32 %v2921, %v3071
      %v3083 = vadd.f32 %v2926, %v3071
      %v3084 = vadd.f32 %v2931, %v3071
      %v3085 = vadd.f32 %v2936, %v3071
      %v3086 = vadd.f32 %v2941, %v3071
      %v3087 = vadd.f32 %v2946, %v3071
      %v3088 = vadd.f32 %v2951, %v3071
      %v3089 = vadd.f32 %v2956, %v3071
      %v3090 = vadd.f32 %v2961, %v3071
      %v3091 = vadd.f32 %v2966, %v3071
      %v3092 = vadd.f32 %v2971, %v3071
      %v3093 = vadd.f32 %v2976, %v3071
      %v3094 = vadd.f32 %v2981, %v3071
      %v3095 = vadd.f32 %v2986, %v3071
      %v3096 = vadd.f32 %v2991, %v3071
      %v3097 = vadd.f32 %v2996, %v3071
      %v3098 = vadd.f32 %v3001, %v3071
      %v3099 = vadd.f32 %v3006, %v3071
      %v3100 = vadd.f32 %v3011, %v3071
      %v3101 = vadd.f32 %v3016, %v3071
      %v3102 = vadd.f32 %v3021, %v3071
      %v3103 = vadd.f32 %v3026, %v3071
      %v3104 = vand.u32 2147483647, %v3072
      %vm3105 = vcmp.le.f32.partialorder %v3104, 0.7853982
      %vm3106 = vcmp.lt.s32.totalorder %v3072, 0
      %v3107 = vand.u32 %v3072, 2139095040
      %v3108 = vshrl.u32 %v3107, 23
      %v3109 = vsub.s32 %v3108, 127
      %v3110 = vand.u32 2147483647, %v3072
      %v3111 = vand.u32 %v3110, 8388607
      %v3112 = vor.u32 %v3111, 8388608
      %v3113 = vsub.s32 0, %v3112
      %v3114 = vadd.s32 %v3109, 1
      %vm3115 = vcmp.gt.s32.totalorder %v3114, 0
      %v3116 = vsel %vm3115, %v3114, 0
      %v3117 = vshrl.u32 %v3116, 5
      %v3118 = vand.u32 %v3116, 31
      %v3119 = vsub.s32 32, %v3118
      %v3120 = vshrl.u32 683565275, %v3119
      %v3121 = vshll.u32 683565275, %v3118
      %v3122 = vshrl.u32 2475754826, %v3119
      %v3123 = vor.u32 %v3121, %v3122
      %v3124 = vshll.u32 2475754826, %v3118
      %v3125 = vshrl.u32 2131351028, %v3119
      %v3126 = vor.u32 %v3124, %v3125
      %v3127 = vshll.u32 2131351028, %v3118
      %v3128 = vshrl.u32 2102212464, %v3119
      %v3129 = vor.u32 %v3127, %v3128
      %v3130 = vshll.u32 2102212464, %v3118
      %v3131 = vshrl.u32 920167782, %v3119
      %v3132 = vor.u32 %v3130, %v3131
      %v3133 = vshll.u32 920167782, %v3118
      %v3134 = vshrl.u32 1326507024, %v3119
      %v3135 = vor.u32 %v3133, %v3134
      %vm3136 = vcmp.lt.s32.totalorder %v3117, 1
      %vm3137 = vcmp.lt.s32.totalorder %v3117, 2
      %vm3138 = vcmp.lt.s32.totalorder %v3117, 3
      %vm3139 = vcmp.lt.s32.totalorder %v3117, 4
      %v3140 = vsel %vm3136, %v3120, %v3123
      %v3141 = vsel %vm3139, %v3129, 2102212464
      %v3142 = vsel %vm3138, %v3126, %v3141
      %v3143 = vsel %vm3137, %v3140, %v3142
      %v3144 = vsel %vm3136, %v3123, %v3126
      %v3145 = vsel %vm3139, %v3132, 920167782
      %v3146 = vsel %vm3138, %v3129, %v3145
      %v3147 = vsel %vm3137, %v3144, %v3146
      %v3148 = vsel %vm3136, %v3126, %v3129
      %v3149 = vsel %vm3139, %v3135, 1326507024
      %v3150 = vsel %vm3138, %v3132, %v3149
      %v3151 = vsel %vm3137, %v3148, %v3150
      %v3152 = vshll.u32 %v3112, 8
      %v3153 = vmul.u32.u64.compose %v3152, %v3151
      %v3154 = vextract.low.u32 %v3153
      %v3155 = vextract.high.u32 %v3153
      %v3156 = vmul.u32.u64.compose %v3152, %v3147
      %v3157 = vextract.low.u32 %v3156
      %v3158 = vextract.high.u32 %v3156
      %v3159 = vmul.u32 %v3152, %v3143
      %v3160 = vadd.s32 %v3155, %v3157
      %vm3161 = vc.u32 %v3155, %v3157
      %v3162 = vadd.s32 %v3158, 1
      %v3163 = vsel %vm3161, %v3162, %v3158
      %v3164 = vadd.s32 %v3159, %v3163
      %v3165 = vadd.s32 %v3164, 536870912
      %v3166 = vshrl.u32 %v3165, 30
      %v3167 = vshll.u32 %v3166, 30
      %v3168 = vsub.s32 %v3164, %v3167
      %vm3169 = vcmp.lt.s32.totalorder %v3168, 0
      %v3170 = vsub.s32 0, %v3168
      %v3171 = vsel %vm3169, %v3170, %v3168
      %v3172 = vclz %v3171
      %v3173 = vsub.s32 %v3172, 2
      %vm3174 = vcmp.gt.s32.totalorder 0, %v3173
      %v3175 = vsel %vm3174, 0, %v3173
      %v3176 = vsub.s32 32, %v3175
      %v3177 = vshll.u32 %v3168, %v3175
      %v3178 = vshrl.u32 %v3160, %v3176
      %v3179 = vor.u32 %v3177, %v3178
      %v3180 = vsub.s32 4294967266, %v3175
      %v3181 = vadd.s32 %v3180, 127
      %v3182 = vshll.u32 %v3181, 23
      %v3183 = vor.u32 4788187, %v3182
      %v3184 = vand.u32 2147483647, %v3183
      %v3186 = vcvt.s32.f32 %v3179
      %v3187 = vmul.f32 %v3186, %v3184
      %v3188 = vxor.u32 %v3187, 2147483648
      %v3189 = vsel %vm3106, %v3188, %v3187
      %v3190 = vsub.s32 4, %v3166
      %v3191 = vsel %vm3106, %v3190, %v3166
      %v3192 = vsel %vm3105, %v3072, %v3189
      %v3193 = vsel %vm3105, 0, %v3191
      %v3194 = vcosq.f32.pop %v3192
      %v3195 = vsinq.f32.pop %v3192
      %vm3196 = vweird.f32 %v3072
      %v3197 = vadd.s32 %v3193, 3
      %v3198 = vand.u32 %v3197, 3
      %vm3199 = vcmp.lt.s32.totalorder %v3198, 2
      %vm3200 = vcmp.eq.s32.totalorder %v3198, 0
      %v3201 = vxor.u32 %v3195, 2147483648
      %v3202 = vsel %vm3200, %v3194, %v3201
      %vm3203 = vcmp.eq.s32.totalorder %v3198, 2
      %v3204 = vxor.u32 %v3194, 2147483648
      %v3205 = vsel %vm3203, %v3204, %v3195
      %v3206 = vsel %vm3199, %v3202, %v3205
      %v3207 = vsel %vm3196, nan, %v3206
      %v3208 = vand.u32 2147483647, %v3073
      %vm3209 = vcmp.le.f32.partialorder %v3208, 0.7853982
      %vm3210 = vcmp.lt.s32.totalorder %v3073, 0
      %v3211 = vand.u32 %v3073, 2139095040
      %v3212 = vshrl.u32 %v3211, 23
      %v3213 = vsub.s32 %v3212, 127
      %v3214 = vand.u32 2147483647, %v3073
      %v3215 = vand.u32 %v3214, 8388607
      %v3216 = vor.u32 %v3215, 8388608
      %v3217 = vsub.s32 0, %v3216
      %v3218 = vadd.s32 %v3213, 1
      %vm3219 = vcmp.gt.s32.totalorder %v3218, 0
      %v3220 = vsel %vm3219, %v3218, 0
      %v3221 = vshrl.u32 %v3220, 5
      %v3222 = vand.u32 %v3220, 31
      %v3223 = vsub.s32 32, %v3222
      %v3224 = vshrl.u32 683565275, %v3223
      %v3225 = vshll.u32 683565275, %v3222
      %v3226 = vshrl.u32 2475754826, %v3223
      %v3227 = vor.u32 %v3225, %v3226
      %v3228 = vshll.u32 2475754826, %v3222
      %v3229 = vshrl.u32 2131351028, %v3223
      %v3230 = vor.u32 %v3228, %v3229
      %v3231 = vshll.u32 2131351028, %v3222
      %v3232 = vshrl.u32 2102212464, %v3223
      %v3233 = vor.u32 %v3231, %v3232
      %v3234 = vshll.u32 2102212464, %v3222
      %v3235 = vshrl.u32 920167782, %v3223
      %v3236 = vor.u32 %v3234, %v3235
      %v3237 = vshll.u32 920167782, %v3222
      %v3238 = vshrl.u32 1326507024, %v3223
      %v3239 = vor.u32 %v3237, %v3238
      %vm3240 = vcmp.lt.s32.totalorder %v3221, 1
      %vm3241 = vcmp.lt.s32.totalorder %v3221, 2
      %vm3242 = vcmp.lt.s32.totalorder %v3221, 3
      %vm3243 = vcmp.lt.s32.totalorder %v3221, 4
      %v3244 = vsel %vm3240, %v3224, %v3227
      %v3245 = vsel %vm3243, %v3233, 2102212464
      %v3246 = vsel %vm3242, %v3230, %v3245
      %v3247 = vsel %vm3241, %v3244, %v3246
      %v3248 = vsel %vm3240, %v3227, %v3230
      %v3249 = vsel %vm3243, %v3236, 920167782
      %v3250 = vsel %vm3242, %v3233, %v3249
      %v3251 = vsel %vm3241, %v3248, %v3250
      %v3252 = vsel %vm3240, %v3230, %v3233
      %v3253 = vsel %vm3243, %v3239, 1326507024
      %v3254 = vsel %vm3242, %v3236, %v3253
      %v3255 = vsel %vm3241, %v3252, %v3254
      %v3256 = vshll.u32 %v3216, 8
      %v3257 = vmul.u32.u64.compose %v3256, %v3255
      %v3258 = vextract.low.u32 %v3257
      %v3259 = vextract.high.u32 %v3257
      %v3260 = vmul.u32.u64.compose %v3256, %v3251
      %v3261 = vextract.low.u32 %v3260
      %v3262 = vextract.high.u32 %v3260
      %v3263 = vmul.u32 %v3256, %v3247
      %v3264 = vadd.s32 %v3259, %v3261
      %vm3265 = vc.u32 %v3259, %v3261
      %v3266 = vadd.s32 %v3262, 1
      %v3267 = vsel %vm3265, %v3266, %v3262
      %v3268 = vadd.s32 %v3263, %v3267
      %v3269 = vadd.s32 %v3268, 536870912
      %v3270 = vshrl.u32 %v3269, 30
      %v3271 = vshll.u32 %v3270, 30
      %v3272 = vsub.s32 %v3268, %v3271
      %vm3273 = vcmp.lt.s32.totalorder %v3272, 0
      %v3274 = vsub.s32 0, %v3272
      %v3275 = vsel %vm3273, %v3274, %v3272
      %v3276 = vclz %v3275
      %v3277 = vsub.s32 %v3276, 2
      %vm3278 = vcmp.gt.s32.totalorder 0, %v3277
      %v3279 = vsel %vm3278, 0, %v3277
      %v3280 = vsub.s32 32, %v3279
      %v3281 = vshll.u32 %v3272, %v3279
      %v3282 = vshrl.u32 %v3264, %v3280
      %v3283 = vor.u32 %v3281, %v3282
      %v3284 = vsub.s32 4294967266, %v3279
      %v3285 = vadd.s32 %v3284, 127
      %v3286 = vshll.u32 %v3285, 23
      %v3287 = vor.u32 4788187, %v3286
      %v3288 = vand.u32 2147483647, %v3287
      %v3290 = vcvt.s32.f32 %v3283
      %v3291 = vmul.f32 %v3290, %v3288
      %v3292 = vxor.u32 %v3291, 2147483648
      %v3293 = vsel %vm3210, %v3292, %v3291
      %v3294 = vsub.s32 4, %v3270
      %v3295 = vsel %vm3210, %v3294, %v3270
      %v3296 = vsel %vm3209, %v3073, %v3293
      %v3297 = vsel %vm3209, 0, %v3295
      %v3298 = vcosq.f32.pop %v3296
      %v3299 = vsinq.f32.pop %v3296
      %vm3300 = vweird.f32 %v3073
      %v3301 = vadd.s32 %v3297, 3
      %v3302 = vand.u32 %v3301, 3
      %vm3303 = vcmp.lt.s32.totalorder %v3302, 2
      %vm3304 = vcmp.eq.s32.totalorder %v3302, 0
      %v3305 = vxor.u32 %v3299, 2147483648
      %v3306 = vsel %vm3304, %v3298, %v3305
      %vm3307 = vcmp.eq.s32.totalorder %v3302, 2
      %v3308 = vxor.u32 %v3298, 2147483648
      %v3309 = vsel %vm3307, %v3308, %v3299
      %v3310 = vsel %vm3303, %v3306, %v3309
      %v3311 = vsel %vm3300, nan, %v3310
      %v3312 = vand.u32 2147483647, %v3074
      %vm3313 = vcmp.le.f32.partialorder %v3312, 0.7853982
      %vm3314 = vcmp.lt.s32.totalorder %v3074, 0
      %v3315 = vand.u32 %v3074, 2139095040
      %v3316 = vshrl.u32 %v3315, 23
      %v3317 = vsub.s32 %v3316, 127
      %v3318 = vand.u32 2147483647, %v3074
      %v3319 = vand.u32 %v3318, 8388607
      %v3320 = vor.u32 %v3319, 8388608
      %v3321 = vsub.s32 0, %v3320
      %v3322 = vadd.s32 %v3317, 1
      %vm3323 = vcmp.gt.s32.totalorder %v3322, 0
      %v3324 = vsel %vm3323, %v3322, 0
      %v3325 = vshrl.u32 %v3324, 5
      %v3326 = vand.u32 %v3324, 31
      %v3327 = vsub.s32 32, %v3326
      %v3328 = vshrl.u32 683565275, %v3327
      %v3329 = vshll.u32 683565275, %v3326
      %v3330 = vshrl.u32 2475754826, %v3327
      %v3331 = vor.u32 %v3329, %v3330
      %v3332 = vshll.u32 2475754826, %v3326
      %v3333 = vshrl.u32 2131351028, %v3327
      %v3334 = vor.u32 %v3332, %v3333
      %v3335 = vshll.u32 2131351028, %v3326
      %v3336 = vshrl.u32 2102212464, %v3327
      %v3337 = vor.u32 %v3335, %v3336
      %v3338 = vshll.u32 2102212464, %v3326
      %v3339 = vshrl.u32 920167782, %v3327
      %v3340 = vor.u32 %v3338, %v3339
      %v3341 = vshll.u32 920167782, %v3326
      %v3342 = vshrl.u32 1326507024, %v3327
      %v3343 = vor.u32 %v3341, %v3342
      %vm3344 = vcmp.lt.s32.totalorder %v3325, 1
      %vm3345 = vcmp.lt.s32.totalorder %v3325, 2
      %vm3346 = vcmp.lt.s32.totalorder %v3325, 3
      %vm3347 = vcmp.lt.s32.totalorder %v3325, 4
      %v3348 = vsel %vm3344, %v3328, %v3331
      %v3349 = vsel %vm3347, %v3337, 2102212464
      %v3350 = vsel %vm3346, %v3334, %v3349
      %v3351 = vsel %vm3345, %v3348, %v3350
      %v3352 = vsel %vm3344, %v3331, %v3334
      %v3353 = vsel %vm3347, %v3340, 920167782
      %v3354 = vsel %vm3346, %v3337, %v3353
      %v3355 = vsel %vm3345, %v3352, %v3354
      %v3356 = vsel %vm3344, %v3334, %v3337
      %v3357 = vsel %vm3347, %v3343, 1326507024
      %v3358 = vsel %vm3346, %v3340, %v3357
      %v3359 = vsel %vm3345, %v3356, %v3358
      %v3360 = vshll.u32 %v3320, 8
      %v3361 = vmul.u32.u64.compose %v3360, %v3359
      %v3362 = vextract.low.u32 %v3361
      %v3363 = vextract.high.u32 %v3361
      %v3364 = vmul.u32.u64.compose %v3360, %v3355
      %v3365 = vextract.low.u32 %v3364
      %v3366 = vextract.high.u32 %v3364
      %v3367 = vmul.u32 %v3360, %v3351
      %v3368 = vadd.s32 %v3363, %v3365
      %vm3369 = vc.u32 %v3363, %v3365
      %v3370 = vadd.s32 %v3366, 1
      %v3371 = vsel %vm3369, %v3370, %v3366
      %v3372 = vadd.s32 %v3367, %v3371
      %v3373 = vadd.s32 %v3372, 536870912
      %v3374 = vshrl.u32 %v3373, 30
      %v3375 = vshll.u32 %v3374, 30
      %v3376 = vsub.s32 %v3372, %v3375
      %vm3377 = vcmp.lt.s32.totalorder %v3376, 0
      %v3378 = vsub.s32 0, %v3376
      %v3379 = vsel %vm3377, %v3378, %v3376
      %v3380 = vclz %v3379
      %v3381 = vsub.s32 %v3380, 2
      %vm3382 = vcmp.gt.s32.totalorder 0, %v3381
      %v3383 = vsel %vm3382, 0, %v3381
      %v3384 = vsub.s32 32, %v3383
      %v3385 = vshll.u32 %v3376, %v3383
      %v3386 = vshrl.u32 %v3368, %v3384
      %v3387 = vor.u32 %v3385, %v3386
      %v3388 = vsub.s32 4294967266, %v3383
      %v3389 = vadd.s32 %v3388, 127
      %v3390 = vshll.u32 %v3389, 23
      %v3391 = vor.u32 4788187, %v3390
      %v3392 = vand.u32 2147483647, %v3391
      %v3394 = vcvt.s32.f32 %v3387
      %v3395 = vmul.f32 %v3394, %v3392
      %v3396 = vxor.u32 %v3395, 2147483648
      %v3397 = vsel %vm3314, %v3396, %v3395
      %v3398 = vsub.s32 4, %v3374
      %v3399 = vsel %vm3314, %v3398, %v3374
      %v3400 = vsel %vm3313, %v3074, %v3397
      %v3401 = vsel %vm3313, 0, %v3399
      %v3402 = vcosq.f32.pop %v3400
      %v3403 = vsinq.f32.pop %v3400
      %vm3404 = vweird.f32 %v3074
      %v3405 = vadd.s32 %v3401, 3
      %v3406 = vand.u32 %v3405, 3
      %vm3407 = vcmp.lt.s32.totalorder %v3406, 2
      %vm3408 = vcmp.eq.s32.totalorder %v3406, 0
      %v3409 = vxor.u32 %v3403, 2147483648
      %v3410 = vsel %vm3408, %v3402, %v3409
      %vm3411 = vcmp.eq.s32.totalorder %v3406, 2
      %v3412 = vxor.u32 %v3402, 2147483648
      %v3413 = vsel %vm3411, %v3412, %v3403
      %v3414 = vsel %vm3407, %v3410, %v3413
      %v3415 = vsel %vm3404, nan, %v3414
      %v3416 = vand.u32 2147483647, %v3075
      %vm3417 = vcmp.le.f32.partialorder %v3416, 0.7853982
      %vm3418 = vcmp.lt.s32.totalorder %v3075, 0
      %v3419 = vand.u32 %v3075, 2139095040
      %v3420 = vshrl.u32 %v3419, 23
      %v3421 = vsub.s32 %v3420, 127
      %v3422 = vand.u32 2147483647, %v3075
      %v3423 = vand.u32 %v3422, 8388607
      %v3424 = vor.u32 %v3423, 8388608
      %v3425 = vsub.s32 0, %v3424
      %v3426 = vadd.s32 %v3421, 1
      %vm3427 = vcmp.gt.s32.totalorder %v3426, 0
      %v3428 = vsel %vm3427, %v3426, 0
      %v3429 = vshrl.u32 %v3428, 5
      %v3430 = vand.u32 %v3428, 31
      %v3431 = vsub.s32 32, %v3430
      %v3432 = vshrl.u32 683565275, %v3431
      %v3433 = vshll.u32 683565275, %v3430
      %v3434 = vshrl.u32 2475754826, %v3431
      %v3435 = vor.u32 %v3433, %v3434
      %v3436 = vshll.u32 2475754826, %v3430
      %v3437 = vshrl.u32 2131351028, %v3431
      %v3438 = vor.u32 %v3436, %v3437
      %v3439 = vshll.u32 2131351028, %v3430
      %v3440 = vshrl.u32 2102212464, %v3431
      %v3441 = vor.u32 %v3439, %v3440
      %v3442 = vshll.u32 2102212464, %v3430
      %v3443 = vshrl.u32 920167782, %v3431
      %v3444 = vor.u32 %v3442, %v3443
      %v3445 = vshll.u32 920167782, %v3430
      %v3446 = vshrl.u32 1326507024, %v3431
      %v3447 = vor.u32 %v3445, %v3446
      %vm3448 = vcmp.lt.s32.totalorder %v3429, 1
      %vm3449 = vcmp.lt.s32.totalorder %v3429, 2
      %vm3450 = vcmp.lt.s32.totalorder %v3429, 3
      %vm3451 = vcmp.lt.s32.totalorder %v3429, 4
      %v3452 = vsel %vm3448, %v3432, %v3435
      %v3453 = vsel %vm3451, %v3441, 2102212464
      %v3454 = vsel %vm3450, %v3438, %v3453
      %v3455 = vsel %vm3449, %v3452, %v3454
      %v3456 = vsel %vm3448, %v3435, %v3438
      %v3457 = vsel %vm3451, %v3444, 920167782
      %v3458 = vsel %vm3450, %v3441, %v3457
      %v3459 = vsel %vm3449, %v3456, %v3458
      %v3460 = vsel %vm3448, %v3438, %v3441
      %v3461 = vsel %vm3451, %v3447, 1326507024
      %v3462 = vsel %vm3450, %v3444, %v3461
      %v3463 = vsel %vm3449, %v3460, %v3462
      %v3464 = vshll.u32 %v3424, 8
      %v3465 = vmul.u32.u64.compose %v3464, %v3463
      %v3466 = vextract.low.u32 %v3465
      %v3467 = vextract.high.u32 %v3465
      %v3468 = vmul.u32.u64.compose %v3464, %v3459
      %v3469 = vextract.low.u32 %v3468
      %v3470 = vextract.high.u32 %v3468
      %v3471 = vmul.u32 %v3464, %v3455
      %v3472 = vadd.s32 %v3467, %v3469
      %vm3473 = vc.u32 %v3467, %v3469
      %v3474 = vadd.s32 %v3470, 1
      %v3475 = vsel %vm3473, %v3474, %v3470
      %v3476 = vadd.s32 %v3471, %v3475
      %v3477 = vadd.s32 %v3476, 536870912
      %v3478 = vshrl.u32 %v3477, 30
      %v3479 = vshll.u32 %v3478, 30
      %v3480 = vsub.s32 %v3476, %v3479
      %vm3481 = vcmp.lt.s32.totalorder %v3480, 0
      %v3482 = vsub.s32 0, %v3480
      %v3483 = vsel %vm3481, %v3482, %v3480
      %v3484 = vclz %v3483
      %v3485 = vsub.s32 %v3484, 2
      %vm3486 = vcmp.gt.s32.totalorder 0, %v3485
      %v3487 = vsel %vm3486, 0, %v3485
      %v3488 = vsub.s32 32, %v3487
      %v3489 = vshll.u32 %v3480, %v3487
      %v3490 = vshrl.u32 %v3472, %v3488
      %v3491 = vor.u32 %v3489, %v3490
      %v3492 = vsub.s32 4294967266, %v3487
      %v3493 = vadd.s32 %v3492, 127
      %v3494 = vshll.u32 %v3493, 23
      %v3495 = vor.u32 4788187, %v3494
      %v3496 = vand.u32 2147483647, %v3495
      %v3498 = vcvt.s32.f32 %v3491
      %v3499 = vmul.f32 %v3498, %v3496
      %v3500 = vxor.u32 %v3499, 2147483648
      %v3501 = vsel %vm3418, %v3500, %v3499
      %v3502 = vsub.s32 4, %v3478
      %v3503 = vsel %vm3418, %v3502, %v3478
      %v3504 = vsel %vm3417, %v3075, %v3501
      %v3505 = vsel %vm3417, 0, %v3503
      %v3506 = vcosq.f32.pop %v3504
      %v3507 = vsinq.f32.pop %v3504
      %vm3508 = vweird.f32 %v3075
      %v3509 = vadd.s32 %v3505, 3
      %v3510 = vand.u32 %v3509, 3
      %vm3511 = vcmp.lt.s32.totalorder %v3510, 2
      %vm3512 = vcmp.eq.s32.totalorder %v3510, 0
      %v3513 = vxor.u32 %v3507, 2147483648
      %v3514 = vsel %vm3512, %v3506, %v3513
      %vm3515 = vcmp.eq.s32.totalorder %v3510, 2
      %v3516 = vxor.u32 %v3506, 2147483648
      %v3517 = vsel %vm3515, %v3516, %v3507
      %v3518 = vsel %vm3511, %v3514, %v3517
      %v3519 = vsel %vm3508, nan, %v3518
      %v3520 = vand.u32 2147483647, %v3076
      %vm3521 = vcmp.le.f32.partialorder %v3520, 0.7853982
      %vm3522 = vcmp.lt.s32.totalorder %v3076, 0
      %v3523 = vand.u32 %v3076, 2139095040
      %v3524 = vshrl.u32 %v3523, 23
      %v3525 = vsub.s32 %v3524, 127
      %v3526 = vand.u32 2147483647, %v3076
      %v3527 = vand.u32 %v3526, 8388607
      %v3528 = vor.u32 %v3527, 8388608
      %v3529 = vsub.s32 0, %v3528
      %v3530 = vadd.s32 %v3525, 1
      %vm3531 = vcmp.gt.s32.totalorder %v3530, 0
      %v3532 = vsel %vm3531, %v3530, 0
      %v3533 = vshrl.u32 %v3532, 5
      %v3534 = vand.u32 %v3532, 31
      %v3535 = vsub.s32 32, %v3534
      %v3536 = vshrl.u32 683565275, %v3535
      %v3537 = vshll.u32 683565275, %v3534
      %v3538 = vshrl.u32 2475754826, %v3535
      %v3539 = vor.u32 %v3537, %v3538
      %v3540 = vshll.u32 2475754826, %v3534
      %v3541 = vshrl.u32 2131351028, %v3535
      %v3542 = vor.u32 %v3540, %v3541
      %v3543 = vshll.u32 2131351028, %v3534
      %v3544 = vshrl.u32 2102212464, %v3535
      %v3545 = vor.u32 %v3543, %v3544
      %v3546 = vshll.u32 2102212464, %v3534
      %v3547 = vshrl.u32 920167782, %v3535
      %v3548 = vor.u32 %v3546, %v3547
      %v3549 = vshll.u32 920167782, %v3534
      %v3550 = vshrl.u32 1326507024, %v3535
      %v3551 = vor.u32 %v3549, %v3550
      %vm3552 = vcmp.lt.s32.totalorder %v3533, 1
      %vm3553 = vcmp.lt.s32.totalorder %v3533, 2
      %vm3554 = vcmp.lt.s32.totalorder %v3533, 3
      %vm3555 = vcmp.lt.s32.totalorder %v3533, 4
      %v3556 = vsel %vm3552, %v3536, %v3539
      %v3557 = vsel %vm3555, %v3545, 2102212464
      %v3558 = vsel %vm3554, %v3542, %v3557
      %v3559 = vsel %vm3553, %v3556, %v3558
      %v3560 = vsel %vm3552, %v3539, %v3542
      %v3561 = vsel %vm3555, %v3548, 920167782
      %v3562 = vsel %vm3554, %v3545, %v3561
      %v3563 = vsel %vm3553, %v3560, %v3562
      %v3564 = vsel %vm3552, %v3542, %v3545
      %v3565 = vsel %vm3555, %v3551, 1326507024
      %v3566 = vsel %vm3554, %v3548, %v3565
      %v3567 = vsel %vm3553, %v3564, %v3566
      %v3568 = vshll.u32 %v3528, 8
      %v3569 = vmul.u32.u64.compose %v3568, %v3567
      %v3570 = vextract.low.u32 %v3569
      %v3571 = vextract.high.u32 %v3569
      %v3572 = vmul.u32.u64.compose %v3568, %v3563
      %v3573 = vextract.low.u32 %v3572
      %v3574 = vextract.high.u32 %v3572
      %v3575 = vmul.u32 %v3568, %v3559
      %v3576 = vadd.s32 %v3571, %v3573
      %vm3577 = vc.u32 %v3571, %v3573
      %v3578 = vadd.s32 %v3574, 1
      %v3579 = vsel %vm3577, %v3578, %v3574
      %v3580 = vadd.s32 %v3575, %v3579
      %v3581 = vadd.s32 %v3580, 536870912
      %v3582 = vshrl.u32 %v3581, 30
      %v3583 = vshll.u32 %v3582, 30
      %v3584 = vsub.s32 %v3580, %v3583
      %vm3585 = vcmp.lt.s32.totalorder %v3584, 0
      %v3586 = vsub.s32 0, %v3584
      %v3587 = vsel %vm3585, %v3586, %v3584
      %v3588 = vclz %v3587
      %v3589 = vsub.s32 %v3588, 2
      %vm3590 = vcmp.gt.s32.totalorder 0, %v3589
      %v3591 = vsel %vm3590, 0, %v3589
      %v3592 = vsub.s32 32, %v3591
      %v3593 = vshll.u32 %v3584, %v3591
      %v3594 = vshrl.u32 %v3576, %v3592
      %v3595 = vor.u32 %v3593, %v3594
      %v3596 = vsub.s32 4294967266, %v3591
      %v3597 = vadd.s32 %v3596, 127
      %v3598 = vshll.u32 %v3597, 23
      %v3599 = vor.u32 4788187, %v3598
      %v3600 = vand.u32 2147483647, %v3599
      %v3602 = vcvt.s32.f32 %v3595
      %v3603 = vmul.f32 %v3602, %v3600
      %v3604 = vxor.u32 %v3603, 2147483648
      %v3605 = vsel %vm3522, %v3604, %v3603
      %v3606 = vsub.s32 4, %v3582
      %v3607 = vsel %vm3522, %v3606, %v3582
      %v3608 = vsel %vm3521, %v3076, %v3605
      %v3609 = vsel %vm3521, 0, %v3607
      %v3610 = vcosq.f32.pop %v3608
      %v3611 = vsinq.f32.pop %v3608
      %vm3612 = vweird.f32 %v3076
      %v3613 = vadd.s32 %v3609, 3
      %v3614 = vand.u32 %v3613, 3
      %vm3615 = vcmp.lt.s32.totalorder %v3614, 2
      %vm3616 = vcmp.eq.s32.totalorder %v3614, 0
      %v3617 = vxor.u32 %v3611, 2147483648
      %v3618 = vsel %vm3616, %v3610, %v3617
      %vm3619 = vcmp.eq.s32.totalorder %v3614, 2
      %v3620 = vxor.u32 %v3610, 2147483648
      %v3621 = vsel %vm3619, %v3620, %v3611
      %v3622 = vsel %vm3615, %v3618, %v3621
      %v3623 = vsel %vm3612, nan, %v3622
      %v3624 = vand.u32 2147483647, %v3077
      %vm3625 = vcmp.le.f32.partialorder %v3624, 0.7853982
      %vm3626 = vcmp.lt.s32.totalorder %v3077, 0
      %v3627 = vand.u32 %v3077, 2139095040
      %v3628 = vshrl.u32 %v3627, 23
      %v3629 = vsub.s32 %v3628, 127
      %v3630 = vand.u32 2147483647, %v3077
      %v3631 = vand.u32 %v3630, 8388607
      %v3632 = vor.u32 %v3631, 8388608
      %v3633 = vsub.s32 0, %v3632
      %v3634 = vadd.s32 %v3629, 1
      %vm3635 = vcmp.gt.s32.totalorder %v3634, 0
      %v3636 = vsel %vm3635, %v3634, 0
      %v3637 = vshrl.u32 %v3636, 5
      %v3638 = vand.u32 %v3636, 31
      %v3639 = vsub.s32 32, %v3638
      %v3640 = vshrl.u32 683565275, %v3639
      %v3641 = vshll.u32 683565275, %v3638
      %v3642 = vshrl.u32 2475754826, %v3639
      %v3643 = vor.u32 %v3641, %v3642
      %v3644 = vshll.u32 2475754826, %v3638
      %v3645 = vshrl.u32 2131351028, %v3639
      %v3646 = vor.u32 %v3644, %v3645
      %v3647 = vshll.u32 2131351028, %v3638
      %v3648 = vshrl.u32 2102212464, %v3639
      %v3649 = vor.u32 %v3647, %v3648
      %v3650 = vshll.u32 2102212464, %v3638
      %v3651 = vshrl.u32 920167782, %v3639
      %v3652 = vor.u32 %v3650, %v3651
      %v3653 = vshll.u32 920167782, %v3638
      %v3654 = vshrl.u32 1326507024, %v3639
      %v3655 = vor.u32 %v3653, %v3654
      %vm3656 = vcmp.lt.s32.totalorder %v3637, 1
      %vm3657 = vcmp.lt.s32.totalorder %v3637, 2
      %vm3658 = vcmp.lt.s32.totalorder %v3637, 3
      %vm3659 = vcmp.lt.s32.totalorder %v3637, 4
      %v3660 = vsel %vm3656, %v3640, %v3643
      %v3661 = vsel %vm3659, %v3649, 2102212464
      %v3662 = vsel %vm3658, %v3646, %v3661
      %v3663 = vsel %vm3657, %v3660, %v3662
      %v3664 = vsel %vm3656, %v3643, %v3646
      %v3665 = vsel %vm3659, %v3652, 920167782
      %v3666 = vsel %vm3658, %v3649, %v3665
      %v3667 = vsel %vm3657, %v3664, %v3666
      %v3668 = vsel %vm3656, %v3646, %v3649
      %v3669 = vsel %vm3659, %v3655, 1326507024
      %v3670 = vsel %vm3658, %v3652, %v3669
      %v3671 = vsel %vm3657, %v3668, %v3670
      %v3672 = vshll.u32 %v3632, 8
      %v3673 = vmul.u32.u64.compose %v3672, %v3671
      %v3674 = vextract.low.u32 %v3673
      %v3675 = vextract.high.u32 %v3673
      %v3676 = vmul.u32.u64.compose %v3672, %v3667
      %v3677 = vextract.low.u32 %v3676
      %v3678 = vextract.high.u32 %v3676
      %v3679 = vmul.u32 %v3672, %v3663
      %v3680 = vadd.s32 %v3675, %v3677
      %vm3681 = vc.u32 %v3675, %v3677
      %v3682 = vadd.s32 %v3678, 1
      %v3683 = vsel %vm3681, %v3682, %v3678
      %v3684 = vadd.s32 %v3679, %v3683
      %v3685 = vadd.s32 %v3684, 536870912
      %v3686 = vshrl.u32 %v3685, 30
      %v3687 = vshll.u32 %v3686, 30
      %v3688 = vsub.s32 %v3684, %v3687
      %vm3689 = vcmp.lt.s32.totalorder %v3688, 0
      %v3690 = vsub.s32 0, %v3688
      %v3691 = vsel %vm3689, %v3690, %v3688
      %v3692 = vclz %v3691
      %v3693 = vsub.s32 %v3692, 2
      %vm3694 = vcmp.gt.s32.totalorder 0, %v3693
      %v3695 = vsel %vm3694, 0, %v3693
      %v3696 = vsub.s32 32, %v3695
      %v3697 = vshll.u32 %v3688, %v3695
      %v3698 = vshrl.u32 %v3680, %v3696
      %v3699 = vor.u32 %v3697, %v3698
      %v3700 = vsub.s32 4294967266, %v3695
      %v3701 = vadd.s32 %v3700, 127
      %v3702 = vshll.u32 %v3701, 23
      %v3703 = vor.u32 4788187, %v3702
      %v3704 = vand.u32 2147483647, %v3703
      %v3706 = vcvt.s32.f32 %v3699
      %v3707 = vmul.f32 %v3706, %v3704
      %v3708 = vxor.u32 %v3707, 2147483648
      %v3709 = vsel %vm3626, %v3708, %v3707
      %v3710 = vsub.s32 4, %v3686
      %v3711 = vsel %vm3626, %v3710, %v3686
      %v3712 = vsel %vm3625, %v3077, %v3709
      %v3713 = vsel %vm3625, 0, %v3711
      %v3714 = vcosq.f32.pop %v3712
      %v3715 = vsinq.f32.pop %v3712
      %vm3716 = vweird.f32 %v3077
      %v3717 = vadd.s32 %v3713, 3
      %v3718 = vand.u32 %v3717, 3
      %vm3719 = vcmp.lt.s32.totalorder %v3718, 2
      %vm3720 = vcmp.eq.s32.totalorder %v3718, 0
      %v3721 = vxor.u32 %v3715, 2147483648
      %v3722 = vsel %vm3720, %v3714, %v3721
      %vm3723 = vcmp.eq.s32.totalorder %v3718, 2
      %v3724 = vxor.u32 %v3714, 2147483648
      %v3725 = vsel %vm3723, %v3724, %v3715
      %v3726 = vsel %vm3719, %v3722, %v3725
      %v3727 = vsel %vm3716, nan, %v3726
      %v3728 = vand.u32 2147483647, %v3078
      %vm3729 = vcmp.le.f32.partialorder %v3728, 0.7853982
      %vm3730 = vcmp.lt.s32.totalorder %v3078, 0
      %v3731 = vand.u32 %v3078, 2139095040
      %v3732 = vshrl.u32 %v3731, 23
      %v3733 = vsub.s32 %v3732, 127
      %v3734 = vand.u32 2147483647, %v3078
      %v3735 = vand.u32 %v3734, 8388607
      %v3736 = vor.u32 %v3735, 8388608
      %v3737 = vsub.s32 0, %v3736
      %v3738 = vadd.s32 %v3733, 1
      %vm3739 = vcmp.gt.s32.totalorder %v3738, 0
      %v3740 = vsel %vm3739, %v3738, 0
      %v3741 = vshrl.u32 %v3740, 5
      %v3742 = vand.u32 %v3740, 31
      %v3743 = vsub.s32 32, %v3742
      %v3744 = vshrl.u32 683565275, %v3743
      %v3745 = vshll.u32 683565275, %v3742
      %v3746 = vshrl.u32 2475754826, %v3743
      %v3747 = vor.u32 %v3745, %v3746
      %v3748 = vshll.u32 2475754826, %v3742
      %v3749 = vshrl.u32 2131351028, %v3743
      %v3750 = vor.u32 %v3748, %v3749
      %v3751 = vshll.u32 2131351028, %v3742
      %v3752 = vshrl.u32 2102212464, %v3743
      %v3753 = vor.u32 %v3751, %v3752
      %v3754 = vshll.u32 2102212464, %v3742
      %v3755 = vshrl.u32 920167782, %v3743
      %v3756 = vor.u32 %v3754, %v3755
      %v3757 = vshll.u32 920167782, %v3742
      %v3758 = vshrl.u32 1326507024, %v3743
      %v3759 = vor.u32 %v3757, %v3758
      %vm3760 = vcmp.lt.s32.totalorder %v3741, 1
      %vm3761 = vcmp.lt.s32.totalorder %v3741, 2
      %vm3762 = vcmp.lt.s32.totalorder %v3741, 3
      %vm3763 = vcmp.lt.s32.totalorder %v3741, 4
      %v3764 = vsel %vm3760, %v3744, %v3747
      %v3765 = vsel %vm3763, %v3753, 2102212464
      %v3766 = vsel %vm3762, %v3750, %v3765
      %v3767 = vsel %vm3761, %v3764, %v3766
      %v3768 = vsel %vm3760, %v3747, %v3750
      %v3769 = vsel %vm3763, %v3756, 920167782
      %v3770 = vsel %vm3762, %v3753, %v3769
      %v3771 = vsel %vm3761, %v3768, %v3770
      %v3772 = vsel %vm3760, %v3750, %v3753
      %v3773 = vsel %vm3763, %v3759, 1326507024
      %v3774 = vsel %vm3762, %v3756, %v3773
      %v3775 = vsel %vm3761, %v3772, %v3774
      %v3776 = vshll.u32 %v3736, 8
      %v3777 = vmul.u32.u64.compose %v3776, %v3775
      %v3778 = vextract.low.u32 %v3777
      %v3779 = vextract.high.u32 %v3777
      %v3780 = vmul.u32.u64.compose %v3776, %v3771
      %v3781 = vextract.low.u32 %v3780
      %v3782 = vextract.high.u32 %v3780
      %v3783 = vmul.u32 %v3776, %v3767
      %v3784 = vadd.s32 %v3779, %v3781
      %vm3785 = vc.u32 %v3779, %v3781
      %v3786 = vadd.s32 %v3782, 1
      %v3787 = vsel %vm3785, %v3786, %v3782
      %v3788 = vadd.s32 %v3783, %v3787
      %v3789 = vadd.s32 %v3788, 536870912
      %v3790 = vshrl.u32 %v3789, 30
      %v3791 = vshll.u32 %v3790, 30
      %v3792 = vsub.s32 %v3788, %v3791
      %vm3793 = vcmp.lt.s32.totalorder %v3792, 0
      %v3794 = vsub.s32 0, %v3792
      %v3795 = vsel %vm3793, %v3794, %v3792
      %v3796 = vclz %v3795
      %v3797 = vsub.s32 %v3796, 2
      %vm3798 = vcmp.gt.s32.totalorder 0, %v3797
      %v3799 = vsel %vm3798, 0, %v3797
      %v3800 = vsub.s32 32, %v3799
      %v3801 = vshll.u32 %v3792, %v3799
      %v3802 = vshrl.u32 %v3784, %v3800
      %v3803 = vor.u32 %v3801, %v3802
      %v3804 = vsub.s32 4294967266, %v3799
      %v3805 = vadd.s32 %v3804, 127
      %v3806 = vshll.u32 %v3805, 23
      %v3807 = vor.u32 4788187, %v3806
      %v3808 = vand.u32 2147483647, %v3807
      %v3810 = vcvt.s32.f32 %v3803
      %v3811 = vmul.f32 %v3810, %v3808
      %v3812 = vxor.u32 %v3811, 2147483648
      %v3813 = vsel %vm3730, %v3812, %v3811
      %v3814 = vsub.s32 4, %v3790
      %v3815 = vsel %vm3730, %v3814, %v3790
      %v3816 = vsel %vm3729, %v3078, %v3813
      %v3817 = vsel %vm3729, 0, %v3815
      %v3818 = vcosq.f32.pop %v3816
      %v3819 = vsinq.f32.pop %v3816
      %vm3820 = vweird.f32 %v3078
      %v3821 = vadd.s32 %v3817, 3
      %v3822 = vand.u32 %v3821, 3
      %vm3823 = vcmp.lt.s32.totalorder %v3822, 2
      %vm3824 = vcmp.eq.s32.totalorder %v3822, 0
      %v3825 = vxor.u32 %v3819, 2147483648
      %v3826 = vsel %vm3824, %v3818, %v3825
      %vm3827 = vcmp.eq.s32.totalorder %v3822, 2
      %v3828 = vxor.u32 %v3818, 2147483648
      %v3829 = vsel %vm3827, %v3828, %v3819
      %v3830 = vsel %vm3823, %v3826, %v3829
      %v3831 = vsel %vm3820, nan, %v3830
      %v3832 = vand.u32 2147483647, %v3079
      %vm3833 = vcmp.le.f32.partialorder %v3832, 0.7853982
      %vm3834 = vcmp.lt.s32.totalorder %v3079, 0
      %v3835 = vand.u32 %v3079, 2139095040
      %v3836 = vshrl.u32 %v3835, 23
      %v3837 = vsub.s32 %v3836, 127
      %v3838 = vand.u32 2147483647, %v3079
      %v3839 = vand.u32 %v3838, 8388607
      %v3840 = vor.u32 %v3839, 8388608
      %v3841 = vsub.s32 0, %v3840
      %v3842 = vadd.s32 %v3837, 1
      %vm3843 = vcmp.gt.s32.totalorder %v3842, 0
      %v3844 = vsel %vm3843, %v3842, 0
      %v3845 = vshrl.u32 %v3844, 5
      %v3846 = vand.u32 %v3844, 31
      %v3847 = vsub.s32 32, %v3846
      %v3848 = vshrl.u32 683565275, %v3847
      %v3849 = vshll.u32 683565275, %v3846
      %v3850 = vshrl.u32 2475754826, %v3847
      %v3851 = vor.u32 %v3849, %v3850
      %v3852 = vshll.u32 2475754826, %v3846
      %v3853 = vshrl.u32 2131351028, %v3847
      %v3854 = vor.u32 %v3852, %v3853
      %v3855 = vshll.u32 2131351028, %v3846
      %v3856 = vshrl.u32 2102212464, %v3847
      %v3857 = vor.u32 %v3855, %v3856
      %v3858 = vshll.u32 2102212464, %v3846
      %v3859 = vshrl.u32 920167782, %v3847
      %v3860 = vor.u32 %v3858, %v3859
      %v3861 = vshll.u32 920167782, %v3846
      %v3862 = vshrl.u32 1326507024, %v3847
      %v3863 = vor.u32 %v3861, %v3862
      %vm3864 = vcmp.lt.s32.totalorder %v3845, 1
      %vm3865 = vcmp.lt.s32.totalorder %v3845, 2
      %vm3866 = vcmp.lt.s32.totalorder %v3845, 3
      %vm3867 = vcmp.lt.s32.totalorder %v3845, 4
      %v3868 = vsel %vm3864, %v3848, %v3851
      %v3869 = vsel %vm3867, %v3857, 2102212464
      %v3870 = vsel %vm3866, %v3854, %v3869
      %v3871 = vsel %vm3865, %v3868, %v3870
      %v3872 = vsel %vm3864, %v3851, %v3854
      %v3873 = vsel %vm3867, %v3860, 920167782
      %v3874 = vsel %vm3866, %v3857, %v3873
      %v3875 = vsel %vm3865, %v3872, %v3874
      %v3876 = vsel %vm3864, %v3854, %v3857
      %v3877 = vsel %vm3867, %v3863, 1326507024
      %v3878 = vsel %vm3866, %v3860, %v3877
      %v3879 = vsel %vm3865, %v3876, %v3878
      %v3880 = vshll.u32 %v3840, 8
      %v3881 = vmul.u32.u64.compose %v3880, %v3879
      %v3882 = vextract.low.u32 %v3881
      %v3883 = vextract.high.u32 %v3881
      %v3884 = vmul.u32.u64.compose %v3880, %v3875
      %v3885 = vextract.low.u32 %v3884
      %v3886 = vextract.high.u32 %v3884
      %v3887 = vmul.u32 %v3880, %v3871
      %v3888 = vadd.s32 %v3883, %v3885
      %vm3889 = vc.u32 %v3883, %v3885
      %v3890 = vadd.s32 %v3886, 1
      %v3891 = vsel %vm3889, %v3890, %v3886
      %v3892 = vadd.s32 %v3887, %v3891
      %v3893 = vadd.s32 %v3892, 536870912
      %v3894 = vshrl.u32 %v3893, 30
      %v3895 = vshll.u32 %v3894, 30
      %v3896 = vsub.s32 %v3892, %v3895
      %vm3897 = vcmp.lt.s32.totalorder %v3896, 0
      %v3898 = vsub.s32 0, %v3896
      %v3899 = vsel %vm3897, %v3898, %v3896
      %v3900 = vclz %v3899
      %v3901 = vsub.s32 %v3900, 2
      %vm3902 = vcmp.gt.s32.totalorder 0, %v3901
      %v3903 = vsel %vm3902, 0, %v3901
      %v3904 = vsub.s32 32, %v3903
      %v3905 = vshll.u32 %v3896, %v3903
      %v3906 = vshrl.u32 %v3888, %v3904
      %v3907 = vor.u32 %v3905, %v3906
      %v3908 = vsub.s32 4294967266, %v3903
      %v3909 = vadd.s32 %v3908, 127
      %v3910 = vshll.u32 %v3909, 23
      %v3911 = vor.u32 4788187, %v3910
      %v3912 = vand.u32 2147483647, %v3911
      %v3914 = vcvt.s32.f32 %v3907
      %v3915 = vmul.f32 %v3914, %v3912
      %v3916 = vxor.u32 %v3915, 2147483648
      %v3917 = vsel %vm3834, %v3916, %v3915
      %v3918 = vsub.s32 4, %v3894
      %v3919 = vsel %vm3834, %v3918, %v3894
      %v3920 = vsel %vm3833, %v3079, %v3917
      %v3921 = vsel %vm3833, 0, %v3919
      %v3922 = vcosq.f32.pop %v3920
      %v3923 = vsinq.f32.pop %v3920
      %vm3924 = vweird.f32 %v3079
      %v3925 = vadd.s32 %v3921, 3
      %v3926 = vand.u32 %v3925, 3
      %vm3927 = vcmp.lt.s32.totalorder %v3926, 2
      %vm3928 = vcmp.eq.s32.totalorder %v3926, 0
      %v3929 = vxor.u32 %v3923, 2147483648
      %v3930 = vsel %vm3928, %v3922, %v3929
      %vm3931 = vcmp.eq.s32.totalorder %v3926, 2
      %v3932 = vxor.u32 %v3922, 2147483648
      %v3933 = vsel %vm3931, %v3932, %v3923
      %v3934 = vsel %vm3927, %v3930, %v3933
      %v3935 = vsel %vm3924, nan, %v3934
      %v3936 = vand.u32 2147483647, %v3080
      %vm3937 = vcmp.le.f32.partialorder %v3936, 0.7853982
      %vm3938 = vcmp.lt.s32.totalorder %v3080, 0
      %v3939 = vand.u32 %v3080, 2139095040
      %v3940 = vshrl.u32 %v3939, 23
      %v3941 = vsub.s32 %v3940, 127
      %v3942 = vand.u32 2147483647, %v3080
      %v3943 = vand.u32 %v3942, 8388607
      %v3944 = vor.u32 %v3943, 8388608
      %v3945 = vsub.s32 0, %v3944
      %v3946 = vadd.s32 %v3941, 1
      %vm3947 = vcmp.gt.s32.totalorder %v3946, 0
      %v3948 = vsel %vm3947, %v3946, 0
      %v3949 = vshrl.u32 %v3948, 5
      %v3950 = vand.u32 %v3948, 31
      %v3951 = vsub.s32 32, %v3950
      %v3952 = vshrl.u32 683565275, %v3951
      %v3953 = vshll.u32 683565275, %v3950
      %v3954 = vshrl.u32 2475754826, %v3951
      %v3955 = vor.u32 %v3953, %v3954
      %v3956 = vshll.u32 2475754826, %v3950
      %v3957 = vshrl.u32 2131351028, %v3951
      %v3958 = vor.u32 %v3956, %v3957
      %v3959 = vshll.u32 2131351028, %v3950
      %v3960 = vshrl.u32 2102212464, %v3951
      %v3961 = vor.u32 %v3959, %v3960
      %v3962 = vshll.u32 2102212464, %v3950
      %v3963 = vshrl.u32 920167782, %v3951
      %v3964 = vor.u32 %v3962, %v3963
      %v3965 = vshll.u32 920167782, %v3950
      %v3966 = vshrl.u32 1326507024, %v3951
      %v3967 = vor.u32 %v3965, %v3966
      %vm3968 = vcmp.lt.s32.totalorder %v3949, 1
      %vm3969 = vcmp.lt.s32.totalorder %v3949, 2
      %vm3970 = vcmp.lt.s32.totalorder %v3949, 3
      %vm3971 = vcmp.lt.s32.totalorder %v3949, 4
      %v3972 = vsel %vm3968, %v3952, %v3955
      %v3973 = vsel %vm3971, %v3961, 2102212464
      %v3974 = vsel %vm3970, %v3958, %v3973
      %v3975 = vsel %vm3969, %v3972, %v3974
      %v3976 = vsel %vm3968, %v3955, %v3958
      %v3977 = vsel %vm3971, %v3964, 920167782
      %v3978 = vsel %vm3970, %v3961, %v3977
      %v3979 = vsel %vm3969, %v3976, %v3978
      %v3980 = vsel %vm3968, %v3958, %v3961
      %v3981 = vsel %vm3971, %v3967, 1326507024
      %v3982 = vsel %vm3970, %v3964, %v3981
      %v3983 = vsel %vm3969, %v3980, %v3982
      %v3984 = vshll.u32 %v3944, 8
      %v3985 = vmul.u32.u64.compose %v3984, %v3983
      %v3986 = vextract.low.u32 %v3985
      %v3987 = vextract.high.u32 %v3985
      %v3988 = vmul.u32.u64.compose %v3984, %v3979
      %v3989 = vextract.low.u32 %v3988
      %v3990 = vextract.high.u32 %v3988
      %v3991 = vmul.u32 %v3984, %v3975
      %v3992 = vadd.s32 %v3987, %v3989
      %vm3993 = vc.u32 %v3987, %v3989
      %v3994 = vadd.s32 %v3990, 1
      %v3995 = vsel %vm3993, %v3994, %v3990
      %v3996 = vadd.s32 %v3991, %v3995
      %v3997 = vadd.s32 %v3996, 536870912
      %v3998 = vshrl.u32 %v3997, 30
      %v3999 = vshll.u32 %v3998, 30
      %v4000 = vsub.s32 %v3996, %v3999
      %vm4001 = vcmp.lt.s32.totalorder %v4000, 0
      %v4002 = vsub.s32 0, %v4000
      %v4003 = vsel %vm4001, %v4002, %v4000
      %v4004 = vclz %v4003
      %v4005 = vsub.s32 %v4004, 2
      %vm4006 = vcmp.gt.s32.totalorder 0, %v4005
      %v4007 = vsel %vm4006, 0, %v4005
      %v4008 = vsub.s32 32, %v4007
      %v4009 = vshll.u32 %v4000, %v4007
      %v4010 = vshrl.u32 %v3992, %v4008
      %v4011 = vor.u32 %v4009, %v4010
      %v4012 = vsub.s32 4294967266, %v4007
      %v4013 = vadd.s32 %v4012, 127
      %v4014 = vshll.u32 %v4013, 23
      %v4015 = vor.u32 4788187, %v4014
      %v4016 = vand.u32 2147483647, %v4015
      %v4018 = vcvt.s32.f32 %v4011
      %v4019 = vmul.f32 %v4018, %v4016
      %v4020 = vxor.u32 %v4019, 2147483648
      %v4021 = vsel %vm3938, %v4020, %v4019
      %v4022 = vsub.s32 4, %v3998
      %v4023 = vsel %vm3938, %v4022, %v3998
      %v4024 = vsel %vm3937, %v3080, %v4021
      %v4025 = vsel %vm3937, 0, %v4023
      %v4026 = vcosq.f32.pop %v4024
      %v4027 = vsinq.f32.pop %v4024
      %vm4028 = vweird.f32 %v3080
      %v4029 = vadd.s32 %v4025, 3
      %v4030 = vand.u32 %v4029, 3
      %vm4031 = vcmp.lt.s32.totalorder %v4030, 2
      %vm4032 = vcmp.eq.s32.totalorder %v4030, 0
      %v4033 = vxor.u32 %v4027, 2147483648
      %v4034 = vsel %vm4032, %v4026, %v4033
      %vm4035 = vcmp.eq.s32.totalorder %v4030, 2
      %v4036 = vxor.u32 %v4026, 2147483648
      %v4037 = vsel %vm4035, %v4036, %v4027
      %v4038 = vsel %vm4031, %v4034, %v4037
      %v4039 = vsel %vm4028, nan, %v4038
      %v4040 = vand.u32 2147483647, %v3081
      %vm4041 = vcmp.le.f32.partialorder %v4040, 0.7853982
      %vm4042 = vcmp.lt.s32.totalorder %v3081, 0
      %v4043 = vand.u32 %v3081, 2139095040
      %v4044 = vshrl.u32 %v4043, 23
      %v4045 = vsub.s32 %v4044, 127
      %v4046 = vand.u32 2147483647, %v3081
      %v4047 = vand.u32 %v4046, 8388607
      %v4048 = vor.u32 %v4047, 8388608
      %v4049 = vsub.s32 0, %v4048
      %v4050 = vadd.s32 %v4045, 1
      %vm4051 = vcmp.gt.s32.totalorder %v4050, 0
      %v4052 = vsel %vm4051, %v4050, 0
      %v4053 = vshrl.u32 %v4052, 5
      %v4054 = vand.u32 %v4052, 31
      %v4055 = vsub.s32 32, %v4054
      %v4056 = vshrl.u32 683565275, %v4055
      %v4057 = vshll.u32 683565275, %v4054
      %v4058 = vshrl.u32 2475754826, %v4055
      %v4059 = vor.u32 %v4057, %v4058
      %v4060 = vshll.u32 2475754826, %v4054
      %v4061 = vshrl.u32 2131351028, %v4055
      %v4062 = vor.u32 %v4060, %v4061
      %v4063 = vshll.u32 2131351028, %v4054
      %v4064 = vshrl.u32 2102212464, %v4055
      %v4065 = vor.u32 %v4063, %v4064
      %v4066 = vshll.u32 2102212464, %v4054
      %v4067 = vshrl.u32 920167782, %v4055
      %v4068 = vor.u32 %v4066, %v4067
      %v4069 = vshll.u32 920167782, %v4054
      %v4070 = vshrl.u32 1326507024, %v4055
      %v4071 = vor.u32 %v4069, %v4070
      %vm4072 = vcmp.lt.s32.totalorder %v4053, 1
      %vm4073 = vcmp.lt.s32.totalorder %v4053, 2
      %vm4074 = vcmp.lt.s32.totalorder %v4053, 3
      %vm4075 = vcmp.lt.s32.totalorder %v4053, 4
      %v4076 = vsel %vm4072, %v4056, %v4059
      %v4077 = vsel %vm4075, %v4065, 2102212464
      %v4078 = vsel %vm4074, %v4062, %v4077
      %v4079 = vsel %vm4073, %v4076, %v4078
      %v4080 = vsel %vm4072, %v4059, %v4062
      %v4081 = vsel %vm4075, %v4068, 920167782
      %v4082 = vsel %vm4074, %v4065, %v4081
      %v4083 = vsel %vm4073, %v4080, %v4082
      %v4084 = vsel %vm4072, %v4062, %v4065
      %v4085 = vsel %vm4075, %v4071, 1326507024
      %v4086 = vsel %vm4074, %v4068, %v4085
      %v4087 = vsel %vm4073, %v4084, %v4086
      %v4088 = vshll.u32 %v4048, 8
      %v4089 = vmul.u32.u64.compose %v4088, %v4087
      %v4090 = vextract.low.u32 %v4089
      %v4091 = vextract.high.u32 %v4089
      %v4092 = vmul.u32.u64.compose %v4088, %v4083
      %v4093 = vextract.low.u32 %v4092
      %v4094 = vextract.high.u32 %v4092
      %v4095 = vmul.u32 %v4088, %v4079
      %v4096 = vadd.s32 %v4091, %v4093
      %vm4097 = vc.u32 %v4091, %v4093
      %v4098 = vadd.s32 %v4094, 1
      %v4099 = vsel %vm4097, %v4098, %v4094
      %v4100 = vadd.s32 %v4095, %v4099
      %v4101 = vadd.s32 %v4100, 536870912
      %v4102 = vshrl.u32 %v4101, 30
      %v4103 = vshll.u32 %v4102, 30
      %v4104 = vsub.s32 %v4100, %v4103
      %vm4105 = vcmp.lt.s32.totalorder %v4104, 0
      %v4106 = vsub.s32 0, %v4104
      %v4107 = vsel %vm4105, %v4106, %v4104
      %v4108 = vclz %v4107
      %v4109 = vsub.s32 %v4108, 2
      %vm4110 = vcmp.gt.s32.totalorder 0, %v4109
      %v4111 = vsel %vm4110, 0, %v4109
      %v4112 = vsub.s32 32, %v4111
      %v4113 = vshll.u32 %v4104, %v4111
      %v4114 = vshrl.u32 %v4096, %v4112
      %v4115 = vor.u32 %v4113, %v4114
      %v4116 = vsub.s32 4294967266, %v4111
      %v4117 = vadd.s32 %v4116, 127
      %v4118 = vshll.u32 %v4117, 23
      %v4119 = vor.u32 4788187, %v4118
      %v4120 = vand.u32 2147483647, %v4119
      %v4122 = vcvt.s32.f32 %v4115
      %v4123 = vmul.f32 %v4122, %v4120
      %v4124 = vxor.u32 %v4123, 2147483648
      %v4125 = vsel %vm4042, %v4124, %v4123
      %v4126 = vsub.s32 4, %v4102
      %v4127 = vsel %vm4042, %v4126, %v4102
      %v4128 = vsel %vm4041, %v3081, %v4125
      %v4129 = vsel %vm4041, 0, %v4127
      %v4130 = vcosq.f32.pop %v4128
      %v4131 = vsinq.f32.pop %v4128
      %vm4132 = vweird.f32 %v3081
      %v4133 = vadd.s32 %v4129, 3
      %v4134 = vand.u32 %v4133, 3
      %vm4135 = vcmp.lt.s32.totalorder %v4134, 2
      %vm4136 = vcmp.eq.s32.totalorder %v4134, 0
      %v4137 = vxor.u32 %v4131, 2147483648
      %v4138 = vsel %vm4136, %v4130, %v4137
      %vm4139 = vcmp.eq.s32.totalorder %v4134, 2
      %v4140 = vxor.u32 %v4130, 2147483648
      %v4141 = vsel %vm4139, %v4140, %v4131
      %v4142 = vsel %vm4135, %v4138, %v4141
      %v4143 = vsel %vm4132, nan, %v4142
      %v4144 = vand.u32 2147483647, %v3082
      %vm4145 = vcmp.le.f32.partialorder %v4144, 0.7853982
      %vm4146 = vcmp.lt.s32.totalorder %v3082, 0
      %v4147 = vand.u32 %v3082, 2139095040
      %v4148 = vshrl.u32 %v4147, 23
      %v4149 = vsub.s32 %v4148, 127
      %v4150 = vand.u32 2147483647, %v3082
      %v4151 = vand.u32 %v4150, 8388607
      %v4152 = vor.u32 %v4151, 8388608
      %v4153 = vsub.s32 0, %v4152
      %v4154 = vadd.s32 %v4149, 1
      %vm4155 = vcmp.gt.s32.totalorder %v4154, 0
      %v4156 = vsel %vm4155, %v4154, 0
      %v4157 = vshrl.u32 %v4156, 5
      %v4158 = vand.u32 %v4156, 31
      %v4159 = vsub.s32 32, %v4158
      %v4160 = vshrl.u32 683565275, %v4159
      %v4161 = vshll.u32 683565275, %v4158
      %v4162 = vshrl.u32 2475754826, %v4159
      %v4163 = vor.u32 %v4161, %v4162
      %v4164 = vshll.u32 2475754826, %v4158
      %v4165 = vshrl.u32 2131351028, %v4159
      %v4166 = vor.u32 %v4164, %v4165
      %v4167 = vshll.u32 2131351028, %v4158
      %v4168 = vshrl.u32 2102212464, %v4159
      %v4169 = vor.u32 %v4167, %v4168
      %v4170 = vshll.u32 2102212464, %v4158
      %v4171 = vshrl.u32 920167782, %v4159
      %v4172 = vor.u32 %v4170, %v4171
      %v4173 = vshll.u32 920167782, %v4158
      %v4174 = vshrl.u32 1326507024, %v4159
      %v4175 = vor.u32 %v4173, %v4174
      %vm4176 = vcmp.lt.s32.totalorder %v4157, 1
      %vm4177 = vcmp.lt.s32.totalorder %v4157, 2
      %vm4178 = vcmp.lt.s32.totalorder %v4157, 3
      %vm4179 = vcmp.lt.s32.totalorder %v4157, 4
      %v4180 = vsel %vm4176, %v4160, %v4163
      %v4181 = vsel %vm4179, %v4169, 2102212464
      %v4182 = vsel %vm4178, %v4166, %v4181
      %v4183 = vsel %vm4177, %v4180, %v4182
      %v4184 = vsel %vm4176, %v4163, %v4166
      %v4185 = vsel %vm4179, %v4172, 920167782
      %v4186 = vsel %vm4178, %v4169, %v4185
      %v4187 = vsel %vm4177, %v4184, %v4186
      %v4188 = vsel %vm4176, %v4166, %v4169
      %v4189 = vsel %vm4179, %v4175, 1326507024
      %v4190 = vsel %vm4178, %v4172, %v4189
      %v4191 = vsel %vm4177, %v4188, %v4190
      %v4192 = vshll.u32 %v4152, 8
      %v4193 = vmul.u32.u64.compose %v4192, %v4191
      %v4194 = vextract.low.u32 %v4193
      %v4195 = vextract.high.u32 %v4193
      %v4196 = vmul.u32.u64.compose %v4192, %v4187
      %v4197 = vextract.low.u32 %v4196
      %v4198 = vextract.high.u32 %v4196
      %v4199 = vmul.u32 %v4192, %v4183
      %v4200 = vadd.s32 %v4195, %v4197
      %vm4201 = vc.u32 %v4195, %v4197
      %v4202 = vadd.s32 %v4198, 1
      %v4203 = vsel %vm4201, %v4202, %v4198
      %v4204 = vadd.s32 %v4199, %v4203
      %v4205 = vadd.s32 %v4204, 536870912
      %v4206 = vshrl.u32 %v4205, 30
      %v4207 = vshll.u32 %v4206, 30
      %v4208 = vsub.s32 %v4204, %v4207
      %vm4209 = vcmp.lt.s32.totalorder %v4208, 0
      %v4210 = vsub.s32 0, %v4208
      %v4211 = vsel %vm4209, %v4210, %v4208
      %v4212 = vclz %v4211
      %v4213 = vsub.s32 %v4212, 2
      %vm4214 = vcmp.gt.s32.totalorder 0, %v4213
      %v4215 = vsel %vm4214, 0, %v4213
      %v4216 = vsub.s32 32, %v4215
      %v4217 = vshll.u32 %v4208, %v4215
      %v4218 = vshrl.u32 %v4200, %v4216
      %v4219 = vor.u32 %v4217, %v4218
      %v4220 = vsub.s32 4294967266, %v4215
      %v4221 = vadd.s32 %v4220, 127
      %v4222 = vshll.u32 %v4221, 23
      %v4223 = vor.u32 4788187, %v4222
      %v4224 = vand.u32 2147483647, %v4223
      %v4226 = vcvt.s32.f32 %v4219
      %v4227 = vmul.f32 %v4226, %v4224
      %v4228 = vxor.u32 %v4227, 2147483648
      %v4229 = vsel %vm4146, %v4228, %v4227
      %v4230 = vsub.s32 4, %v4206
      %v4231 = vsel %vm4146, %v4230, %v4206
      %v4232 = vsel %vm4145, %v3082, %v4229
      %v4233 = vsel %vm4145, 0, %v4231
      %v4234 = vcosq.f32.pop %v4232
      %v4235 = vsinq.f32.pop %v4232
      %vm4236 = vweird.f32 %v3082
      %v4237 = vadd.s32 %v4233, 3
      %v4238 = vand.u32 %v4237, 3
      %vm4239 = vcmp.lt.s32.totalorder %v4238, 2
      %vm4240 = vcmp.eq.s32.totalorder %v4238, 0
      %v4241 = vxor.u32 %v4235, 2147483648
      %v4242 = vsel %vm4240, %v4234, %v4241
      %vm4243 = vcmp.eq.s32.totalorder %v4238, 2
      %v4244 = vxor.u32 %v4234, 2147483648
      %v4245 = vsel %vm4243, %v4244, %v4235
      %v4246 = vsel %vm4239, %v4242, %v4245
      %v4247 = vsel %vm4236, nan, %v4246
      %v4248 = vand.u32 2147483647, %v3083
      %vm4249 = vcmp.le.f32.partialorder %v4248, 0.7853982
      %vm4250 = vcmp.lt.s32.totalorder %v3083, 0
      %v4251 = vand.u32 %v3083, 2139095040
      %v4252 = vshrl.u32 %v4251, 23
      %v4253 = vsub.s32 %v4252, 127
      %v4254 = vand.u32 2147483647, %v3083
      %v4255 = vand.u32 %v4254, 8388607
      %v4256 = vor.u32 %v4255, 8388608
      %v4257 = vsub.s32 0, %v4256
      %v4258 = vadd.s32 %v4253, 1
      %vm4259 = vcmp.gt.s32.totalorder %v4258, 0
      %v4260 = vsel %vm4259, %v4258, 0
      %v4261 = vshrl.u32 %v4260, 5
      %v4262 = vand.u32 %v4260, 31
      %v4263 = vsub.s32 32, %v4262
      %v4264 = vshrl.u32 683565275, %v4263
      %v4265 = vshll.u32 683565275, %v4262
      %v4266 = vshrl.u32 2475754826, %v4263
      %v4267 = vor.u32 %v4265, %v4266
      %v4268 = vshll.u32 2475754826, %v4262
      %v4269 = vshrl.u32 2131351028, %v4263
      %v4270 = vor.u32 %v4268, %v4269
      %v4271 = vshll.u32 2131351028, %v4262
      %v4272 = vshrl.u32 2102212464, %v4263
      %v4273 = vor.u32 %v4271, %v4272
      %v4274 = vshll.u32 2102212464, %v4262
      %v4275 = vshrl.u32 920167782, %v4263
      %v4276 = vor.u32 %v4274, %v4275
      %v4277 = vshll.u32 920167782, %v4262
      %v4278 = vshrl.u32 1326507024, %v4263
      %v4279 = vor.u32 %v4277, %v4278
      %vm4280 = vcmp.lt.s32.totalorder %v4261, 1
      %vm4281 = vcmp.lt.s32.totalorder %v4261, 2
      %vm4282 = vcmp.lt.s32.totalorder %v4261, 3
      %vm4283 = vcmp.lt.s32.totalorder %v4261, 4
      %v4284 = vsel %vm4280, %v4264, %v4267
      %v4285 = vsel %vm4283, %v4273, 2102212464
      %v4286 = vsel %vm4282, %v4270, %v4285
      %v4287 = vsel %vm4281, %v4284, %v4286
      %v4288 = vsel %vm4280, %v4267, %v4270
      %v4289 = vsel %vm4283, %v4276, 920167782
      %v4290 = vsel %vm4282, %v4273, %v4289
      %v4291 = vsel %vm4281, %v4288, %v4290
      %v4292 = vsel %vm4280, %v4270, %v4273
      %v4293 = vsel %vm4283, %v4279, 1326507024
      %v4294 = vsel %vm4282, %v4276, %v4293
      %v4295 = vsel %vm4281, %v4292, %v4294
      %v4296 = vshll.u32 %v4256, 8
      %v4297 = vmul.u32.u64.compose %v4296, %v4295
      %v4298 = vextract.low.u32 %v4297
      %v4299 = vextract.high.u32 %v4297
      %v4300 = vmul.u32.u64.compose %v4296, %v4291
      %v4301 = vextract.low.u32 %v4300
      %v4302 = vextract.high.u32 %v4300
      %v4303 = vmul.u32 %v4296, %v4287
      %v4304 = vadd.s32 %v4299, %v4301
      %vm4305 = vc.u32 %v4299, %v4301
      %v4306 = vadd.s32 %v4302, 1
      %v4307 = vsel %vm4305, %v4306, %v4302
      %v4308 = vadd.s32 %v4303, %v4307
      %v4309 = vadd.s32 %v4308, 536870912
      %v4310 = vshrl.u32 %v4309, 30
      %v4311 = vshll.u32 %v4310, 30
      %v4312 = vsub.s32 %v4308, %v4311
      %vm4313 = vcmp.lt.s32.totalorder %v4312, 0
      %v4314 = vsub.s32 0, %v4312
      %v4315 = vsel %vm4313, %v4314, %v4312
      %v4316 = vclz %v4315
      %v4317 = vsub.s32 %v4316, 2
      %vm4318 = vcmp.gt.s32.totalorder 0, %v4317
      %v4319 = vsel %vm4318, 0, %v4317
      %v4320 = vsub.s32 32, %v4319
      %v4321 = vshll.u32 %v4312, %v4319
      %v4322 = vshrl.u32 %v4304, %v4320
      %v4323 = vor.u32 %v4321, %v4322
      %v4324 = vsub.s32 4294967266, %v4319
      %v4325 = vadd.s32 %v4324, 127
      %v4326 = vshll.u32 %v4325, 23
      %v4327 = vor.u32 4788187, %v4326
      %v4328 = vand.u32 2147483647, %v4327
      %v4330 = vcvt.s32.f32 %v4323
      %v4331 = vmul.f32 %v4330, %v4328
      %v4332 = vxor.u32 %v4331, 2147483648
      %v4333 = vsel %vm4250, %v4332, %v4331
      %v4334 = vsub.s32 4, %v4310
      %v4335 = vsel %vm4250, %v4334, %v4310
      %v4336 = vsel %vm4249, %v3083, %v4333
      %v4337 = vsel %vm4249, 0, %v4335
      %v4338 = vcosq.f32.pop %v4336
      %v4339 = vsinq.f32.pop %v4336
      %vm4340 = vweird.f32 %v3083
      %v4341 = vadd.s32 %v4337, 3
      %v4342 = vand.u32 %v4341, 3
      %vm4343 = vcmp.lt.s32.totalorder %v4342, 2
      %vm4344 = vcmp.eq.s32.totalorder %v4342, 0
      %v4345 = vxor.u32 %v4339, 2147483648
      %v4346 = vsel %vm4344, %v4338, %v4345
      %vm4347 = vcmp.eq.s32.totalorder %v4342, 2
      %v4348 = vxor.u32 %v4338, 2147483648
      %v4349 = vsel %vm4347, %v4348, %v4339
      %v4350 = vsel %vm4343, %v4346, %v4349
      %v4351 = vsel %vm4340, nan, %v4350
      %v4352 = vand.u32 2147483647, %v3084
      %vm4353 = vcmp.le.f32.partialorder %v4352, 0.7853982
      %vm4354 = vcmp.lt.s32.totalorder %v3084, 0
      %v4355 = vand.u32 %v3084, 2139095040
      %v4356 = vshrl.u32 %v4355, 23
      %v4357 = vsub.s32 %v4356, 127
      %v4358 = vand.u32 2147483647, %v3084
      %v4359 = vand.u32 %v4358, 8388607
      %v4360 = vor.u32 %v4359, 8388608
      %v4361 = vsub.s32 0, %v4360
      %v4362 = vadd.s32 %v4357, 1
      %vm4363 = vcmp.gt.s32.totalorder %v4362, 0
      %v4364 = vsel %vm4363, %v4362, 0
      %v4365 = vshrl.u32 %v4364, 5
      %v4366 = vand.u32 %v4364, 31
      %v4367 = vsub.s32 32, %v4366
      %v4368 = vshrl.u32 683565275, %v4367
      %v4369 = vshll.u32 683565275, %v4366
      %v4370 = vshrl.u32 2475754826, %v4367
      %v4371 = vor.u32 %v4369, %v4370
      %v4372 = vshll.u32 2475754826, %v4366
      %v4373 = vshrl.u32 2131351028, %v4367
      %v4374 = vor.u32 %v4372, %v4373
      %v4375 = vshll.u32 2131351028, %v4366
      %v4376 = vshrl.u32 2102212464, %v4367
      %v4377 = vor.u32 %v4375, %v4376
      %v4378 = vshll.u32 2102212464, %v4366
      %v4379 = vshrl.u32 920167782, %v4367
      %v4380 = vor.u32 %v4378, %v4379
      %v4381 = vshll.u32 920167782, %v4366
      %v4382 = vshrl.u32 1326507024, %v4367
      %v4383 = vor.u32 %v4381, %v4382
      %vm4384 = vcmp.lt.s32.totalorder %v4365, 1
      %vm4385 = vcmp.lt.s32.totalorder %v4365, 2
      %vm4386 = vcmp.lt.s32.totalorder %v4365, 3
      %vm4387 = vcmp.lt.s32.totalorder %v4365, 4
      %v4388 = vsel %vm4384, %v4368, %v4371
      %v4389 = vsel %vm4387, %v4377, 2102212464
      %v4390 = vsel %vm4386, %v4374, %v4389
      %v4391 = vsel %vm4385, %v4388, %v4390
      %v4392 = vsel %vm4384, %v4371, %v4374
      %v4393 = vsel %vm4387, %v4380, 920167782
      %v4394 = vsel %vm4386, %v4377, %v4393
      %v4395 = vsel %vm4385, %v4392, %v4394
      %v4396 = vsel %vm4384, %v4374, %v4377
      %v4397 = vsel %vm4387, %v4383, 1326507024
      %v4398 = vsel %vm4386, %v4380, %v4397
      %v4399 = vsel %vm4385, %v4396, %v4398
      %v4400 = vshll.u32 %v4360, 8
      %v4401 = vmul.u32.u64.compose %v4400, %v4399
      %v4402 = vextract.low.u32 %v4401
      %v4403 = vextract.high.u32 %v4401
      %v4404 = vmul.u32.u64.compose %v4400, %v4395
      %v4405 = vextract.low.u32 %v4404
      %v4406 = vextract.high.u32 %v4404
      %v4407 = vmul.u32 %v4400, %v4391
      %v4408 = vadd.s32 %v4403, %v4405
      %vm4409 = vc.u32 %v4403, %v4405
      %v4410 = vadd.s32 %v4406, 1
      %v4411 = vsel %vm4409, %v4410, %v4406
      %v4412 = vadd.s32 %v4407, %v4411
      %v4413 = vadd.s32 %v4412, 536870912
      %v4414 = vshrl.u32 %v4413, 30
      %v4415 = vshll.u32 %v4414, 30
      %v4416 = vsub.s32 %v4412, %v4415
      %vm4417 = vcmp.lt.s32.totalorder %v4416, 0
      %v4418 = vsub.s32 0, %v4416
      %v4419 = vsel %vm4417, %v4418, %v4416
      %v4420 = vclz %v4419
      %v4421 = vsub.s32 %v4420, 2
      %vm4422 = vcmp.gt.s32.totalorder 0, %v4421
      %v4423 = vsel %vm4422, 0, %v4421
      %v4424 = vsub.s32 32, %v4423
      %v4425 = vshll.u32 %v4416, %v4423
      %v4426 = vshrl.u32 %v4408, %v4424
      %v4427 = vor.u32 %v4425, %v4426
      %v4428 = vsub.s32 4294967266, %v4423
      %v4429 = vadd.s32 %v4428, 127
      %v4430 = vshll.u32 %v4429, 23
      %v4431 = vor.u32 4788187, %v4430
      %v4432 = vand.u32 2147483647, %v4431
      %v4434 = vcvt.s32.f32 %v4427
      %v4435 = vmul.f32 %v4434, %v4432
      %v4436 = vxor.u32 %v4435, 2147483648
      %v4437 = vsel %vm4354, %v4436, %v4435
      %v4438 = vsub.s32 4, %v4414
      %v4439 = vsel %vm4354, %v4438, %v4414
      %v4440 = vsel %vm4353, %v3084, %v4437
      %v4441 = vsel %vm4353, 0, %v4439
      %v4442 = vcosq.f32.pop %v4440
      %v4443 = vsinq.f32.pop %v4440
      %vm4444 = vweird.f32 %v3084
      %v4445 = vadd.s32 %v4441, 3
      %v4446 = vand.u32 %v4445, 3
      %vm4447 = vcmp.lt.s32.totalorder %v4446, 2
      %vm4448 = vcmp.eq.s32.totalorder %v4446, 0
      %v4449 = vxor.u32 %v4443, 2147483648
      %v4450 = vsel %vm4448, %v4442, %v4449
      %vm4451 = vcmp.eq.s32.totalorder %v4446, 2
      %v4452 = vxor.u32 %v4442, 2147483648
      %v4453 = vsel %vm4451, %v4452, %v4443
      %v4454 = vsel %vm4447, %v4450, %v4453
      %v4455 = vsel %vm4444, nan, %v4454
      %v4456 = vand.u32 2147483647, %v3085
      %vm4457 = vcmp.le.f32.partialorder %v4456, 0.7853982
      %vm4458 = vcmp.lt.s32.totalorder %v3085, 0
      %v4459 = vand.u32 %v3085, 2139095040
      %v4460 = vshrl.u32 %v4459, 23
      %v4461 = vsub.s32 %v4460, 127
      %v4462 = vand.u32 2147483647, %v3085
      %v4463 = vand.u32 %v4462, 8388607
      %v4464 = vor.u32 %v4463, 8388608
      %v4465 = vsub.s32 0, %v4464
      %v4466 = vadd.s32 %v4461, 1
      %vm4467 = vcmp.gt.s32.totalorder %v4466, 0
      %v4468 = vsel %vm4467, %v4466, 0
      %v4469 = vshrl.u32 %v4468, 5
      %v4470 = vand.u32 %v4468, 31
      %v4471 = vsub.s32 32, %v4470
      %v4472 = vshrl.u32 683565275, %v4471
      %v4473 = vshll.u32 683565275, %v4470
      %v4474 = vshrl.u32 2475754826, %v4471
      %v4475 = vor.u32 %v4473, %v4474
      %v4476 = vshll.u32 2475754826, %v4470
      %v4477 = vshrl.u32 2131351028, %v4471
      %v4478 = vor.u32 %v4476, %v4477
      %v4479 = vshll.u32 2131351028, %v4470
      %v4480 = vshrl.u32 2102212464, %v4471
      %v4481 = vor.u32 %v4479, %v4480
      %v4482 = vshll.u32 2102212464, %v4470
      %v4483 = vshrl.u32 920167782, %v4471
      %v4484 = vor.u32 %v4482, %v4483
      %v4485 = vshll.u32 920167782, %v4470
      %v4486 = vshrl.u32 1326507024, %v4471
      %v4487 = vor.u32 %v4485, %v4486
      %vm4488 = vcmp.lt.s32.totalorder %v4469, 1
      %vm4489 = vcmp.lt.s32.totalorder %v4469, 2
      %vm4490 = vcmp.lt.s32.totalorder %v4469, 3
      %vm4491 = vcmp.lt.s32.totalorder %v4469, 4
      %v4492 = vsel %vm4488, %v4472, %v4475
      %v4493 = vsel %vm4491, %v4481, 2102212464
      %v4494 = vsel %vm4490, %v4478, %v4493
      %v4495 = vsel %vm4489, %v4492, %v4494
      %v4496 = vsel %vm4488, %v4475, %v4478
      %v4497 = vsel %vm4491, %v4484, 920167782
      %v4498 = vsel %vm4490, %v4481, %v4497
      %v4499 = vsel %vm4489, %v4496, %v4498
      %v4500 = vsel %vm4488, %v4478, %v4481
      %v4501 = vsel %vm4491, %v4487, 1326507024
      %v4502 = vsel %vm4490, %v4484, %v4501
      %v4503 = vsel %vm4489, %v4500, %v4502
      %v4504 = vshll.u32 %v4464, 8
      %v4505 = vmul.u32.u64.compose %v4504, %v4503
      %v4506 = vextract.low.u32 %v4505
      %v4507 = vextract.high.u32 %v4505
      %v4508 = vmul.u32.u64.compose %v4504, %v4499
      %v4509 = vextract.low.u32 %v4508
      %v4510 = vextract.high.u32 %v4508
      %v4511 = vmul.u32 %v4504, %v4495
      %v4512 = vadd.s32 %v4507, %v4509
      %vm4513 = vc.u32 %v4507, %v4509
      %v4514 = vadd.s32 %v4510, 1
      %v4515 = vsel %vm4513, %v4514, %v4510
      %v4516 = vadd.s32 %v4511, %v4515
      %v4517 = vadd.s32 %v4516, 536870912
      %v4518 = vshrl.u32 %v4517, 30
      %v4519 = vshll.u32 %v4518, 30
      %v4520 = vsub.s32 %v4516, %v4519
      %vm4521 = vcmp.lt.s32.totalorder %v4520, 0
      %v4522 = vsub.s32 0, %v4520
      %v4523 = vsel %vm4521, %v4522, %v4520
      %v4524 = vclz %v4523
      %v4525 = vsub.s32 %v4524, 2
      %vm4526 = vcmp.gt.s32.totalorder 0, %v4525
      %v4527 = vsel %vm4526, 0, %v4525
      %v4528 = vsub.s32 32, %v4527
      %v4529 = vshll.u32 %v4520, %v4527
      %v4530 = vshrl.u32 %v4512, %v4528
      %v4531 = vor.u32 %v4529, %v4530
      %v4532 = vsub.s32 4294967266, %v4527
      %v4533 = vadd.s32 %v4532, 127
      %v4534 = vshll.u32 %v4533, 23
      %v4535 = vor.u32 4788187, %v4534
      %v4536 = vand.u32 2147483647, %v4535
      %v4538 = vcvt.s32.f32 %v4531
      %v4539 = vmul.f32 %v4538, %v4536
      %v4540 = vxor.u32 %v4539, 2147483648
      %v4541 = vsel %vm4458, %v4540, %v4539
      %v4542 = vsub.s32 4, %v4518
      %v4543 = vsel %vm4458, %v4542, %v4518
      %v4544 = vsel %vm4457, %v3085, %v4541
      %v4545 = vsel %vm4457, 0, %v4543
      %v4546 = vcosq.f32.pop %v4544
      %v4547 = vsinq.f32.pop %v4544
      %vm4548 = vweird.f32 %v3085
      %v4549 = vadd.s32 %v4545, 3
      %v4550 = vand.u32 %v4549, 3
      %vm4551 = vcmp.lt.s32.totalorder %v4550, 2
      %vm4552 = vcmp.eq.s32.totalorder %v4550, 0
      %v4553 = vxor.u32 %v4547, 2147483648
      %v4554 = vsel %vm4552, %v4546, %v4553
      %vm4555 = vcmp.eq.s32.totalorder %v4550, 2
      %v4556 = vxor.u32 %v4546, 2147483648
      %v4557 = vsel %vm4555, %v4556, %v4547
      %v4558 = vsel %vm4551, %v4554, %v4557
      %v4559 = vsel %vm4548, nan, %v4558
      %v4560 = vand.u32 2147483647, %v3086
      %vm4561 = vcmp.le.f32.partialorder %v4560, 0.7853982
      %vm4562 = vcmp.lt.s32.totalorder %v3086, 0
      %v4563 = vand.u32 %v3086, 2139095040
      %v4564 = vshrl.u32 %v4563, 23
      %v4565 = vsub.s32 %v4564, 127
      %v4566 = vand.u32 2147483647, %v3086
      %v4567 = vand.u32 %v4566, 8388607
      %v4568 = vor.u32 %v4567, 8388608
      %v4569 = vsub.s32 0, %v4568
      %v4570 = vadd.s32 %v4565, 1
      %vm4571 = vcmp.gt.s32.totalorder %v4570, 0
      %v4572 = vsel %vm4571, %v4570, 0
      %v4573 = vshrl.u32 %v4572, 5
      %v4574 = vand.u32 %v4572, 31
      %v4575 = vsub.s32 32, %v4574
      %v4576 = vshrl.u32 683565275, %v4575
      %v4577 = vshll.u32 683565275, %v4574
      %v4578 = vshrl.u32 2475754826, %v4575
      %v4579 = vor.u32 %v4577, %v4578
      %v4580 = vshll.u32 2475754826, %v4574
      %v4581 = vshrl.u32 2131351028, %v4575
      %v4582 = vor.u32 %v4580, %v4581
      %v4583 = vshll.u32 2131351028, %v4574
      %v4584 = vshrl.u32 2102212464, %v4575
      %v4585 = vor.u32 %v4583, %v4584
      %v4586 = vshll.u32 2102212464, %v4574
      %v4587 = vshrl.u32 920167782, %v4575
      %v4588 = vor.u32 %v4586, %v4587
      %v4589 = vshll.u32 920167782, %v4574
      %v4590 = vshrl.u32 1326507024, %v4575
      %v4591 = vor.u32 %v4589, %v4590
      %vm4592 = vcmp.lt.s32.totalorder %v4573, 1
      %vm4593 = vcmp.lt.s32.totalorder %v4573, 2
      %vm4594 = vcmp.lt.s32.totalorder %v4573, 3
      %vm4595 = vcmp.lt.s32.totalorder %v4573, 4
      %v4596 = vsel %vm4592, %v4576, %v4579
      %v4597 = vsel %vm4595, %v4585, 2102212464
      %v4598 = vsel %vm4594, %v4582, %v4597
      %v4599 = vsel %vm4593, %v4596, %v4598
      %v4600 = vsel %vm4592, %v4579, %v4582
      %v4601 = vsel %vm4595, %v4588, 920167782
      %v4602 = vsel %vm4594, %v4585, %v4601
      %v4603 = vsel %vm4593, %v4600, %v4602
      %v4604 = vsel %vm4592, %v4582, %v4585
      %v4605 = vsel %vm4595, %v4591, 1326507024
      %v4606 = vsel %vm4594, %v4588, %v4605
      %v4607 = vsel %vm4593, %v4604, %v4606
      %v4608 = vshll.u32 %v4568, 8
      %v4609 = vmul.u32.u64.compose %v4608, %v4607
      %v4610 = vextract.low.u32 %v4609
      %v4611 = vextract.high.u32 %v4609
      %v4612 = vmul.u32.u64.compose %v4608, %v4603
      %v4613 = vextract.low.u32 %v4612
      %v4614 = vextract.high.u32 %v4612
      %v4615 = vmul.u32 %v4608, %v4599
      %v4616 = vadd.s32 %v4611, %v4613
      %vm4617 = vc.u32 %v4611, %v4613
      %v4618 = vadd.s32 %v4614, 1
      %v4619 = vsel %vm4617, %v4618, %v4614
      %v4620 = vadd.s32 %v4615, %v4619
      %v4621 = vadd.s32 %v4620, 536870912
      %v4622 = vshrl.u32 %v4621, 30
      %v4623 = vshll.u32 %v4622, 30
      %v4624 = vsub.s32 %v4620, %v4623
      %vm4625 = vcmp.lt.s32.totalorder %v4624, 0
      %v4626 = vsub.s32 0, %v4624
      %v4627 = vsel %vm4625, %v4626, %v4624
      %v4628 = vclz %v4627
      %v4629 = vsub.s32 %v4628, 2
      %vm4630 = vcmp.gt.s32.totalorder 0, %v4629
      %v4631 = vsel %vm4630, 0, %v4629
      %v4632 = vsub.s32 32, %v4631
      %v4633 = vshll.u32 %v4624, %v4631
      %v4634 = vshrl.u32 %v4616, %v4632
      %v4635 = vor.u32 %v4633, %v4634
      %v4636 = vsub.s32 4294967266, %v4631
      %v4637 = vadd.s32 %v4636, 127
      %v4638 = vshll.u32 %v4637, 23
      %v4639 = vor.u32 4788187, %v4638
      %v4640 = vand.u32 2147483647, %v4639
      %v4642 = vcvt.s32.f32 %v4635
      %v4643 = vmul.f32 %v4642, %v4640
      %v4644 = vxor.u32 %v4643, 2147483648
      %v4645 = vsel %vm4562, %v4644, %v4643
      %v4646 = vsub.s32 4, %v4622
      %v4647 = vsel %vm4562, %v4646, %v4622
      %v4648 = vsel %vm4561, %v3086, %v4645
      %v4649 = vsel %vm4561, 0, %v4647
      %v4650 = vcosq.f32.pop %v4648
      %v4651 = vsinq.f32.pop %v4648
      %vm4652 = vweird.f32 %v3086
      %v4653 = vadd.s32 %v4649, 3
      %v4654 = vand.u32 %v4653, 3
      %vm4655 = vcmp.lt.s32.totalorder %v4654, 2
      %vm4656 = vcmp.eq.s32.totalorder %v4654, 0
      %v4657 = vxor.u32 %v4651, 2147483648
      %v4658 = vsel %vm4656, %v4650, %v4657
      %vm4659 = vcmp.eq.s32.totalorder %v4654, 2
      %v4660 = vxor.u32 %v4650, 2147483648
      %v4661 = vsel %vm4659, %v4660, %v4651
      %v4662 = vsel %vm4655, %v4658, %v4661
      %v4663 = vsel %vm4652, nan, %v4662
      %v4664 = vand.u32 2147483647, %v3087
      %vm4665 = vcmp.le.f32.partialorder %v4664, 0.7853982
      %vm4666 = vcmp.lt.s32.totalorder %v3087, 0
      %v4667 = vand.u32 %v3087, 2139095040
      %v4668 = vshrl.u32 %v4667, 23
      %v4669 = vsub.s32 %v4668, 127
      %v4670 = vand.u32 2147483647, %v3087
      %v4671 = vand.u32 %v4670, 8388607
      %v4672 = vor.u32 %v4671, 8388608
      %v4673 = vsub.s32 0, %v4672
      %v4674 = vadd.s32 %v4669, 1
      %vm4675 = vcmp.gt.s32.totalorder %v4674, 0
      %v4676 = vsel %vm4675, %v4674, 0
      %v4677 = vshrl.u32 %v4676, 5
      %v4678 = vand.u32 %v4676, 31
      %v4679 = vsub.s32 32, %v4678
      %v4680 = vshrl.u32 683565275, %v4679
      %v4681 = vshll.u32 683565275, %v4678
      %v4682 = vshrl.u32 2475754826, %v4679
      %v4683 = vor.u32 %v4681, %v4682
      %v4684 = vshll.u32 2475754826, %v4678
      %v4685 = vshrl.u32 2131351028, %v4679
      %v4686 = vor.u32 %v4684, %v4685
      %v4687 = vshll.u32 2131351028, %v4678
      %v4688 = vshrl.u32 2102212464, %v4679
      %v4689 = vor.u32 %v4687, %v4688
      %v4690 = vshll.u32 2102212464, %v4678
      %v4691 = vshrl.u32 920167782, %v4679
      %v4692 = vor.u32 %v4690, %v4691
      %v4693 = vshll.u32 920167782, %v4678
      %v4694 = vshrl.u32 1326507024, %v4679
      %v4695 = vor.u32 %v4693, %v4694
      %vm4696 = vcmp.lt.s32.totalorder %v4677, 1
      %vm4697 = vcmp.lt.s32.totalorder %v4677, 2
      %vm4698 = vcmp.lt.s32.totalorder %v4677, 3
      %vm4699 = vcmp.lt.s32.totalorder %v4677, 4
      %v4700 = vsel %vm4696, %v4680, %v4683
      %v4701 = vsel %vm4699, %v4689, 2102212464
      %v4702 = vsel %vm4698, %v4686, %v4701
      %v4703 = vsel %vm4697, %v4700, %v4702
      %v4704 = vsel %vm4696, %v4683, %v4686
      %v4705 = vsel %vm4699, %v4692, 920167782
      %v4706 = vsel %vm4698, %v4689, %v4705
      %v4707 = vsel %vm4697, %v4704, %v4706
      %v4708 = vsel %vm4696, %v4686, %v4689
      %v4709 = vsel %vm4699, %v4695, 1326507024
      %v4710 = vsel %vm4698, %v4692, %v4709
      %v4711 = vsel %vm4697, %v4708, %v4710
      %v4712 = vshll.u32 %v4672, 8
      %v4713 = vmul.u32.u64.compose %v4712, %v4711
      %v4714 = vextract.low.u32 %v4713
      %v4715 = vextract.high.u32 %v4713
      %v4716 = vmul.u32.u64.compose %v4712, %v4707
      %v4717 = vextract.low.u32 %v4716
      %v4718 = vextract.high.u32 %v4716
      %v4719 = vmul.u32 %v4712, %v4703
      %v4720 = vadd.s32 %v4715, %v4717
      %vm4721 = vc.u32 %v4715, %v4717
      %v4722 = vadd.s32 %v4718, 1
      %v4723 = vsel %vm4721, %v4722, %v4718
      %v4724 = vadd.s32 %v4719, %v4723
      %v4725 = vadd.s32 %v4724, 536870912
      %v4726 = vshrl.u32 %v4725, 30
      %v4727 = vshll.u32 %v4726, 30
      %v4728 = vsub.s32 %v4724, %v4727
      %vm4729 = vcmp.lt.s32.totalorder %v4728, 0
      %v4730 = vsub.s32 0, %v4728
      %v4731 = vsel %vm4729, %v4730, %v4728
      %v4732 = vclz %v4731
      %v4733 = vsub.s32 %v4732, 2
      %vm4734 = vcmp.gt.s32.totalorder 0, %v4733
      %v4735 = vsel %vm4734, 0, %v4733
      %v4736 = vsub.s32 32, %v4735
      %v4737 = vshll.u32 %v4728, %v4735
      %v4738 = vshrl.u32 %v4720, %v4736
      %v4739 = vor.u32 %v4737, %v4738
      %v4740 = vsub.s32 4294967266, %v4735
      %v4741 = vadd.s32 %v4740, 127
      %v4742 = vshll.u32 %v4741, 23
      %v4743 = vor.u32 4788187, %v4742
      %v4744 = vand.u32 2147483647, %v4743
      %v4746 = vcvt.s32.f32 %v4739
      %v4747 = vmul.f32 %v4746, %v4744
      %v4748 = vxor.u32 %v4747, 2147483648
      %v4749 = vsel %vm4666, %v4748, %v4747
      %v4750 = vsub.s32 4, %v4726
      %v4751 = vsel %vm4666, %v4750, %v4726
      %v4752 = vsel %vm4665, %v3087, %v4749
      %v4753 = vsel %vm4665, 0, %v4751
      %v4754 = vcosq.f32.pop %v4752
      %v4755 = vsinq.f32.pop %v4752
      %vm4756 = vweird.f32 %v3087
      %v4757 = vadd.s32 %v4753, 3
      %v4758 = vand.u32 %v4757, 3
      %vm4759 = vcmp.lt.s32.totalorder %v4758, 2
      %vm4760 = vcmp.eq.s32.totalorder %v4758, 0
      %v4761 = vxor.u32 %v4755, 2147483648
      %v4762 = vsel %vm4760, %v4754, %v4761
      %vm4763 = vcmp.eq.s32.totalorder %v4758, 2
      %v4764 = vxor.u32 %v4754, 2147483648
      %v4765 = vsel %vm4763, %v4764, %v4755
      %v4766 = vsel %vm4759, %v4762, %v4765
      %v4767 = vsel %vm4756, nan, %v4766
      %v4768 = vand.u32 2147483647, %v3088
      %vm4769 = vcmp.le.f32.partialorder %v4768, 0.7853982
      %vm4770 = vcmp.lt.s32.totalorder %v3088, 0
      %v4771 = vand.u32 %v3088, 2139095040
      %v4772 = vshrl.u32 %v4771, 23
      %v4773 = vsub.s32 %v4772, 127
      %v4774 = vand.u32 2147483647, %v3088
      %v4775 = vand.u32 %v4774, 8388607
      %v4776 = vor.u32 %v4775, 8388608
      %v4777 = vsub.s32 0, %v4776
      %v4778 = vadd.s32 %v4773, 1
      %vm4779 = vcmp.gt.s32.totalorder %v4778, 0
      %v4780 = vsel %vm4779, %v4778, 0
      %v4781 = vshrl.u32 %v4780, 5
      %v4782 = vand.u32 %v4780, 31
      %v4783 = vsub.s32 32, %v4782
      %v4784 = vshrl.u32 683565275, %v4783
      %v4785 = vshll.u32 683565275, %v4782
      %v4786 = vshrl.u32 2475754826, %v4783
      %v4787 = vor.u32 %v4785, %v4786
      %v4788 = vshll.u32 2475754826, %v4782
      %v4789 = vshrl.u32 2131351028, %v4783
      %v4790 = vor.u32 %v4788, %v4789
      %v4791 = vshll.u32 2131351028, %v4782
      %v4792 = vshrl.u32 2102212464, %v4783
      %v4793 = vor.u32 %v4791, %v4792
      %v4794 = vshll.u32 2102212464, %v4782
      %v4795 = vshrl.u32 920167782, %v4783
      %v4796 = vor.u32 %v4794, %v4795
      %v4797 = vshll.u32 920167782, %v4782
      %v4798 = vshrl.u32 1326507024, %v4783
      %v4799 = vor.u32 %v4797, %v4798
      %vm4800 = vcmp.lt.s32.totalorder %v4781, 1
      %vm4801 = vcmp.lt.s32.totalorder %v4781, 2
      %vm4802 = vcmp.lt.s32.totalorder %v4781, 3
      %vm4803 = vcmp.lt.s32.totalorder %v4781, 4
      %v4804 = vsel %vm4800, %v4784, %v4787
      %v4805 = vsel %vm4803, %v4793, 2102212464
      %v4806 = vsel %vm4802, %v4790, %v4805
      %v4807 = vsel %vm4801, %v4804, %v4806
      %v4808 = vsel %vm4800, %v4787, %v4790
      %v4809 = vsel %vm4803, %v4796, 920167782
      %v4810 = vsel %vm4802, %v4793, %v4809
      %v4811 = vsel %vm4801, %v4808, %v4810
      %v4812 = vsel %vm4800, %v4790, %v4793
      %v4813 = vsel %vm4803, %v4799, 1326507024
      %v4814 = vsel %vm4802, %v4796, %v4813
      %v4815 = vsel %vm4801, %v4812, %v4814
      %v4816 = vshll.u32 %v4776, 8
      %v4817 = vmul.u32.u64.compose %v4816, %v4815
      %v4818 = vextract.low.u32 %v4817
      %v4819 = vextract.high.u32 %v4817
      %v4820 = vmul.u32.u64.compose %v4816, %v4811
      %v4821 = vextract.low.u32 %v4820
      %v4822 = vextract.high.u32 %v4820
      %v4823 = vmul.u32 %v4816, %v4807
      %v4824 = vadd.s32 %v4819, %v4821
      %vm4825 = vc.u32 %v4819, %v4821
      %v4826 = vadd.s32 %v4822, 1
      %v4827 = vsel %vm4825, %v4826, %v4822
      %v4828 = vadd.s32 %v4823, %v4827
      %v4829 = vadd.s32 %v4828, 536870912
      %v4830 = vshrl.u32 %v4829, 30
      %v4831 = vshll.u32 %v4830, 30
      %v4832 = vsub.s32 %v4828, %v4831
      %vm4833 = vcmp.lt.s32.totalorder %v4832, 0
      %v4834 = vsub.s32 0, %v4832
      %v4835 = vsel %vm4833, %v4834, %v4832
      %v4836 = vclz %v4835
      %v4837 = vsub.s32 %v4836, 2
      %vm4838 = vcmp.gt.s32.totalorder 0, %v4837
      %v4839 = vsel %vm4838, 0, %v4837
      %v4840 = vsub.s32 32, %v4839
      %v4841 = vshll.u32 %v4832, %v4839
      %v4842 = vshrl.u32 %v4824, %v4840
      %v4843 = vor.u32 %v4841, %v4842
      %v4844 = vsub.s32 4294967266, %v4839
      %v4845 = vadd.s32 %v4844, 127
      %v4846 = vshll.u32 %v4845, 23
      %v4847 = vor.u32 4788187, %v4846
      %v4848 = vand.u32 2147483647, %v4847
      %v4850 = vcvt.s32.f32 %v4843
      %v4851 = vmul.f32 %v4850, %v4848
      %v4852 = vxor.u32 %v4851, 2147483648
      %v4853 = vsel %vm4770, %v4852, %v4851
      %v4854 = vsub.s32 4, %v4830
      %v4855 = vsel %vm4770, %v4854, %v4830
      %v4856 = vsel %vm4769, %v3088, %v4853
      %v4857 = vsel %vm4769, 0, %v4855
      %v4858 = vcosq.f32.pop %v4856
      %v4859 = vsinq.f32.pop %v4856
      %vm4860 = vweird.f32 %v3088
      %v4861 = vadd.s32 %v4857, 3
      %v4862 = vand.u32 %v4861, 3
      %vm4863 = vcmp.lt.s32.totalorder %v4862, 2
      %vm4864 = vcmp.eq.s32.totalorder %v4862, 0
      %v4865 = vxor.u32 %v4859, 2147483648
      %v4866 = vsel %vm4864, %v4858, %v4865
      %vm4867 = vcmp.eq.s32.totalorder %v4862, 2
      %v4868 = vxor.u32 %v4858, 2147483648
      %v4869 = vsel %vm4867, %v4868, %v4859
      %v4870 = vsel %vm4863, %v4866, %v4869
      %v4871 = vsel %vm4860, nan, %v4870
      %v4872 = vand.u32 2147483647, %v3089
      %vm4873 = vcmp.le.f32.partialorder %v4872, 0.7853982
      %vm4874 = vcmp.lt.s32.totalorder %v3089, 0
      %v4875 = vand.u32 %v3089, 2139095040
      %v4876 = vshrl.u32 %v4875, 23
      %v4877 = vsub.s32 %v4876, 127
      %v4878 = vand.u32 2147483647, %v3089
      %v4879 = vand.u32 %v4878, 8388607
      %v4880 = vor.u32 %v4879, 8388608
      %v4881 = vsub.s32 0, %v4880
      %v4882 = vadd.s32 %v4877, 1
      %vm4883 = vcmp.gt.s32.totalorder %v4882, 0
      %v4884 = vsel %vm4883, %v4882, 0
      %v4885 = vshrl.u32 %v4884, 5
      %v4886 = vand.u32 %v4884, 31
      %v4887 = vsub.s32 32, %v4886
      %v4888 = vshrl.u32 683565275, %v4887
      %v4889 = vshll.u32 683565275, %v4886
      %v4890 = vshrl.u32 2475754826, %v4887
      %v4891 = vor.u32 %v4889, %v4890
      %v4892 = vshll.u32 2475754826, %v4886
      %v4893 = vshrl.u32 2131351028, %v4887
      %v4894 = vor.u32 %v4892, %v4893
      %v4895 = vshll.u32 2131351028, %v4886
      %v4896 = vshrl.u32 2102212464, %v4887
      %v4897 = vor.u32 %v4895, %v4896
      %v4898 = vshll.u32 2102212464, %v4886
      %v4899 = vshrl.u32 920167782, %v4887
      %v4900 = vor.u32 %v4898, %v4899
      %v4901 = vshll.u32 920167782, %v4886
      %v4902 = vshrl.u32 1326507024, %v4887
      %v4903 = vor.u32 %v4901, %v4902
      %vm4904 = vcmp.lt.s32.totalorder %v4885, 1
      %vm4905 = vcmp.lt.s32.totalorder %v4885, 2
      %vm4906 = vcmp.lt.s32.totalorder %v4885, 3
      %vm4907 = vcmp.lt.s32.totalorder %v4885, 4
      %v4908 = vsel %vm4904, %v4888, %v4891
      %v4909 = vsel %vm4907, %v4897, 2102212464
      %v4910 = vsel %vm4906, %v4894, %v4909
      %v4911 = vsel %vm4905, %v4908, %v4910
      %v4912 = vsel %vm4904, %v4891, %v4894
      %v4913 = vsel %vm4907, %v4900, 920167782
      %v4914 = vsel %vm4906, %v4897, %v4913
      %v4915 = vsel %vm4905, %v4912, %v4914
      %v4916 = vsel %vm4904, %v4894, %v4897
      %v4917 = vsel %vm4907, %v4903, 1326507024
      %v4918 = vsel %vm4906, %v4900, %v4917
      %v4919 = vsel %vm4905, %v4916, %v4918
      %v4920 = vshll.u32 %v4880, 8
      %v4921 = vmul.u32.u64.compose %v4920, %v4919
      %v4922 = vextract.low.u32 %v4921
      %v4923 = vextract.high.u32 %v4921
      %v4924 = vmul.u32.u64.compose %v4920, %v4915
      %v4925 = vextract.low.u32 %v4924
      %v4926 = vextract.high.u32 %v4924
      %v4927 = vmul.u32 %v4920, %v4911
      %v4928 = vadd.s32 %v4923, %v4925
      %vm4929 = vc.u32 %v4923, %v4925
      %v4930 = vadd.s32 %v4926, 1
      %v4931 = vsel %vm4929, %v4930, %v4926
      %v4932 = vadd.s32 %v4927, %v4931
      %v4933 = vadd.s32 %v4932, 536870912
      %v4934 = vshrl.u32 %v4933, 30
      %v4935 = vshll.u32 %v4934, 30
      %v4936 = vsub.s32 %v4932, %v4935
      %vm4937 = vcmp.lt.s32.totalorder %v4936, 0
      %v4938 = vsub.s32 0, %v4936
      %v4939 = vsel %vm4937, %v4938, %v4936
      %v4940 = vclz %v4939
      %v4941 = vsub.s32 %v4940, 2
      %vm4942 = vcmp.gt.s32.totalorder 0, %v4941
      %v4943 = vsel %vm4942, 0, %v4941
      %v4944 = vsub.s32 32, %v4943
      %v4945 = vshll.u32 %v4936, %v4943
      %v4946 = vshrl.u32 %v4928, %v4944
      %v4947 = vor.u32 %v4945, %v4946
      %v4948 = vsub.s32 4294967266, %v4943
      %v4949 = vadd.s32 %v4948, 127
      %v4950 = vshll.u32 %v4949, 23
      %v4951 = vor.u32 4788187, %v4950
      %v4952 = vand.u32 2147483647, %v4951
      %v4954 = vcvt.s32.f32 %v4947
      %v4955 = vmul.f32 %v4954, %v4952
      %v4956 = vxor.u32 %v4955, 2147483648
      %v4957 = vsel %vm4874, %v4956, %v4955
      %v4958 = vsub.s32 4, %v4934
      %v4959 = vsel %vm4874, %v4958, %v4934
      %v4960 = vsel %vm4873, %v3089, %v4957
      %v4961 = vsel %vm4873, 0, %v4959
      %v4962 = vcosq.f32.pop %v4960
      %v4963 = vsinq.f32.pop %v4960
      %vm4964 = vweird.f32 %v3089
      %v4965 = vadd.s32 %v4961, 3
      %v4966 = vand.u32 %v4965, 3
      %vm4967 = vcmp.lt.s32.totalorder %v4966, 2
      %vm4968 = vcmp.eq.s32.totalorder %v4966, 0
      %v4969 = vxor.u32 %v4963, 2147483648
      %v4970 = vsel %vm4968, %v4962, %v4969
      %vm4971 = vcmp.eq.s32.totalorder %v4966, 2
      %v4972 = vxor.u32 %v4962, 2147483648
      %v4973 = vsel %vm4971, %v4972, %v4963
      %v4974 = vsel %vm4967, %v4970, %v4973
      %v4975 = vsel %vm4964, nan, %v4974
      %v4976 = vand.u32 2147483647, %v3090
      %vm4977 = vcmp.le.f32.partialorder %v4976, 0.7853982
      %vm4978 = vcmp.lt.s32.totalorder %v3090, 0
      %v4979 = vand.u32 %v3090, 2139095040
      %v4980 = vshrl.u32 %v4979, 23
      %v4981 = vsub.s32 %v4980, 127
      %v4982 = vand.u32 2147483647, %v3090
      %v4983 = vand.u32 %v4982, 8388607
      %v4984 = vor.u32 %v4983, 8388608
      %v4985 = vsub.s32 0, %v4984
      %v4986 = vadd.s32 %v4981, 1
      %vm4987 = vcmp.gt.s32.totalorder %v4986, 0
      %v4988 = vsel %vm4987, %v4986, 0
      %v4989 = vshrl.u32 %v4988, 5
      %v4990 = vand.u32 %v4988, 31
      %v4991 = vsub.s32 32, %v4990
      %v4992 = vshrl.u32 683565275, %v4991
      %v4993 = vshll.u32 683565275, %v4990
      %v4994 = vshrl.u32 2475754826, %v4991
      %v4995 = vor.u32 %v4993, %v4994
      %v4996 = vshll.u32 2475754826, %v4990
      %v4997 = vshrl.u32 2131351028, %v4991
      %v4998 = vor.u32 %v4996, %v4997
      %v4999 = vshll.u32 2131351028, %v4990
      %v5000 = vshrl.u32 2102212464, %v4991
      %v5001 = vor.u32 %v4999, %v5000
      %v5002 = vshll.u32 2102212464, %v4990
      %v5003 = vshrl.u32 920167782, %v4991
      %v5004 = vor.u32 %v5002, %v5003
      %v5005 = vshll.u32 920167782, %v4990
      %v5006 = vshrl.u32 1326507024, %v4991
      %v5007 = vor.u32 %v5005, %v5006
      %vm5008 = vcmp.lt.s32.totalorder %v4989, 1
      %vm5009 = vcmp.lt.s32.totalorder %v4989, 2
      %vm5010 = vcmp.lt.s32.totalorder %v4989, 3
      %vm5011 = vcmp.lt.s32.totalorder %v4989, 4
      %v5012 = vsel %vm5008, %v4992, %v4995
      %v5013 = vsel %vm5011, %v5001, 2102212464
      %v5014 = vsel %vm5010, %v4998, %v5013
      %v5015 = vsel %vm5009, %v5012, %v5014
      %v5016 = vsel %vm5008, %v4995, %v4998
      %v5017 = vsel %vm5011, %v5004, 920167782
      %v5018 = vsel %vm5010, %v5001, %v5017
      %v5019 = vsel %vm5009, %v5016, %v5018
      %v5020 = vsel %vm5008, %v4998, %v5001
      %v5021 = vsel %vm5011, %v5007, 1326507024
      %v5022 = vsel %vm5010, %v5004, %v5021
      %v5023 = vsel %vm5009, %v5020, %v5022
      %v5024 = vshll.u32 %v4984, 8
      %v5025 = vmul.u32.u64.compose %v5024, %v5023
      %v5026 = vextract.low.u32 %v5025
      %v5027 = vextract.high.u32 %v5025
      %v5028 = vmul.u32.u64.compose %v5024, %v5019
      %v5029 = vextract.low.u32 %v5028
      %v5030 = vextract.high.u32 %v5028
      %v5031 = vmul.u32 %v5024, %v5015
      %v5032 = vadd.s32 %v5027, %v5029
      %vm5033 = vc.u32 %v5027, %v5029
      %v5034 = vadd.s32 %v5030, 1
      %v5035 = vsel %vm5033, %v5034, %v5030
      %v5036 = vadd.s32 %v5031, %v5035
      %v5037 = vadd.s32 %v5036, 536870912
      %v5038 = vshrl.u32 %v5037, 30
      %v5039 = vshll.u32 %v5038, 30
      %v5040 = vsub.s32 %v5036, %v5039
      %vm5041 = vcmp.lt.s32.totalorder %v5040, 0
      %v5042 = vsub.s32 0, %v5040
      %v5043 = vsel %vm5041, %v5042, %v5040
      %v5044 = vclz %v5043
      %v5045 = vsub.s32 %v5044, 2
      %vm5046 = vcmp.gt.s32.totalorder 0, %v5045
      %v5047 = vsel %vm5046, 0, %v5045
      %v5048 = vsub.s32 32, %v5047
      %v5049 = vshll.u32 %v5040, %v5047
      %v5050 = vshrl.u32 %v5032, %v5048
      %v5051 = vor.u32 %v5049, %v5050
      %v5052 = vsub.s32 4294967266, %v5047
      %v5053 = vadd.s32 %v5052, 127
      %v5054 = vshll.u32 %v5053, 23
      %v5055 = vor.u32 4788187, %v5054
      %v5056 = vand.u32 2147483647, %v5055
      %v5058 = vcvt.s32.f32 %v5051
      %v5059 = vmul.f32 %v5058, %v5056
      %v5060 = vxor.u32 %v5059, 2147483648
      %v5061 = vsel %vm4978, %v5060, %v5059
      %v5062 = vsub.s32 4, %v5038
      %v5063 = vsel %vm4978, %v5062, %v5038
      %v5064 = vsel %vm4977, %v3090, %v5061
      %v5065 = vsel %vm4977, 0, %v5063
      %v5066 = vcosq.f32.pop %v5064
      %v5067 = vsinq.f32.pop %v5064
      %vm5068 = vweird.f32 %v3090
      %v5069 = vadd.s32 %v5065, 3
      %v5070 = vand.u32 %v5069, 3
      %vm5071 = vcmp.lt.s32.totalorder %v5070, 2
      %vm5072 = vcmp.eq.s32.totalorder %v5070, 0
      %v5073 = vxor.u32 %v5067, 2147483648
      %v5074 = vsel %vm5072, %v5066, %v5073
      %vm5075 = vcmp.eq.s32.totalorder %v5070, 2
      %v5076 = vxor.u32 %v5066, 2147483648
      %v5077 = vsel %vm5075, %v5076, %v5067
      %v5078 = vsel %vm5071, %v5074, %v5077
      %v5079 = vsel %vm5068, nan, %v5078
      %v5080 = vand.u32 2147483647, %v3091
      %vm5081 = vcmp.le.f32.partialorder %v5080, 0.7853982
      %vm5082 = vcmp.lt.s32.totalorder %v3091, 0
      %v5083 = vand.u32 %v3091, 2139095040
      %v5084 = vshrl.u32 %v5083, 23
      %v5085 = vsub.s32 %v5084, 127
      %v5086 = vand.u32 2147483647, %v3091
      %v5087 = vand.u32 %v5086, 8388607
      %v5088 = vor.u32 %v5087, 8388608
      %v5089 = vsub.s32 0, %v5088
      %v5090 = vadd.s32 %v5085, 1
      %vm5091 = vcmp.gt.s32.totalorder %v5090, 0
      %v5092 = vsel %vm5091, %v5090, 0
      %v5093 = vshrl.u32 %v5092, 5
      %v5094 = vand.u32 %v5092, 31
      %v5095 = vsub.s32 32, %v5094
      %v5096 = vshrl.u32 683565275, %v5095
      %v5097 = vshll.u32 683565275, %v5094
      %v5098 = vshrl.u32 2475754826, %v5095
      %v5099 = vor.u32 %v5097, %v5098
      %v5100 = vshll.u32 2475754826, %v5094
      %v5101 = vshrl.u32 2131351028, %v5095
      %v5102 = vor.u32 %v5100, %v5101
      %v5103 = vshll.u32 2131351028, %v5094
      %v5104 = vshrl.u32 2102212464, %v5095
      %v5105 = vor.u32 %v5103, %v5104
      %v5106 = vshll.u32 2102212464, %v5094
      %v5107 = vshrl.u32 920167782, %v5095
      %v5108 = vor.u32 %v5106, %v5107
      %v5109 = vshll.u32 920167782, %v5094
      %v5110 = vshrl.u32 1326507024, %v5095
      %v5111 = vor.u32 %v5109, %v5110
      %vm5112 = vcmp.lt.s32.totalorder %v5093, 1
      %vm5113 = vcmp.lt.s32.totalorder %v5093, 2
      %vm5114 = vcmp.lt.s32.totalorder %v5093, 3
      %vm5115 = vcmp.lt.s32.totalorder %v5093, 4
      %v5116 = vsel %vm5112, %v5096, %v5099
      %v5117 = vsel %vm5115, %v5105, 2102212464
      %v5118 = vsel %vm5114, %v5102, %v5117
      %v5119 = vsel %vm5113, %v5116, %v5118
      %v5120 = vsel %vm5112, %v5099, %v5102
      %v5121 = vsel %vm5115, %v5108, 920167782
      %v5122 = vsel %vm5114, %v5105, %v5121
      %v5123 = vsel %vm5113, %v5120, %v5122
      %v5124 = vsel %vm5112, %v5102, %v5105
      %v5125 = vsel %vm5115, %v5111, 1326507024
      %v5126 = vsel %vm5114, %v5108, %v5125
      %v5127 = vsel %vm5113, %v5124, %v5126
      %v5128 = vshll.u32 %v5088, 8
      %v5129 = vmul.u32.u64.compose %v5128, %v5127
      %v5130 = vextract.low.u32 %v5129
      %v5131 = vextract.high.u32 %v5129
      %v5132 = vmul.u32.u64.compose %v5128, %v5123
      %v5133 = vextract.low.u32 %v5132
      %v5134 = vextract.high.u32 %v5132
      %v5135 = vmul.u32 %v5128, %v5119
      %v5136 = vadd.s32 %v5131, %v5133
      %vm5137 = vc.u32 %v5131, %v5133
      %v5138 = vadd.s32 %v5134, 1
      %v5139 = vsel %vm5137, %v5138, %v5134
      %v5140 = vadd.s32 %v5135, %v5139
      %v5141 = vadd.s32 %v5140, 536870912
      %v5142 = vshrl.u32 %v5141, 30
      %v5143 = vshll.u32 %v5142, 30
      %v5144 = vsub.s32 %v5140, %v5143
      %vm5145 = vcmp.lt.s32.totalorder %v5144, 0
      %v5146 = vsub.s32 0, %v5144
      %v5147 = vsel %vm5145, %v5146, %v5144
      %v5148 = vclz %v5147
      %v5149 = vsub.s32 %v5148, 2
      %vm5150 = vcmp.gt.s32.totalorder 0, %v5149
      %v5151 = vsel %vm5150, 0, %v5149
      %v5152 = vsub.s32 32, %v5151
      %v5153 = vshll.u32 %v5144, %v5151
      %v5154 = vshrl.u32 %v5136, %v5152
      %v5155 = vor.u32 %v5153, %v5154
      %v5156 = vsub.s32 4294967266, %v5151
      %v5157 = vadd.s32 %v5156, 127
      %v5158 = vshll.u32 %v5157, 23
      %v5159 = vor.u32 4788187, %v5158
      %v5160 = vand.u32 2147483647, %v5159
      %v5162 = vcvt.s32.f32 %v5155
      %v5163 = vmul.f32 %v5162, %v5160
      %v5164 = vxor.u32 %v5163, 2147483648
      %v5165 = vsel %vm5082, %v5164, %v5163
      %v5166 = vsub.s32 4, %v5142
      %v5167 = vsel %vm5082, %v5166, %v5142
      %v5168 = vsel %vm5081, %v3091, %v5165
      %v5169 = vsel %vm5081, 0, %v5167
      %v5170 = vcosq.f32.pop %v5168
      %v5171 = vsinq.f32.pop %v5168
      %vm5172 = vweird.f32 %v3091
      %v5173 = vadd.s32 %v5169, 3
      %v5174 = vand.u32 %v5173, 3
      %vm5175 = vcmp.lt.s32.totalorder %v5174, 2
      %vm5176 = vcmp.eq.s32.totalorder %v5174, 0
      %v5177 = vxor.u32 %v5171, 2147483648
      %v5178 = vsel %vm5176, %v5170, %v5177
      %vm5179 = vcmp.eq.s32.totalorder %v5174, 2
      %v5180 = vxor.u32 %v5170, 2147483648
      %v5181 = vsel %vm5179, %v5180, %v5171
      %v5182 = vsel %vm5175, %v5178, %v5181
      %v5183 = vsel %vm5172, nan, %v5182
      %v5184 = vand.u32 2147483647, %v3092
      %vm5185 = vcmp.le.f32.partialorder %v5184, 0.7853982
      %vm5186 = vcmp.lt.s32.totalorder %v3092, 0
      %v5187 = vand.u32 %v3092, 2139095040
      %v5188 = vshrl.u32 %v5187, 23
      %v5189 = vsub.s32 %v5188, 127
      %v5190 = vand.u32 2147483647, %v3092
      %v5191 = vand.u32 %v5190, 8388607
      %v5192 = vor.u32 %v5191, 8388608
      %v5193 = vsub.s32 0, %v5192
      %v5194 = vadd.s32 %v5189, 1
      %vm5195 = vcmp.gt.s32.totalorder %v5194, 0
      %v5196 = vsel %vm5195, %v5194, 0
      %v5197 = vshrl.u32 %v5196, 5
      %v5198 = vand.u32 %v5196, 31
      %v5199 = vsub.s32 32, %v5198
      %v5200 = vshrl.u32 683565275, %v5199
      %v5201 = vshll.u32 683565275, %v5198
      %v5202 = vshrl.u32 2475754826, %v5199
      %v5203 = vor.u32 %v5201, %v5202
      %v5204 = vshll.u32 2475754826, %v5198
      %v5205 = vshrl.u32 2131351028, %v5199
      %v5206 = vor.u32 %v5204, %v5205
      %v5207 = vshll.u32 2131351028, %v5198
      %v5208 = vshrl.u32 2102212464, %v5199
      %v5209 = vor.u32 %v5207, %v5208
      %v5210 = vshll.u32 2102212464, %v5198
      %v5211 = vshrl.u32 920167782, %v5199
      %v5212 = vor.u32 %v5210, %v5211
      %v5213 = vshll.u32 920167782, %v5198
      %v5214 = vshrl.u32 1326507024, %v5199
      %v5215 = vor.u32 %v5213, %v5214
      %vm5216 = vcmp.lt.s32.totalorder %v5197, 1
      %vm5217 = vcmp.lt.s32.totalorder %v5197, 2
      %vm5218 = vcmp.lt.s32.totalorder %v5197, 3
      %vm5219 = vcmp.lt.s32.totalorder %v5197, 4
      %v5220 = vsel %vm5216, %v5200, %v5203
      %v5221 = vsel %vm5219, %v5209, 2102212464
      %v5222 = vsel %vm5218, %v5206, %v5221
      %v5223 = vsel %vm5217, %v5220, %v5222
      %v5224 = vsel %vm5216, %v5203, %v5206
      %v5225 = vsel %vm5219, %v5212, 920167782
      %v5226 = vsel %vm5218, %v5209, %v5225
      %v5227 = vsel %vm5217, %v5224, %v5226
      %v5228 = vsel %vm5216, %v5206, %v5209
      %v5229 = vsel %vm5219, %v5215, 1326507024
      %v5230 = vsel %vm5218, %v5212, %v5229
      %v5231 = vsel %vm5217, %v5228, %v5230
      %v5232 = vshll.u32 %v5192, 8
      %v5233 = vmul.u32.u64.compose %v5232, %v5231
      %v5234 = vextract.low.u32 %v5233
      %v5235 = vextract.high.u32 %v5233
      %v5236 = vmul.u32.u64.compose %v5232, %v5227
      %v5237 = vextract.low.u32 %v5236
      %v5238 = vextract.high.u32 %v5236
      %v5239 = vmul.u32 %v5232, %v5223
      %v5240 = vadd.s32 %v5235, %v5237
      %vm5241 = vc.u32 %v5235, %v5237
      %v5242 = vadd.s32 %v5238, 1
      %v5243 = vsel %vm5241, %v5242, %v5238
      %v5244 = vadd.s32 %v5239, %v5243
      %v5245 = vadd.s32 %v5244, 536870912
      %v5246 = vshrl.u32 %v5245, 30
      %v5247 = vshll.u32 %v5246, 30
      %v5248 = vsub.s32 %v5244, %v5247
      %vm5249 = vcmp.lt.s32.totalorder %v5248, 0
      %v5250 = vsub.s32 0, %v5248
      %v5251 = vsel %vm5249, %v5250, %v5248
      %v5252 = vclz %v5251
      %v5253 = vsub.s32 %v5252, 2
      %vm5254 = vcmp.gt.s32.totalorder 0, %v5253
      %v5255 = vsel %vm5254, 0, %v5253
      %v5256 = vsub.s32 32, %v5255
      %v5257 = vshll.u32 %v5248, %v5255
      %v5258 = vshrl.u32 %v5240, %v5256
      %v5259 = vor.u32 %v5257, %v5258
      %v5260 = vsub.s32 4294967266, %v5255
      %v5261 = vadd.s32 %v5260, 127
      %v5262 = vshll.u32 %v5261, 23
      %v5263 = vor.u32 4788187, %v5262
      %v5264 = vand.u32 2147483647, %v5263
      %v5266 = vcvt.s32.f32 %v5259
      %v5267 = vmul.f32 %v5266, %v5264
      %v5268 = vxor.u32 %v5267, 2147483648
      %v5269 = vsel %vm5186, %v5268, %v5267
      %v5270 = vsub.s32 4, %v5246
      %v5271 = vsel %vm5186, %v5270, %v5246
      %v5272 = vsel %vm5185, %v3092, %v5269
      %v5273 = vsel %vm5185, 0, %v5271
      %v5274 = vcosq.f32.pop %v5272
      %v5275 = vsinq.f32.pop %v5272
      %vm5276 = vweird.f32 %v3092
      %v5277 = vadd.s32 %v5273, 3
      %v5278 = vand.u32 %v5277, 3
      %vm5279 = vcmp.lt.s32.totalorder %v5278, 2
      %vm5280 = vcmp.eq.s32.totalorder %v5278, 0
      %v5281 = vxor.u32 %v5275, 2147483648
      %v5282 = vsel %vm5280, %v5274, %v5281
      %vm5283 = vcmp.eq.s32.totalorder %v5278, 2
      %v5284 = vxor.u32 %v5274, 2147483648
      %v5285 = vsel %vm5283, %v5284, %v5275
      %v5286 = vsel %vm5279, %v5282, %v5285
      %v5287 = vsel %vm5276, nan, %v5286
      %v5288 = vand.u32 2147483647, %v3093
      %vm5289 = vcmp.le.f32.partialorder %v5288, 0.7853982
      %vm5290 = vcmp.lt.s32.totalorder %v3093, 0
      %v5291 = vand.u32 %v3093, 2139095040
      %v5292 = vshrl.u32 %v5291, 23
      %v5293 = vsub.s32 %v5292, 127
      %v5294 = vand.u32 2147483647, %v3093
      %v5295 = vand.u32 %v5294, 8388607
      %v5296 = vor.u32 %v5295, 8388608
      %v5297 = vsub.s32 0, %v5296
      %v5298 = vadd.s32 %v5293, 1
      %vm5299 = vcmp.gt.s32.totalorder %v5298, 0
      %v5300 = vsel %vm5299, %v5298, 0
      %v5301 = vshrl.u32 %v5300, 5
      %v5302 = vand.u32 %v5300, 31
      %v5303 = vsub.s32 32, %v5302
      %v5304 = vshrl.u32 683565275, %v5303
      %v5305 = vshll.u32 683565275, %v5302
      %v5306 = vshrl.u32 2475754826, %v5303
      %v5307 = vor.u32 %v5305, %v5306
      %v5308 = vshll.u32 2475754826, %v5302
      %v5309 = vshrl.u32 2131351028, %v5303
      %v5310 = vor.u32 %v5308, %v5309
      %v5311 = vshll.u32 2131351028, %v5302
      %v5312 = vshrl.u32 2102212464, %v5303
      %v5313 = vor.u32 %v5311, %v5312
      %v5314 = vshll.u32 2102212464, %v5302
      %v5315 = vshrl.u32 920167782, %v5303
      %v5316 = vor.u32 %v5314, %v5315
      %v5317 = vshll.u32 920167782, %v5302
      %v5318 = vshrl.u32 1326507024, %v5303
      %v5319 = vor.u32 %v5317, %v5318
      %vm5320 = vcmp.lt.s32.totalorder %v5301, 1
      %vm5321 = vcmp.lt.s32.totalorder %v5301, 2
      %vm5322 = vcmp.lt.s32.totalorder %v5301, 3
      %vm5323 = vcmp.lt.s32.totalorder %v5301, 4
      %v5324 = vsel %vm5320, %v5304, %v5307
      %v5325 = vsel %vm5323, %v5313, 2102212464
      %v5326 = vsel %vm5322, %v5310, %v5325
      %v5327 = vsel %vm5321, %v5324, %v5326
      %v5328 = vsel %vm5320, %v5307, %v5310
      %v5329 = vsel %vm5323, %v5316, 920167782
      %v5330 = vsel %vm5322, %v5313, %v5329
      %v5331 = vsel %vm5321, %v5328, %v5330
      %v5332 = vsel %vm5320, %v5310, %v5313
      %v5333 = vsel %vm5323, %v5319, 1326507024
      %v5334 = vsel %vm5322, %v5316, %v5333
      %v5335 = vsel %vm5321, %v5332, %v5334
      %v5336 = vshll.u32 %v5296, 8
      %v5337 = vmul.u32.u64.compose %v5336, %v5335
      %v5338 = vextract.low.u32 %v5337
      %v5339 = vextract.high.u32 %v5337
      %v5340 = vmul.u32.u64.compose %v5336, %v5331
      %v5341 = vextract.low.u32 %v5340
      %v5342 = vextract.high.u32 %v5340
      %v5343 = vmul.u32 %v5336, %v5327
      %v5344 = vadd.s32 %v5339, %v5341
      %vm5345 = vc.u32 %v5339, %v5341
      %v5346 = vadd.s32 %v5342, 1
      %v5347 = vsel %vm5345, %v5346, %v5342
      %v5348 = vadd.s32 %v5343, %v5347
      %v5349 = vadd.s32 %v5348, 536870912
      %v5350 = vshrl.u32 %v5349, 30
      %v5351 = vshll.u32 %v5350, 30
      %v5352 = vsub.s32 %v5348, %v5351
      %vm5353 = vcmp.lt.s32.totalorder %v5352, 0
      %v5354 = vsub.s32 0, %v5352
      %v5355 = vsel %vm5353, %v5354, %v5352
      %v5356 = vclz %v5355
      %v5357 = vsub.s32 %v5356, 2
      %vm5358 = vcmp.gt.s32.totalorder 0, %v5357
      %v5359 = vsel %vm5358, 0, %v5357
      %v5360 = vsub.s32 32, %v5359
      %v5361 = vshll.u32 %v5352, %v5359
      %v5362 = vshrl.u32 %v5344, %v5360
      %v5363 = vor.u32 %v5361, %v5362
      %v5364 = vsub.s32 4294967266, %v5359
      %v5365 = vadd.s32 %v5364, 127
      %v5366 = vshll.u32 %v5365, 23
      %v5367 = vor.u32 4788187, %v5366
      %v5368 = vand.u32 2147483647, %v5367
      %v5370 = vcvt.s32.f32 %v5363
      %v5371 = vmul.f32 %v5370, %v5368
      %v5372 = vxor.u32 %v5371, 2147483648
      %v5373 = vsel %vm5290, %v5372, %v5371
      %v5374 = vsub.s32 4, %v5350
      %v5375 = vsel %vm5290, %v5374, %v5350
      %v5376 = vsel %vm5289, %v3093, %v5373
      %v5377 = vsel %vm5289, 0, %v5375
      %v5378 = vcosq.f32.pop %v5376
      %v5379 = vsinq.f32.pop %v5376
      %vm5380 = vweird.f32 %v3093
      %v5381 = vadd.s32 %v5377, 3
      %v5382 = vand.u32 %v5381, 3
      %vm5383 = vcmp.lt.s32.totalorder %v5382, 2
      %vm5384 = vcmp.eq.s32.totalorder %v5382, 0
      %v5385 = vxor.u32 %v5379, 2147483648
      %v5386 = vsel %vm5384, %v5378, %v5385
      %vm5387 = vcmp.eq.s32.totalorder %v5382, 2
      %v5388 = vxor.u32 %v5378, 2147483648
      %v5389 = vsel %vm5387, %v5388, %v5379
      %v5390 = vsel %vm5383, %v5386, %v5389
      %v5391 = vsel %vm5380, nan, %v5390
      %v5392 = vand.u32 2147483647, %v3094
      %vm5393 = vcmp.le.f32.partialorder %v5392, 0.7853982
      %vm5394 = vcmp.lt.s32.totalorder %v3094, 0
      %v5395 = vand.u32 %v3094, 2139095040
      %v5396 = vshrl.u32 %v5395, 23
      %v5397 = vsub.s32 %v5396, 127
      %v5398 = vand.u32 2147483647, %v3094
      %v5399 = vand.u32 %v5398, 8388607
      %v5400 = vor.u32 %v5399, 8388608
      %v5401 = vsub.s32 0, %v5400
      %v5402 = vadd.s32 %v5397, 1
      %vm5403 = vcmp.gt.s32.totalorder %v5402, 0
      %v5404 = vsel %vm5403, %v5402, 0
      %v5405 = vshrl.u32 %v5404, 5
      %v5406 = vand.u32 %v5404, 31
      %v5407 = vsub.s32 32, %v5406
      %v5408 = vshrl.u32 683565275, %v5407
      %v5409 = vshll.u32 683565275, %v5406
      %v5410 = vshrl.u32 2475754826, %v5407
      %v5411 = vor.u32 %v5409, %v5410
      %v5412 = vshll.u32 2475754826, %v5406
      %v5413 = vshrl.u32 2131351028, %v5407
      %v5414 = vor.u32 %v5412, %v5413
      %v5415 = vshll.u32 2131351028, %v5406
      %v5416 = vshrl.u32 2102212464, %v5407
      %v5417 = vor.u32 %v5415, %v5416
      %v5418 = vshll.u32 2102212464, %v5406
      %v5419 = vshrl.u32 920167782, %v5407
      %v5420 = vor.u32 %v5418, %v5419
      %v5421 = vshll.u32 920167782, %v5406
      %v5422 = vshrl.u32 1326507024, %v5407
      %v5423 = vor.u32 %v5421, %v5422
      %vm5424 = vcmp.lt.s32.totalorder %v5405, 1
      %vm5425 = vcmp.lt.s32.totalorder %v5405, 2
      %vm5426 = vcmp.lt.s32.totalorder %v5405, 3
      %vm5427 = vcmp.lt.s32.totalorder %v5405, 4
      %v5428 = vsel %vm5424, %v5408, %v5411
      %v5429 = vsel %vm5427, %v5417, 2102212464
      %v5430 = vsel %vm5426, %v5414, %v5429
      %v5431 = vsel %vm5425, %v5428, %v5430
      %v5432 = vsel %vm5424, %v5411, %v5414
      %v5433 = vsel %vm5427, %v5420, 920167782
      %v5434 = vsel %vm5426, %v5417, %v5433
      %v5435 = vsel %vm5425, %v5432, %v5434
      %v5436 = vsel %vm5424, %v5414, %v5417
      %v5437 = vsel %vm5427, %v5423, 1326507024
      %v5438 = vsel %vm5426, %v5420, %v5437
      %v5439 = vsel %vm5425, %v5436, %v5438
      %v5440 = vshll.u32 %v5400, 8
      %v5441 = vmul.u32.u64.compose %v5440, %v5439
      %v5442 = vextract.low.u32 %v5441
      %v5443 = vextract.high.u32 %v5441
      %v5444 = vmul.u32.u64.compose %v5440, %v5435
      %v5445 = vextract.low.u32 %v5444
      %v5446 = vextract.high.u32 %v5444
      %v5447 = vmul.u32 %v5440, %v5431
      %v5448 = vadd.s32 %v5443, %v5445
      %vm5449 = vc.u32 %v5443, %v5445
      %v5450 = vadd.s32 %v5446, 1
      %v5451 = vsel %vm5449, %v5450, %v5446
      %v5452 = vadd.s32 %v5447, %v5451
      %v5453 = vadd.s32 %v5452, 536870912
      %v5454 = vshrl.u32 %v5453, 30
      %v5455 = vshll.u32 %v5454, 30
      %v5456 = vsub.s32 %v5452, %v5455
      %vm5457 = vcmp.lt.s32.totalorder %v5456, 0
      %v5458 = vsub.s32 0, %v5456
      %v5459 = vsel %vm5457, %v5458, %v5456
      %v5460 = vclz %v5459
      %v5461 = vsub.s32 %v5460, 2
      %vm5462 = vcmp.gt.s32.totalorder 0, %v5461
      %v5463 = vsel %vm5462, 0, %v5461
      %v5464 = vsub.s32 32, %v5463
      %v5465 = vshll.u32 %v5456, %v5463
      %v5466 = vshrl.u32 %v5448, %v5464
      %v5467 = vor.u32 %v5465, %v5466
      %v5468 = vsub.s32 4294967266, %v5463
      %v5469 = vadd.s32 %v5468, 127
      %v5470 = vshll.u32 %v5469, 23
      %v5471 = vor.u32 4788187, %v5470
      %v5472 = vand.u32 2147483647, %v5471
      %v5474 = vcvt.s32.f32 %v5467
      %v5475 = vmul.f32 %v5474, %v5472
      %v5476 = vxor.u32 %v5475, 2147483648
      %v5477 = vsel %vm5394, %v5476, %v5475
      %v5478 = vsub.s32 4, %v5454
      %v5479 = vsel %vm5394, %v5478, %v5454
      %v5480 = vsel %vm5393, %v3094, %v5477
      %v5481 = vsel %vm5393, 0, %v5479
      %v5482 = vcosq.f32.pop %v5480
      %v5483 = vsinq.f32.pop %v5480
      %vm5484 = vweird.f32 %v3094
      %v5485 = vadd.s32 %v5481, 3
      %v5486 = vand.u32 %v5485, 3
      %vm5487 = vcmp.lt.s32.totalorder %v5486, 2
      %vm5488 = vcmp.eq.s32.totalorder %v5486, 0
      %v5489 = vxor.u32 %v5483, 2147483648
      %v5490 = vsel %vm5488, %v5482, %v5489
      %vm5491 = vcmp.eq.s32.totalorder %v5486, 2
      %v5492 = vxor.u32 %v5482, 2147483648
      %v5493 = vsel %vm5491, %v5492, %v5483
      %v5494 = vsel %vm5487, %v5490, %v5493
      %v5495 = vsel %vm5484, nan, %v5494
      %v5496 = vand.u32 2147483647, %v3095
      %vm5497 = vcmp.le.f32.partialorder %v5496, 0.7853982
      %vm5498 = vcmp.lt.s32.totalorder %v3095, 0
      %v5499 = vand.u32 %v3095, 2139095040
      %v5500 = vshrl.u32 %v5499, 23
      %v5501 = vsub.s32 %v5500, 127
      %v5502 = vand.u32 2147483647, %v3095
      %v5503 = vand.u32 %v5502, 8388607
      %v5504 = vor.u32 %v5503, 8388608
      %v5505 = vsub.s32 0, %v5504
      %v5506 = vadd.s32 %v5501, 1
      %vm5507 = vcmp.gt.s32.totalorder %v5506, 0
      %v5508 = vsel %vm5507, %v5506, 0
      %v5509 = vshrl.u32 %v5508, 5
      %v5510 = vand.u32 %v5508, 31
      %v5511 = vsub.s32 32, %v5510
      %v5512 = vshrl.u32 683565275, %v5511
      %v5513 = vshll.u32 683565275, %v5510
      %v5514 = vshrl.u32 2475754826, %v5511
      %v5515 = vor.u32 %v5513, %v5514
      %v5516 = vshll.u32 2475754826, %v5510
      %v5517 = vshrl.u32 2131351028, %v5511
      %v5518 = vor.u32 %v5516, %v5517
      %v5519 = vshll.u32 2131351028, %v5510
      %v5520 = vshrl.u32 2102212464, %v5511
      %v5521 = vor.u32 %v5519, %v5520
      %v5522 = vshll.u32 2102212464, %v5510
      %v5523 = vshrl.u32 920167782, %v5511
      %v5524 = vor.u32 %v5522, %v5523
      %v5525 = vshll.u32 920167782, %v5510
      %v5526 = vshrl.u32 1326507024, %v5511
      %v5527 = vor.u32 %v5525, %v5526
      %vm5528 = vcmp.lt.s32.totalorder %v5509, 1
      %vm5529 = vcmp.lt.s32.totalorder %v5509, 2
      %vm5530 = vcmp.lt.s32.totalorder %v5509, 3
      %vm5531 = vcmp.lt.s32.totalorder %v5509, 4
      %v5532 = vsel %vm5528, %v5512, %v5515
      %v5533 = vsel %vm5531, %v5521, 2102212464
      %v5534 = vsel %vm5530, %v5518, %v5533
      %v5535 = vsel %vm5529, %v5532, %v5534
      %v5536 = vsel %vm5528, %v5515, %v5518
      %v5537 = vsel %vm5531, %v5524, 920167782
      %v5538 = vsel %vm5530, %v5521, %v5537
      %v5539 = vsel %vm5529, %v5536, %v5538
      %v5540 = vsel %vm5528, %v5518, %v5521
      %v5541 = vsel %vm5531, %v5527, 1326507024
      %v5542 = vsel %vm5530, %v5524, %v5541
      %v5543 = vsel %vm5529, %v5540, %v5542
      %v5544 = vshll.u32 %v5504, 8
      %v5545 = vmul.u32.u64.compose %v5544, %v5543
      %v5546 = vextract.low.u32 %v5545
      %v5547 = vextract.high.u32 %v5545
      %v5548 = vmul.u32.u64.compose %v5544, %v5539
      %v5549 = vextract.low.u32 %v5548
      %v5550 = vextract.high.u32 %v5548
      %v5551 = vmul.u32 %v5544, %v5535
      %v5552 = vadd.s32 %v5547, %v5549
      %vm5553 = vc.u32 %v5547, %v5549
      %v5554 = vadd.s32 %v5550, 1
      %v5555 = vsel %vm5553, %v5554, %v5550
      %v5556 = vadd.s32 %v5551, %v5555
      %v5557 = vadd.s32 %v5556, 536870912
      %v5558 = vshrl.u32 %v5557, 30
      %v5559 = vshll.u32 %v5558, 30
      %v5560 = vsub.s32 %v5556, %v5559
      %vm5561 = vcmp.lt.s32.totalorder %v5560, 0
      %v5562 = vsub.s32 0, %v5560
      %v5563 = vsel %vm5561, %v5562, %v5560
      %v5564 = vclz %v5563
      %v5565 = vsub.s32 %v5564, 2
      %vm5566 = vcmp.gt.s32.totalorder 0, %v5565
      %v5567 = vsel %vm5566, 0, %v5565
      %v5568 = vsub.s32 32, %v5567
      %v5569 = vshll.u32 %v5560, %v5567
      %v5570 = vshrl.u32 %v5552, %v5568
      %v5571 = vor.u32 %v5569, %v5570
      %v5572 = vsub.s32 4294967266, %v5567
      %v5573 = vadd.s32 %v5572, 127
      %v5574 = vshll.u32 %v5573, 23
      %v5575 = vor.u32 4788187, %v5574
      %v5576 = vand.u32 2147483647, %v5575
      %v5578 = vcvt.s32.f32 %v5571
      %v5579 = vmul.f32 %v5578, %v5576
      %v5580 = vxor.u32 %v5579, 2147483648
      %v5581 = vsel %vm5498, %v5580, %v5579
      %v5582 = vsub.s32 4, %v5558
      %v5583 = vsel %vm5498, %v5582, %v5558
      %v5584 = vsel %vm5497, %v3095, %v5581
      %v5585 = vsel %vm5497, 0, %v5583
      %v5586 = vcosq.f32.pop %v5584
      %v5587 = vsinq.f32.pop %v5584
      %vm5588 = vweird.f32 %v3095
      %v5589 = vadd.s32 %v5585, 3
      %v5590 = vand.u32 %v5589, 3
      %vm5591 = vcmp.lt.s32.totalorder %v5590, 2
      %vm5592 = vcmp.eq.s32.totalorder %v5590, 0
      %v5593 = vxor.u32 %v5587, 2147483648
      %v5594 = vsel %vm5592, %v5586, %v5593
      %vm5595 = vcmp.eq.s32.totalorder %v5590, 2
      %v5596 = vxor.u32 %v5586, 2147483648
      %v5597 = vsel %vm5595, %v5596, %v5587
      %v5598 = vsel %vm5591, %v5594, %v5597
      %v5599 = vsel %vm5588, nan, %v5598
      %v5600 = vand.u32 2147483647, %v3096
      %vm5601 = vcmp.le.f32.partialorder %v5600, 0.7853982
      %vm5602 = vcmp.lt.s32.totalorder %v3096, 0
      %v5603 = vand.u32 %v3096, 2139095040
      %v5604 = vshrl.u32 %v5603, 23
      %v5605 = vsub.s32 %v5604, 127
      %v5606 = vand.u32 2147483647, %v3096
      %v5607 = vand.u32 %v5606, 8388607
      %v5608 = vor.u32 %v5607, 8388608
      %v5609 = vsub.s32 0, %v5608
      %v5610 = vadd.s32 %v5605, 1
      %vm5611 = vcmp.gt.s32.totalorder %v5610, 0
      %v5612 = vsel %vm5611, %v5610, 0
      %v5613 = vshrl.u32 %v5612, 5
      %v5614 = vand.u32 %v5612, 31
      %v5615 = vsub.s32 32, %v5614
      %v5616 = vshrl.u32 683565275, %v5615
      %v5617 = vshll.u32 683565275, %v5614
      %v5618 = vshrl.u32 2475754826, %v5615
      %v5619 = vor.u32 %v5617, %v5618
      %v5620 = vshll.u32 2475754826, %v5614
      %v5621 = vshrl.u32 2131351028, %v5615
      %v5622 = vor.u32 %v5620, %v5621
      %v5623 = vshll.u32 2131351028, %v5614
      %v5624 = vshrl.u32 2102212464, %v5615
      %v5625 = vor.u32 %v5623, %v5624
      %v5626 = vshll.u32 2102212464, %v5614
      %v5627 = vshrl.u32 920167782, %v5615
      %v5628 = vor.u32 %v5626, %v5627
      %v5629 = vshll.u32 920167782, %v5614
      %v5630 = vshrl.u32 1326507024, %v5615
      %v5631 = vor.u32 %v5629, %v5630
      %vm5632 = vcmp.lt.s32.totalorder %v5613, 1
      %vm5633 = vcmp.lt.s32.totalorder %v5613, 2
      %vm5634 = vcmp.lt.s32.totalorder %v5613, 3
      %vm5635 = vcmp.lt.s32.totalorder %v5613, 4
      %v5636 = vsel %vm5632, %v5616, %v5619
      %v5637 = vsel %vm5635, %v5625, 2102212464
      %v5638 = vsel %vm5634, %v5622, %v5637
      %v5639 = vsel %vm5633, %v5636, %v5638
      %v5640 = vsel %vm5632, %v5619, %v5622
      %v5641 = vsel %vm5635, %v5628, 920167782
      %v5642 = vsel %vm5634, %v5625, %v5641
      %v5643 = vsel %vm5633, %v5640, %v5642
      %v5644 = vsel %vm5632, %v5622, %v5625
      %v5645 = vsel %vm5635, %v5631, 1326507024
      %v5646 = vsel %vm5634, %v5628, %v5645
      %v5647 = vsel %vm5633, %v5644, %v5646
      %v5648 = vshll.u32 %v5608, 8
      %v5649 = vmul.u32.u64.compose %v5648, %v5647
      %v5650 = vextract.low.u32 %v5649
      %v5651 = vextract.high.u32 %v5649
      %v5652 = vmul.u32.u64.compose %v5648, %v5643
      %v5653 = vextract.low.u32 %v5652
      %v5654 = vextract.high.u32 %v5652
      %v5655 = vmul.u32 %v5648, %v5639
      %v5656 = vadd.s32 %v5651, %v5653
      %vm5657 = vc.u32 %v5651, %v5653
      %v5658 = vadd.s32 %v5654, 1
      %v5659 = vsel %vm5657, %v5658, %v5654
      %v5660 = vadd.s32 %v5655, %v5659
      %v5661 = vadd.s32 %v5660, 536870912
      %v5662 = vshrl.u32 %v5661, 30
      %v5663 = vshll.u32 %v5662, 30
      %v5664 = vsub.s32 %v5660, %v5663
      %vm5665 = vcmp.lt.s32.totalorder %v5664, 0
      %v5666 = vsub.s32 0, %v5664
      %v5667 = vsel %vm5665, %v5666, %v5664
      %v5668 = vclz %v5667
      %v5669 = vsub.s32 %v5668, 2
      %vm5670 = vcmp.gt.s32.totalorder 0, %v5669
      %v5671 = vsel %vm5670, 0, %v5669
      %v5672 = vsub.s32 32, %v5671
      %v5673 = vshll.u32 %v5664, %v5671
      %v5674 = vshrl.u32 %v5656, %v5672
      %v5675 = vor.u32 %v5673, %v5674
      %v5676 = vsub.s32 4294967266, %v5671
      %v5677 = vadd.s32 %v5676, 127
      %v5678 = vshll.u32 %v5677, 23
      %v5679 = vor.u32 4788187, %v5678
      %v5680 = vand.u32 2147483647, %v5679
      %v5682 = vcvt.s32.f32 %v5675
      %v5683 = vmul.f32 %v5682, %v5680
      %v5684 = vxor.u32 %v5683, 2147483648
      %v5685 = vsel %vm5602, %v5684, %v5683
      %v5686 = vsub.s32 4, %v5662
      %v5687 = vsel %vm5602, %v5686, %v5662
      %v5688 = vsel %vm5601, %v3096, %v5685
      %v5689 = vsel %vm5601, 0, %v5687
      %v5690 = vcosq.f32.pop %v5688
      %v5691 = vsinq.f32.pop %v5688
      %vm5692 = vweird.f32 %v3096
      %v5693 = vadd.s32 %v5689, 3
      %v5694 = vand.u32 %v5693, 3
      %vm5695 = vcmp.lt.s32.totalorder %v5694, 2
      %vm5696 = vcmp.eq.s32.totalorder %v5694, 0
      %v5697 = vxor.u32 %v5691, 2147483648
      %v5698 = vsel %vm5696, %v5690, %v5697
      %vm5699 = vcmp.eq.s32.totalorder %v5694, 2
      %v5700 = vxor.u32 %v5690, 2147483648
      %v5701 = vsel %vm5699, %v5700, %v5691
      %v5702 = vsel %vm5695, %v5698, %v5701
      %v5703 = vsel %vm5692, nan, %v5702
      %v5704 = vand.u32 2147483647, %v3097
      %vm5705 = vcmp.le.f32.partialorder %v5704, 0.7853982
      %vm5706 = vcmp.lt.s32.totalorder %v3097, 0
      %v5707 = vand.u32 %v3097, 2139095040
      %v5708 = vshrl.u32 %v5707, 23
      %v5709 = vsub.s32 %v5708, 127
      %v5710 = vand.u32 2147483647, %v3097
      %v5711 = vand.u32 %v5710, 8388607
      %v5712 = vor.u32 %v5711, 8388608
      %v5713 = vsub.s32 0, %v5712
      %v5714 = vadd.s32 %v5709, 1
      %vm5715 = vcmp.gt.s32.totalorder %v5714, 0
      %v5716 = vsel %vm5715, %v5714, 0
      %v5717 = vshrl.u32 %v5716, 5
      %v5718 = vand.u32 %v5716, 31
      %v5719 = vsub.s32 32, %v5718
      %v5720 = vshrl.u32 683565275, %v5719
      %v5721 = vshll.u32 683565275, %v5718
      %v5722 = vshrl.u32 2475754826, %v5719
      %v5723 = vor.u32 %v5721, %v5722
      %v5724 = vshll.u32 2475754826, %v5718
      %v5725 = vshrl.u32 2131351028, %v5719
      %v5726 = vor.u32 %v5724, %v5725
      %v5727 = vshll.u32 2131351028, %v5718
      %v5728 = vshrl.u32 2102212464, %v5719
      %v5729 = vor.u32 %v5727, %v5728
      %v5730 = vshll.u32 2102212464, %v5718
      %v5731 = vshrl.u32 920167782, %v5719
      %v5732 = vor.u32 %v5730, %v5731
      %v5733 = vshll.u32 920167782, %v5718
      %v5734 = vshrl.u32 1326507024, %v5719
      %v5735 = vor.u32 %v5733, %v5734
      %vm5736 = vcmp.lt.s32.totalorder %v5717, 1
      %vm5737 = vcmp.lt.s32.totalorder %v5717, 2
      %vm5738 = vcmp.lt.s32.totalorder %v5717, 3
      %vm5739 = vcmp.lt.s32.totalorder %v5717, 4
      %v5740 = vsel %vm5736, %v5720, %v5723
      %v5741 = vsel %vm5739, %v5729, 2102212464
      %v5742 = vsel %vm5738, %v5726, %v5741
      %v5743 = vsel %vm5737, %v5740, %v5742
      %v5744 = vsel %vm5736, %v5723, %v5726
      %v5745 = vsel %vm5739, %v5732, 920167782
      %v5746 = vsel %vm5738, %v5729, %v5745
      %v5747 = vsel %vm5737, %v5744, %v5746
      %v5748 = vsel %vm5736, %v5726, %v5729
      %v5749 = vsel %vm5739, %v5735, 1326507024
      %v5750 = vsel %vm5738, %v5732, %v5749
      %v5751 = vsel %vm5737, %v5748, %v5750
      %v5752 = vshll.u32 %v5712, 8
      %v5753 = vmul.u32.u64.compose %v5752, %v5751
      %v5754 = vextract.low.u32 %v5753
      %v5755 = vextract.high.u32 %v5753
      %v5756 = vmul.u32.u64.compose %v5752, %v5747
      %v5757 = vextract.low.u32 %v5756
      %v5758 = vextract.high.u32 %v5756
      %v5759 = vmul.u32 %v5752, %v5743
      %v5760 = vadd.s32 %v5755, %v5757
      %vm5761 = vc.u32 %v5755, %v5757
      %v5762 = vadd.s32 %v5758, 1
      %v5763 = vsel %vm5761, %v5762, %v5758
      %v5764 = vadd.s32 %v5759, %v5763
      %v5765 = vadd.s32 %v5764, 536870912
      %v5766 = vshrl.u32 %v5765, 30
      %v5767 = vshll.u32 %v5766, 30
      %v5768 = vsub.s32 %v5764, %v5767
      %vm5769 = vcmp.lt.s32.totalorder %v5768, 0
      %v5770 = vsub.s32 0, %v5768
      %v5771 = vsel %vm5769, %v5770, %v5768
      %v5772 = vclz %v5771
      %v5773 = vsub.s32 %v5772, 2
      %vm5774 = vcmp.gt.s32.totalorder 0, %v5773
      %v5775 = vsel %vm5774, 0, %v5773
      %v5776 = vsub.s32 32, %v5775
      %v5777 = vshll.u32 %v5768, %v5775
      %v5778 = vshrl.u32 %v5760, %v5776
      %v5779 = vor.u32 %v5777, %v5778
      %v5780 = vsub.s32 4294967266, %v5775
      %v5781 = vadd.s32 %v5780, 127
      %v5782 = vshll.u32 %v5781, 23
      %v5783 = vor.u32 4788187, %v5782
      %v5784 = vand.u32 2147483647, %v5783
      %v5786 = vcvt.s32.f32 %v5779
      %v5787 = vmul.f32 %v5786, %v5784
      %v5788 = vxor.u32 %v5787, 2147483648
      %v5789 = vsel %vm5706, %v5788, %v5787
      %v5790 = vsub.s32 4, %v5766
      %v5791 = vsel %vm5706, %v5790, %v5766
      %v5792 = vsel %vm5705, %v3097, %v5789
      %v5793 = vsel %vm5705, 0, %v5791
      %v5794 = vcosq.f32.pop %v5792
      %v5795 = vsinq.f32.pop %v5792
      %vm5796 = vweird.f32 %v3097
      %v5797 = vadd.s32 %v5793, 3
      %v5798 = vand.u32 %v5797, 3
      %vm5799 = vcmp.lt.s32.totalorder %v5798, 2
      %vm5800 = vcmp.eq.s32.totalorder %v5798, 0
      %v5801 = vxor.u32 %v5795, 2147483648
      %v5802 = vsel %vm5800, %v5794, %v5801
      %vm5803 = vcmp.eq.s32.totalorder %v5798, 2
      %v5804 = vxor.u32 %v5794, 2147483648
      %v5805 = vsel %vm5803, %v5804, %v5795
      %v5806 = vsel %vm5799, %v5802, %v5805
      %v5807 = vsel %vm5796, nan, %v5806
      %v5808 = vand.u32 2147483647, %v3098
      %vm5809 = vcmp.le.f32.partialorder %v5808, 0.7853982
      %vm5810 = vcmp.lt.s32.totalorder %v3098, 0
      %v5811 = vand.u32 %v3098, 2139095040
      %v5812 = vshrl.u32 %v5811, 23
      %v5813 = vsub.s32 %v5812, 127
      %v5814 = vand.u32 2147483647, %v3098
      %v5815 = vand.u32 %v5814, 8388607
      %v5816 = vor.u32 %v5815, 8388608
      %v5817 = vsub.s32 0, %v5816
      %v5818 = vadd.s32 %v5813, 1
      %vm5819 = vcmp.gt.s32.totalorder %v5818, 0
      %v5820 = vsel %vm5819, %v5818, 0
      %v5821 = vshrl.u32 %v5820, 5
      %v5822 = vand.u32 %v5820, 31
      %v5823 = vsub.s32 32, %v5822
      %v5824 = vshrl.u32 683565275, %v5823
      %v5825 = vshll.u32 683565275, %v5822
      %v5826 = vshrl.u32 2475754826, %v5823
      %v5827 = vor.u32 %v5825, %v5826
      %v5828 = vshll.u32 2475754826, %v5822
      %v5829 = vshrl.u32 2131351028, %v5823
      %v5830 = vor.u32 %v5828, %v5829
      %v5831 = vshll.u32 2131351028, %v5822
      %v5832 = vshrl.u32 2102212464, %v5823
      %v5833 = vor.u32 %v5831, %v5832
      %v5834 = vshll.u32 2102212464, %v5822
      %v5835 = vshrl.u32 920167782, %v5823
      %v5836 = vor.u32 %v5834, %v5835
      %v5837 = vshll.u32 920167782, %v5822
      %v5838 = vshrl.u32 1326507024, %v5823
      %v5839 = vor.u32 %v5837, %v5838
      %vm5840 = vcmp.lt.s32.totalorder %v5821, 1
      %vm5841 = vcmp.lt.s32.totalorder %v5821, 2
      %vm5842 = vcmp.lt.s32.totalorder %v5821, 3
      %vm5843 = vcmp.lt.s32.totalorder %v5821, 4
      %v5844 = vsel %vm5840, %v5824, %v5827
      %v5845 = vsel %vm5843, %v5833, 2102212464
      %v5846 = vsel %vm5842, %v5830, %v5845
      %v5847 = vsel %vm5841, %v5844, %v5846
      %v5848 = vsel %vm5840, %v5827, %v5830
      %v5849 = vsel %vm5843, %v5836, 920167782
      %v5850 = vsel %vm5842, %v5833, %v5849
      %v5851 = vsel %vm5841, %v5848, %v5850
      %v5852 = vsel %vm5840, %v5830, %v5833
      %v5853 = vsel %vm5843, %v5839, 1326507024
      %v5854 = vsel %vm5842, %v5836, %v5853
      %v5855 = vsel %vm5841, %v5852, %v5854
      %v5856 = vshll.u32 %v5816, 8
      %v5857 = vmul.u32.u64.compose %v5856, %v5855
      %v5858 = vextract.low.u32 %v5857
      %v5859 = vextract.high.u32 %v5857
      %v5860 = vmul.u32.u64.compose %v5856, %v5851
      %v5861 = vextract.low.u32 %v5860
      %v5862 = vextract.high.u32 %v5860
      %v5863 = vmul.u32 %v5856, %v5847
      %v5864 = vadd.s32 %v5859, %v5861
      %vm5865 = vc.u32 %v5859, %v5861
      %v5866 = vadd.s32 %v5862, 1
      %v5867 = vsel %vm5865, %v5866, %v5862
      %v5868 = vadd.s32 %v5863, %v5867
      %v5869 = vadd.s32 %v5868, 536870912
      %v5870 = vshrl.u32 %v5869, 30
      %v5871 = vshll.u32 %v5870, 30
      %v5872 = vsub.s32 %v5868, %v5871
      %vm5873 = vcmp.lt.s32.totalorder %v5872, 0
      %v5874 = vsub.s32 0, %v5872
      %v5875 = vsel %vm5873, %v5874, %v5872
      %v5876 = vclz %v5875
      %v5877 = vsub.s32 %v5876, 2
      %vm5878 = vcmp.gt.s32.totalorder 0, %v5877
      %v5879 = vsel %vm5878, 0, %v5877
      %v5880 = vsub.s32 32, %v5879
      %v5881 = vshll.u32 %v5872, %v5879
      %v5882 = vshrl.u32 %v5864, %v5880
      %v5883 = vor.u32 %v5881, %v5882
      %v5884 = vsub.s32 4294967266, %v5879
      %v5885 = vadd.s32 %v5884, 127
      %v5886 = vshll.u32 %v5885, 23
      %v5887 = vor.u32 4788187, %v5886
      %v5888 = vand.u32 2147483647, %v5887
      %v5890 = vcvt.s32.f32 %v5883
      %v5891 = vmul.f32 %v5890, %v5888
      %v5892 = vxor.u32 %v5891, 2147483648
      %v5893 = vsel %vm5810, %v5892, %v5891
      %v5894 = vsub.s32 4, %v5870
      %v5895 = vsel %vm5810, %v5894, %v5870
      %v5896 = vsel %vm5809, %v3098, %v5893
      %v5897 = vsel %vm5809, 0, %v5895
      %v5898 = vcosq.f32.pop %v5896
      %v5899 = vsinq.f32.pop %v5896
      %vm5900 = vweird.f32 %v3098
      %v5901 = vadd.s32 %v5897, 3
      %v5902 = vand.u32 %v5901, 3
      %vm5903 = vcmp.lt.s32.totalorder %v5902, 2
      %vm5904 = vcmp.eq.s32.totalorder %v5902, 0
      %v5905 = vxor.u32 %v5899, 2147483648
      %v5906 = vsel %vm5904, %v5898, %v5905
      %vm5907 = vcmp.eq.s32.totalorder %v5902, 2
      %v5908 = vxor.u32 %v5898, 2147483648
      %v5909 = vsel %vm5907, %v5908, %v5899
      %v5910 = vsel %vm5903, %v5906, %v5909
      %v5911 = vsel %vm5900, nan, %v5910
      %v5912 = vand.u32 2147483647, %v3099
      %vm5913 = vcmp.le.f32.partialorder %v5912, 0.7853982
      %vm5914 = vcmp.lt.s32.totalorder %v3099, 0
      %v5915 = vand.u32 %v3099, 2139095040
      %v5916 = vshrl.u32 %v5915, 23
      %v5917 = vsub.s32 %v5916, 127
      %v5918 = vand.u32 2147483647, %v3099
      %v5919 = vand.u32 %v5918, 8388607
      %v5920 = vor.u32 %v5919, 8388608
      %v5921 = vsub.s32 0, %v5920
      %v5922 = vadd.s32 %v5917, 1
      %vm5923 = vcmp.gt.s32.totalorder %v5922, 0
      %v5924 = vsel %vm5923, %v5922, 0
      %v5925 = vshrl.u32 %v5924, 5
      %v5926 = vand.u32 %v5924, 31
      %v5927 = vsub.s32 32, %v5926
      %v5928 = vshrl.u32 683565275, %v5927
      %v5929 = vshll.u32 683565275, %v5926
      %v5930 = vshrl.u32 2475754826, %v5927
      %v5931 = vor.u32 %v5929, %v5930
      %v5932 = vshll.u32 2475754826, %v5926
      %v5933 = vshrl.u32 2131351028, %v5927
      %v5934 = vor.u32 %v5932, %v5933
      %v5935 = vshll.u32 2131351028, %v5926
      %v5936 = vshrl.u32 2102212464, %v5927
      %v5937 = vor.u32 %v5935, %v5936
      %v5938 = vshll.u32 2102212464, %v5926
      %v5939 = vshrl.u32 920167782, %v5927
      %v5940 = vor.u32 %v5938, %v5939
      %v5941 = vshll.u32 920167782, %v5926
      %v5942 = vshrl.u32 1326507024, %v5927
      %v5943 = vor.u32 %v5941, %v5942
      %vm5944 = vcmp.lt.s32.totalorder %v5925, 1
      %vm5945 = vcmp.lt.s32.totalorder %v5925, 2
      %vm5946 = vcmp.lt.s32.totalorder %v5925, 3
      %vm5947 = vcmp.lt.s32.totalorder %v5925, 4
      %v5948 = vsel %vm5944, %v5928, %v5931
      %v5949 = vsel %vm5947, %v5937, 2102212464
      %v5950 = vsel %vm5946, %v5934, %v5949
      %v5951 = vsel %vm5945, %v5948, %v5950
      %v5952 = vsel %vm5944, %v5931, %v5934
      %v5953 = vsel %vm5947, %v5940, 920167782
      %v5954 = vsel %vm5946, %v5937, %v5953
      %v5955 = vsel %vm5945, %v5952, %v5954
      %v5956 = vsel %vm5944, %v5934, %v5937
      %v5957 = vsel %vm5947, %v5943, 1326507024
      %v5958 = vsel %vm5946, %v5940, %v5957
      %v5959 = vsel %vm5945, %v5956, %v5958
      %v5960 = vshll.u32 %v5920, 8
      %v5961 = vmul.u32.u64.compose %v5960, %v5959
      %v5962 = vextract.low.u32 %v5961
      %v5963 = vextract.high.u32 %v5961
      %v5964 = vmul.u32.u64.compose %v5960, %v5955
      %v5965 = vextract.low.u32 %v5964
      %v5966 = vextract.high.u32 %v5964
      %v5967 = vmul.u32 %v5960, %v5951
      %v5968 = vadd.s32 %v5963, %v5965
      %vm5969 = vc.u32 %v5963, %v5965
      %v5970 = vadd.s32 %v5966, 1
      %v5971 = vsel %vm5969, %v5970, %v5966
      %v5972 = vadd.s32 %v5967, %v5971
      %v5973 = vadd.s32 %v5972, 536870912
      %v5974 = vshrl.u32 %v5973, 30
      %v5975 = vshll.u32 %v5974, 30
      %v5976 = vsub.s32 %v5972, %v5975
      %vm5977 = vcmp.lt.s32.totalorder %v5976, 0
      %v5978 = vsub.s32 0, %v5976
      %v5979 = vsel %vm5977, %v5978, %v5976
      %v5980 = vclz %v5979
      %v5981 = vsub.s32 %v5980, 2
      %vm5982 = vcmp.gt.s32.totalorder 0, %v5981
      %v5983 = vsel %vm5982, 0, %v5981
      %v5984 = vsub.s32 32, %v5983
      %v5985 = vshll.u32 %v5976, %v5983
      %v5986 = vshrl.u32 %v5968, %v5984
      %v5987 = vor.u32 %v5985, %v5986
      %v5988 = vsub.s32 4294967266, %v5983
      %v5989 = vadd.s32 %v5988, 127
      %v5990 = vshll.u32 %v5989, 23
      %v5991 = vor.u32 4788187, %v5990
      %v5992 = vand.u32 2147483647, %v5991
      %v5994 = vcvt.s32.f32 %v5987
      %v5995 = vmul.f32 %v5994, %v5992
      %v5996 = vxor.u32 %v5995, 2147483648
      %v5997 = vsel %vm5914, %v5996, %v5995
      %v5998 = vsub.s32 4, %v5974
      %v5999 = vsel %vm5914, %v5998, %v5974
      %v6000 = vsel %vm5913, %v3099, %v5997
      %v6001 = vsel %vm5913, 0, %v5999
      %v6002 = vcosq.f32.pop %v6000
      %v6003 = vsinq.f32.pop %v6000
      %vm6004 = vweird.f32 %v3099
      %v6005 = vadd.s32 %v6001, 3
      %v6006 = vand.u32 %v6005, 3
      %vm6007 = vcmp.lt.s32.totalorder %v6006, 2
      %vm6008 = vcmp.eq.s32.totalorder %v6006, 0
      %v6009 = vxor.u32 %v6003, 2147483648
      %v6010 = vsel %vm6008, %v6002, %v6009
      %vm6011 = vcmp.eq.s32.totalorder %v6006, 2
      %v6012 = vxor.u32 %v6002, 2147483648
      %v6013 = vsel %vm6011, %v6012, %v6003
      %v6014 = vsel %vm6007, %v6010, %v6013
      %v6015 = vsel %vm6004, nan, %v6014
      %v6016 = vand.u32 2147483647, %v3100
      %vm6017 = vcmp.le.f32.partialorder %v6016, 0.7853982
      %vm6018 = vcmp.lt.s32.totalorder %v3100, 0
      %v6019 = vand.u32 %v3100, 2139095040
      %v6020 = vshrl.u32 %v6019, 23
      %v6021 = vsub.s32 %v6020, 127
      %v6022 = vand.u32 2147483647, %v3100
      %v6023 = vand.u32 %v6022, 8388607
      %v6024 = vor.u32 %v6023, 8388608
      %v6025 = vsub.s32 0, %v6024
      %v6026 = vadd.s32 %v6021, 1
      %vm6027 = vcmp.gt.s32.totalorder %v6026, 0
      %v6028 = vsel %vm6027, %v6026, 0
      %v6029 = vshrl.u32 %v6028, 5
      %v6030 = vand.u32 %v6028, 31
      %v6031 = vsub.s32 32, %v6030
      %v6032 = vshrl.u32 683565275, %v6031
      %v6033 = vshll.u32 683565275, %v6030
      %v6034 = vshrl.u32 2475754826, %v6031
      %v6035 = vor.u32 %v6033, %v6034
      %v6036 = vshll.u32 2475754826, %v6030
      %v6037 = vshrl.u32 2131351028, %v6031
      %v6038 = vor.u32 %v6036, %v6037
      %v6039 = vshll.u32 2131351028, %v6030
      %v6040 = vshrl.u32 2102212464, %v6031
      %v6041 = vor.u32 %v6039, %v6040
      %v6042 = vshll.u32 2102212464, %v6030
      %v6043 = vshrl.u32 920167782, %v6031
      %v6044 = vor.u32 %v6042, %v6043
      %v6045 = vshll.u32 920167782, %v6030
      %v6046 = vshrl.u32 1326507024, %v6031
      %v6047 = vor.u32 %v6045, %v6046
      %vm6048 = vcmp.lt.s32.totalorder %v6029, 1
      %vm6049 = vcmp.lt.s32.totalorder %v6029, 2
      %vm6050 = vcmp.lt.s32.totalorder %v6029, 3
      %vm6051 = vcmp.lt.s32.totalorder %v6029, 4
      %v6052 = vsel %vm6048, %v6032, %v6035
      %v6053 = vsel %vm6051, %v6041, 2102212464
      %v6054 = vsel %vm6050, %v6038, %v6053
      %v6055 = vsel %vm6049, %v6052, %v6054
      %v6056 = vsel %vm6048, %v6035, %v6038
      %v6057 = vsel %vm6051, %v6044, 920167782
      %v6058 = vsel %vm6050, %v6041, %v6057
      %v6059 = vsel %vm6049, %v6056, %v6058
      %v6060 = vsel %vm6048, %v6038, %v6041
      %v6061 = vsel %vm6051, %v6047, 1326507024
      %v6062 = vsel %vm6050, %v6044, %v6061
      %v6063 = vsel %vm6049, %v6060, %v6062
      %v6064 = vshll.u32 %v6024, 8
      %v6065 = vmul.u32.u64.compose %v6064, %v6063
      %v6066 = vextract.low.u32 %v6065
      %v6067 = vextract.high.u32 %v6065
      %v6068 = vmul.u32.u64.compose %v6064, %v6059
      %v6069 = vextract.low.u32 %v6068
      %v6070 = vextract.high.u32 %v6068
      %v6071 = vmul.u32 %v6064, %v6055
      %v6072 = vadd.s32 %v6067, %v6069
      %vm6073 = vc.u32 %v6067, %v6069
      %v6074 = vadd.s32 %v6070, 1
      %v6075 = vsel %vm6073, %v6074, %v6070
      %v6076 = vadd.s32 %v6071, %v6075
      %v6077 = vadd.s32 %v6076, 536870912
      %v6078 = vshrl.u32 %v6077, 30
      %v6079 = vshll.u32 %v6078, 30
      %v6080 = vsub.s32 %v6076, %v6079
      %vm6081 = vcmp.lt.s32.totalorder %v6080, 0
      %v6082 = vsub.s32 0, %v6080
      %v6083 = vsel %vm6081, %v6082, %v6080
      %v6084 = vclz %v6083
      %v6085 = vsub.s32 %v6084, 2
      %vm6086 = vcmp.gt.s32.totalorder 0, %v6085
      %v6087 = vsel %vm6086, 0, %v6085
      %v6088 = vsub.s32 32, %v6087
      %v6089 = vshll.u32 %v6080, %v6087
      %v6090 = vshrl.u32 %v6072, %v6088
      %v6091 = vor.u32 %v6089, %v6090
      %v6092 = vsub.s32 4294967266, %v6087
      %v6093 = vadd.s32 %v6092, 127
      %v6094 = vshll.u32 %v6093, 23
      %v6095 = vor.u32 4788187, %v6094
      %v6096 = vand.u32 2147483647, %v6095
      %v6098 = vcvt.s32.f32 %v6091
      %v6099 = vmul.f32 %v6098, %v6096
      %v6100 = vxor.u32 %v6099, 2147483648
      %v6101 = vsel %vm6018, %v6100, %v6099
      %v6102 = vsub.s32 4, %v6078
      %v6103 = vsel %vm6018, %v6102, %v6078
      %v6104 = vsel %vm6017, %v3100, %v6101
      %v6105 = vsel %vm6017, 0, %v6103
      %v6106 = vcosq.f32.pop %v6104
      %v6107 = vsinq.f32.pop %v6104
      %vm6108 = vweird.f32 %v3100
      %v6109 = vadd.s32 %v6105, 3
      %v6110 = vand.u32 %v6109, 3
      %vm6111 = vcmp.lt.s32.totalorder %v6110, 2
      %vm6112 = vcmp.eq.s32.totalorder %v6110, 0
      %v6113 = vxor.u32 %v6107, 2147483648
      %v6114 = vsel %vm6112, %v6106, %v6113
      %vm6115 = vcmp.eq.s32.totalorder %v6110, 2
      %v6116 = vxor.u32 %v6106, 2147483648
      %v6117 = vsel %vm6115, %v6116, %v6107
      %v6118 = vsel %vm6111, %v6114, %v6117
      %v6119 = vsel %vm6108, nan, %v6118
      %v6120 = vand.u32 2147483647, %v3101
      %vm6121 = vcmp.le.f32.partialorder %v6120, 0.7853982
      %vm6122 = vcmp.lt.s32.totalorder %v3101, 0
      %v6123 = vand.u32 %v3101, 2139095040
      %v6124 = vshrl.u32 %v6123, 23
      %v6125 = vsub.s32 %v6124, 127
      %v6126 = vand.u32 2147483647, %v3101
      %v6127 = vand.u32 %v6126, 8388607
      %v6128 = vor.u32 %v6127, 8388608
      %v6129 = vsub.s32 0, %v6128
      %v6130 = vadd.s32 %v6125, 1
      %vm6131 = vcmp.gt.s32.totalorder %v6130, 0
      %v6132 = vsel %vm6131, %v6130, 0
      %v6133 = vshrl.u32 %v6132, 5
      %v6134 = vand.u32 %v6132, 31
      %v6135 = vsub.s32 32, %v6134
      %v6136 = vshrl.u32 683565275, %v6135
      %v6137 = vshll.u32 683565275, %v6134
      %v6138 = vshrl.u32 2475754826, %v6135
      %v6139 = vor.u32 %v6137, %v6138
      %v6140 = vshll.u32 2475754826, %v6134
      %v6141 = vshrl.u32 2131351028, %v6135
      %v6142 = vor.u32 %v6140, %v6141
      %v6143 = vshll.u32 2131351028, %v6134
      %v6144 = vshrl.u32 2102212464, %v6135
      %v6145 = vor.u32 %v6143, %v6144
      %v6146 = vshll.u32 2102212464, %v6134
      %v6147 = vshrl.u32 920167782, %v6135
      %v6148 = vor.u32 %v6146, %v6147
      %v6149 = vshll.u32 920167782, %v6134
      %v6150 = vshrl.u32 1326507024, %v6135
      %v6151 = vor.u32 %v6149, %v6150
      %vm6152 = vcmp.lt.s32.totalorder %v6133, 1
      %vm6153 = vcmp.lt.s32.totalorder %v6133, 2
      %vm6154 = vcmp.lt.s32.totalorder %v6133, 3
      %vm6155 = vcmp.lt.s32.totalorder %v6133, 4
      %v6156 = vsel %vm6152, %v6136, %v6139
      %v6157 = vsel %vm6155, %v6145, 2102212464
      %v6158 = vsel %vm6154, %v6142, %v6157
      %v6159 = vsel %vm6153, %v6156, %v6158
      %v6160 = vsel %vm6152, %v6139, %v6142
      %v6161 = vsel %vm6155, %v6148, 920167782
      %v6162 = vsel %vm6154, %v6145, %v6161
      %v6163 = vsel %vm6153, %v6160, %v6162
      %v6164 = vsel %vm6152, %v6142, %v6145
      %v6165 = vsel %vm6155, %v6151, 1326507024
      %v6166 = vsel %vm6154, %v6148, %v6165
      %v6167 = vsel %vm6153, %v6164, %v6166
      %v6168 = vshll.u32 %v6128, 8
      %v6169 = vmul.u32.u64.compose %v6168, %v6167
      %v6170 = vextract.low.u32 %v6169
      %v6171 = vextract.high.u32 %v6169
      %v6172 = vmul.u32.u64.compose %v6168, %v6163
      %v6173 = vextract.low.u32 %v6172
      %v6174 = vextract.high.u32 %v6172
      %v6175 = vmul.u32 %v6168, %v6159
      %v6176 = vadd.s32 %v6171, %v6173
      %vm6177 = vc.u32 %v6171, %v6173
      %v6178 = vadd.s32 %v6174, 1
      %v6179 = vsel %vm6177, %v6178, %v6174
      %v6180 = vadd.s32 %v6175, %v6179
      %v6181 = vadd.s32 %v6180, 536870912
      %v6182 = vshrl.u32 %v6181, 30
      %v6183 = vshll.u32 %v6182, 30
      %v6184 = vsub.s32 %v6180, %v6183
      %vm6185 = vcmp.lt.s32.totalorder %v6184, 0
      %v6186 = vsub.s32 0, %v6184
      %v6187 = vsel %vm6185, %v6186, %v6184
      %v6188 = vclz %v6187
      %v6189 = vsub.s32 %v6188, 2
      %vm6190 = vcmp.gt.s32.totalorder 0, %v6189
      %v6191 = vsel %vm6190, 0, %v6189
      %v6192 = vsub.s32 32, %v6191
      %v6193 = vshll.u32 %v6184, %v6191
      %v6194 = vshrl.u32 %v6176, %v6192
      %v6195 = vor.u32 %v6193, %v6194
      %v6196 = vsub.s32 4294967266, %v6191
      %v6197 = vadd.s32 %v6196, 127
      %v6198 = vshll.u32 %v6197, 23
      %v6199 = vor.u32 4788187, %v6198
      %v6200 = vand.u32 2147483647, %v6199
      %v6202 = vcvt.s32.f32 %v6195
      %v6203 = vmul.f32 %v6202, %v6200
      %v6204 = vxor.u32 %v6203, 2147483648
      %v6205 = vsel %vm6122, %v6204, %v6203
      %v6206 = vsub.s32 4, %v6182
      %v6207 = vsel %vm6122, %v6206, %v6182
      %v6208 = vsel %vm6121, %v3101, %v6205
      %v6209 = vsel %vm6121, 0, %v6207
      %v6210 = vcosq.f32.pop %v6208
      %v6211 = vsinq.f32.pop %v6208
      %vm6212 = vweird.f32 %v3101
      %v6213 = vadd.s32 %v6209, 3
      %v6214 = vand.u32 %v6213, 3
      %vm6215 = vcmp.lt.s32.totalorder %v6214, 2
      %vm6216 = vcmp.eq.s32.totalorder %v6214, 0
      %v6217 = vxor.u32 %v6211, 2147483648
      %v6218 = vsel %vm6216, %v6210, %v6217
      %vm6219 = vcmp.eq.s32.totalorder %v6214, 2
      %v6220 = vxor.u32 %v6210, 2147483648
      %v6221 = vsel %vm6219, %v6220, %v6211
      %v6222 = vsel %vm6215, %v6218, %v6221
      %v6223 = vsel %vm6212, nan, %v6222
      %v6224 = vand.u32 2147483647, %v3102
      %vm6225 = vcmp.le.f32.partialorder %v6224, 0.7853982
      %vm6226 = vcmp.lt.s32.totalorder %v3102, 0
      %v6227 = vand.u32 %v3102, 2139095040
      %v6228 = vshrl.u32 %v6227, 23
      %v6229 = vsub.s32 %v6228, 127
      %v6230 = vand.u32 2147483647, %v3102
      %v6231 = vand.u32 %v6230, 8388607
      %v6232 = vor.u32 %v6231, 8388608
      %v6233 = vsub.s32 0, %v6232
      %v6234 = vadd.s32 %v6229, 1
      %vm6235 = vcmp.gt.s32.totalorder %v6234, 0
      %v6236 = vsel %vm6235, %v6234, 0
      %v6237 = vshrl.u32 %v6236, 5
      %v6238 = vand.u32 %v6236, 31
      %v6239 = vsub.s32 32, %v6238
      %v6240 = vshrl.u32 683565275, %v6239
      %v6241 = vshll.u32 683565275, %v6238
      %v6242 = vshrl.u32 2475754826, %v6239
      %v6243 = vor.u32 %v6241, %v6242
      %v6244 = vshll.u32 2475754826, %v6238
      %v6245 = vshrl.u32 2131351028, %v6239
      %v6246 = vor.u32 %v6244, %v6245
      %v6247 = vshll.u32 2131351028, %v6238
      %v6248 = vshrl.u32 2102212464, %v6239
      %v6249 = vor.u32 %v6247, %v6248
      %v6250 = vshll.u32 2102212464, %v6238
      %v6251 = vshrl.u32 920167782, %v6239
      %v6252 = vor.u32 %v6250, %v6251
      %v6253 = vshll.u32 920167782, %v6238
      %v6254 = vshrl.u32 1326507024, %v6239
      %v6255 = vor.u32 %v6253, %v6254
      %vm6256 = vcmp.lt.s32.totalorder %v6237, 1
      %vm6257 = vcmp.lt.s32.totalorder %v6237, 2
      %vm6258 = vcmp.lt.s32.totalorder %v6237, 3
      %vm6259 = vcmp.lt.s32.totalorder %v6237, 4
      %v6260 = vsel %vm6256, %v6240, %v6243
      %v6261 = vsel %vm6259, %v6249, 2102212464
      %v6262 = vsel %vm6258, %v6246, %v6261
      %v6263 = vsel %vm6257, %v6260, %v6262
      %v6264 = vsel %vm6256, %v6243, %v6246
      %v6265 = vsel %vm6259, %v6252, 920167782
      %v6266 = vsel %vm6258, %v6249, %v6265
      %v6267 = vsel %vm6257, %v6264, %v6266
      %v6268 = vsel %vm6256, %v6246, %v6249
      %v6269 = vsel %vm6259, %v6255, 1326507024
      %v6270 = vsel %vm6258, %v6252, %v6269
      %v6271 = vsel %vm6257, %v6268, %v6270
      %v6272 = vshll.u32 %v6232, 8
      %v6273 = vmul.u32.u64.compose %v6272, %v6271
      %v6274 = vextract.low.u32 %v6273
      %v6275 = vextract.high.u32 %v6273
      %v6276 = vmul.u32.u64.compose %v6272, %v6267
      %v6277 = vextract.low.u32 %v6276
      %v6278 = vextract.high.u32 %v6276
      %v6279 = vmul.u32 %v6272, %v6263
      %v6280 = vadd.s32 %v6275, %v6277
      %vm6281 = vc.u32 %v6275, %v6277
      %v6282 = vadd.s32 %v6278, 1
      %v6283 = vsel %vm6281, %v6282, %v6278
      %v6284 = vadd.s32 %v6279, %v6283
      %v6285 = vadd.s32 %v6284, 536870912
      %v6286 = vshrl.u32 %v6285, 30
      %v6287 = vshll.u32 %v6286, 30
      %v6288 = vsub.s32 %v6284, %v6287
      %vm6289 = vcmp.lt.s32.totalorder %v6288, 0
      %v6290 = vsub.s32 0, %v6288
      %v6291 = vsel %vm6289, %v6290, %v6288
      %v6292 = vclz %v6291
      %v6293 = vsub.s32 %v6292, 2
      %vm6294 = vcmp.gt.s32.totalorder 0, %v6293
      %v6295 = vsel %vm6294, 0, %v6293
      %v6296 = vsub.s32 32, %v6295
      %v6297 = vshll.u32 %v6288, %v6295
      %v6298 = vshrl.u32 %v6280, %v6296
      %v6299 = vor.u32 %v6297, %v6298
      %v6300 = vsub.s32 4294967266, %v6295
      %v6301 = vadd.s32 %v6300, 127
      %v6302 = vshll.u32 %v6301, 23
      %v6303 = vor.u32 4788187, %v6302
      %v6304 = vand.u32 2147483647, %v6303
      %v6306 = vcvt.s32.f32 %v6299
      %v6307 = vmul.f32 %v6306, %v6304
      %v6308 = vxor.u32 %v6307, 2147483648
      %v6309 = vsel %vm6226, %v6308, %v6307
      %v6310 = vsub.s32 4, %v6286
      %v6311 = vsel %vm6226, %v6310, %v6286
      %v6312 = vsel %vm6225, %v3102, %v6309
      %v6313 = vsel %vm6225, 0, %v6311
      %v6314 = vcosq.f32.pop %v6312
      %v6315 = vsinq.f32.pop %v6312
      %vm6316 = vweird.f32 %v3102
      %v6317 = vadd.s32 %v6313, 3
      %v6318 = vand.u32 %v6317, 3
      %vm6319 = vcmp.lt.s32.totalorder %v6318, 2
      %vm6320 = vcmp.eq.s32.totalorder %v6318, 0
      %v6321 = vxor.u32 %v6315, 2147483648
      %v6322 = vsel %vm6320, %v6314, %v6321
      %vm6323 = vcmp.eq.s32.totalorder %v6318, 2
      %v6324 = vxor.u32 %v6314, 2147483648
      %v6325 = vsel %vm6323, %v6324, %v6315
      %v6326 = vsel %vm6319, %v6322, %v6325
      %v6327 = vsel %vm6316, nan, %v6326
      %v6328 = vand.u32 2147483647, %v3103
      %vm6329 = vcmp.le.f32.partialorder %v6328, 0.7853982
      %vm6330 = vcmp.lt.s32.totalorder %v3103, 0
      %v6331 = vand.u32 %v3103, 2139095040
      %v6332 = vshrl.u32 %v6331, 23
      %v6333 = vsub.s32 %v6332, 127
      %v6334 = vand.u32 2147483647, %v3103
      %v6335 = vand.u32 %v6334, 8388607
      %v6336 = vor.u32 %v6335, 8388608
      %v6337 = vsub.s32 0, %v6336
      %v6338 = vadd.s32 %v6333, 1
      %vm6339 = vcmp.gt.s32.totalorder %v6338, 0
      %v6340 = vsel %vm6339, %v6338, 0
      %v6341 = vshrl.u32 %v6340, 5
      %v6342 = vand.u32 %v6340, 31
      %v6343 = vsub.s32 32, %v6342
      %v6344 = vshrl.u32 683565275, %v6343
      %v6345 = vshll.u32 683565275, %v6342
      %v6346 = vshrl.u32 2475754826, %v6343
      %v6347 = vor.u32 %v6345, %v6346
      %v6348 = vshll.u32 2475754826, %v6342
      %v6349 = vshrl.u32 2131351028, %v6343
      %v6350 = vor.u32 %v6348, %v6349
      %v6351 = vshll.u32 2131351028, %v6342
      %v6352 = vshrl.u32 2102212464, %v6343
      %v6353 = vor.u32 %v6351, %v6352
      %v6354 = vshll.u32 2102212464, %v6342
      %v6355 = vshrl.u32 920167782, %v6343
      %v6356 = vor.u32 %v6354, %v6355
      %v6357 = vshll.u32 920167782, %v6342
      %v6358 = vshrl.u32 1326507024, %v6343
      %v6359 = vor.u32 %v6357, %v6358
      %vm6360 = vcmp.lt.s32.totalorder %v6341, 1
      %vm6361 = vcmp.lt.s32.totalorder %v6341, 2
      %vm6362 = vcmp.lt.s32.totalorder %v6341, 3
      %vm6363 = vcmp.lt.s32.totalorder %v6341, 4
      %v6364 = vsel %vm6360, %v6344, %v6347
      %v6365 = vsel %vm6363, %v6353, 2102212464
      %v6366 = vsel %vm6362, %v6350, %v6365
      %v6367 = vsel %vm6361, %v6364, %v6366
      %v6368 = vsel %vm6360, %v6347, %v6350
      %v6369 = vsel %vm6363, %v6356, 920167782
      %v6370 = vsel %vm6362, %v6353, %v6369
      %v6371 = vsel %vm6361, %v6368, %v6370
      %v6372 = vsel %vm6360, %v6350, %v6353
      %v6373 = vsel %vm6363, %v6359, 1326507024
      %v6374 = vsel %vm6362, %v6356, %v6373
      %v6375 = vsel %vm6361, %v6372, %v6374
      %v6376 = vshll.u32 %v6336, 8
      %v6377 = vmul.u32.u64.compose %v6376, %v6375
      %v6378 = vextract.low.u32 %v6377
      %v6379 = vextract.high.u32 %v6377
      %v6380 = vmul.u32.u64.compose %v6376, %v6371
      %v6381 = vextract.low.u32 %v6380
      %v6382 = vextract.high.u32 %v6380
      %v6383 = vmul.u32 %v6376, %v6367
      %v6384 = vadd.s32 %v6379, %v6381
      %vm6385 = vc.u32 %v6379, %v6381
      %v6386 = vadd.s32 %v6382, 1
      %v6387 = vsel %vm6385, %v6386, %v6382
      %v6388 = vadd.s32 %v6383, %v6387
      %v6389 = vadd.s32 %v6388, 536870912
      %v6390 = vshrl.u32 %v6389, 30
      %v6391 = vshll.u32 %v6390, 30
      %v6392 = vsub.s32 %v6388, %v6391
      %vm6393 = vcmp.lt.s32.totalorder %v6392, 0
      %v6394 = vsub.s32 0, %v6392
      %v6395 = vsel %vm6393, %v6394, %v6392
      %v6396 = vclz %v6395
      %v6397 = vsub.s32 %v6396, 2
      %vm6398 = vcmp.gt.s32.totalorder 0, %v6397
      %v6399 = vsel %vm6398, 0, %v6397
      %v6400 = vsub.s32 32, %v6399
      %v6401 = vshll.u32 %v6392, %v6399
      %v6402 = vshrl.u32 %v6384, %v6400
      %v6403 = vor.u32 %v6401, %v6402
      %v6404 = vsub.s32 4294967266, %v6399
      %v6405 = vadd.s32 %v6404, 127
      %v6406 = vshll.u32 %v6405, 23
      %v6407 = vor.u32 4788187, %v6406
      %v6408 = vand.u32 2147483647, %v6407
      %v6410 = vcvt.s32.f32 %v6403
      %v6411 = vmul.f32 %v6410, %v6408
      %v6412 = vxor.u32 %v6411, 2147483648
      %v6413 = vsel %vm6330, %v6412, %v6411
      %v6414 = vsub.s32 4, %v6390
      %v6415 = vsel %vm6330, %v6414, %v6390
      %v6416 = vsel %vm6329, %v3103, %v6413
      %v6417 = vsel %vm6329, 0, %v6415
      %v6418 = vcosq.f32.pop %v6416
      %v6419 = vsinq.f32.pop %v6416
      %vm6420 = vweird.f32 %v3103
      %v6421 = vadd.s32 %v6417, 3
      %v6422 = vand.u32 %v6421, 3
      %vm6423 = vcmp.lt.s32.totalorder %v6422, 2
      %vm6424 = vcmp.eq.s32.totalorder %v6422, 0
      %v6425 = vxor.u32 %v6419, 2147483648
      %v6426 = vsel %vm6424, %v6418, %v6425
      %vm6427 = vcmp.eq.s32.totalorder %v6422, 2
      %v6428 = vxor.u32 %v6418, 2147483648
      %v6429 = vsel %vm6427, %v6428, %v6419
      %v6430 = vsel %vm6423, %v6426, %v6429
      %v6431 = vsel %vm6420, nan, %v6430
      %v6432 = vlaneseq
      %v6433 = vshrl.u32 %v6432, 7
      %v6434 = vsub.s32 0, %v6433
      %v6435 = vrot.slane %v3067, %v6434
      %v6436 = vmul.f32 %v6435, %v3207
      %v6437 = vmul.f32 %v6435, %v3311
      %v6438 = vmul.f32 %v6435, %v3415
      %v6439 = vmul.f32 %v6435, %v3519
      %v6440 = vmul.f32 %v6435, %v3623
      %v6441 = vmul.f32 %v6435, %v3727
      %v6442 = vmul.f32 %v6435, %v3831
      %v6443 = vmul.f32 %v6435, %v3935
      %v6444 = vmul.f32 %v6435, %v4039
      %v6445 = vmul.f32 %v6435, %v4143
      %v6446 = vmul.f32 %v6435, %v4247
      %v6447 = vmul.f32 %v6435, %v4351
      %v6448 = vmul.f32 %v6435, %v4455
      %v6449 = vmul.f32 %v6435, %v4559
      %v6450 = vmul.f32 %v6435, %v4663
      %v6451 = vmul.f32 %v6435, %v4767
      %v6452 = vmul.f32 %v6435, %v4871
      %v6453 = vmul.f32 %v6435, %v4975
      %v6454 = vmul.f32 %v6435, %v5079
      %v6455 = vmul.f32 %v6435, %v5183
      %v6456 = vmul.f32 %v6435, %v5287
      %v6457 = vmul.f32 %v6435, %v5391
      %v6458 = vmul.f32 %v6435, %v5495
      %v6459 = vmul.f32 %v6435, %v5599
      %v6460 = vmul.f32 %v6435, %v5703
      %v6461 = vmul.f32 %v6435, %v5807
      %v6462 = vmul.f32 %v6435, %v5911
      %v6463 = vmul.f32 %v6435, %v6015
      %v6464 = vmul.f32 %v6435, %v6119
      %v6465 = vmul.f32 %v6435, %v6223
      %v6466 = vmul.f32 %v6435, %v6327
      %v6467 = vmul.f32 %v6435, %v6431
      %v6468 = vadd.f32 %v3035, %v6436
      %v6469 = vadd.f32 %v3036, %v6437
      %v6470 = vadd.f32 %v3037, %v6438
      %v6471 = vadd.f32 %v3038, %v6439
      %v6472 = vadd.f32 %v3039, %v6440
      %v6473 = vadd.f32 %v3040, %v6441
      %v6474 = vadd.f32 %v3041, %v6442
      %v6475 = vadd.f32 %v3042, %v6443
      %v6476 = vadd.f32 %v3043, %v6444
      %v6477 = vadd.f32 %v3044, %v6445
      %v6478 = vadd.f32 %v3045, %v6446
      %v6479 = vadd.f32 %v3046, %v6447
      %v6480 = vadd.f32 %v3047, %v6448
      %v6481 = vadd.f32 %v3048, %v6449
      %v6482 = vadd.f32 %v3049, %v6450
      %v6483 = vadd.f32 %v3050, %v6451
      %v6484 = vadd.f32 %v3051, %v6452
      %v6485 = vadd.f32 %v3052, %v6453
      %v6486 = vadd.f32 %v3053, %v6454
      %v6487 = vadd.f32 %v3054, %v6455
      %v6488 = vadd.f32 %v3055, %v6456
      %v6489 = vadd.f32 %v3056, %v6457
      %v6490 = vadd.f32 %v3057, %v6458
      %v6491 = vadd.f32 %v3058, %v6459
      %v6492 = vadd.f32 %v3059, %v6460
      %v6493 = vadd.f32 %v3060, %v6461
      %v6494 = vadd.f32 %v3061, %v6462
      %v6495 = vadd.f32 %v3062, %v6463
      %v6496 = vadd.f32 %v3063, %v6464
      %v6497 = vadd.f32 %v3064, %v6465
      %v6498 = vadd.f32 %v3065, %v6466
      %v6499 = vadd.f32 %v3066, %v6467
      %v6500 = vld [vmem:[%s1 + $0xa8] sm:$0xff]
      %v6501 = vld [vmem:[%s1 + $0xb0] sm:$0x7f]
      %v6502 = vld [vmem:[%s1 + $0xb8] sm:$0xff]
      %v6503 = vld [vmem:[%s1 + $0xc0] sm:$0xff]
      %v6504 = vld [vmem:[%s1 + $0xc8] sm:$0xff]
      %v6505 = vld [vmem:[%s1 + $0xd0] sm:$0xff]
      %v6506 = vld [vmem:[%s1 + $0xd8] sm:$0xff]
      %v6507 = vld [vmem:[%s1 + $0xe0] sm:$0xff]
      %vm6508 = vcmask 392192
      %v6510 = vsel %vm6508, %v6468, 0
      %v6513 = vsel %vm6508, %v6469, 0
      %v6516 = vsel %vm6508, %v6470, 0
      %v6519 = vsel %vm6508, %v6471, 0
      %v6522 = vsel %vm6508, %v6472, 0
      %v6525 = vsel %vm6508, %v6473, 0
      %v6528 = vsel %vm6508, %v6474, 0
      %v6531 = vsel %vm6508, %v6475, 0
      %v6534 = vsel %vm6508, %v6476, 0
      %v6537 = vsel %vm6508, %v6477, 0
      %v6540 = vsel %vm6508, %v6478, 0
      %v6543 = vsel %vm6508, %v6479, 0
      %v6546 = vsel %vm6508, %v6480, 0
      %v6549 = vsel %vm6508, %v6481, 0
      %v6552 = vsel %vm6508, %v6482, 0
      %v6555 = vsel %vm6508, %v6483, 0
      %v6558 = vsel %vm6508, %v6484, 0
      %v6561 = vsel %vm6508, %v6485, 0
      %v6564 = vsel %vm6508, %v6486, 0
      %v6567 = vsel %vm6508, %v6487, 0
      %v6570 = vsel %vm6508, %v6488, 0
      %v6573 = vsel %vm6508, %v6489, 0
      %v6576 = vsel %vm6508, %v6490, 0
      %v6579 = vsel %vm6508, %v6491, 0
      %v6582 = vsel %vm6508, %v6492, 0
      %v6585 = vsel %vm6508, %v6493, 0
      %v6588 = vsel %vm6508, %v6494, 0
      %v6591 = vsel %vm6508, %v6495, 0
      %v6594 = vsel %vm6508, %v6496, 0
      %v6597 = vsel %vm6508, %v6497, 0
      %v6600 = vsel %vm6508, %v6498, 0
      %v6603 = vsel %vm6508, %v6499, 0
      %6605 = vmatprep.subr.mxu0 0.0
      %6606 = vmatpush1.msra.mxu0 %v6502
      %6607 = vmatprep.subr.mxu0 0.0
      %6608 = vmatpush1.msra.mxu0 %v6503
      %6609 = vmatprep.subr.mxu0 0.0
      %6610 = vmatpush1.msra.mxu0 %v6504
      %6611 = vmatprep.subr.mxu0 0.0
      %6612 = vmatpush1.msra.mxu0 %v6505
      %6613 = vmatprep.subr.mxu0 0.0
      %6614 = vmatpush1.msra.mxu0 %v6506
      %6615 = vmatprep.subr.mxu0 0.0
      %6616 = vmatpush1.msra.mxu0 %v6507
      %6617 = vmatprep.subr.mxu0 0.0
      %6618 = vmatpush1.msra.mxu0 0.0
      %6619 = vmatprep.subr.mxu0 0.0
      %6620 = vmatpush1.msra.mxu0 0.0
      %6621 = vmatprep.subr.mxu0 0.0
      %6622 = vmatpush1.msra.mxu0 0.0
      %6623 = vmatprep.subr.mxu0 0.0
      %6624 = vmatpush1.msra.mxu0 0.0
      %6625 = vmatprep.subr.mxu0 0.0
      %6626 = vmatpush1.msra.mxu0 0.0
      %6627 = vmatprep.subr.mxu0 0.0
      %6628 = vmatpush1.msra.mxu0 0.0
      %6629 = vmatprep.subr.mxu0 0.0
      %6630 = vmatpush1.msra.mxu0 0.0
      %6631 = vmatprep.subr.mxu0 0.0
      %6632 = vmatpush1.msra.mxu0 0.0
      %6633 = vmatprep.subr.mxu0 0.0
      %6634 = vmatpush1.msra.mxu0 0.0
      %6635 = vmatprep.subr.mxu0 0.0
      %6636 = vmatpush1.msra.mxu0 0.0
      %6637 = vmatprep.subr.mxu0 0.0
      %6638 = vmatpush1.msra.mxu0 0.0
      %6639 = vmatprep.subr.mxu0 0.0
      %6640 = vmatpush1.msra.mxu0 0.0
      %6641 = vmatprep.subr.mxu0 0.0
      %6642 = vmatpush1.msra.mxu0 0.0
      %6643 = vmatprep.subr.mxu0 0.0
      %6644 = vmatpush1.msra.mxu0 0.0
      %6645 = vmatprep.subr.mxu0 0.0
      %6646 = vmatpush1.msra.mxu0 0.0
      %6647 = vmatprep.subr.mxu0 0.0
      %6648 = vmatpush1.msra.mxu0 0.0
      %6649 = vmatprep.subr.mxu0 0.0
      %6650 = vmatpush1.msra.mxu0 0.0
      %6651 = vmatprep.subr.mxu0 0.0
      %6652 = vmatpush1.msra.mxu0 0.0
      %6653 = vmatprep.subr.mxu0 0.0
      %6654 = vmatpush1.msra.mxu0 0.0
      %6655 = vmatprep.subr.mxu0 0.0
      %6656 = vmatpush1.msra.mxu0 0.0
      %6657 = vmatprep.subr.mxu0 0.0
      %6658 = vmatpush1.msra.mxu0 0.0
      %6659 = vmatprep.subr.mxu0 0.0
      %6660 = vmatpush1.msra.mxu0 0.0
      %6661 = vmatprep.subr.mxu0 0.0
      %6662 = vmatpush1.msra.mxu0 0.0
      %6663 = vmatprep.subr.mxu0 0.0
      %6664 = vmatpush1.msra.mxu0 0.0
      %6665 = vmatprep.subr.mxu0 0.0
      %6666 = vmatpush1.msra.mxu0 0.0
      %6667 = vmatprep.subr.mxu0 0.0
      %6668 = vmatpush1.msra.mxu0 0.0
      %6669 = vmatprep.mubr.f32.mxu0 0.0
      %6670 = vmatmul.mubr.f32.gmra.mrb[0].mxu0 %v6510
      %v6671 = vpop.f32.mrb[0].mxu0
      %v6672 = vadd.f32 0.0, %v6671
      %v6673 = vpop.f32.mrb[0].mxu0
      %6674 = vmatprep.mubr.f32.mxu0 0.0
      %6675 = vmatmul.mubr.f32.gmra.mrb[0].mxu0 %v6513
      %v6676 = vpop.f32.mrb[0].mxu0
      %v6677 = vadd.f32 0.0, %v6676
      %v6678 = vpop.f32.mrb[0].mxu0
      %6679 = vmatprep.mubr.f32.mxu0 0.0
      %6680 = vmatmul.mubr.f32.gmra.mrb[0].mxu0 %v6516
      %v6681 = vpop.f32.mrb[0].mxu0
      %v6682 = vadd.f32 0.0, %v6681
      %v6683 = vpop.f32.mrb[0].mxu0
      %6684 = vmatprep.mubr.f32.mxu0 0.0
      %6685 = vmatmul.mubr.f32.gmra.mrb[0].mxu0 %v6519
      %v6686 = vpop.f32.mrb[0].mxu0
      %v6687 = vadd.f32 0.0, %v6686
      %v6688 = vpop.f32.mrb[0].mxu0
      %6689 = vmatprep.mubr.f32.mxu0 0.0
      %6690 = vmatmul.mubr.f32.gmra.mrb[0].mxu0 %v6522
      %v6691 = vpop.f32.mrb[0].mxu0
      %v6692 = vadd.f32 0.0, %v6691
      %v6693 = vpop.f32.mrb[0].mxu0
      %6694 = vmatprep.mubr.f32.mxu0 0.0
      %6695 = vmatmul.mubr.f32.gmra.mrb[0].mxu0 %v6525
      %v6696 = vpop.f32.mrb[0].mxu0
      %v6697 = vadd.f32 0.0, %v6696
      %v6698 = vpop.f32.mrb[0].mxu0
      %6699 = vmatprep.mubr.f32.mxu0 0.0
      %6700 = vmatmul.mubr.f32.gmra.mrb[0].mxu0 %v6528
      %v6701 = vpop.f32.mrb[0].mxu0
      %v6702 = vadd.f32 0.0, %v6701
      %v6703 = vpop.f32.mrb[0].mxu0
      %6704 = vmatprep.mubr.f32.mxu0 0.0
      %6705 = vmatmul.mubr.f32.gmra.mrb[0].mxu0 %v6531
      %v6706 = vpop.f32.mrb[0].mxu0
      %v6707 = vadd.f32 0.0, %v6706
      %v6708 = vpop.f32.mrb[0].mxu0
      %6709 = vmatprep.mubr.f32.mxu0 0.0
      %6710 = vmatmul.mubr.f32.gmra.mrb[0].mxu0 %v6534
      %v6711 = vpop.f32.mrb[0].mxu0
      %v6712 = vadd.f32 0.0, %v6711
      %v6713 = vpop.f32.mrb[0].mxu0
      %6714 = vmatprep.mubr.f32.mxu0 0.0
      %6715 = vmatmul.mubr.f32.gmra.mrb[0].mxu0 %v6537
      %v6716 = vpop.f32.mrb[0].mxu0
      %v6717 = vadd.f32 0.0, %v6716
      %v6718 = vpop.f32.mrb[0].mxu0
      %6719 = vmatprep.mubr.f32.mxu0 0.0
      %6720 = vmatmul.mubr.f32.gmra.mrb[0].mxu0 %v6540
      %v6721 = vpop.f32.mrb[0].mxu0
      %v6722 = vadd.f32 0.0, %v6721
      %v6723 = vpop.f32.mrb[0].mxu0
      %6724 = vmatprep.mubr.f32.mxu0 0.0
      %6725 = vmatmul.mubr.f32.gmra.mrb[0].mxu0 %v6543
      %v6726 = vpop.f32.mrb[0].mxu0
      %v6727 = vadd.f32 0.0, %v6726
      %v6728 = vpop.f32.mrb[0].mxu0
      %6729 = vmatprep.mubr.f32.mxu0 0.0
      %6730 = vmatmul.mubr.f32.gmra.mrb[0].mxu0 %v6546
      %v6731 = vpop.f32.mrb[0].mxu0
      %v6732 = vadd.f32 0.0, %v6731
      %v6733 = vpop.f32.mrb[0].mxu0
      %6734 = vmatprep.mubr.f32.mxu0 0.0
      %6735 = vmatmul.mubr.f32.gmra.mrb[0].mxu0 %v6549
      %v6736 = vpop.f32.mrb[0].mxu0
      %v6737 = vadd.f32 0.0, %v6736
      %v6738 = vpop.f32.mrb[0].mxu0
      %6739 = vmatprep.mubr.f32.mxu0 0.0
      %6740 = vmatmul.mubr.f32.gmra.mrb[0].mxu0 %v6552
      %v6741 = vpop.f32.mrb[0].mxu0
      %v6742 = vadd.f32 0.0, %v6741
      %v6743 = vpop.f32.mrb[0].mxu0
      %6744 = vmatprep.mubr.f32.mxu0 0.0
      %6745 = vmatmul.mubr.f32.gmra.mrb[0].mxu0 %v6555
      %v6746 = vpop.f32.mrb[0].mxu0
      %v6747 = vadd.f32 0.0, %v6746
      %v6748 = vpop.f32.mrb[0].mxu0
      %6749 = vmatprep.mubr.f32.mxu0 0.0
      %6750 = vmatmul.mubr.f32.gmra.mrb[0].mxu0 %v6558
      %v6751 = vpop.f32.mrb[0].mxu0
      %v6752 = vadd.f32 0.0, %v6751
      %v6753 = vpop.f32.mrb[0].mxu0
      %6754 = vmatprep.mubr.f32.mxu0 0.0
      %6755 = vmatmul.mubr.f32.gmra.mrb[0].mxu0 %v6561
      %v6756 = vpop.f32.mrb[0].mxu0
      %v6757 = vadd.f32 0.0, %v6756
      %v6758 = vpop.f32.mrb[0].mxu0
      %6759 = vmatprep.mubr.f32.mxu0 0.0
      %6760 = vmatmul.mubr.f32.gmra.mrb[0].mxu0 %v6564
      %v6761 = vpop.f32.mrb[0].mxu0
      %v6762 = vadd.f32 0.0, %v6761
      %v6763 = vpop.f32.mrb[0].mxu0
      %6764 = vmatprep.mubr.f32.mxu0 0.0
      %6765 = vmatmul.mubr.f32.gmra.mrb[0].mxu0 %v6567
      %v6766 = vpop.f32.mrb[0].mxu0
      %v6767 = vadd.f32 0.0, %v6766
      %v6768 = vpop.f32.mrb[0].mxu0
      %6769 = vmatprep.mubr.f32.mxu0 0.0
      %6770 = vmatmul.mubr.f32.gmra.mrb[0].mxu0 %v6570
      %v6771 = vpop.f32.mrb[0].mxu0
      %v6772 = vadd.f32 0.0, %v6771
      %v6773 = vpop.f32.mrb[0].mxu0
      %6774 = vmatprep.mubr.f32.mxu0 0.0
      %6775 = vmatmul.mubr.f32.gmra.mrb[0].mxu0 %v6573
      %v6776 = vpop.f32.mrb[0].mxu0
      %v6777 = vadd.f32 0.0, %v6776
      %v6778 = vpop.f32.mrb[0].mxu0
      %6779 = vmatprep.mubr.f32.mxu0 0.0
      %6780 = vmatmul.mubr.f32.gmra.mrb[0].mxu0 %v6576
      %v6781 = vpop.f32.mrb[0].mxu0
      %v6782 = vadd.f32 0.0, %v6781
      %v6783 = vpop.f32.mrb[0].mxu0
      %6784 = vmatprep.mubr.f32.mxu0 0.0
      %6785 = vmatmul.mubr.f32.gmra.mrb[0].mxu0 %v6579
      %v6786 = vpop.f32.mrb[0].mxu0
      %v6787 = vadd.f32 0.0, %v6786
      %v6788 = vpop.f32.mrb[0].mxu0
      %6789 = vmatprep.mubr.f32.mxu0 0.0
      %6790 = vmatmul.mubr.f32.gmra.mrb[0].mxu0 %v6582
      %v6791 = vpop.f32.mrb[0].mxu0
      %v6792 = vadd.f32 0.0, %v6791
      %v6793 = vpop.f32.mrb[0].mxu0
      %6794 = vmatprep.mubr.f32.mxu0 0.0
      %6795 = vmatmul.mubr.f32.gmra.mrb[0].mxu0 %v6585
      %v6796 = vpop.f32.mrb[0].mxu0
      %v6797 = vadd.f32 0.0, %v6796
      %v6798 = vpop.f32.mrb[0].mxu0
      %6799 = vmatprep.mubr.f32.mxu0 0.0
      %6800 = vmatmul.mubr.f32.gmra.mrb[0].mxu0 %v6588
      %v6801 = vpop.f32.mrb[0].mxu0
      %v6802 = vadd.f32 0.0, %v6801
      %v6803 = vpop.f32.mrb[0].mxu0
      %6804 = vmatprep.mubr.f32.mxu0 0.0
      %6805 = vmatmul.mubr.f32.gmra.mrb[0].mxu0 %v6591
      %v6806 = vpop.f32.mrb[0].mxu0
      %v6807 = vadd.f32 0.0, %v6806
      %v6808 = vpop.f32.mrb[0].mxu0
      %6809 = vmatprep.mubr.f32.mxu0 0.0
      %6810 = vmatmul.mubr.f32.gmra.mrb[0].mxu0 %v6594
      %v6811 = vpop.f32.mrb[0].mxu0
      %v6812 = vadd.f32 0.0, %v6811
      %v6813 = vpop.f32.mrb[0].mxu0
      %6814 = vmatprep.mubr.f32.mxu0 0.0
      %6815 = vmatmul.mubr.f32.gmra.mrb[0].mxu0 %v6597
      %v6816 = vpop.f32.mrb[0].mxu0
      %v6817 = vadd.f32 0.0, %v6816
      %v6818 = vpop.f32.mrb[0].mxu0
      %6819 = vmatprep.mubr.f32.mxu0 0.0
      %6820 = vmatmul.mubr.f32.gmra.mrb[0].mxu0 %v6600
      %v6821 = vpop.f32.mrb[0].mxu0
      %v6822 = vadd.f32 0.0, %v6821
      %v6823 = vpop.f32.mrb[0].mxu0
      %6824 = vmatprep.mubr.f32.mxu0 0.0
      %6825 = vmatmul.mubr.f32.gmra.mrb[0].mxu0 %v6603
      %v6826 = vpop.f32.mrb[0].mxu0
      %v6827 = vadd.f32 0.0, %v6826
      %v6828 = vpop.f32.mrb[0].mxu0
      %6829 = vdwg.mxu0
      %6862 = vrot.lane.b32.xlu0 %v2513, 127
      %v6863 = vpop.permute.xlu0 %6862
      %6864 = vrot.lane.b32.xlu0 %v2518, 127
      %v6865 = vpop.permute.xlu0 %6864
      %6866 = vrot.lane.b32.xlu0 %v2523, 127
      %v6867 = vpop.permute.xlu0 %6866
      %6868 = vrot.lane.b32.xlu0 %v2528, 127
      %v6869 = vpop.permute.xlu0 %6868
      %6870 = vrot.lane.b32.xlu0 %v2533, 127
      %v6871 = vpop.permute.xlu0 %6870
      %6872 = vrot.lane.b32.xlu0 %v2538, 127
      %v6873 = vpop.permute.xlu0 %6872
      %6874 = vrot.lane.b32.xlu0 %v2543, 127
      %v6875 = vpop.permute.xlu0 %6874
      %6876 = vrot.lane.b32.xlu0 %v2548, 127
      %v6877 = vpop.permute.xlu0 %6876
      %6878 = vrot.lane.b32.xlu0 %v2553, 127
      %v6879 = vpop.permute.xlu0 %6878
      %6880 = vrot.lane.b32.xlu0 %v2558, 127
      %v6881 = vpop.permute.xlu0 %6880
      %6882 = vrot.lane.b32.xlu0 %v2563, 127
      %v6883 = vpop.permute.xlu0 %6882
      %6884 = vrot.lane.b32.xlu0 %v2568, 127
      %v6885 = vpop.permute.xlu0 %6884
      %6886 = vrot.lane.b32.xlu0 %v2573, 127
      %v6887 = vpop.permute.xlu0 %6886
      %6888 = vrot.lane.b32.xlu0 %v2578, 127
      %v6889 = vpop.permute.xlu0 %6888
      %6890 = vrot.lane.b32.xlu0 %v2583, 127
      %v6891 = vpop.permute.xlu0 %6890
      %6892 = vrot.lane.b32.xlu0 %v2588, 127
      %v6893 = vpop.permute.xlu0 %6892
      %6894 = vrot.lane.b32.xlu0 %v2593, 127
      %v6895 = vpop.permute.xlu0 %6894
      %6896 = vrot.lane.b32.xlu0 %v2598, 127
      %v6897 = vpop.permute.xlu0 %6896
      %6898 = vrot.lane.b32.xlu0 %v2603, 127
      %v6899 = vpop.permute.xlu0 %6898
      %6900 = vrot.lane.b32.xlu0 %v2608, 127
      %v6901 = vpop.permute.xlu0 %6900
      %6902 = vrot.lane.b32.xlu0 %v2613, 127
      %v6903 = vpop.permute.xlu0 %6902
      %6904 = vrot.lane.b32.xlu0 %v2618, 127
      %v6905 = vpop.permute.xlu0 %6904
      %6906 = vrot.lane.b32.xlu0 %v2623, 127
      %v6907 = vpop.permute.xlu0 %6906
      %6908 = vrot.lane.b32.xlu0 %v2628, 127
      %v6909 = vpop.permute.xlu0 %6908
      %6910 = vrot.lane.b32.xlu0 %v2633, 127
      %v6911 = vpop.permute.xlu0 %6910
      %6912 = vrot.lane.b32.xlu0 %v2638, 127
      %v6913 = vpop.permute.xlu0 %6912
      %6914 = vrot.lane.b32.xlu0 %v2643, 127
      %v6915 = vpop.permute.xlu0 %6914
      %6916 = vrot.lane.b32.xlu0 %v2648, 127
      %v6917 = vpop.permute.xlu0 %6916
      %6918 = vrot.lane.b32.xlu0 %v2653, 127
      %v6919 = vpop.permute.xlu0 %6918
      %6920 = vrot.lane.b32.xlu0 %v2658, 127
      %v6921 = vpop.permute.xlu0 %6920
      %6922 = vrot.lane.b32.xlu0 %v2663, 127
      %v6923 = vpop.permute.xlu0 %6922
      %6924 = vrot.lane.b32.xlu0 %v2668, 127
      %v6925 = vpop.permute.xlu0 %6924
      %vm6926 = vcmask 121856
      %v6927 = vsel %vm6926, %v6863, 0
      %v6929 = vsel %vm6926, %v6865, 0
      %v6931 = vsel %vm6926, %v6867, 0
      %v6933 = vsel %vm6926, %v6869, 0
      %v6935 = vsel %vm6926, %v6871, 0
      %v6937 = vsel %vm6926, %v6873, 0
      %v6939 = vsel %vm6926, %v6875, 0
      %v6941 = vsel %vm6926, %v6877, 0
      %v6943 = vsel %vm6926, %v6879, 0
      %v6945 = vsel %vm6926, %v6881, 0
      %v6947 = vsel %vm6926, %v6883, 0
      %v6949 = vsel %vm6926, %v6885, 0
      %v6951 = vsel %vm6926, %v6887, 0
      %v6953 = vsel %vm6926, %v6889, 0
      %v6955 = vsel %vm6926, %v6891, 0
      %v6957 = vsel %vm6926, %v6893, 0
      %v6959 = vsel %vm6926, %v6895, 0
      %v6961 = vsel %vm6926, %v6897, 0
      %v6963 = vsel %vm6926, %v6899, 0
      %v6965 = vsel %vm6926, %v6901, 0
      %v6967 = vsel %vm6926, %v6903, 0
      %v6969 = vsel %vm6926, %v6905, 0
      %v6971 = vsel %vm6926, %v6907, 0
      %v6973 = vsel %vm6926, %v6909, 0
      %v6975 = vsel %vm6926, %v6911, 0
      %v6977 = vsel %vm6926, %v6913, 0
      %v6979 = vsel %vm6926, %v6915, 0
      %v6981 = vsel %vm6926, %v6917, 0
      %v6983 = vsel %vm6926, %v6919, 0
      %v6985 = vsel %vm6926, %v6921, 0
      %v6987 = vsel %vm6926, %v6923, 0
      %v6989 = vsel %vm6926, %v6925, 0
      %vm6991 = vcmask 1046528
      %v6993 = vsel %vm6991, %v6501, 0
      %6995 = vmatprep.subr.mxu0 0.0
      %6996 = vmatpush1.msra.mxu0 %v6500
      %6997 = vmatprep.subr.mxu0 0.0
      %6998 = vmatpush1.msra.mxu0 %v6993
      %6999 = vmatprep.subr.mxu0 0.0
      %7000 = vmatpush1.msra.mxu0 0.0
      %7001 = vmatprep.subr.mxu0 0.0
      %7002 = vmatpush1.msra.mxu0 0.0
      %7003 = vmatprep.subr.mxu0 0.0
      %7004 = vmatpush1.msra.mxu0 0.0
      %7005 = vmatprep.subr.mxu0 0.0
      %7006 = vmatpush1.msra.mxu0 0.0
      %7007 = vmatprep.subr.mxu0 0.0
      %7008 = vmatpush1.msra.mxu0 0.0
      %7009 = vmatprep.subr.mxu0 0.0
      %7010 = vmatpush1.msra.mxu0 0.0
      %7011 = vmatprep.subr.mxu0 0.0
      %7012 = vmatpush1.msra.mxu0 0.0
      %7013 = vmatprep.subr.mxu0 0.0
      %7014 = vmatpush1.msra.mxu0 0.0
      %7015 = vmatprep.subr.mxu0 0.0
      %7016 = vmatpush1.msra.mxu0 0.0
      %7017 = vmatprep.subr.mxu0 0.0
      %7018 = vmatpush1.msra.mxu0 0.0
      %7019 = vmatprep.subr.mxu0 0.0
      %7020 = vmatpush1.msra.mxu0 0.0
      %7021 = vmatprep.subr.mxu0 0.0
      %7022 = vmatpush1.msra.mxu0 0.0
      %7023 = vmatprep.subr.mxu0 0.0
      %7024 = vmatpush1.msra.mxu0 0.0
      %7025 = vmatprep.subr.mxu0 0.0
      %7026 = vmatpush1.msra.mxu0 0.0
      %7027 = vmatprep.subr.mxu0 0.0
      %7028 = vmatpush1.msra.mxu0 0.0
      %7029 = vmatprep.subr.mxu0 0.0
      %7030 = vmatpush1.msra.mxu0 0.0
      %7031 = vmatprep.subr.mxu0 0.0
      %7032 = vmatpush1.msra.mxu0 0.0
      %7033 = vmatprep.subr.mxu0 0.0
      %7034 = vmatpush1.msra.mxu0 0.0
      %7035 = vmatprep.subr.mxu0 0.0
      %7036 = vmatpush1.msra.mxu0 0.0
      %7037 = vmatprep.subr.mxu0 0.0
      %7038 = vmatpush1.msra.mxu0 0.0
      %7039 = vmatprep.subr.mxu0 0.0
      %7040 = vmatpush1.msra.mxu0 0.0
      %7041 = vmatprep.subr.mxu0 0.0
      %7042 = vmatpush1.msra.mxu0 0.0
      %7043 = vmatprep.subr.mxu0 0.0
      %7044 = vmatpush1.msra.mxu0 0.0
      %7045 = vmatprep.subr.mxu0 0.0
      %7046 = vmatpush1.msra.mxu0 0.0
      %7047 = vmatprep.subr.mxu0 0.0
      %7048 = vmatpush1.msra.mxu0 0.0
      %7049 = vmatprep.subr.mxu0 0.0
      %7050 = vmatpush1.msra.mxu0 0.0
      %7051 = vmatprep.subr.mxu0 0.0
      %7052 = vmatpush1.msra.mxu0 0.0
      %7053 = vmatprep.subr.mxu0 0.0
      %7054 = vmatpush1.msra.mxu0 0.0
      %7055 = vmatprep.subr.mxu0 0.0
      %7056 = vmatpush1.msra.mxu0 0.0
      %7057 = vmatprep.subr.mxu0 0.0
      %7058 = vmatpush1.msra.mxu0 0.0
      %7059 = vmatprep.mubr.f32.mxu0 0.0
      %7060 = vmatmul.mubr.f32.gmra.mrb[0].mxu0 %v6927
      %v7061 = vpop.f32.mrb[0].mxu0
      %v7062 = vadd.f32 %v6672, %v7061
      %v7063 = vpop.f32.mrb[0].mxu0
      %7064 = vmatprep.mubr.f32.mxu0 0.0
      %7065 = vmatmul.mubr.f32.gmra.mrb[0].mxu0 %v6929
      %v7066 = vpop.f32.mrb[0].mxu0
      %v7067 = vadd.f32 %v6677, %v7066
      %v7068 = vpop.f32.mrb[0].mxu0
      %7069 = vmatprep.mubr.f32.mxu0 0.0
      %7070 = vmatmul.mubr.f32.gmra.mrb[0].mxu0 %v6931
      %v7071 = vpop.f32.mrb[0].mxu0
      %v7072 = vadd.f32 %v6682, %v7071
      %v7073 = vpop.f32.mrb[0].mxu0
      %7074 = vmatprep.mubr.f32.mxu0 0.0
      %7075 = vmatmul.mubr.f32.gmra.mrb[0].mxu0 %v6933
      %v7076 = vpop.f32.mrb[0].mxu0
      %v7077 = vadd.f32 %v6687, %v7076
      %v7078 = vpop.f32.mrb[0].mxu0
      %7079 = vmatprep.mubr.f32.mxu0 0.0
      %7080 = vmatmul.mubr.f32.gmra.mrb[0].mxu0 %v6935
      %v7081 = vpop.f32.mrb[0].mxu0
      %v7082 = vadd.f32 %v6692, %v7081
      %v7083 = vpop.f32.mrb[0].mxu0
      %7084 = vmatprep.mubr.f32.mxu0 0.0
      %7085 = vmatmul.mubr.f32.gmra.mrb[0].mxu0 %v6937
      %v7086 = vpop.f32.mrb[0].mxu0
      %v7087 = vadd.f32 %v6697, %v7086
      %v7088 = vpop.f32.mrb[0].mxu0
      %7089 = vmatprep.mubr.f32.mxu0 0.0
      %7090 = vmatmul.mubr.f32.gmra.mrb[0].mxu0 %v6939
      %v7091 = vpop.f32.mrb[0].mxu0
      %v7092 = vadd.f32 %v6702, %v7091
      %v7093 = vpop.f32.mrb[0].mxu0
      %7094 = vmatprep.mubr.f32.mxu0 0.0
      %7095 = vmatmul.mubr.f32.gmra.mrb[0].mxu0 %v6941
      %v7096 = vpop.f32.mrb[0].mxu0
      %v7097 = vadd.f32 %v6707, %v7096
      %v7098 = vpop.f32.mrb[0].mxu0
      %7099 = vmatprep.mubr.f32.mxu0 0.0
      %7100 = vmatmul.mubr.f32.gmra.mrb[0].mxu0 %v6943
      %v7101 = vpop.f32.mrb[0].mxu0
      %v7102 = vadd.f32 %v6712, %v7101
      %v7103 = vpop.f32.mrb[0].mxu0
      %7104 = vmatprep.mubr.f32.mxu0 0.0
      %7105 = vmatmul.mubr.f32.gmra.mrb[0].mxu0 %v6945
      %v7106 = vpop.f32.mrb[0].mxu0
      %v7107 = vadd.f32 %v6717, %v7106
      %v7108 = vpop.f32.mrb[0].mxu0
      %7109 = vmatprep.mubr.f32.mxu0 0.0
      %7110 = vmatmul.mubr.f32.gmra.mrb[0].mxu0 %v6947
      %v7111 = vpop.f32.mrb[0].mxu0
      %v7112 = vadd.f32 %v6722, %v7111
      %v7113 = vpop.f32.mrb[0].mxu0
      %7114 = vmatprep.mubr.f32.mxu0 0.0
      %7115 = vmatmul.mubr.f32.gmra.mrb[0].mxu0 %v6949
      %v7116 = vpop.f32.mrb[0].mxu0
      %v7117 = vadd.f32 %v6727, %v7116
      %v7118 = vpop.f32.mrb[0].mxu0
      %7119 = vmatprep.mubr.f32.mxu0 0.0
      %7120 = vmatmul.mubr.f32.gmra.mrb[0].mxu0 %v6951
      %v7121 = vpop.f32.mrb[0].mxu0
      %v7122 = vadd.f32 %v6732, %v7121
      %v7123 = vpop.f32.mrb[0].mxu0
      %7124 = vmatprep.mubr.f32.mxu0 0.0
      %7125 = vmatmul.mubr.f32.gmra.mrb[0].mxu0 %v6953
      %v7126 = vpop.f32.mrb[0].mxu0
      %v7127 = vadd.f32 %v6737, %v7126
      %v7128 = vpop.f32.mrb[0].mxu0
      %7129 = vmatprep.mubr.f32.mxu0 0.0
      %7130 = vmatmul.mubr.f32.gmra.mrb[0].mxu0 %v6955
      %v7131 = vpop.f32.mrb[0].mxu0
      %v7132 = vadd.f32 %v6742, %v7131
      %v7133 = vpop.f32.mrb[0].mxu0
      %7134 = vmatprep.mubr.f32.mxu0 0.0
      %7135 = vmatmul.mubr.f32.gmra.mrb[0].mxu0 %v6957
      %v7136 = vpop.f32.mrb[0].mxu0
      %v7137 = vadd.f32 %v6747, %v7136
      %v7138 = vpop.f32.mrb[0].mxu0
      %7139 = vmatprep.mubr.f32.mxu0 0.0
      %7140 = vmatmul.mubr.f32.gmra.mrb[0].mxu0 %v6959
      %v7141 = vpop.f32.mrb[0].mxu0
      %v7142 = vadd.f32 %v6752, %v7141
      %v7143 = vpop.f32.mrb[0].mxu0
      %7144 = vmatprep.mubr.f32.mxu0 0.0
      %7145 = vmatmul.mubr.f32.gmra.mrb[0].mxu0 %v6961
      %v7146 = vpop.f32.mrb[0].mxu0
      %v7147 = vadd.f32 %v6757, %v7146
      %v7148 = vpop.f32.mrb[0].mxu0
      %7149 = vmatprep.mubr.f32.mxu0 0.0
      %7150 = vmatmul.mubr.f32.gmra.mrb[0].mxu0 %v6963
      %v7151 = vpop.f32.mrb[0].mxu0
      %v7152 = vadd.f32 %v6762, %v7151
      %v7153 = vpop.f32.mrb[0].mxu0
      %7154 = vmatprep.mubr.f32.mxu0 0.0
      %7155 = vmatmul.mubr.f32.gmra.mrb[0].mxu0 %v6965
      %v7156 = vpop.f32.mrb[0].mxu0
      %v7157 = vadd.f32 %v6767, %v7156
      %v7158 = vpop.f32.mrb[0].mxu0
      %7159 = vmatprep.mubr.f32.mxu0 0.0
      %7160 = vmatmul.mubr.f32.gmra.mrb[0].mxu0 %v6967
      %v7161 = vpop.f32.mrb[0].mxu0
      %v7162 = vadd.f32 %v6772, %v7161
      %v7163 = vpop.f32.mrb[0].mxu0
      %7164 = vmatprep.mubr.f32.mxu0 0.0
      %7165 = vmatmul.mubr.f32.gmra.mrb[0].mxu0 %v6969
      %v7166 = vpop.f32.mrb[0].mxu0
      %v7167 = vadd.f32 %v6777, %v7166
      %v7168 = vpop.f32.mrb[0].mxu0
      %7169 = vmatprep.mubr.f32.mxu0 0.0
      %7170 = vmatmul.mubr.f32.gmra.mrb[0].mxu0 %v6971
      %v7171 = vpop.f32.mrb[0].mxu0
      %v7172 = vadd.f32 %v6782, %v7171
      %v7173 = vpop.f32.mrb[0].mxu0
      %7174 = vmatprep.mubr.f32.mxu0 0.0
      %7175 = vmatmul.mubr.f32.gmra.mrb[0].mxu0 %v6973
      %v7176 = vpop.f32.mrb[0].mxu0
      %v7177 = vadd.f32 %v6787, %v7176
      %v7178 = vpop.f32.mrb[0].mxu0
      %7179 = vmatprep.mubr.f32.mxu0 0.0
      %7180 = vmatmul.mubr.f32.gmra.mrb[0].mxu0 %v6975
      %v7181 = vpop.f32.mrb[0].mxu0
      %v7182 = vadd.f32 %v6792, %v7181
      %v7183 = vpop.f32.mrb[0].mxu0
      %7184 = vmatprep.mubr.f32.mxu0 0.0
      %7185 = vmatmul.mubr.f32.gmra.mrb[0].mxu0 %v6977
      %v7186 = vpop.f32.mrb[0].mxu0
      %v7187 = vadd.f32 %v6797, %v7186
      %v7188 = vpop.f32.mrb[0].mxu0
      %7189 = vmatprep.mubr.f32.mxu0 0.0
      %7190 = vmatmul.mubr.f32.gmra.mrb[0].mxu0 %v6979
      %v7191 = vpop.f32.mrb[0].mxu0
      %v7192 = vadd.f32 %v6802, %v7191
      %v7193 = vpop.f32.mrb[0].mxu0
      %7194 = vmatprep.mubr.f32.mxu0 0.0
      %7195 = vmatmul.mubr.f32.gmra.mrb[0].mxu0 %v6981
      %v7196 = vpop.f32.mrb[0].mxu0
      %v7197 = vadd.f32 %v6807, %v7196
      %v7198 = vpop.f32.mrb[0].mxu0
      %7199 = vmatprep.mubr.f32.mxu0 0.0
      %7200 = vmatmul.mubr.f32.gmra.mrb[0].mxu0 %v6983
      %v7201 = vpop.f32.mrb[0].mxu0
      %v7202 = vadd.f32 %v6812, %v7201
      %v7203 = vpop.f32.mrb[0].mxu0
      %7204 = vmatprep.mubr.f32.mxu0 0.0
      %7205 = vmatmul.mubr.f32.gmra.mrb[0].mxu0 %v6985
      %v7206 = vpop.f32.mrb[0].mxu0
      %v7207 = vadd.f32 %v6817, %v7206
      %v7208 = vpop.f32.mrb[0].mxu0
      %7209 = vmatprep.mubr.f32.mxu0 0.0
      %7210 = vmatmul.mubr.f32.gmra.mrb[0].mxu0 %v6987
      %v7211 = vpop.f32.mrb[0].mxu0
      %v7212 = vadd.f32 %v6822, %v7211
      %v7213 = vpop.f32.mrb[0].mxu0
      %7214 = vmatprep.mubr.f32.mxu0 0.0
      %7215 = vmatmul.mubr.f32.gmra.mrb[0].mxu0 %v6989
      %v7216 = vpop.f32.mrb[0].mxu0
      %v7217 = vadd.f32 %v6827, %v7216
      %v7218 = vpop.f32.mrb[0].mxu0
      %7219 = vdwg.mxu0
      %v7220 = vld [vmem:[%s1 + $0xe8] sm:$0x1]
      %v7221 = vlaneseq
      %v7222 = vshrl.u32 %v7221, 7
      %v7223 = vsub.s32 0, %v7222
      %v7224 = vrot.slane %v7220, %v7223
      %v7225 = vadd.f32 %v7062, %v7224
      %v7226 = vadd.f32 %v7067, %v7224
      %v7227 = vadd.f32 %v7072, %v7224
      %v7228 = vadd.f32 %v7077, %v7224
      %v7229 = vadd.f32 %v7082, %v7224
      %v7230 = vadd.f32 %v7087, %v7224
      %v7231 = vadd.f32 %v7092, %v7224
      %v7232 = vadd.f32 %v7097, %v7224
      %v7233 = vadd.f32 %v7102, %v7224
      %v7234 = vadd.f32 %v7107, %v7224
      %v7235 = vadd.f32 %v7112, %v7224
      %v7236 = vadd.f32 %v7117, %v7224
      %v7237 = vadd.f32 %v7122, %v7224
      %v7238 = vadd.f32 %v7127, %v7224
      %v7239 = vadd.f32 %v7132, %v7224
      %v7240 = vadd.f32 %v7137, %v7224
      %v7241 = vadd.f32 %v7142, %v7224
      %v7242 = vadd.f32 %v7147, %v7224
      %v7243 = vadd.f32 %v7152, %v7224
      %v7244 = vadd.f32 %v7157, %v7224
      %v7245 = vadd.f32 %v7162, %v7224
      %v7246 = vadd.f32 %v7167, %v7224
      %v7247 = vadd.f32 %v7172, %v7224
      %v7248 = vadd.f32 %v7177, %v7224
      %v7249 = vadd.f32 %v7182, %v7224
      %v7250 = vadd.f32 %v7187, %v7224
      %v7251 = vadd.f32 %v7192, %v7224
      %v7252 = vadd.f32 %v7197, %v7224
      %v7253 = vadd.f32 %v7202, %v7224
      %v7254 = vadd.f32 %v7207, %v7224
      %v7255 = vadd.f32 %v7212, %v7224
      %v7256 = vadd.f32 %v7217, %v7224
      %v7257 = vmax.f32 %v7225, 0.0
      %v7258 = vmax.f32 %v7226, 0.0
      %v7259 = vmax.f32 %v7227, 0.0
      %v7260 = vmax.f32 %v7228, 0.0
      %v7261 = vmax.f32 %v7229, 0.0
      %v7262 = vmax.f32 %v7230, 0.0
      %v7263 = vmax.f32 %v7231, 0.0
      %v7264 = vmax.f32 %v7232, 0.0
      %v7265 = vmax.f32 %v7233, 0.0
      %v7266 = vmax.f32 %v7234, 0.0
      %v7267 = vmax.f32 %v7235, 0.0
      %v7268 = vmax.f32 %v7236, 0.0
      %v7269 = vmax.f32 %v7237, 0.0
      %v7270 = vmax.f32 %v7238, 0.0
      %v7271 = vmax.f32 %v7239, 0.0
      %v7272 = vmax.f32 %v7240, 0.0
      %v7273 = vmax.f32 %v7241, 0.0
      %v7274 = vmax.f32 %v7242, 0.0
      %v7275 = vmax.f32 %v7243, 0.0
      %v7276 = vmax.f32 %v7244, 0.0
      %v7277 = vmax.f32 %v7245, 0.0
      %v7278 = vmax.f32 %v7246, 0.0
      %v7279 = vmax.f32 %v7247, 0.0
      %v7280 = vmax.f32 %v7248, 0.0
      %v7281 = vmax.f32 %v7249, 0.0
      %v7282 = vmax.f32 %v7250, 0.0
      %v7283 = vmax.f32 %v7251, 0.0
      %v7284 = vmax.f32 %v7252, 0.0
      %v7285 = vmax.f32 %v7253, 0.0
      %v7286 = vmax.f32 %v7254, 0.0
      %v7287 = vmax.f32 %v7255, 0.0
      %v7288 = vmax.f32 %v7256, 0.0
      %v7289 = vld [vmem:[%s1 + $0xf0] sm:$0xff]
      %v7290 = vld [vmem:[%s1 + $0xf8] sm:$0xff]
      %v7291 = vld [vmem:[%s1 + $0x100] sm:$0x1]
      %v7292 = vlaneseq
      %v7293 = vshrl.u32 %v7292, 7
      %v7294 = vsub.s32 0, %v7293
      %v7295 = vrot.slane %v7291, %v7294
      %v7297 = vsel %vm1989, %v7257, 0
      %v7300 = vsel %vm1989, %v7258, 0
      %v7303 = vsel %vm1989, %v7259, 0
      %v7306 = vsel %vm1989, %v7260, 0
      %v7309 = vsel %vm1989, %v7261, 0
      %v7312 = vsel %vm1989, %v7262, 0
      %v7315 = vsel %vm1989, %v7263, 0
      %v7318 = vsel %vm1989, %v7264, 0
      %v7321 = vsel %vm1989, %v7265, 0
      %v7324 = vsel %vm1989, %v7266, 0
      %v7327 = vsel %vm1989, %v7267, 0
      %v7330 = vsel %vm1989, %v7268, 0
      %v7333 = vsel %vm1989, %v7269, 0
      %v7336 = vsel %vm1989, %v7270, 0
      %v7339 = vsel %vm1989, %v7271, 0
      %v7342 = vsel %vm1989, %v7272, 0
      %v7345 = vsel %vm1989, %v7273, 0
      %v7348 = vsel %vm1989, %v7274, 0
      %v7351 = vsel %vm1989, %v7275, 0
      %v7354 = vsel %vm1989, %v7276, 0
      %v7357 = vsel %vm1989, %v7277, 0
      %v7360 = vsel %vm1989, %v7278, 0
      %v7363 = vsel %vm1989, %v7279, 0
      %v7366 = vsel %vm1989, %v7280, 0
      %v7369 = vsel %vm1989, %v7281, 0
      %v7372 = vsel %vm1989, %v7282, 0
      %v7375 = vsel %vm1989, %v7283, 0
      %v7378 = vsel %vm1989, %v7284, 0
      %v7381 = vsel %vm1989, %v7285, 0
      %v7384 = vsel %vm1989, %v7286, 0
      %v7387 = vsel %vm1989, %v7287, 0
      %v7390 = vsel %vm1989, %v7288, 0
      %7392 = vmatprep.subr.mxu0 0.0
      %7393 = vmatpush1.msra.mxu0 %v7289
      %7394 = vmatprep.subr.mxu0 0.0
      %7395 = vmatpush1.msra.mxu0 %v7290
      %7396 = vmatprep.subr.mxu0 0.0
      %7397 = vmatpush1.msra.mxu0 0.0
      %7398 = vmatprep.subr.mxu0 0.0
      %7399 = vmatpush1.msra.mxu0 0.0
      %7400 = vmatprep.subr.mxu0 0.0
      %7401 = vmatpush1.msra.mxu0 0.0
      %7402 = vmatprep.subr.mxu0 0.0
      %7403 = vmatpush1.msra.mxu0 0.0
      %7404 = vmatprep.subr.mxu0 0.0
      %7405 = vmatpush1.msra.mxu0 0.0
      %7406 = vmatprep.subr.mxu0 0.0
      %7407 = vmatpush1.msra.mxu0 0.0
      %7408 = vmatprep.subr.mxu0 0.0
      %7409 = vmatpush1.msra.mxu0 0.0
      %7410 = vmatprep.subr.mxu0 0.0
      %7411 = vmatpush1.msra.mxu0 0.0
      %7412 = vmatprep.subr.mxu0 0.0
      %7413 = vmatpush1.msra.mxu0 0.0
      %7414 = vmatprep.subr.mxu0 0.0
      %7415 = vmatpush1.msra.mxu0 0.0
      %7416 = vmatprep.subr.mxu0 0.0
      %7417 = vmatpush1.msra.mxu0 0.0
      %7418 = vmatprep.subr.mxu0 0.0
      %7419 = vmatpush1.msra.mxu0 0.0
      %7420 = vmatprep.subr.mxu0 0.0
      %7421 = vmatpush1.msra.mxu0 0.0
      %7422 = vmatprep.subr.mxu0 0.0
      %7423 = vmatpush1.msra.mxu0 0.0
      %7424 = vmatprep.subr.mxu0 0.0
      %7425 = vmatpush1.msra.mxu0 0.0
      %7426 = vmatprep.subr.mxu0 0.0
      %7427 = vmatpush1.msra.mxu0 0.0
      %7428 = vmatprep.subr.mxu0 0.0
      %7429 = vmatpush1.msra.mxu0 0.0
      %7430 = vmatprep.subr.mxu0 0.0
      %7431 = vmatpush1.msra.mxu0 0.0
      %7432 = vmatprep.subr.mxu0 0.0
      %7433 = vmatpush1.msra.mxu0 0.0
      %7434 = vmatprep.subr.mxu0 0.0
      %7435 = vmatpush1.msra.mxu0 0.0
      %7436 = vmatprep.subr.mxu0 0.0
      %7437 = vmatpush1.msra.mxu0 0.0
      %7438 = vmatprep.subr.mxu0 0.0
      %7439 = vmatpush1.msra.mxu0 0.0
      %7440 = vmatprep.subr.mxu0 0.0
      %7441 = vmatpush1.msra.mxu0 0.0
      %7442 = vmatprep.subr.mxu0 0.0
      %7443 = vmatpush1.msra.mxu0 0.0
      %7444 = vmatprep.subr.mxu0 0.0
      %7445 = vmatpush1.msra.mxu0 0.0
      %7446 = vmatprep.subr.mxu0 0.0
      %7447 = vmatpush1.msra.mxu0 0.0
      %7448 = vmatprep.subr.mxu0 0.0
      %7449 = vmatpush1.msra.mxu0 0.0
      %7450 = vmatprep.subr.mxu0 0.0
      %7451 = vmatpush1.msra.mxu0 0.0
      %7452 = vmatprep.subr.mxu0 0.0
      %7453 = vmatpush1.msra.mxu0 0.0
      %7454 = vmatprep.subr.mxu0 0.0
      %7455 = vmatpush1.msra.mxu0 0.0
      %7456 = vmatprep.mubr.f32.mxu0 0.0
      %7457 = vmatmul.mubr.f32.gmra.mrb[0].mxu0 %v7297
      %v7458 = vpop.f32.mrb[0].mxu0
      %v7459 = vadd.f32 %v7295, %v7458
      %v7460 = vpop.f32.mrb[0].mxu0
      %7461 = vmatprep.mubr.f32.mxu0 0.0
      %7462 = vmatmul.mubr.f32.gmra.mrb[0].mxu0 %v7300
      %v7463 = vpop.f32.mrb[0].mxu0
      %v7464 = vadd.f32 %v7295, %v7463
      %v7465 = vpop.f32.mrb[0].mxu0
      %7466 = vmatprep.mubr.f32.mxu0 0.0
      %7467 = vmatmul.mubr.f32.gmra.mrb[0].mxu0 %v7303
      %v7468 = vpop.f32.mrb[0].mxu0
      %v7469 = vadd.f32 %v7295, %v7468
      %v7470 = vpop.f32.mrb[0].mxu0
      %7471 = vmatprep.mubr.f32.mxu0 0.0
      %7472 = vmatmul.mubr.f32.gmra.mrb[0].mxu0 %v7306
      %v7473 = vpop.f32.mrb[0].mxu0
      %v7474 = vadd.f32 %v7295, %v7473
      %v7475 = vpop.f32.mrb[0].mxu0
      %7476 = vmatprep.mubr.f32.mxu0 0.0
      %7477 = vmatmul.mubr.f32.gmra.mrb[0].mxu0 %v7309
      %v7478 = vpop.f32.mrb[0].mxu0
      %v7479 = vadd.f32 %v7295, %v7478
      %v7480 = vpop.f32.mrb[0].mxu0
      %7481 = vmatprep.mubr.f32.mxu0 0.0
      %7482 = vmatmul.mubr.f32.gmra.mrb[0].mxu0 %v7312
      %v7483 = vpop.f32.mrb[0].mxu0
      %v7484 = vadd.f32 %v7295, %v7483
      %v7485 = vpop.f32.mrb[0].mxu0
      %7486 = vmatprep.mubr.f32.mxu0 0.0
      %7487 = vmatmul.mubr.f32.gmra.mrb[0].mxu0 %v7315
      %v7488 = vpop.f32.mrb[0].mxu0
      %v7489 = vadd.f32 %v7295, %v7488
      %v7490 = vpop.f32.mrb[0].mxu0
      %7491 = vmatprep.mubr.f32.mxu0 0.0
      %7492 = vmatmul.mubr.f32.gmra.mrb[0].mxu0 %v7318
      %v7493 = vpop.f32.mrb[0].mxu0
      %v7494 = vadd.f32 %v7295, %v7493
      %v7495 = vpop.f32.mrb[0].mxu0
      %7496 = vmatprep.mubr.f32.mxu0 0.0
      %7497 = vmatmul.mubr.f32.gmra.mrb[0].mxu0 %v7321
      %v7498 = vpop.f32.mrb[0].mxu0
      %v7499 = vadd.f32 %v7295, %v7498
      %v7500 = vpop.f32.mrb[0].mxu0
      %7501 = vmatprep.mubr.f32.mxu0 0.0
      %7502 = vmatmul.mubr.f32.gmra.mrb[0].mxu0 %v7324
      %v7503 = vpop.f32.mrb[0].mxu0
      %v7504 = vadd.f32 %v7295, %v7503
      %v7505 = vpop.f32.mrb[0].mxu0
      %7506 = vmatprep.mubr.f32.mxu0 0.0
      %7507 = vmatmul.mubr.f32.gmra.mrb[0].mxu0 %v7327
      %v7508 = vpop.f32.mrb[0].mxu0
      %v7509 = vadd.f32 %v7295, %v7508
      %v7510 = vpop.f32.mrb[0].mxu0
      %7511 = vmatprep.mubr.f32.mxu0 0.0
      %7512 = vmatmul.mubr.f32.gmra.mrb[0].mxu0 %v7330
      %v7513 = vpop.f32.mrb[0].mxu0
      %v7514 = vadd.f32 %v7295, %v7513
      %v7515 = vpop.f32.mrb[0].mxu0
      %7516 = vmatprep.mubr.f32.mxu0 0.0
      %7517 = vmatmul.mubr.f32.gmra.mrb[0].mxu0 %v7333
      %v7518 = vpop.f32.mrb[0].mxu0
      %v7519 = vadd.f32 %v7295, %v7518
      %v7520 = vpop.f32.mrb[0].mxu0
      %7521 = vmatprep.mubr.f32.mxu0 0.0
      %7522 = vmatmul.mubr.f32.gmra.mrb[0].mxu0 %v7336
      %v7523 = vpop.f32.mrb[0].mxu0
      %v7524 = vadd.f32 %v7295, %v7523
      %v7525 = vpop.f32.mrb[0].mxu0
      %7526 = vmatprep.mubr.f32.mxu0 0.0
      %7527 = vmatmul.mubr.f32.gmra.mrb[0].mxu0 %v7339
      %v7528 = vpop.f32.mrb[0].mxu0
      %v7529 = vadd.f32 %v7295, %v7528
      %v7530 = vpop.f32.mrb[0].mxu0
      %7531 = vmatprep.mubr.f32.mxu0 0.0
      %7532 = vmatmul.mubr.f32.gmra.mrb[0].mxu0 %v7342
      %v7533 = vpop.f32.mrb[0].mxu0
      %v7534 = vadd.f32 %v7295, %v7533
      %v7535 = vpop.f32.mrb[0].mxu0
      %7536 = vmatprep.mubr.f32.mxu0 0.0
      %7537 = vmatmul.mubr.f32.gmra.mrb[0].mxu0 %v7345
      %v7538 = vpop.f32.mrb[0].mxu0
      %v7539 = vadd.f32 %v7295, %v7538
      %v7540 = vpop.f32.mrb[0].mxu0
      %7541 = vmatprep.mubr.f32.mxu0 0.0
      %7542 = vmatmul.mubr.f32.gmra.mrb[0].mxu0 %v7348
      %v7543 = vpop.f32.mrb[0].mxu0
      %v7544 = vadd.f32 %v7295, %v7543
      %v7545 = vpop.f32.mrb[0].mxu0
      %7546 = vmatprep.mubr.f32.mxu0 0.0
      %7547 = vmatmul.mubr.f32.gmra.mrb[0].mxu0 %v7351
      %v7548 = vpop.f32.mrb[0].mxu0
      %v7549 = vadd.f32 %v7295, %v7548
      %v7550 = vpop.f32.mrb[0].mxu0
      %7551 = vmatprep.mubr.f32.mxu0 0.0
      %7552 = vmatmul.mubr.f32.gmra.mrb[0].mxu0 %v7354
      %v7553 = vpop.f32.mrb[0].mxu0
      %v7554 = vadd.f32 %v7295, %v7553
      %v7555 = vpop.f32.mrb[0].mxu0
      %7556 = vmatprep.mubr.f32.mxu0 0.0
      %7557 = vmatmul.mubr.f32.gmra.mrb[0].mxu0 %v7357
      %v7558 = vpop.f32.mrb[0].mxu0
      %v7559 = vadd.f32 %v7295, %v7558
      %v7560 = vpop.f32.mrb[0].mxu0
      %7561 = vmatprep.mubr.f32.mxu0 0.0
      %7562 = vmatmul.mubr.f32.gmra.mrb[0].mxu0 %v7360
      %v7563 = vpop.f32.mrb[0].mxu0
      %v7564 = vadd.f32 %v7295, %v7563
      %v7565 = vpop.f32.mrb[0].mxu0
      %7566 = vmatprep.mubr.f32.mxu0 0.0
      %7567 = vmatmul.mubr.f32.gmra.mrb[0].mxu0 %v7363
      %v7568 = vpop.f32.mrb[0].mxu0
      %v7569 = vadd.f32 %v7295, %v7568
      %v7570 = vpop.f32.mrb[0].mxu0
      %7571 = vmatprep.mubr.f32.mxu0 0.0
      %7572 = vmatmul.mubr.f32.gmra.mrb[0].mxu0 %v7366
      %v7573 = vpop.f32.mrb[0].mxu0
      %v7574 = vadd.f32 %v7295, %v7573
      %v7575 = vpop.f32.mrb[0].mxu0
      %7576 = vmatprep.mubr.f32.mxu0 0.0
      %7577 = vmatmul.mubr.f32.gmra.mrb[0].mxu0 %v7369
      %v7578 = vpop.f32.mrb[0].mxu0
      %v7579 = vadd.f32 %v7295, %v7578
      %v7580 = vpop.f32.mrb[0].mxu0
      %7581 = vmatprep.mubr.f32.mxu0 0.0
      %7582 = vmatmul.mubr.f32.gmra.mrb[0].mxu0 %v7372
      %v7583 = vpop.f32.mrb[0].mxu0
      %v7584 = vadd.f32 %v7295, %v7583
      %v7585 = vpop.f32.mrb[0].mxu0
      %7586 = vmatprep.mubr.f32.mxu0 0.0
      %7587 = vmatmul.mubr.f32.gmra.mrb[0].mxu0 %v7375
      %v7588 = vpop.f32.mrb[0].mxu0
      %v7589 = vadd.f32 %v7295, %v7588
      %v7590 = vpop.f32.mrb[0].mxu0
      %7591 = vmatprep.mubr.f32.mxu0 0.0
      %7592 = vmatmul.mubr.f32.gmra.mrb[0].mxu0 %v7378
      %v7593 = vpop.f32.mrb[0].mxu0
      %v7594 = vadd.f32 %v7295, %v7593
      %v7595 = vpop.f32.mrb[0].mxu0
      %7596 = vmatprep.mubr.f32.mxu0 0.0
      %7597 = vmatmul.mubr.f32.gmra.mrb[0].mxu0 %v7381
      %v7598 = vpop.f32.mrb[0].mxu0
      %v7599 = vadd.f32 %v7295, %v7598
      %v7600 = vpop.f32.mrb[0].mxu0
      %7601 = vmatprep.mubr.f32.mxu0 0.0
      %7602 = vmatmul.mubr.f32.gmra.mrb[0].mxu0 %v7384
      %v7603 = vpop.f32.mrb[0].mxu0
      %v7604 = vadd.f32 %v7295, %v7603
      %v7605 = vpop.f32.mrb[0].mxu0
      %7606 = vmatprep.mubr.f32.mxu0 0.0
      %7607 = vmatmul.mubr.f32.gmra.mrb[0].mxu0 %v7387
      %v7608 = vpop.f32.mrb[0].mxu0
      %v7609 = vadd.f32 %v7295, %v7608
      %v7610 = vpop.f32.mrb[0].mxu0
      %7611 = vmatprep.mubr.f32.mxu0 0.0
      %7612 = vmatmul.mubr.f32.gmra.mrb[0].mxu0 %v7390
      %v7613 = vpop.f32.mrb[0].mxu0
      %v7614 = vadd.f32 %v7295, %v7613
      %v7615 = vpop.f32.mrb[0].mxu0
      %7616 = vdwg.mxu0
      %v7617 = vmax.f32 %v7459, 0.0
      %v7618 = vmax.f32 %v7464, 0.0
      %v7619 = vmax.f32 %v7469, 0.0
      %v7620 = vmax.f32 %v7474, 0.0
      %v7621 = vmax.f32 %v7479, 0.0
      %v7622 = vmax.f32 %v7484, 0.0
      %v7623 = vmax.f32 %v7489, 0.0
      %v7624 = vmax.f32 %v7494, 0.0
      %v7625 = vmax.f32 %v7499, 0.0
      %v7626 = vmax.f32 %v7504, 0.0
      %v7627 = vmax.f32 %v7509, 0.0
      %v7628 = vmax.f32 %v7514, 0.0
      %v7629 = vmax.f32 %v7519, 0.0
      %v7630 = vmax.f32 %v7524, 0.0
      %v7631 = vmax.f32 %v7529, 0.0
      %v7632 = vmax.f32 %v7534, 0.0
      %v7633 = vmax.f32 %v7539, 0.0
      %v7634 = vmax.f32 %v7544, 0.0
      %v7635 = vmax.f32 %v7549, 0.0
      %v7636 = vmax.f32 %v7554, 0.0
      %v7637 = vmax.f32 %v7559, 0.0
      %v7638 = vmax.f32 %v7564, 0.0
      %v7639 = vmax.f32 %v7569, 0.0
      %v7640 = vmax.f32 %v7574, 0.0
      %v7641 = vmax.f32 %v7579, 0.0
      %v7642 = vmax.f32 %v7584, 0.0
      %v7643 = vmax.f32 %v7589, 0.0
      %v7644 = vmax.f32 %v7594, 0.0
      %v7645 = vmax.f32 %v7599, 0.0
      %v7646 = vmax.f32 %v7604, 0.0
      %v7647 = vmax.f32 %v7609, 0.0
      %v7648 = vmax.f32 %v7614, 0.0
      %v7649 = vld [vmem:[%s1 + $0x108] sm:$0xff]
      %v7650 = vld [vmem:[%s1 + $0x110] sm:$0xff]
      %v7651 = vld [vmem:[%s1 + $0x118] sm:$0x1]
      %v7652 = vlaneseq
      %v7653 = vshrl.u32 %v7652, 7
      %v7654 = vsub.s32 0, %v7653
      %v7655 = vrot.slane %v7651, %v7654
      %v7657 = vsel %vm1989, %v7617, 0
      %v7660 = vsel %vm1989, %v7618, 0
      %v7663 = vsel %vm1989, %v7619, 0
      %v7666 = vsel %vm1989, %v7620, 0
      %v7669 = vsel %vm1989, %v7621, 0
      %v7672 = vsel %vm1989, %v7622, 0
      %v7675 = vsel %vm1989, %v7623, 0
      %v7678 = vsel %vm1989, %v7624, 0
      %v7681 = vsel %vm1989, %v7625, 0
      %v7684 = vsel %vm1989, %v7626, 0
      %v7687 = vsel %vm1989, %v7627, 0
      %v7690 = vsel %vm1989, %v7628, 0
      %v7693 = vsel %vm1989, %v7629, 0
      %v7696 = vsel %vm1989, %v7630, 0
      %v7699 = vsel %vm1989, %v7631, 0
      %v7702 = vsel %vm1989, %v7632, 0
      %v7705 = vsel %vm1989, %v7633, 0
      %v7708 = vsel %vm1989, %v7634, 0
      %v7711 = vsel %vm1989, %v7635, 0
      %v7714 = vsel %vm1989, %v7636, 0
      %v7717 = vsel %vm1989, %v7637, 0
      %v7720 = vsel %vm1989, %v7638, 0
      %v7723 = vsel %vm1989, %v7639, 0
      %v7726 = vsel %vm1989, %v7640, 0
      %v7729 = vsel %vm1989, %v7641, 0
      %v7732 = vsel %vm1989, %v7642, 0
      %v7735 = vsel %vm1989, %v7643, 0
      %v7738 = vsel %vm1989, %v7644, 0
      %v7741 = vsel %vm1989, %v7645, 0
      %v7744 = vsel %vm1989, %v7646, 0
      %v7747 = vsel %vm1989, %v7647, 0
      %v7750 = vsel %vm1989, %v7648, 0
      %7752 = vmatprep.subr.mxu0 0.0
      %7753 = vmatpush1.msra.mxu0 %v7649
      %7754 = vmatprep.subr.mxu0 0.0
      %7755 = vmatpush1.msra.mxu0 %v7650
      %7756 = vmatprep.subr.mxu0 0.0
      %7757 = vmatpush1.msra.mxu0 0.0
      %7758 = vmatprep.subr.mxu0 0.0
      %7759 = vmatpush1.msra.mxu0 0.0
      %7760 = vmatprep.subr.mxu0 0.0
      %7761 = vmatpush1.msra.mxu0 0.0
      %7762 = vmatprep.subr.mxu0 0.0
      %7763 = vmatpush1.msra.mxu0 0.0
      %7764 = vmatprep.subr.mxu0 0.0
      %7765 = vmatpush1.msra.mxu0 0.0
      %7766 = vmatprep.subr.mxu0 0.0
      %7767 = vmatpush1.msra.mxu0 0.0
      %7768 = vmatprep.subr.mxu0 0.0
      %7769 = vmatpush1.msra.mxu0 0.0
      %7770 = vmatprep.subr.mxu0 0.0
      %7771 = vmatpush1.msra.mxu0 0.0
      %7772 = vmatprep.subr.mxu0 0.0
      %7773 = vmatpush1.msra.mxu0 0.0
      %7774 = vmatprep.subr.mxu0 0.0
      %7775 = vmatpush1.msra.mxu0 0.0
      %7776 = vmatprep.subr.mxu0 0.0
      %7777 = vmatpush1.msra.mxu0 0.0
      %7778 = vmatprep.subr.mxu0 0.0
      %7779 = vmatpush1.msra.mxu0 0.0
      %7780 = vmatprep.subr.mxu0 0.0
      %7781 = vmatpush1.msra.mxu0 0.0
      %7782 = vmatprep.subr.mxu0 0.0
      %7783 = vmatpush1.msra.mxu0 0.0
      %7784 = vmatprep.subr.mxu0 0.0
      %7785 = vmatpush1.msra.mxu0 0.0
      %7786 = vmatprep.subr.mxu0 0.0
      %7787 = vmatpush1.msra.mxu0 0.0
      %7788 = vmatprep.subr.mxu0 0.0
      %7789 = vmatpush1.msra.mxu0 0.0
      %7790 = vmatprep.subr.mxu0 0.0
      %7791 = vmatpush1.msra.mxu0 0.0
      %7792 = vmatprep.subr.mxu0 0.0
      %7793 = vmatpush1.msra.mxu0 0.0
      %7794 = vmatprep.subr.mxu0 0.0
      %7795 = vmatpush1.msra.mxu0 0.0
      %7796 = vmatprep.subr.mxu0 0.0
      %7797 = vmatpush1.msra.mxu0 0.0
      %7798 = vmatprep.subr.mxu0 0.0
      %7799 = vmatpush1.msra.mxu0 0.0
      %7800 = vmatprep.subr.mxu0 0.0
      %7801 = vmatpush1.msra.mxu0 0.0
      %7802 = vmatprep.subr.mxu0 0.0
      %7803 = vmatpush1.msra.mxu0 0.0
      %7804 = vmatprep.subr.mxu0 0.0
      %7805 = vmatpush1.msra.mxu0 0.0
      %7806 = vmatprep.subr.mxu0 0.0
      %7807 = vmatpush1.msra.mxu0 0.0
      %7808 = vmatprep.subr.mxu0 0.0
      %7809 = vmatpush1.msra.mxu0 0.0
      %7810 = vmatprep.subr.mxu0 0.0
      %7811 = vmatpush1.msra.mxu0 0.0
      %7812 = vmatprep.subr.mxu0 0.0
      %7813 = vmatpush1.msra.mxu0 0.0
      %7814 = vmatprep.subr.mxu0 0.0
      %7815 = vmatpush1.msra.mxu0 0.0
      %7816 = vmatprep.mubr.f32.mxu0 0.0
      %7817 = vmatmul.mubr.f32.gmra.mrb[0].mxu0 %v7657
      %v7818 = vpop.f32.mrb[0].mxu0
      %v7819 = vadd.f32 %v7655, %v7818
      %v7820 = vpop.f32.mrb[0].mxu0
      %7821 = vmatprep.mubr.f32.mxu0 0.0
      %7822 = vmatmul.mubr.f32.gmra.mrb[0].mxu0 %v7660
      %v7823 = vpop.f32.mrb[0].mxu0
      %v7824 = vadd.f32 %v7655, %v7823
      %v7825 = vpop.f32.mrb[0].mxu0
      %7826 = vmatprep.mubr.f32.mxu0 0.0
      %7827 = vmatmul.mubr.f32.gmra.mrb[0].mxu0 %v7663
      %v7828 = vpop.f32.mrb[0].mxu0
      %v7829 = vadd.f32 %v7655, %v7828
      %v7830 = vpop.f32.mrb[0].mxu0
      %7831 = vmatprep.mubr.f32.mxu0 0.0
      %7832 = vmatmul.mubr.f32.gmra.mrb[0].mxu0 %v7666
      %v7833 = vpop.f32.mrb[0].mxu0
      %v7834 = vadd.f32 %v7655, %v7833
      %v7835 = vpop.f32.mrb[0].mxu0
      %7836 = vmatprep.mubr.f32.mxu0 0.0
      %7837 = vmatmul.mubr.f32.gmra.mrb[0].mxu0 %v7669
      %v7838 = vpop.f32.mrb[0].mxu0
      %v7839 = vadd.f32 %v7655, %v7838
      %v7840 = vpop.f32.mrb[0].mxu0
      %7841 = vmatprep.mubr.f32.mxu0 0.0
      %7842 = vmatmul.mubr.f32.gmra.mrb[0].mxu0 %v7672
      %v7843 = vpop.f32.mrb[0].mxu0
      %v7844 = vadd.f32 %v7655, %v7843
      %v7845 = vpop.f32.mrb[0].mxu0
      %7846 = vmatprep.mubr.f32.mxu0 0.0
      %7847 = vmatmul.mubr.f32.gmra.mrb[0].mxu0 %v7675
      %v7848 = vpop.f32.mrb[0].mxu0
      %v7849 = vadd.f32 %v7655, %v7848
      %v7850 = vpop.f32.mrb[0].mxu0
      %7851 = vmatprep.mubr.f32.mxu0 0.0
      %7852 = vmatmul.mubr.f32.gmra.mrb[0].mxu0 %v7678
      %v7853 = vpop.f32.mrb[0].mxu0
      %v7854 = vadd.f32 %v7655, %v7853
      %v7855 = vpop.f32.mrb[0].mxu0
      %7856 = vmatprep.mubr.f32.mxu0 0.0
      %7857 = vmatmul.mubr.f32.gmra.mrb[0].mxu0 %v7681
      %v7858 = vpop.f32.mrb[0].mxu0
      %v7859 = vadd.f32 %v7655, %v7858
      %v7860 = vpop.f32.mrb[0].mxu0
      %7861 = vmatprep.mubr.f32.mxu0 0.0
      %7862 = vmatmul.mubr.f32.gmra.mrb[0].mxu0 %v7684
      %v7863 = vpop.f32.mrb[0].mxu0
      %v7864 = vadd.f32 %v7655, %v7863
      %v7865 = vpop.f32.mrb[0].mxu0
      %7866 = vmatprep.mubr.f32.mxu0 0.0
      %7867 = vmatmul.mubr.f32.gmra.mrb[0].mxu0 %v7687
      %v7868 = vpop.f32.mrb[0].mxu0
      %v7869 = vadd.f32 %v7655, %v7868
      %v7870 = vpop.f32.mrb[0].mxu0
      %7871 = vmatprep.mubr.f32.mxu0 0.0
      %7872 = vmatmul.mubr.f32.gmra.mrb[0].mxu0 %v7690
      %v7873 = vpop.f32.mrb[0].mxu0
      %v7874 = vadd.f32 %v7655, %v7873
      %v7875 = vpop.f32.mrb[0].mxu0
      %7876 = vmatprep.mubr.f32.mxu0 0.0
      %7877 = vmatmul.mubr.f32.gmra.mrb[0].mxu0 %v7693
      %v7878 = vpop.f32.mrb[0].mxu0
      %v7879 = vadd.f32 %v7655, %v7878
      %v7880 = vpop.f32.mrb[0].mxu0
      %7881 = vmatprep.mubr.f32.mxu0 0.0
      %7882 = vmatmul.mubr.f32.gmra.mrb[0].mxu0 %v7696
      %v7883 = vpop.f32.mrb[0].mxu0
      %v7884 = vadd.f32 %v7655, %v7883
      %v7885 = vpop.f32.mrb[0].mxu0
      %7886 = vmatprep.mubr.f32.mxu0 0.0
      %7887 = vmatmul.mubr.f32.gmra.mrb[0].mxu0 %v7699
      %v7888 = vpop.f32.mrb[0].mxu0
      %v7889 = vadd.f32 %v7655, %v7888
      %v7890 = vpop.f32.mrb[0].mxu0
      %7891 = vmatprep.mubr.f32.mxu0 0.0
      %7892 = vmatmul.mubr.f32.gmra.mrb[0].mxu0 %v7702
      %v7893 = vpop.f32.mrb[0].mxu0
      %v7894 = vadd.f32 %v7655, %v7893
      %v7895 = vpop.f32.mrb[0].mxu0
      %7896 = vmatprep.mubr.f32.mxu0 0.0
      %7897 = vmatmul.mubr.f32.gmra.mrb[0].mxu0 %v7705
      %v7898 = vpop.f32.mrb[0].mxu0
      %v7899 = vadd.f32 %v7655, %v7898
      %v7900 = vpop.f32.mrb[0].mxu0
      %7901 = vmatprep.mubr.f32.mxu0 0.0
      %7902 = vmatmul.mubr.f32.gmra.mrb[0].mxu0 %v7708
      %v7903 = vpop.f32.mrb[0].mxu0
      %v7904 = vadd.f32 %v7655, %v7903
      %v7905 = vpop.f32.mrb[0].mxu0
      %7906 = vmatprep.mubr.f32.mxu0 0.0
      %7907 = vmatmul.mubr.f32.gmra.mrb[0].mxu0 %v7711
      %v7908 = vpop.f32.mrb[0].mxu0
      %v7909 = vadd.f32 %v7655, %v7908
      %v7910 = vpop.f32.mrb[0].mxu0
      %7911 = vmatprep.mubr.f32.mxu0 0.0
      %7912 = vmatmul.mubr.f32.gmra.mrb[0].mxu0 %v7714
      %v7913 = vpop.f32.mrb[0].mxu0
      %v7914 = vadd.f32 %v7655, %v7913
      %v7915 = vpop.f32.mrb[0].mxu0
      %7916 = vmatprep.mubr.f32.mxu0 0.0
      %7917 = vmatmul.mubr.f32.gmra.mrb[0].mxu0 %v7717
      %v7918 = vpop.f32.mrb[0].mxu0
      %v7919 = vadd.f32 %v7655, %v7918
      %v7920 = vpop.f32.mrb[0].mxu0
      %7921 = vmatprep.mubr.f32.mxu0 0.0
      %7922 = vmatmul.mubr.f32.gmra.mrb[0].mxu0 %v7720
      %v7923 = vpop.f32.mrb[0].mxu0
      %v7924 = vadd.f32 %v7655, %v7923
      %v7925 = vpop.f32.mrb[0].mxu0
      %7926 = vmatprep.mubr.f32.mxu0 0.0
      %7927 = vmatmul.mubr.f32.gmra.mrb[0].mxu0 %v7723
      %v7928 = vpop.f32.mrb[0].mxu0
      %v7929 = vadd.f32 %v7655, %v7928
      %v7930 = vpop.f32.mrb[0].mxu0
      %7931 = vmatprep.mubr.f32.mxu0 0.0
      %7932 = vmatmul.mubr.f32.gmra.mrb[0].mxu0 %v7726
      %v7933 = vpop.f32.mrb[0].mxu0
      %v7934 = vadd.f32 %v7655, %v7933
      %v7935 = vpop.f32.mrb[0].mxu0
      %7936 = vmatprep.mubr.f32.mxu0 0.0
      %7937 = vmatmul.mubr.f32.gmra.mrb[0].mxu0 %v7729
      %v7938 = vpop.f32.mrb[0].mxu0
      %v7939 = vadd.f32 %v7655, %v7938
      %v7940 = vpop.f32.mrb[0].mxu0
      %7941 = vmatprep.mubr.f32.mxu0 0.0
      %7942 = vmatmul.mubr.f32.gmra.mrb[0].mxu0 %v7732
      %v7943 = vpop.f32.mrb[0].mxu0
      %v7944 = vadd.f32 %v7655, %v7943
      %v7945 = vpop.f32.mrb[0].mxu0
      %7946 = vmatprep.mubr.f32.mxu0 0.0
      %7947 = vmatmul.mubr.f32.gmra.mrb[0].mxu0 %v7735
      %v7948 = vpop.f32.mrb[0].mxu0
      %v7949 = vadd.f32 %v7655, %v7948
      %v7950 = vpop.f32.mrb[0].mxu0
      %7951 = vmatprep.mubr.f32.mxu0 0.0
      %7952 = vmatmul.mubr.f32.gmra.mrb[0].mxu0 %v7738
      %v7953 = vpop.f32.mrb[0].mxu0
      %v7954 = vadd.f32 %v7655, %v7953
      %v7955 = vpop.f32.mrb[0].mxu0
      %7956 = vmatprep.mubr.f32.mxu0 0.0
      %7957 = vmatmul.mubr.f32.gmra.mrb[0].mxu0 %v7741
      %v7958 = vpop.f32.mrb[0].mxu0
      %v7959 = vadd.f32 %v7655, %v7958
      %v7960 = vpop.f32.mrb[0].mxu0
      %7961 = vmatprep.mubr.f32.mxu0 0.0
      %7962 = vmatmul.mubr.f32.gmra.mrb[0].mxu0 %v7744
      %v7963 = vpop.f32.mrb[0].mxu0
      %v7964 = vadd.f32 %v7655, %v7963
      %v7965 = vpop.f32.mrb[0].mxu0
      %7966 = vmatprep.mubr.f32.mxu0 0.0
      %7967 = vmatmul.mubr.f32.gmra.mrb[0].mxu0 %v7747
      %v7968 = vpop.f32.mrb[0].mxu0
      %v7969 = vadd.f32 %v7655, %v7968
      %v7970 = vpop.f32.mrb[0].mxu0
      %7971 = vmatprep.mubr.f32.mxu0 0.0
      %7972 = vmatmul.mubr.f32.gmra.mrb[0].mxu0 %v7750
      %v7973 = vpop.f32.mrb[0].mxu0
      %v7974 = vadd.f32 %v7655, %v7973
      %v7975 = vpop.f32.mrb[0].mxu0
      %7976 = vdwg.mxu0
      %v7977 = vmax.f32 %v7819, 0.0
      %v7978 = vmax.f32 %v7824, 0.0
      %v7979 = vmax.f32 %v7829, 0.0
      %v7980 = vmax.f32 %v7834, 0.0
      %v7981 = vmax.f32 %v7839, 0.0
      %v7982 = vmax.f32 %v7844, 0.0
      %v7983 = vmax.f32 %v7849, 0.0
      %v7984 = vmax.f32 %v7854, 0.0
      %v7985 = vmax.f32 %v7859, 0.0
      %v7986 = vmax.f32 %v7864, 0.0
      %v7987 = vmax.f32 %v7869, 0.0
      %v7988 = vmax.f32 %v7874, 0.0
      %v7989 = vmax.f32 %v7879, 0.0
      %v7990 = vmax.f32 %v7884, 0.0
      %v7991 = vmax.f32 %v7889, 0.0
      %v7992 = vmax.f32 %v7894, 0.0
      %v7993 = vmax.f32 %v7899, 0.0
      %v7994 = vmax.f32 %v7904, 0.0
      %v7995 = vmax.f32 %v7909, 0.0
      %v7996 = vmax.f32 %v7914, 0.0
      %v7997 = vmax.f32 %v7919, 0.0
      %v7998 = vmax.f32 %v7924, 0.0
      %v7999 = vmax.f32 %v7929, 0.0
      %v8000 = vmax.f32 %v7934, 0.0
      %v8001 = vmax.f32 %v7939, 0.0
      %v8002 = vmax.f32 %v7944, 0.0
      %v8003 = vmax.f32 %v7949, 0.0
      %v8004 = vmax.f32 %v7954, 0.0
      %v8005 = vmax.f32 %v7959, 0.0
      %v8006 = vmax.f32 %v7964, 0.0
      %v8007 = vmax.f32 %v7969, 0.0
      %v8008 = vmax.f32 %v7974, 0.0
      %v8009 = vld [vmem:[%s1 + $0x120] sm:$0xff]
      %v8010 = vld [vmem:[%s1 + $0x128] sm:$0xff]
      %v8011 = vld [vmem:[%s1 + $0x130] sm:$0x1]
      %v8012 = vlaneseq
      %v8013 = vshrl.u32 %v8012, 7
      %v8014 = vsub.s32 0, %v8013
      %v8015 = vrot.slane %v8011, %v8014
      %v8017 = vsel %vm1989, %v7977, 0
      %v8020 = vsel %vm1989, %v7978, 0
      %v8023 = vsel %vm1989, %v7979, 0
      %v8026 = vsel %vm1989, %v7980, 0
      %v8029 = vsel %vm1989, %v7981, 0
      %v8032 = vsel %vm1989, %v7982, 0
      %v8035 = vsel %vm1989, %v7983, 0
      %v8038 = vsel %vm1989, %v7984, 0
      %v8041 = vsel %vm1989, %v7985, 0
      %v8044 = vsel %vm1989, %v7986, 0
      %v8047 = vsel %vm1989, %v7987, 0
      %v8050 = vsel %vm1989, %v7988, 0
      %v8053 = vsel %vm1989, %v7989, 0
      %v8056 = vsel %vm1989, %v7990, 0
      %v8059 = vsel %vm1989, %v7991, 0
      %v8062 = vsel %vm1989, %v7992, 0
      %v8065 = vsel %vm1989, %v7993, 0
      %v8068 = vsel %vm1989, %v7994, 0
      %v8071 = vsel %vm1989, %v7995, 0
      %v8074 = vsel %vm1989, %v7996, 0
      %v8077 = vsel %vm1989, %v7997, 0
      %v8080 = vsel %vm1989, %v7998, 0
      %v8083 = vsel %vm1989, %v7999, 0
      %v8086 = vsel %vm1989, %v8000, 0
      %v8089 = vsel %vm1989, %v8001, 0
      %v8092 = vsel %vm1989, %v8002, 0
      %v8095 = vsel %vm1989, %v8003, 0
      %v8098 = vsel %vm1989, %v8004, 0
      %v8101 = vsel %vm1989, %v8005, 0
      %v8104 = vsel %vm1989, %v8006, 0
      %v8107 = vsel %vm1989, %v8007, 0
      %v8110 = vsel %vm1989, %v8008, 0
      %8112 = vmatprep.subr.mxu0 0.0
      %8113 = vmatpush1.msra.mxu0 %v8009
      %8114 = vmatprep.subr.mxu0 0.0
      %8115 = vmatpush1.msra.mxu0 %v8010
      %8116 = vmatprep.subr.mxu0 0.0
      %8117 = vmatpush1.msra.mxu0 0.0
      %8118 = vmatprep.subr.mxu0 0.0
      %8119 = vmatpush1.msra.mxu0 0.0
      %8120 = vmatprep.subr.mxu0 0.0
      %8121 = vmatpush1.msra.mxu0 0.0
      %8122 = vmatprep.subr.mxu0 0.0
      %8123 = vmatpush1.msra.mxu0 0.0
      %8124 = vmatprep.subr.mxu0 0.0
      %8125 = vmatpush1.msra.mxu0 0.0
      %8126 = vmatprep.subr.mxu0 0.0
      %8127 = vmatpush1.msra.mxu0 0.0
      %8128 = vmatprep.subr.mxu0 0.0
      %8129 = vmatpush1.msra.mxu0 0.0
      %8130 = vmatprep.subr.mxu0 0.0
      %8131 = vmatpush1.msra.mxu0 0.0
      %8132 = vmatprep.subr.mxu0 0.0
      %8133 = vmatpush1.msra.mxu0 0.0
      %8134 = vmatprep.subr.mxu0 0.0
      %8135 = vmatpush1.msra.mxu0 0.0
      %8136 = vmatprep.subr.mxu0 0.0
      %8137 = vmatpush1.msra.mxu0 0.0
      %8138 = vmatprep.subr.mxu0 0.0
      %8139 = vmatpush1.msra.mxu0 0.0
      %8140 = vmatprep.subr.mxu0 0.0
      %8141 = vmatpush1.msra.mxu0 0.0
      %8142 = vmatprep.subr.mxu0 0.0
      %8143 = vmatpush1.msra.mxu0 0.0
      %8144 = vmatprep.subr.mxu0 0.0
      %8145 = vmatpush1.msra.mxu0 0.0
      %8146 = vmatprep.subr.mxu0 0.0
      %8147 = vmatpush1.msra.mxu0 0.0
      %8148 = vmatprep.subr.mxu0 0.0
      %8149 = vmatpush1.msra.mxu0 0.0
      %8150 = vmatprep.subr.mxu0 0.0
      %8151 = vmatpush1.msra.mxu0 0.0
      %8152 = vmatprep.subr.mxu0 0.0
      %8153 = vmatpush1.msra.mxu0 0.0
      %8154 = vmatprep.subr.mxu0 0.0
      %8155 = vmatpush1.msra.mxu0 0.0
      %8156 = vmatprep.subr.mxu0 0.0
      %8157 = vmatpush1.msra.mxu0 0.0
      %8158 = vmatprep.subr.mxu0 0.0
      %8159 = vmatpush1.msra.mxu0 0.0
      %8160 = vmatprep.subr.mxu0 0.0
      %8161 = vmatpush1.msra.mxu0 0.0
      %8162 = vmatprep.subr.mxu0 0.0
      %8163 = vmatpush1.msra.mxu0 0.0
      %8164 = vmatprep.subr.mxu0 0.0
      %8165 = vmatpush1.msra.mxu0 0.0
      %8166 = vmatprep.subr.mxu0 0.0
      %8167 = vmatpush1.msra.mxu0 0.0
      %8168 = vmatprep.subr.mxu0 0.0
      %8169 = vmatpush1.msra.mxu0 0.0
      %8170 = vmatprep.subr.mxu0 0.0
      %8171 = vmatpush1.msra.mxu0 0.0
      %8172 = vmatprep.subr.mxu0 0.0
      %8173 = vmatpush1.msra.mxu0 0.0
      %8174 = vmatprep.subr.mxu0 0.0
      %8175 = vmatpush1.msra.mxu0 0.0
      %8176 = vmatprep.mubr.f32.mxu0 0.0
      %8177 = vmatmul.mubr.f32.gmra.mrb[0].mxu0 %v8017
      %v8178 = vpop.f32.mrb[0].mxu0
      %v8179 = vadd.f32 %v8015, %v8178
      %v8180 = vpop.f32.mrb[0].mxu0
      %8181 = vmatprep.mubr.f32.mxu0 0.0
      %8182 = vmatmul.mubr.f32.gmra.mrb[0].mxu0 %v8020
      %v8183 = vpop.f32.mrb[0].mxu0
      %v8184 = vadd.f32 %v8015, %v8183
      %v8185 = vpop.f32.mrb[0].mxu0
      %8186 = vmatprep.mubr.f32.mxu0 0.0
      %8187 = vmatmul.mubr.f32.gmra.mrb[0].mxu0 %v8023
      %v8188 = vpop.f32.mrb[0].mxu0
      %v8189 = vadd.f32 %v8015, %v8188
      %v8190 = vpop.f32.mrb[0].mxu0
      %8191 = vmatprep.mubr.f32.mxu0 0.0
      %8192 = vmatmul.mubr.f32.gmra.mrb[0].mxu0 %v8026
      %v8193 = vpop.f32.mrb[0].mxu0
      %v8194 = vadd.f32 %v8015, %v8193
      %v8195 = vpop.f32.mrb[0].mxu0
      %8196 = vmatprep.mubr.f32.mxu0 0.0
      %8197 = vmatmul.mubr.f32.gmra.mrb[0].mxu0 %v8029
      %v8198 = vpop.f32.mrb[0].mxu0
      %v8199 = vadd.f32 %v8015, %v8198
      %v8200 = vpop.f32.mrb[0].mxu0
      %8201 = vmatprep.mubr.f32.mxu0 0.0
      %8202 = vmatmul.mubr.f32.gmra.mrb[0].mxu0 %v8032
      %v8203 = vpop.f32.mrb[0].mxu0
      %v8204 = vadd.f32 %v8015, %v8203
      %v8205 = vpop.f32.mrb[0].mxu0
      %8206 = vmatprep.mubr.f32.mxu0 0.0
      %8207 = vmatmul.mubr.f32.gmra.mrb[0].mxu0 %v8035
      %v8208 = vpop.f32.mrb[0].mxu0
      %v8209 = vadd.f32 %v8015, %v8208
      %v8210 = vpop.f32.mrb[0].mxu0
      %8211 = vmatprep.mubr.f32.mxu0 0.0
      %8212 = vmatmul.mubr.f32.gmra.mrb[0].mxu0 %v8038
      %v8213 = vpop.f32.mrb[0].mxu0
      %v8214 = vadd.f32 %v8015, %v8213
      %v8215 = vpop.f32.mrb[0].mxu0
      %8216 = vmatprep.mubr.f32.mxu0 0.0
      %8217 = vmatmul.mubr.f32.gmra.mrb[0].mxu0 %v8041
      %v8218 = vpop.f32.mrb[0].mxu0
      %v8219 = vadd.f32 %v8015, %v8218
      %v8220 = vpop.f32.mrb[0].mxu0
      %8221 = vmatprep.mubr.f32.mxu0 0.0
      %8222 = vmatmul.mubr.f32.gmra.mrb[0].mxu0 %v8044
      %v8223 = vpop.f32.mrb[0].mxu0
      %v8224 = vadd.f32 %v8015, %v8223
      %v8225 = vpop.f32.mrb[0].mxu0
      %8226 = vmatprep.mubr.f32.mxu0 0.0
      %8227 = vmatmul.mubr.f32.gmra.mrb[0].mxu0 %v8047
      %v8228 = vpop.f32.mrb[0].mxu0
      %v8229 = vadd.f32 %v8015, %v8228
      %v8230 = vpop.f32.mrb[0].mxu0
      %8231 = vmatprep.mubr.f32.mxu0 0.0
      %8232 = vmatmul.mubr.f32.gmra.mrb[0].mxu0 %v8050
      %v8233 = vpop.f32.mrb[0].mxu0
      %v8234 = vadd.f32 %v8015, %v8233
      %v8235 = vpop.f32.mrb[0].mxu0
      %8236 = vmatprep.mubr.f32.mxu0 0.0
      %8237 = vmatmul.mubr.f32.gmra.mrb[0].mxu0 %v8053
      %v8238 = vpop.f32.mrb[0].mxu0
      %v8239 = vadd.f32 %v8015, %v8238
      %v8240 = vpop.f32.mrb[0].mxu0
      %8241 = vmatprep.mubr.f32.mxu0 0.0
      %8242 = vmatmul.mubr.f32.gmra.mrb[0].mxu0 %v8056
      %v8243 = vpop.f32.mrb[0].mxu0
      %v8244 = vadd.f32 %v8015, %v8243
      %v8245 = vpop.f32.mrb[0].mxu0
      %8246 = vmatprep.mubr.f32.mxu0 0.0
      %8247 = vmatmul.mubr.f32.gmra.mrb[0].mxu0 %v8059
      %v8248 = vpop.f32.mrb[0].mxu0
      %v8249 = vadd.f32 %v8015, %v8248
      %v8250 = vpop.f32.mrb[0].mxu0
      %8251 = vmatprep.mubr.f32.mxu0 0.0
      %8252 = vmatmul.mubr.f32.gmra.mrb[0].mxu0 %v8062
      %v8253 = vpop.f32.mrb[0].mxu0
      %v8254 = vadd.f32 %v8015, %v8253
      %v8255 = vpop.f32.mrb[0].mxu0
      %8256 = vmatprep.mubr.f32.mxu0 0.0
      %8257 = vmatmul.mubr.f32.gmra.mrb[0].mxu0 %v8065
      %v8258 = vpop.f32.mrb[0].mxu0
      %v8259 = vadd.f32 %v8015, %v8258
      %v8260 = vpop.f32.mrb[0].mxu0
      %8261 = vmatprep.mubr.f32.mxu0 0.0
      %8262 = vmatmul.mubr.f32.gmra.mrb[0].mxu0 %v8068
      %v8263 = vpop.f32.mrb[0].mxu0
      %v8264 = vadd.f32 %v8015, %v8263
      %v8265 = vpop.f32.mrb[0].mxu0
      %8266 = vmatprep.mubr.f32.mxu0 0.0
      %8267 = vmatmul.mubr.f32.gmra.mrb[0].mxu0 %v8071
      %v8268 = vpop.f32.mrb[0].mxu0
      %v8269 = vadd.f32 %v8015, %v8268
      %v8270 = vpop.f32.mrb[0].mxu0
      %8271 = vmatprep.mubr.f32.mxu0 0.0
      %8272 = vmatmul.mubr.f32.gmra.mrb[0].mxu0 %v8074
      %v8273 = vpop.f32.mrb[0].mxu0
      %v8274 = vadd.f32 %v8015, %v8273
      %v8275 = vpop.f32.mrb[0].mxu0
      %8276 = vmatprep.mubr.f32.mxu0 0.0
      %8277 = vmatmul.mubr.f32.gmra.mrb[0].mxu0 %v8077
      %v8278 = vpop.f32.mrb[0].mxu0
      %v8279 = vadd.f32 %v8015, %v8278
      %v8280 = vpop.f32.mrb[0].mxu0
      %8281 = vmatprep.mubr.f32.mxu0 0.0
      %8282 = vmatmul.mubr.f32.gmra.mrb[0].mxu0 %v8080
      %v8283 = vpop.f32.mrb[0].mxu0
      %v8284 = vadd.f32 %v8015, %v8283
      %v8285 = vpop.f32.mrb[0].mxu0
      %8286 = vmatprep.mubr.f32.mxu0 0.0
      %8287 = vmatmul.mubr.f32.gmra.mrb[0].mxu0 %v8083
      %v8288 = vpop.f32.mrb[0].mxu0
      %v8289 = vadd.f32 %v8015, %v8288
      %v8290 = vpop.f32.mrb[0].mxu0
      %8291 = vmatprep.mubr.f32.mxu0 0.0
      %8292 = vmatmul.mubr.f32.gmra.mrb[0].mxu0 %v8086
      %v8293 = vpop.f32.mrb[0].mxu0
      %v8294 = vadd.f32 %v8015, %v8293
      %v8295 = vpop.f32.mrb[0].mxu0
      %8296 = vmatprep.mubr.f32.mxu0 0.0
      %8297 = vmatmul.mubr.f32.gmra.mrb[0].mxu0 %v8089
      %v8298 = vpop.f32.mrb[0].mxu0
      %v8299 = vadd.f32 %v8015, %v8298
      %v8300 = vpop.f32.mrb[0].mxu0
      %8301 = vmatprep.mubr.f32.mxu0 0.0
      %8302 = vmatmul.mubr.f32.gmra.mrb[0].mxu0 %v8092
      %v8303 = vpop.f32.mrb[0].mxu0
      %v8304 = vadd.f32 %v8015, %v8303
      %v8305 = vpop.f32.mrb[0].mxu0
      %8306 = vmatprep.mubr.f32.mxu0 0.0
      %8307 = vmatmul.mubr.f32.gmra.mrb[0].mxu0 %v8095
      %v8308 = vpop.f32.mrb[0].mxu0
      %v8309 = vadd.f32 %v8015, %v8308
      %v8310 = vpop.f32.mrb[0].mxu0
      %8311 = vmatprep.mubr.f32.mxu0 0.0
      %8312 = vmatmul.mubr.f32.gmra.mrb[0].mxu0 %v8098
      %v8313 = vpop.f32.mrb[0].mxu0
      %v8314 = vadd.f32 %v8015, %v8313
      %v8315 = vpop.f32.mrb[0].mxu0
      %8316 = vmatprep.mubr.f32.mxu0 0.0
      %8317 = vmatmul.mubr.f32.gmra.mrb[0].mxu0 %v8101
      %v8318 = vpop.f32.mrb[0].mxu0
      %v8319 = vadd.f32 %v8015, %v8318
      %v8320 = vpop.f32.mrb[0].mxu0
      %8321 = vmatprep.mubr.f32.mxu0 0.0
      %8322 = vmatmul.mubr.f32.gmra.mrb[0].mxu0 %v8104
      %v8323 = vpop.f32.mrb[0].mxu0
      %v8324 = vadd.f32 %v8015, %v8323
      %v8325 = vpop.f32.mrb[0].mxu0
      %8326 = vmatprep.mubr.f32.mxu0 0.0
      %8327 = vmatmul.mubr.f32.gmra.mrb[0].mxu0 %v8107
      %v8328 = vpop.f32.mrb[0].mxu0
      %v8329 = vadd.f32 %v8015, %v8328
      %v8330 = vpop.f32.mrb[0].mxu0
      %8331 = vmatprep.mubr.f32.mxu0 0.0
      %8332 = vmatmul.mubr.f32.gmra.mrb[0].mxu0 %v8110
      %v8333 = vpop.f32.mrb[0].mxu0
      %v8334 = vadd.f32 %v8015, %v8333
      %v8335 = vpop.f32.mrb[0].mxu0
      %8336 = vdwg.mxu0
      %8337 = vrot.lane.b32.xlu0 %v2513, 1
      %v8338 = vpop.permute.xlu0 %8337
      %8339 = vrot.lane.b32.xlu0 %v2518, 1
      %v8340 = vpop.permute.xlu0 %8339
      %8341 = vrot.lane.b32.xlu0 %v2523, 1
      %v8342 = vpop.permute.xlu0 %8341
      %8343 = vrot.lane.b32.xlu0 %v2528, 1
      %v8344 = vpop.permute.xlu0 %8343
      %8345 = vrot.lane.b32.xlu0 %v2533, 1
      %v8346 = vpop.permute.xlu0 %8345
      %8347 = vrot.lane.b32.xlu0 %v2538, 1
      %v8348 = vpop.permute.xlu0 %8347
      %8349 = vrot.lane.b32.xlu0 %v2543, 1
      %v8350 = vpop.permute.xlu0 %8349
      %8351 = vrot.lane.b32.xlu0 %v2548, 1
      %v8352 = vpop.permute.xlu0 %8351
      %8353 = vrot.lane.b32.xlu0 %v2553, 1
      %v8354 = vpop.permute.xlu0 %8353
      %8355 = vrot.lane.b32.xlu0 %v2558, 1
      %v8356 = vpop.permute.xlu0 %8355
      %8357 = vrot.lane.b32.xlu0 %v2563, 1
      %v8358 = vpop.permute.xlu0 %8357
      %8359 = vrot.lane.b32.xlu0 %v2568, 1
      %v8360 = vpop.permute.xlu0 %8359
      %8361 = vrot.lane.b32.xlu0 %v2573, 1
      %v8362 = vpop.permute.xlu0 %8361
      %8363 = vrot.lane.b32.xlu0 %v2578, 1
      %v8364 = vpop.permute.xlu0 %8363
      %8365 = vrot.lane.b32.xlu0 %v2583, 1
      %v8366 = vpop.permute.xlu0 %8365
      %8367 = vrot.lane.b32.xlu0 %v2588, 1
      %v8368 = vpop.permute.xlu0 %8367
      %8369 = vrot.lane.b32.xlu0 %v2593, 1
      %v8370 = vpop.permute.xlu0 %8369
      %8371 = vrot.lane.b32.xlu0 %v2598, 1
      %v8372 = vpop.permute.xlu0 %8371
      %8373 = vrot.lane.b32.xlu0 %v2603, 1
      %v8374 = vpop.permute.xlu0 %8373
      %8375 = vrot.lane.b32.xlu0 %v2608, 1
      %v8376 = vpop.permute.xlu0 %8375
      %8377 = vrot.lane.b32.xlu0 %v2613, 1
      %v8378 = vpop.permute.xlu0 %8377
      %8379 = vrot.lane.b32.xlu0 %v2618, 1
      %v8380 = vpop.permute.xlu0 %8379
      %8381 = vrot.lane.b32.xlu0 %v2623, 1
      %v8382 = vpop.permute.xlu0 %8381
      %8383 = vrot.lane.b32.xlu0 %v2628, 1
      %v8384 = vpop.permute.xlu0 %8383
      %8385 = vrot.lane.b32.xlu0 %v2633, 1
      %v8386 = vpop.permute.xlu0 %8385
      %8387 = vrot.lane.b32.xlu0 %v2638, 1
      %v8388 = vpop.permute.xlu0 %8387
      %8389 = vrot.lane.b32.xlu0 %v2643, 1
      %v8390 = vpop.permute.xlu0 %8389
      %8391 = vrot.lane.b32.xlu0 %v2648, 1
      %v8392 = vpop.permute.xlu0 %8391
      %8393 = vrot.lane.b32.xlu0 %v2653, 1
      %v8394 = vpop.permute.xlu0 %8393
      %8395 = vrot.lane.b32.xlu0 %v2658, 1
      %v8396 = vpop.permute.xlu0 %8395
      %8397 = vrot.lane.b32.xlu0 %v2663, 1
      %v8398 = vpop.permute.xlu0 %8397
      %8399 = vrot.lane.b32.xlu0 %v2668, 1
      %v8400 = vpop.permute.xlu0 %8399
      %v8433 = vmul.f32 %v1558, %v8338
      %v8434 = vmul.f32 %v1559, %v8340
      %v8435 = vmul.f32 %v1560, %v8342
      %v8436 = vmul.f32 %v1561, %v8344
      %v8437 = vmul.f32 %v1562, %v8346
      %v8438 = vmul.f32 %v1563, %v8348
      %v8439 = vmul.f32 %v1564, %v8350
      %v8440 = vmul.f32 %v1565, %v8352
      %v8441 = vmul.f32 %v1566, %v8354
      %v8442 = vmul.f32 %v1567, %v8356
      %v8443 = vmul.f32 %v1568, %v8358
      %v8444 = vmul.f32 %v1569, %v8360
      %v8445 = vmul.f32 %v1570, %v8362
      %v8446 = vmul.f32 %v1571, %v8364
      %v8447 = vmul.f32 %v1572, %v8366
      %v8448 = vmul.f32 %v1573, %v8368
      %v8449 = vmul.f32 %v1574, %v8370
      %v8450 = vmul.f32 %v1575, %v8372
      %v8451 = vmul.f32 %v1576, %v8374
      %v8452 = vmul.f32 %v1577, %v8376
      %v8453 = vmul.f32 %v1578, %v8378
      %v8454 = vmul.f32 %v1579, %v8380
      %v8455 = vmul.f32 %v1580, %v8382
      %v8456 = vmul.f32 %v1581, %v8384
      %v8457 = vmul.f32 %v1582, %v8386
      %v8458 = vmul.f32 %v1583, %v8388
      %v8459 = vmul.f32 %v1584, %v8390
      %v8460 = vmul.f32 %v1585, %v8392
      %v8461 = vmul.f32 %v1586, %v8394
      %v8462 = vmul.f32 %v1587, %v8396
      %v8463 = vmul.f32 %v1588, %v8398
      %v8464 = vmul.f32 %v1589, %v8400
      %8497 = vrot.lane.b32.xlu0 %v8433, 127
      %v8498 = vpop.permute.xlu0 %8497
      %8499 = vrot.lane.b32.xlu0 %v8434, 127
      %v8500 = vpop.permute.xlu0 %8499
      %8501 = vrot.lane.b32.xlu0 %v8435, 127
      %v8502 = vpop.permute.xlu0 %8501
      %8503 = vrot.lane.b32.xlu0 %v8436, 127
      %v8504 = vpop.permute.xlu0 %8503
      %8505 = vrot.lane.b32.xlu0 %v8437, 127
      %v8506 = vpop.permute.xlu0 %8505
      %8507 = vrot.lane.b32.xlu0 %v8438, 127
      %v8508 = vpop.permute.xlu0 %8507
      %8509 = vrot.lane.b32.xlu0 %v8439, 127
      %v8510 = vpop.permute.xlu0 %8509
      %8511 = vrot.lane.b32.xlu0 %v8440, 127
      %v8512 = vpop.permute.xlu0 %8511
      %8513 = vrot.lane.b32.xlu0 %v8441, 127
      %v8514 = vpop.permute.xlu0 %8513
      %8515 = vrot.lane.b32.xlu0 %v8442, 127
      %v8516 = vpop.permute.xlu0 %8515
      %8517 = vrot.lane.b32.xlu0 %v8443, 127
      %v8518 = vpop.permute.xlu0 %8517
      %8519 = vrot.lane.b32.xlu0 %v8444, 127
      %v8520 = vpop.permute.xlu0 %8519
      %8521 = vrot.lane.b32.xlu0 %v8445, 127
      %v8522 = vpop.permute.xlu0 %8521
      %8523 = vrot.lane.b32.xlu0 %v8446, 127
      %v8524 = vpop.permute.xlu0 %8523
      %8525 = vrot.lane.b32.xlu0 %v8447, 127
      %v8526 = vpop.permute.xlu0 %8525
      %8527 = vrot.lane.b32.xlu0 %v8448, 127
      %v8528 = vpop.permute.xlu0 %8527
      %8529 = vrot.lane.b32.xlu0 %v8449, 127
      %v8530 = vpop.permute.xlu0 %8529
      %8531 = vrot.lane.b32.xlu0 %v8450, 127
      %v8532 = vpop.permute.xlu0 %8531
      %8533 = vrot.lane.b32.xlu0 %v8451, 127
      %v8534 = vpop.permute.xlu0 %8533
      %8535 = vrot.lane.b32.xlu0 %v8452, 127
      %v8536 = vpop.permute.xlu0 %8535
      %8537 = vrot.lane.b32.xlu0 %v8453, 127
      %v8538 = vpop.permute.xlu0 %8537
      %8539 = vrot.lane.b32.xlu0 %v8454, 127
      %v8540 = vpop.permute.xlu0 %8539
      %8541 = vrot.lane.b32.xlu0 %v8455, 127
      %v8542 = vpop.permute.xlu0 %8541
      %8543 = vrot.lane.b32.xlu0 %v8456, 127
      %v8544 = vpop.permute.xlu0 %8543
      %8545 = vrot.lane.b32.xlu0 %v8457, 127
      %v8546 = vpop.permute.xlu0 %8545
      %8547 = vrot.lane.b32.xlu0 %v8458, 127
      %v8548 = vpop.permute.xlu0 %8547
      %8549 = vrot.lane.b32.xlu0 %v8459, 127
      %v8550 = vpop.permute.xlu0 %8549
      %8551 = vrot.lane.b32.xlu0 %v8460, 127
      %v8552 = vpop.permute.xlu0 %8551
      %8553 = vrot.lane.b32.xlu0 %v8461, 127
      %v8554 = vpop.permute.xlu0 %8553
      %8555 = vrot.lane.b32.xlu0 %v8462, 127
      %v8556 = vpop.permute.xlu0 %8555
      %8557 = vrot.lane.b32.xlu0 %v8463, 127
      %v8558 = vpop.permute.xlu0 %8557
      %8559 = vrot.lane.b32.xlu0 %v8464, 127
      %v8560 = vpop.permute.xlu0 %8559
      %vm8593 = vcmask 7168
      %8594 = vst.msk [vmem:[%s145] sm:$0xff] %vm8593, %v8498
      %8595 = vst.msk [vmem:[%s145 + $0x8] sm:$0xff] %vm8593, %v8500
      %8596 = vst.msk [vmem:[%s145 + $0x10] sm:$0xff] %vm8593, %v8502
      %8597 = vst.msk [vmem:[%s145 + $0x18] sm:$0xff] %vm8593, %v8504
      %8598 = vst.msk [vmem:[%s145 + $0x20] sm:$0xff] %vm8593, %v8506
      %8599 = vst.msk [vmem:[%s145 + $0x28] sm:$0xff] %vm8593, %v8508
      %8600 = vst.msk [vmem:[%s145 + $0x30] sm:$0xff] %vm8593, %v8510
      %8601 = vst.msk [vmem:[%s145 + $0x38] sm:$0xff] %vm8593, %v8512
      %8602 = vst.msk [vmem:[%s145 + $0x40] sm:$0xff] %vm8593, %v8514
      %8603 = vst.msk [vmem:[%s145 + $0x48] sm:$0xff] %vm8593, %v8516
      %8604 = vst.msk [vmem:[%s145 + $0x50] sm:$0xff] %vm8593, %v8518
      %8605 = vst.msk [vmem:[%s145 + $0x58] sm:$0xff] %vm8593, %v8520
      %8606 = vst.msk [vmem:[%s145 + $0x60] sm:$0xff] %vm8593, %v8522
      %8607 = vst.msk [vmem:[%s145 + $0x68] sm:$0xff] %vm8593, %v8524
      %8608 = vst.msk [vmem:[%s145 + $0x70] sm:$0xff] %vm8593, %v8526
      %8609 = vst.msk [vmem:[%s145 + $0x78] sm:$0xff] %vm8593, %v8528
      %8610 = vst.msk [vmem:[%s145 + $0x80] sm:$0xff] %vm8593, %v8530
      %8611 = vst.msk [vmem:[%s145 + $0x88] sm:$0xff] %vm8593, %v8532
      %8612 = vst.msk [vmem:[%s145 + $0x90] sm:$0xff] %vm8593, %v8534
      %8613 = vst.msk [vmem:[%s145 + $0x98] sm:$0xff] %vm8593, %v8536
      %8614 = vst.msk [vmem:[%s145 + $0xa0] sm:$0xff] %vm8593, %v8538
      %8615 = vst.msk [vmem:[%s145 + $0xa8] sm:$0xff] %vm8593, %v8540
      %8616 = vst.msk [vmem:[%s145 + $0xb0] sm:$0xff] %vm8593, %v8542
      %8617 = vst.msk [vmem:[%s145 + $0xb8] sm:$0xff] %vm8593, %v8544
      %8618 = vst.msk [vmem:[%s145 + $0xc0] sm:$0xff] %vm8593, %v8546
      %8619 = vst.msk [vmem:[%s145 + $0xc8] sm:$0xff] %vm8593, %v8548
      %8620 = vst.msk [vmem:[%s145 + $0xd0] sm:$0xff] %vm8593, %v8550
      %8621 = vst.msk [vmem:[%s145 + $0xd8] sm:$0xff] %vm8593, %v8552
      %8622 = vst.msk [vmem:[%s145 + $0xe0] sm:$0xff] %vm8593, %v8554
      %8623 = vst.msk [vmem:[%s145 + $0xe8] sm:$0xff] %vm8593, %v8556
      %8624 = vst.msk [vmem:[%s145 + $0xf0] sm:$0xff] %vm8593, %v8558
      %8625 = vst.msk [vmem:[%s145 + $0xf8] sm:$0xff] %vm8593, %v8560
      %8627 = vset.pattern.permute.xlu0 1
      %8628 = vperm.xlu0 %8627, %v1558
      %v8629 = vpop.permute.xlu0 %8628
      %8632 = vset.pattern.permute.xlu0 1
      %8633 = vperm.xlu0 %8632, %v1559
      %v8634 = vpop.permute.xlu0 %8633
      %8637 = vset.pattern.permute.xlu0 1
      %8638 = vperm.xlu0 %8637, %v1560
      %v8639 = vpop.permute.xlu0 %8638
      %8642 = vset.pattern.permute.xlu0 1
      %8643 = vperm.xlu0 %8642, %v1561
      %v8644 = vpop.permute.xlu0 %8643
      %8647 = vset.pattern.permute.xlu0 1
      %8648 = vperm.xlu0 %8647, %v1562
      %v8649 = vpop.permute.xlu0 %8648
      %8652 = vset.pattern.permute.xlu0 1
      %8653 = vperm.xlu0 %8652, %v1563
      %v8654 = vpop.permute.xlu0 %8653
      %8657 = vset.pattern.permute.xlu0 1
      %8658 = vperm.xlu0 %8657, %v1564
      %v8659 = vpop.permute.xlu0 %8658
      %8662 = vset.pattern.permute.xlu0 1
      %8663 = vperm.xlu0 %8662, %v1565
      %v8664 = vpop.permute.xlu0 %8663
      %8667 = vset.pattern.permute.xlu0 1
      %8668 = vperm.xlu0 %8667, %v1566
      %v8669 = vpop.permute.xlu0 %8668
      %8672 = vset.pattern.permute.xlu0 1
      %8673 = vperm.xlu0 %8672, %v1567
      %v8674 = vpop.permute.xlu0 %8673
      %8677 = vset.pattern.permute.xlu0 1
      %8678 = vperm.xlu0 %8677, %v1568
      %v8679 = vpop.permute.xlu0 %8678
      %8682 = vset.pattern.permute.xlu0 1
      %8683 = vperm.xlu0 %8682, %v1569
      %v8684 = vpop.permute.xlu0 %8683
      %8687 = vset.pattern.permute.xlu0 1
      %8688 = vperm.xlu0 %8687, %v1570
      %v8689 = vpop.permute.xlu0 %8688
      %8692 = vset.pattern.permute.xlu0 1
      %8693 = vperm.xlu0 %8692, %v1571
      %v8694 = vpop.permute.xlu0 %8693
      %8697 = vset.pattern.permute.xlu0 1
      %8698 = vperm.xlu0 %8697, %v1572
      %v8699 = vpop.permute.xlu0 %8698
      %8702 = vset.pattern.permute.xlu0 1
      %8703 = vperm.xlu0 %8702, %v1573
      %v8704 = vpop.permute.xlu0 %8703
      %8707 = vset.pattern.permute.xlu0 1
      %8708 = vperm.xlu0 %8707, %v1574
      %v8709 = vpop.permute.xlu0 %8708
      %8712 = vset.pattern.permute.xlu0 1
      %8713 = vperm.xlu0 %8712, %v1575
      %v8714 = vpop.permute.xlu0 %8713
      %8717 = vset.pattern.permute.xlu0 1
      %8718 = vperm.xlu0 %8717, %v1576
      %v8719 = vpop.permute.xlu0 %8718
      %8722 = vset.pattern.permute.xlu0 1
      %8723 = vperm.xlu0 %8722, %v1577
      %v8724 = vpop.permute.xlu0 %8723
      %8727 = vset.pattern.permute.xlu0 1
      %8728 = vperm.xlu0 %8727, %v1578
      %v8729 = vpop.permute.xlu0 %8728
      %8732 = vset.pattern.permute.xlu0 1
      %8733 = vperm.xlu0 %8732, %v1579
      %v8734 = vpop.permute.xlu0 %8733
      %8737 = vset.pattern.permute.xlu0 1
      %8738 = vperm.xlu0 %8737, %v1580
      %v8739 = vpop.permute.xlu0 %8738
      %8742 = vset.pattern.permute.xlu0 1
      %8743 = vperm.xlu0 %8742, %v1581
      %v8744 = vpop.permute.xlu0 %8743
      %8747 = vset.pattern.permute.xlu0 1
      %8748 = vperm.xlu0 %8747, %v1582
      %v8749 = vpop.permute.xlu0 %8748
      %8752 = vset.pattern.permute.xlu0 1
      %8753 = vperm.xlu0 %8752, %v1583
      %v8754 = vpop.permute.xlu0 %8753
      %8757 = vset.pattern.permute.xlu0 1
      %8758 = vperm.xlu0 %8757, %v1584
      %v8759 = vpop.permute.xlu0 %8758
      %8762 = vset.pattern.permute.xlu0 1
      %8763 = vperm.xlu0 %8762, %v1585
      %v8764 = vpop.permute.xlu0 %8763
      %8767 = vset.pattern.permute.xlu0 1
      %8768 = vperm.xlu0 %8767, %v1586
      %v8769 = vpop.permute.xlu0 %8768
      %8772 = vset.pattern.permute.xlu0 1
      %8773 = vperm.xlu0 %8772, %v1587
      %v8774 = vpop.permute.xlu0 %8773
      %8777 = vset.pattern.permute.xlu0 1
      %8778 = vperm.xlu0 %8777, %v1588
      %v8779 = vpop.permute.xlu0 %8778
      %8782 = vset.pattern.permute.xlu0 1
      %8783 = vperm.xlu0 %8782, %v1589
      %v8784 = vpop.permute.xlu0 %8783
      %v8786 = vmul.f32 %v8629, %v8179
      %v8787 = vmul.f32 %v8634, %v8184
      %v8788 = vmul.f32 %v8639, %v8189
      %v8789 = vmul.f32 %v8644, %v8194
      %v8790 = vmul.f32 %v8649, %v8199
      %v8791 = vmul.f32 %v8654, %v8204
      %v8792 = vmul.f32 %v8659, %v8209
      %v8793 = vmul.f32 %v8664, %v8214
      %v8794 = vmul.f32 %v8669, %v8219
      %v8795 = vmul.f32 %v8674, %v8224
      %v8796 = vmul.f32 %v8679, %v8229
      %v8797 = vmul.f32 %v8684, %v8234
      %v8798 = vmul.f32 %v8689, %v8239
      %v8799 = vmul.f32 %v8694, %v8244
      %v8800 = vmul.f32 %v8699, %v8249
      %v8801 = vmul.f32 %v8704, %v8254
      %v8802 = vmul.f32 %v8709, %v8259
      %v8803 = vmul.f32 %v8714, %v8264
      %v8804 = vmul.f32 %v8719, %v8269
      %v8805 = vmul.f32 %v8724, %v8274
      %v8806 = vmul.f32 %v8729, %v8279
      %v8807 = vmul.f32 %v8734, %v8284
      %v8808 = vmul.f32 %v8739, %v8289
      %v8809 = vmul.f32 %v8744, %v8294
      %v8810 = vmul.f32 %v8749, %v8299
      %v8811 = vmul.f32 %v8754, %v8304
      %v8812 = vmul.f32 %v8759, %v8309
      %v8813 = vmul.f32 %v8764, %v8314
      %v8814 = vmul.f32 %v8769, %v8319
      %v8815 = vmul.f32 %v8774, %v8324
      %v8816 = vmul.f32 %v8779, %v8329
      %v8817 = vmul.f32 %v8784, %v8334
      %8850 = vrot.lane.b32.xlu0 %v8786, 1
      %v8851 = vpop.permute.xlu0 %8850
      %8852 = vrot.lane.b32.xlu0 %v8787, 1
      %v8853 = vpop.permute.xlu0 %8852
      %8854 = vrot.lane.b32.xlu0 %v8788, 1
      %v8855 = vpop.permute.xlu0 %8854
      %8856 = vrot.lane.b32.xlu0 %v8789, 1
      %v8857 = vpop.permute.xlu0 %8856
      %8858 = vrot.lane.b32.xlu0 %v8790, 1
      %v8859 = vpop.permute.xlu0 %8858
      %8860 = vrot.lane.b32.xlu0 %v8791, 1
      %v8861 = vpop.permute.xlu0 %8860
      %8862 = vrot.lane.b32.xlu0 %v8792, 1
      %v8863 = vpop.permute.xlu0 %8862
      %8864 = vrot.lane.b32.xlu0 %v8793, 1
      %v8865 = vpop.permute.xlu0 %8864
      %8866 = vrot.lane.b32.xlu0 %v8794, 1
      %v8867 = vpop.permute.xlu0 %8866
      %8868 = vrot.lane.b32.xlu0 %v8795, 1
      %v8869 = vpop.permute.xlu0 %8868
      %8870 = vrot.lane.b32.xlu0 %v8796, 1
      %v8871 = vpop.permute.xlu0 %8870
      %8872 = vrot.lane.b32.xlu0 %v8797, 1
      %v8873 = vpop.permute.xlu0 %8872
      %8874 = vrot.lane.b32.xlu0 %v8798, 1
      %v8875 = vpop.permute.xlu0 %8874
      %8876 = vrot.lane.b32.xlu0 %v8799, 1
      %v8877 = vpop.permute.xlu0 %8876
      %8878 = vrot.lane.b32.xlu0 %v8800, 1
      %v8879 = vpop.permute.xlu0 %8878
      %8880 = vrot.lane.b32.xlu0 %v8801, 1
      %v8881 = vpop.permute.xlu0 %8880
      %8882 = vrot.lane.b32.xlu0 %v8802, 1
      %v8883 = vpop.permute.xlu0 %8882
      %8884 = vrot.lane.b32.xlu0 %v8803, 1
      %v8885 = vpop.permute.xlu0 %8884
      %8886 = vrot.lane.b32.xlu0 %v8804, 1
      %v8887 = vpop.permute.xlu0 %8886
      %8888 = vrot.lane.b32.xlu0 %v8805, 1
      %v8889 = vpop.permute.xlu0 %8888
      %8890 = vrot.lane.b32.xlu0 %v8806, 1
      %v8891 = vpop.permute.xlu0 %8890
      %8892 = vrot.lane.b32.xlu0 %v8807, 1
      %v8893 = vpop.permute.xlu0 %8892
      %8894 = vrot.lane.b32.xlu0 %v8808, 1
      %v8895 = vpop.permute.xlu0 %8894
      %8896 = vrot.lane.b32.xlu0 %v8809, 1
      %v8897 = vpop.permute.xlu0 %8896
      %8898 = vrot.lane.b32.xlu0 %v8810, 1
      %v8899 = vpop.permute.xlu0 %8898
      %8900 = vrot.lane.b32.xlu0 %v8811, 1
      %v8901 = vpop.permute.xlu0 %8900
      %8902 = vrot.lane.b32.xlu0 %v8812, 1
      %v8903 = vpop.permute.xlu0 %8902
      %8904 = vrot.lane.b32.xlu0 %v8813, 1
      %v8905 = vpop.permute.xlu0 %8904
      %8906 = vrot.lane.b32.xlu0 %v8814, 1
      %v8907 = vpop.permute.xlu0 %8906
      %8908 = vrot.lane.b32.xlu0 %v8815, 1
      %v8909 = vpop.permute.xlu0 %8908
      %8910 = vrot.lane.b32.xlu0 %v8816, 1
      %v8911 = vpop.permute.xlu0 %8910
      %8912 = vrot.lane.b32.xlu0 %v8817, 1
      %v8913 = vpop.permute.xlu0 %8912
      %vm8946 = vcmask 31752
      %8947 = vst.msk [vmem:[%s145] sm:$0xff] %vm8946, %v8851
      %8948 = vst.msk [vmem:[%s145 + $0x8] sm:$0xff] %vm8946, %v8853
      %8949 = vst.msk [vmem:[%s145 + $0x10] sm:$0xff] %vm8946, %v8855
      %8950 = vst.msk [vmem:[%s145 + $0x18] sm:$0xff] %vm8946, %v8857
      %8951 = vst.msk [vmem:[%s145 + $0x20] sm:$0xff] %vm8946, %v8859
      %8952 = vst.msk [vmem:[%s145 + $0x28] sm:$0xff] %vm8946, %v8861
      %8953 = vst.msk [vmem:[%s145 + $0x30] sm:$0xff] %vm8946, %v8863
      %8954 = vst.msk [vmem:[%s145 + $0x38] sm:$0xff] %vm8946, %v8865
      %8955 = vst.msk [vmem:[%s145 + $0x40] sm:$0xff] %vm8946, %v8867
      %8956 = vst.msk [vmem:[%s145 + $0x48] sm:$0xff] %vm8946, %v8869
      %8957 = vst.msk [vmem:[%s145 + $0x50] sm:$0xff] %vm8946, %v8871
      %8958 = vst.msk [vmem:[%s145 + $0x58] sm:$0xff] %vm8946, %v8873
      %8959 = vst.msk [vmem:[%s145 + $0x60] sm:$0xff] %vm8946, %v8875
      %8960 = vst.msk [vmem:[%s145 + $0x68] sm:$0xff] %vm8946, %v8877
      %8961 = vst.msk [vmem:[%s145 + $0x70] sm:$0xff] %vm8946, %v8879
      %8962 = vst.msk [vmem:[%s145 + $0x78] sm:$0xff] %vm8946, %v8881
      %8963 = vst.msk [vmem:[%s145 + $0x80] sm:$0xff] %vm8946, %v8883
      %8964 = vst.msk [vmem:[%s145 + $0x88] sm:$0xff] %vm8946, %v8885
      %8965 = vst.msk [vmem:[%s145 + $0x90] sm:$0xff] %vm8946, %v8887
      %8966 = vst.msk [vmem:[%s145 + $0x98] sm:$0xff] %vm8946, %v8889
      %8967 = vst.msk [vmem:[%s145 + $0xa0] sm:$0xff] %vm8946, %v8891
      %8968 = vst.msk [vmem:[%s145 + $0xa8] sm:$0xff] %vm8946, %v8893
      %8969 = vst.msk [vmem:[%s145 + $0xb0] sm:$0xff] %vm8946, %v8895
      %8970 = vst.msk [vmem:[%s145 + $0xb8] sm:$0xff] %vm8946, %v8897
      %8971 = vst.msk [vmem:[%s145 + $0xc0] sm:$0xff] %vm8946, %v8899
      %8972 = vst.msk [vmem:[%s145 + $0xc8] sm:$0xff] %vm8946, %v8901
      %8973 = vst.msk [vmem:[%s145 + $0xd0] sm:$0xff] %vm8946, %v8903
      %8974 = vst.msk [vmem:[%s145 + $0xd8] sm:$0xff] %vm8946, %v8905
      %8975 = vst.msk [vmem:[%s145 + $0xe0] sm:$0xff] %vm8946, %v8907
      %8976 = vst.msk [vmem:[%s145 + $0xe8] sm:$0xff] %vm8946, %v8909
      %8977 = vst.msk [vmem:[%s145 + $0xf0] sm:$0xff] %vm8946, %v8911
      %8978 = vst.msk [vmem:[%s145 + $0xf8] sm:$0xff] %vm8946, %v8913
      %8979 = vrot.lane.b32.xlu0 %v1558, 4
      %v8980 = vpop.permute.xlu0 %8979
      %8981 = vrot.lane.b32.xlu0 %v1559, 4
      %v8982 = vpop.permute.xlu0 %8981
      %8983 = vrot.lane.b32.xlu0 %v1560, 4
      %v8984 = vpop.permute.xlu0 %8983
      %8985 = vrot.lane.b32.xlu0 %v1561, 4
      %v8986 = vpop.permute.xlu0 %8985
      %8987 = vrot.lane.b32.xlu0 %v1562, 4
      %v8988 = vpop.permute.xlu0 %8987
      %8989 = vrot.lane.b32.xlu0 %v1563, 4
      %v8990 = vpop.permute.xlu0 %8989
      %8991 = vrot.lane.b32.xlu0 %v1564, 4
      %v8992 = vpop.permute.xlu0 %8991
      %8993 = vrot.lane.b32.xlu0 %v1565, 4
      %v8994 = vpop.permute.xlu0 %8993
      %8995 = vrot.lane.b32.xlu0 %v1566, 4
      %v8996 = vpop.permute.xlu0 %8995
      %8997 = vrot.lane.b32.xlu0 %v1567, 4
      %v8998 = vpop.permute.xlu0 %8997
      %8999 = vrot.lane.b32.xlu0 %v1568, 4
      %v9000 = vpop.permute.xlu0 %8999
      %9001 = vrot.lane.b32.xlu0 %v1569, 4
      %v9002 = vpop.permute.xlu0 %9001
      %9003 = vrot.lane.b32.xlu0 %v1570, 4
      %v9004 = vpop.permute.xlu0 %9003
      %9005 = vrot.lane.b32.xlu0 %v1571, 4
      %v9006 = vpop.permute.xlu0 %9005
      %9007 = vrot.lane.b32.xlu0 %v1572, 4
      %v9008 = vpop.permute.xlu0 %9007
      %9009 = vrot.lane.b32.xlu0 %v1573, 4
      %v9010 = vpop.permute.xlu0 %9009
      %9011 = vrot.lane.b32.xlu0 %v1574, 4
      %v9012 = vpop.permute.xlu0 %9011
      %9013 = vrot.lane.b32.xlu0 %v1575, 4
      %v9014 = vpop.permute.xlu0 %9013
      %9015 = vrot.lane.b32.xlu0 %v1576, 4
      %v9016 = vpop.permute.xlu0 %9015
      %9017 = vrot.lane.b32.xlu0 %v1577, 4
      %v9018 = vpop.permute.xlu0 %9017
      %9019 = vrot.lane.b32.xlu0 %v1578, 4
      %v9020 = vpop.permute.xlu0 %9019
      %9021 = vrot.lane.b32.xlu0 %v1579, 4
      %v9022 = vpop.permute.xlu0 %9021
      %9023 = vrot.lane.b32.xlu0 %v1580, 4
      %v9024 = vpop.permute.xlu0 %9023
      %9025 = vrot.lane.b32.xlu0 %v1581, 4
      %v9026 = vpop.permute.xlu0 %9025
      %9027 = vrot.lane.b32.xlu0 %v1582, 4
      %v9028 = vpop.permute.xlu0 %9027
      %9029 = vrot.lane.b32.xlu0 %v1583, 4
      %v9030 = vpop.permute.xlu0 %9029
      %9031 = vrot.lane.b32.xlu0 %v1584, 4
      %v9032 = vpop.permute.xlu0 %9031
      %9033 = vrot.lane.b32.xlu0 %v1585, 4
      %v9034 = vpop.permute.xlu0 %9033
      %9035 = vrot.lane.b32.xlu0 %v1586, 4
      %v9036 = vpop.permute.xlu0 %9035
      %9037 = vrot.lane.b32.xlu0 %v1587, 4
      %v9038 = vpop.permute.xlu0 %9037
      %9039 = vrot.lane.b32.xlu0 %v1588, 4
      %v9040 = vpop.permute.xlu0 %9039
      %9041 = vrot.lane.b32.xlu0 %v1589, 4
      %v9042 = vpop.permute.xlu0 %9041
      %vm9075 = vcmask 64544
      %9076 = vst.msk [vmem:[%s145] sm:$0xff] %vm9075, %v8980
      %9077 = vst.msk [vmem:[%s145 + $0x8] sm:$0xff] %vm9075, %v8982
      %9078 = vst.msk [vmem:[%s145 + $0x10] sm:$0xff] %vm9075, %v8984
      %9079 = vst.msk [vmem:[%s145 + $0x18] sm:$0xff] %vm9075, %v8986
      %9080 = vst.msk [vmem:[%s145 + $0x20] sm:$0xff] %vm9075, %v8988
      %9081 = vst.msk [vmem:[%s145 + $0x28] sm:$0xff] %vm9075, %v8990
      %9082 = vst.msk [vmem:[%s145 + $0x30] sm:$0xff] %vm9075, %v8992
      %9083 = vst.msk [vmem:[%s145 + $0x38] sm:$0xff] %vm9075, %v8994
      %9084 = vst.msk [vmem:[%s145 + $0x40] sm:$0xff] %vm9075, %v8996
      %9085 = vst.msk [vmem:[%s145 + $0x48] sm:$0xff] %vm9075, %v8998
      %9086 = vst.msk [vmem:[%s145 + $0x50] sm:$0xff] %vm9075, %v9000
      %9087 = vst.msk [vmem:[%s145 + $0x58] sm:$0xff] %vm9075, %v9002
      %9088 = vst.msk [vmem:[%s145 + $0x60] sm:$0xff] %vm9075, %v9004
      %9089 = vst.msk [vmem:[%s145 + $0x68] sm:$0xff] %vm9075, %v9006
      %9090 = vst.msk [vmem:[%s145 + $0x70] sm:$0xff] %vm9075, %v9008
      %9091 = vst.msk [vmem:[%s145 + $0x78] sm:$0xff] %vm9075, %v9010
      %9092 = vst.msk [vmem:[%s145 + $0x80] sm:$0xff] %vm9075, %v9012
      %9093 = vst.msk [vmem:[%s145 + $0x88] sm:$0xff] %vm9075, %v9014
      %9094 = vst.msk [vmem:[%s145 + $0x90] sm:$0xff] %vm9075, %v9016
      %9095 = vst.msk [vmem:[%s145 + $0x98] sm:$0xff] %vm9075, %v9018
      %9096 = vst.msk [vmem:[%s145 + $0xa0] sm:$0xff] %vm9075, %v9020
      %9097 = vst.msk [vmem:[%s145 + $0xa8] sm:$0xff] %vm9075, %v9022
      %9098 = vst.msk [vmem:[%s145 + $0xb0] sm:$0xff] %vm9075, %v9024
      %9099 = vst.msk [vmem:[%s145 + $0xb8] sm:$0xff] %vm9075, %v9026
      %9100 = vst.msk [vmem:[%s145 + $0xc0] sm:$0xff] %vm9075, %v9028
      %9101 = vst.msk [vmem:[%s145 + $0xc8] sm:$0xff] %vm9075, %v9030
      %9102 = vst.msk [vmem:[%s145 + $0xd0] sm:$0xff] %vm9075, %v9032
      %9103 = vst.msk [vmem:[%s145 + $0xd8] sm:$0xff] %vm9075, %v9034
      %9104 = vst.msk [vmem:[%s145 + $0xe0] sm:$0xff] %vm9075, %v9036
      %9105 = vst.msk [vmem:[%s145 + $0xe8] sm:$0xff] %vm9075, %v9038
      %9106 = vst.msk [vmem:[%s145 + $0xf0] sm:$0xff] %vm9075, %v9040
      %9107 = vst.msk [vmem:[%s145 + $0xf8] sm:$0xff] %vm9075, %v9042
      %s9108 = smul.u32 32, %s13
      %p9109 = scmp.lt.s32.totalorder %s9108, 127
      %s9110 = scalar_select %p9109, %s9108, 127
      %s9111 = smul.addr %s9110, 8
      %s9112 = scalar_lea.vmem %s2, %s9111
      // Predicated region
      $region29: #{prior_modules_forward.1} parent=27 // pred_check
        %p9113 = pneg %p78
      $region30: #{prior_modules_forward.1} parent=27 // pred_check_branch
        %9115 = sbr.rel (%p9113) target = $region32
      $region31: #{prior_modules_forward.1} parent=27 // pred_region
        %s9116 = smul.u32 32, %s13
      $region32: #{prior_modules_forward.1} parent=27 // pred_fallthru
        _
    $region28: #{prior_modules_forward.1} parent=5 // pred_fallthru
      _
    %p9117 = scmp.le.s32.totalorder 2, %s8
    // Predicated region
    $region33: #{prior_modules_forward.1} parent=5 // pred_check
      %p9118 = pneg %p9117
    $region34: #{prior_modules_forward.1} parent=5 // pred_check_branch
      %9120 = sbr.rel (%p9118) target = $region36
    $region35: #{prior_modules_forward.1} parent=5 // pred_region
      %s9121 = ssub.s32 %s8, 2
      // Predicated region
      $region37: #{prior_modules_forward.1} parent=35 // pred_check
        %p9122 = pneg %p84
      $region38: #{prior_modules_forward.1} parent=35 // pred_check_branch
        %9124 = sbr.rel (%p9122) target = $region40
      $region39: #{prior_modules_forward.1} parent=35 // pred_region
        %s9125 = smul.u32 32, %s14
        %p9126 = scmp.lt.s32.totalorder %s9125, 127
        %s9127 = scalar_select %p9126, %s9125, 127
        %s9128 = smul.addr %s9127, 8
        %s9129 = scalar_lea.vmem %s2, %s9128
      $region40: #{prior_modules_forward.1} parent=35 // pred_fallthru
        _
    $region36: #{prior_modules_forward.1} parent=5 // pred_fallthru
      _
  $region6: #{prior_modules_forward.1} parent=0 // loop_footer
    %s12 = sadd.s32 1, %s8
  $region7: #{prior_modules_forward.1} parent=0 // loop_footer_branch
    %7 = sbr.rel target = $region3
  $region8: #{prior_modules_forward.1} parent=0 // loop_exit
    _

</llo_original>
